<compile_context>
chip_gen: v7x
topology: tpu7x:2x2x1
jax: 0.10.0
libtpu: 0.0.40
codegen_flags: <defaults>
</compile_context>

<pallas_src>
import math
import jax
import jax.numpy as jnp
from jax.experimental import pallas as pl
from jax.experimental.pallas import tpu as pltpu

# --- config (GPTConfig) ---
BLOCK_SIZE = 512
VOCAB = 1024
N_LAYER = 3
N_HEAD = 3
N_EMBD = 48
D_IN = 5
LN_EPS = 1e-5
NEG_INF = -1e30
VMEM_LIMIT = 48 * 1024 * 1024


def _layernorm(x, gamma, beta):
    mu = jnp.mean(x, axis=-1, keepdims=True)
    var = jnp.mean((x - mu) ** 2, axis=-1, keepdims=True)
    return (x - mu) * jax.lax.rsqrt(var + LN_EPS) * gamma + beta


# --------------------- fused whole-network kernel ----------------------------
def gpt_kernel(x_ref,
               g1_ref, b1_ref,
               wq_ref, wk_ref, wv_ref, bq_ref, bk_ref, bv_ref,
               wpr_ref, bpr_ref,
               g2_ref, b2_ref, wfc_ref, bfc_ref, wp2_ref, bp2_ref,
               gf_ref, bf_ref, wlm_ref,
               o_ref):
    Bt, T, C = x_ref.shape
    H = N_HEAD
    hd = C // H
    N = Bt * T
    scale = 1.0 / math.sqrt(hd)
    f32 = jnp.float32

    # Residual stream for this batch chunk stays VMEM/vreg-resident across layers.
    x2 = x_ref[...].reshape(N, C)

    if N_LAYER > 1:
        row = jax.lax.broadcasted_iota(jnp.int32, (T, T), 0)
        col = jax.lax.broadcasted_iota(jnp.int32, (T, T), 1)
        causal = (col <= row)[None]            # (1, T, T) -> broadcast over H*Bt

    def head_proj(xn_h, w_ref, b_ref, l):
        # (H, n, C) x (H, C, hd) -> (H, n, hd): head-batched MXU contraction,
        # head-batched layout comes straight out of the matmul (no relayouts).
        return jnp.einsum('hnc,hcd->hnd', xn_h, w_ref[l],
                          preferred_element_type=f32) + b_ref[l]

    # ---------------- layers 0 .. L-2 : full sequence ----------------
    for l in range(N_LAYER - 1):               # static unroll over layers
        xn = _layernorm(x2, g1_ref[l], b1_ref[l])                 # (N, C)
        xn_h = jnp.broadcast_to(xn[None], (H, N, C))               # cheap leading bcast
        q = head_proj(xn_h, wq_ref, bq_ref, l) * scale             # (H, N, hd)
        k = head_proj(xn_h, wk_ref, bk_ref, l)
        v = head_proj(xn_h, wv_ref, bv_ref, l)
        q3 = q.reshape(H * Bt, T, hd)          # leading-dim regroup (n = h*Bt + b)
        k3 = k.reshape(H * Bt, T, hd)
        v3 = v.reshape(H * Bt, T, hd)

        s = jnp.einsum('nqd,nkd->nqk', q3, k3,
                       preferred_element_type=f32)                 # (H*Bt, T, T)
        s = jnp.where(causal, s, NEG_INF)
        p = jnp.exp(s - jnp.max(s, axis=-1, keepdims=True))
        pv = jnp.einsum('nqk,nkd->nqd', p, v3,
                        preferred_element_type=f32)                # (H*Bt, T, hd)
        # normalize the small PV output; approx reciprocal runs on the EUP slot
        pv = pv * pl.reciprocal(jnp.sum(p, axis=-1, keepdims=True), approx=True)

        pvh = pv.reshape(H, N, hd)
        y = jnp.einsum('hnd,hdc->hnc', pvh, wpr_ref[l],
                       preferred_element_type=f32).sum(axis=0) + bpr_ref[l]
        x2 = x2 + y

        xn2 = _layernorm(x2, g2_ref[l], b2_ref[l])
        h1 = jnp.tanh(jnp.dot(xn2, wfc_ref[l], preferred_element_type=f32) + bfc_ref[l])
        x2 = x2 + jnp.dot(h1, wp2_ref[l], preferred_element_type=f32) + bp2_ref[l]

    # ------- last layer: K/V over all T tokens, everything else on the last token only -------
    l = N_LAYER - 1
    xn = _layernorm(x2, g1_ref[l], b1_ref[l])                      # (N, C)
    xn_h = jnp.broadcast_to(xn[None], (H, N, C))
    k = head_proj(xn_h, wk_ref, bk_ref, l).reshape(H * Bt, T, hd)
    v = head_proj(xn_h, wv_ref, bv_ref, l).reshape(H * Bt, T, hd)

    xn_last = xn.reshape(Bt, T, C)[:, T - 1, :]                    # (Bt, C)
    q = (jnp.einsum('hbc,hcd->hbd', jnp.broadcast_to(xn_last[None], (H, Bt, C)),
                    wq_ref[l], preferred_element_type=f32) + bq_ref[l]) * scale
    q3 = q.reshape(H * Bt, 1, hd)

    # last query attends to every key -> no causal mask needed
    s = jnp.einsum('nqd,nkd->nqk', q3, k, preferred_element_type=f32)   # (H*Bt, 1, T)
    p = jnp.exp(s - jnp.max(s, axis=-1, keepdims=True))
    pv = jnp.einsum('nqk,nkd->nqd', p, v, preferred_element_type=f32)   # (H*Bt, 1, hd)
    pv = pv * pl.reciprocal(jnp.sum(p, axis=-1, keepdims=True), approx=True)

    pvh = pv.reshape(H, Bt, hd)
    y = jnp.einsum('hbd,hdc->hbc', pvh, wpr_ref[l],
                   preferred_element_type=f32).sum(axis=0) + bpr_ref[l]  # (Bt, C)
    x_last = x2.reshape(Bt, T, C)[:, T - 1, :] + y

    xn2 = _layernorm(x_last, g2_ref[l], b2_ref[l])
    h1 = jnp.tanh(jnp.dot(xn2, wfc_ref[l], preferred_element_type=f32) + bfc_ref[l])
    x_last = x_last + jnp.dot(h1, wp2_ref[l], preferred_element_type=f32) + bp2_ref[l]

    # ---- ln_f + lm_head (last token only; V=1024 -> lane-dense output) ----
    xf = _layernorm(x_last, gf_ref[...], bf_ref[...])
    logits = jnp.dot(xf, wlm_ref[...], preferred_element_type=f32)      # (Bt, V)
    o_ref[...] = logits.reshape(Bt, 1, logits.shape[-1])


def _const_spec(w):
    nd = w.ndim
    return pl.BlockSpec(w.shape, lambda i: (0,) * nd)   # full weight resident every step


def _pick_bt(B, T):
    """Batch elements per grid step.

    Budgeted against an explicit 48 MiB scoped-VMEM limit (safe on v7x's 64 MiB
    physical; v5e/v6e have 128 MiB) and capped at B//2 so the 'parallel' grid
    axis has >= 2 steps for v7x's two TensorCores.  Chooses a divisor of B, so
    B % bt == 0 always holds.
    """
    hd = N_EMBD // N_HEAD
    per_elem = (2 * N_HEAD * T * T          # scores + probabilities (f32)
                + 3 * N_HEAD * T * hd       # q, k, v
                + N_HEAD * T * N_EMBD       # head-broadcast ln_1 activations
                + T * 4 * N_EMBD            # MLP hidden
                + 4 * T * N_EMBD) * 4       # residual / ln / attn-out copies
    fixed = 4 * 1024 * 1024                 # stacked weights, dbl-buffered input, slack
    budget = VMEM_LIMIT - fixed
    cap = max(1, budget // max(per_elem, 1))
    cap = min(cap, max(1, B // 2))          # grid >= 2 steps -> both v7x TCs busy
    bt = 1
    for d in range(1, B + 1):
        if B % d == 0 and d <= cap:
            bt = d
    return bt


def run_gpt(x, w):
    """x: (B, T, C) f32 residual-stream input; w: stacked / head-split weights."""
    B, T, C = x.shape
    V = w['lm_w'].shape[1]
    bt = _pick_bt(B, T)
    assert B % bt == 0, "batch chunk must divide batch size"

    names = ['g1', 'b1', 'wq', 'wk', 'wv', 'bq', 'bk', 'bv', 'wpr', 'bpr',
             'g2', 'b2', 'wfc', 'bfc', 'wp2', 'bp2', 'gf', 'bf', 'lm_w']
    weights = [w[n] for n in names]

    in_specs = [pl.BlockSpec((bt, T, C), lambda i: (i, 0, 0))]
    in_specs += [_const_spec(p) for p in weights]

    return pl.pallas_call(
        gpt_kernel,
        out_shape=jax.ShapeDtypeStruct((B, 1, V), jnp.float32),
        grid=(B // bt,),
        in_specs=in_specs,
        out_specs=pl.BlockSpec((bt, 1, V), lambda i: (i, 0, 0)),
        compiler_params=pltpu.CompilerParams(
            dimension_semantics=("parallel",),         # batch chunks -> 2-TC sharding on v7x
            vmem_limit_bytes=VMEM_LIMIT),
    )(x, *weights)


# ------------------------------ parameter init ------------------------------
def init_params(key):
    keys = iter(jax.random.split(key, 4 + 4 * N_LAYER + 1))
    std = 0.02
    proj_std = 0.02 / math.sqrt(2 * N_LAYER)
    p = {
        'wte_w': jax.random.normal(next(keys), (D_IN - 1, N_EMBD // 2)) * std,
        'wte_b': jnp.zeros((N_EMBD // 2,)),
        'wte2': jax.random.normal(next(keys), (VOCAB, N_EMBD // 2)) * std,
        'wpe': jax.random.normal(next(keys), (BLOCK_SIZE, N_EMBD)) * std,
        'blocks': [],
        'gf': jnp.ones((1, N_EMBD)),
        'bf': jnp.zeros((1, N_EMBD)),
    }
    for _ in range(N_LAYER):
        p['blocks'].append(dict(
            g1=jnp.ones((1, N_EMBD)), b1=jnp.zeros((1, N_EMBD)),
            wqkv=jax.random.normal(next(keys), (N_EMBD, 3 * N_EMBD)) * std,
            bqkv=jnp.zeros((1, 3 * N_EMBD)),
            wpr=jax.random.normal(next(keys), (N_EMBD, N_EMBD)) * proj_std,
            bpr=jnp.zeros((1, N_EMBD)),
            g2=jnp.ones((1, N_EMBD)), b2=jnp.zeros((1, N_EMBD)),
            wfc=jax.random.normal(next(keys), (N_EMBD, 4 * N_EMBD)) * std,
            bfc=jnp.zeros((1, 4 * N_EMBD)),
            wp2=jax.random.normal(next(keys), (4 * N_EMBD, N_EMBD)) * proj_std,
            bp2=jnp.zeros((1, N_EMBD)),
        ))
    p['lm_w'] = jax.random.normal(next(keys), (N_EMBD, VOCAB)) * std
    return jax.tree.map(lambda a: a.astype(jnp.float32), p)


# -------------------------------- forward -----------------------------------
def gpt_forward(idx, params):
    """idx: (B, T, D_IN) float32; last feature holds integer token ids."""
    B, T, _ = idx.shape
    assert T <= BLOCK_SIZE
    # TODO(synk): embedding gathers (wte2 / wpe lookups) and the tiny wte linear
    # stay in plain JAX; data-dependent gathers have no clean BlockSpec form.
    num_feat = idx[:, :, :-1]
    tok_id = idx[:, :, -1].astype(jnp.int32)
    num_emb = num_feat @ params['wte_w'] + params['wte_b']          # (B, T, C/2)
    tok_emb = params['wte2'][tok_id]                                # (B, T, C/2)
    emb = jnp.concatenate([num_emb, tok_emb], axis=-1)              # (B, T, C)
    pos_emb = params['wpe'][jnp.arange(T)]                          # (T, C)
    x = emb + pos_emb[None]                                         # drop = identity (eval)

    # Stack per-layer weights -> (L, ...) and move the head split onto the
    # weights (free trace-time reshapes; the kernel never slices 16-lane heads
    # out of a 144-lane activation).
    C, H, L = N_EMBD, N_HEAD, N_LAYER
    hd = C // H
    stack = lambda k: jnp.stack([blk[k] for blk in params['blocks']], axis=0)

    wqkv = stack('wqkv')                                            # (L, C, 3C)
    bqkv = stack('bqkv')[:, 0, :]                                   # (L, 3C)

    def head_w(ws):      # (L, C, C) -> (L, H, C, hd)
        return ws.reshape(L, C, H, hd).transpose(0, 2, 1, 3)

    def head_b(bs):      # (L, C) -> (L, H, 1, hd)
        return bs.reshape(L, H, hd)[:, :, None, :]

    w = dict(
        g1=stack('g1'), b1=stack('b1'),
        wq=head_w(wqkv[:, :, :C]),
        wk=head_w(wqkv[:, :, C:2 * C]),
        wv=head_w(wqkv[:, :, 2 * C:]),
        bq=head_b(bqkv[:, :C]),
        bk=head_b(bqkv[:, C:2 * C]),
        bv=head_b(bqkv[:, 2 * C:]),
        wpr=stack('wpr').reshape(L, H, hd, C),                      # per-head c_proj
        bpr=stack('bpr'),
        g2=stack('g2'), b2=stack('b2'),
        wfc=stack('wfc'), bfc=stack('bfc'),
        wp2=stack('wp2'), bp2=stack('bp2'),
        gf=params['gf'], bf=params['bf'], lm_w=params['lm_w'],
    )
    return run_gpt(x, w)                                            # (B, 1, vocab)


# --------------------------- pure-JAX reference ------------------------------
def reference_forward(idx, params):
    B, T, _ = idx.shape
    num_emb = idx[:, :, :-1] @ params['wte_w'] + params['wte_b']
    tok_emb = params['wte2'][idx[:, :, -1].astype(jnp.int32)]
    x = jnp.concatenate([num_emb, tok_emb], axis=-1) + params['wpe'][jnp.arange(T)][None]
    hd = N_EMBD // N_HEAD
    causal = jnp.tril(jnp.ones((T, T), dtype=bool))
    for blk in params['blocks']:
        xn = _layernorm(x, blk['g1'], blk['b1'])
        qkv = xn @ blk['wqkv'] + blk['bqkv']
        q, k, v = jnp.split(qkv, 3, axis=-1)
        q = q.reshape(B, T, N_HEAD, hd).transpose(0, 2, 1, 3)
        k = k.reshape(B, T, N_HEAD, hd).transpose(0, 2, 1, 3)
        v = v.reshape(B, T, N_HEAD, hd).transpose(0, 2, 1, 3)
        s = jnp.einsum('bhqd,bhkd->bhqk', q, k) / math.sqrt(hd)
        s = jnp.where(causal[None, None], s, -jnp.inf)
        p = jax.nn.softmax(s, axis=-1)
        y = jnp.einsum('bhqk,bhkd->bhqd', p, v).transpose(0, 2, 1, 3).reshape(B, T, N_EMBD)
        x = x + (y @ blk['wpr'] + blk['bpr'])
        xn = _layernorm(x, blk['g2'], blk['b2'])
        x = x + (jnp.tanh(xn @ blk['wfc'] + blk['bfc']) @ blk['wp2'] + blk['bp2'])
    x = _layernorm(x, params['gf'], params['bf'])
    return (x[:, -1:, :] @ params['lm_w'])


if __name__ == "__main__":
    key = jax.random.PRNGKey(0)
    k_feat, k_tok, k_par = jax.random.split(key, 3)

    B, T = 2, 8
    feats = jax.random.normal(k_feat, (B, T, D_IN - 1), dtype=jnp.float32)
    toks = jax.random.randint(k_tok, (B, T, 1), 0, VOCAB).astype(jnp.float32)
    idx = jnp.concatenate([feats, toks], axis=-1)                   # (2, 8, 5)

    params = init_params(k_par)

    fwd = jax.jit(gpt_forward)
    logits = jax.block_until_ready(fwd(idx, params))
    assert logits.shape == (B, 1, VOCAB) and logits.dtype == jnp.float32

    ref = jax.block_until_ready(reference_forward(idx, params))
    # tolerance allows for approx-EUP reciprocal in softmax + bf16 MXU passes
    assert jnp.allclose(logits, ref, rtol=2e-3, atol=2e-3), "mismatch vs reference"

    print("KERNEL_OK")
</pallas_src>

<mosaic_0001>
module attributes {stable_mosaic.version = 11 : i64} {
  func.func @gpt_kernel(%arg0: i32, %arg1: memref<1x8x48xf32, #tpu.memory_space<vmem>>, %arg2: memref<3x1x48xf32, #tpu.memory_space<vmem>>, %arg3: memref<3x1x48xf32, #tpu.memory_space<vmem>>, %arg4: memref<3x3x48x16xf32, #tpu.memory_space<vmem>>, %arg5: memref<3x3x48x16xf32, #tpu.memory_space<vmem>>, %arg6: memref<3x3x48x16xf32, #tpu.memory_space<vmem>>, %arg7: memref<3x3x1x16xf32, #tpu.memory_space<vmem>>, %arg8: memref<3x3x1x16xf32, #tpu.memory_space<vmem>>, %arg9: memref<3x3x1x16xf32, #tpu.memory_space<vmem>>, %arg10: memref<3x3x16x48xf32, #tpu.memory_space<vmem>>, %arg11: memref<3x1x48xf32, #tpu.memory_space<vmem>>, %arg12: memref<3x1x48xf32, #tpu.memory_space<vmem>>, %arg13: memref<3x1x48xf32, #tpu.memory_space<vmem>>, %arg14: memref<3x48x192xf32, #tpu.memory_space<vmem>>, %arg15: memref<3x1x192xf32, #tpu.memory_space<vmem>>, %arg16: memref<3x192x48xf32, #tpu.memory_space<vmem>>, %arg17: memref<3x1x48xf32, #tpu.memory_space<vmem>>, %arg18: memref<1x48xf32, #tpu.memory_space<vmem>>, %arg19: memref<1x48xf32, #tpu.memory_space<vmem>>, %arg20: memref<48x1024xf32, #tpu.memory_space<vmem>>, %arg21: memref<1x1x1024xf32, #tpu.memory_space<vmem>>) attributes {dimension_semantics = [#tpu.dimension_semantics<parallel>], iteration_bounds = array<i64: 2>, scalar_prefetch = 0 : i64, scratch_operands = 0 : i64, tpu.core_type = #tpu.core_type<tc>, window_params = [{transform_indices = @transform_0, window_bounds = array<i64: 1, 8, 48>}, {pipeline_mode = #tpu.pipeline_mode<synchronous>, transform_indices = @transform_1, window_bounds = array<i64: 3, 1, 48>}, {pipeline_mode = #tpu.pipeline_mode<synchronous>, transform_indices = @transform_2, window_bounds = array<i64: 3, 1, 48>}, {pipeline_mode = #tpu.pipeline_mode<synchronous>, transform_indices = @transform_3, window_bounds = array<i64: 3, 3, 48, 16>}, {pipeline_mode = #tpu.pipeline_mode<synchronous>, transform_indices = @transform_4, window_bounds = array<i64: 3, 3, 48, 16>}, {pipeline_mode = #tpu.pipeline_mode<synchronous>, transform_indices = @transform_5, window_bounds = array<i64: 3, 3, 48, 16>}, {pipeline_mode = #tpu.pipeline_mode<synchronous>, transform_indices = @transform_6, window_bounds = array<i64: 3, 3, 1, 16>}, {pipeline_mode = #tpu.pipeline_mode<synchronous>, transform_indices = @transform_7, window_bounds = array<i64: 3, 3, 1, 16>}, {pipeline_mode = #tpu.pipeline_mode<synchronous>, transform_indices = @transform_8, window_bounds = array<i64: 3, 3, 1, 16>}, {pipeline_mode = #tpu.pipeline_mode<synchronous>, transform_indices = @transform_9, window_bounds = array<i64: 3, 3, 16, 48>}, {pipeline_mode = #tpu.pipeline_mode<synchronous>, transform_indices = @transform_10, window_bounds = array<i64: 3, 1, 48>}, {pipeline_mode = #tpu.pipeline_mode<synchronous>, transform_indices = @transform_11, window_bounds = array<i64: 3, 1, 48>}, {pipeline_mode = #tpu.pipeline_mode<synchronous>, transform_indices = @transform_12, window_bounds = array<i64: 3, 1, 48>}, {pipeline_mode = #tpu.pipeline_mode<synchronous>, transform_indices = @transform_13, window_bounds = array<i64: 3, 48, 192>}, {pipeline_mode = #tpu.pipeline_mode<synchronous>, transform_indices = @transform_14, window_bounds = array<i64: 3, 1, 192>}, {pipeline_mode = #tpu.pipeline_mode<synchronous>, transform_indices = @transform_15, window_bounds = array<i64: 3, 192, 48>}, {pipeline_mode = #tpu.pipeline_mode<synchronous>, transform_indices = @transform_16, window_bounds = array<i64: 3, 1, 48>}, {pipeline_mode = #tpu.pipeline_mode<synchronous>, transform_indices = @transform_17, window_bounds = array<i64: 1, 48>}, {pipeline_mode = #tpu.pipeline_mode<synchronous>, transform_indices = @transform_18, window_bounds = array<i64: 1, 48>}, {pipeline_mode = #tpu.pipeline_mode<synchronous>, transform_indices = @transform_19, window_bounds = array<i64: 48, 1024>}, {transform_indices = @transform_20, window_bounds = array<i64: 1, 1, 1024>}]} {
    %c0 = arith.constant 0 : index
    %c0_0 = arith.constant 0 : index
    %c0_1 = arith.constant 0 : index
    %0 = vector.load %arg1[%c0, %c0_0, %c0_1] : memref<1x8x48xf32, #tpu.memory_space<vmem>>, vector<1x8x48xf32>
    %1 = vector.shape_cast %0 : vector<1x8x48xf32> to vector<8x48xf32>
    %2 = tpu.iota {dimensions = array<i32: 0>} : vector<8x8xi32>
    %3 = tpu.iota {dimensions = array<i32: 1>} : vector<8x8xi32>
    %4 = arith.cmpi sle, %3, %2 : vector<8x8xi32>
    %5 = vector.shape_cast %4 : vector<8x8xi1> to vector<1x8x8xi1>
    %c0_2 = arith.constant 0 : index
    %c0_3 = arith.constant 0 : index
    %c0_4 = arith.constant 0 : index
    %6 = vector.load %arg2[%c0_2, %c0_3, %c0_4] : memref<3x1x48xf32, #tpu.memory_space<vmem>>, vector<1x1x48xf32>
    %7 = vector.shape_cast %6 : vector<1x1x48xf32> to vector<1x48xf32>
    %c0_5 = arith.constant 0 : index
    %c0_6 = arith.constant 0 : index
    %c0_7 = arith.constant 0 : index
    %8 = vector.load %arg3[%c0_5, %c0_6, %c0_7] : memref<3x1x48xf32, #tpu.memory_space<vmem>>, vector<1x1x48xf32>
    %9 = vector.shape_cast %8 : vector<1x1x48xf32> to vector<1x48xf32>
    %cst = arith.constant dense<0.000000e+00> : vector<8xf32>
    %10 = vector.multi_reduction <add>, %1, %cst [1] : vector<8x48xf32> to vector<8xf32>
    %11 = vector.shape_cast %10 : vector<8xf32> to vector<8x1xf32>
    %cst_8 = arith.constant 4.800000e+01 : f32
    %12 = vector.broadcast %cst_8 : f32 to vector<8x1xf32>
    %13 = arith.divf %11, %12 : vector<8x1xf32>
    %14 = vector.broadcast %13 : vector<8x1xf32> to vector<8x48xf32>
    %15 = arith.subf %1, %14 : vector<8x48xf32>
    %16 = arith.mulf %15, %15 : vector<8x48xf32>
    %cst_9 = arith.constant dense<0.000000e+00> : vector<8xf32>
    %17 = vector.multi_reduction <add>, %16, %cst_9 [1] : vector<8x48xf32> to vector<8xf32>
    %18 = vector.shape_cast %17 : vector<8xf32> to vector<8x1xf32>
    %cst_10 = arith.constant 4.800000e+01 : f32
    %19 = vector.broadcast %cst_10 : f32 to vector<8x1xf32>
    %20 = arith.divf %18, %19 : vector<8x1xf32>
    %21 = vector.broadcast %13 : vector<8x1xf32> to vector<8x48xf32>
    %22 = arith.subf %1, %21 : vector<8x48xf32>
    %cst_11 = arith.constant 9.99999974E-6 : f32
    %23 = vector.broadcast %cst_11 : f32 to vector<8x1xf32>
    %24 = arith.addf %20, %23 : vector<8x1xf32>
    %25 = math.rsqrt %24 : vector<8x1xf32>
    %26 = vector.broadcast %25 : vector<8x1xf32> to vector<8x48xf32>
    %27 = arith.mulf %22, %26 : vector<8x48xf32>
    %28 = vector.broadcast %7 : vector<1x48xf32> to vector<8x48xf32>
    %29 = arith.mulf %27, %28 : vector<8x48xf32>
    %30 = vector.broadcast %9 : vector<1x48xf32> to vector<8x48xf32>
    %31 = arith.addf %29, %30 : vector<8x48xf32>
    %32 = vector.shape_cast %31 : vector<8x48xf32> to vector<1x8x48xf32>
    %33 = vector.shape_cast %32 : vector<1x8x48xf32> to vector<1x8x48xf32>
    %34 = vector.broadcast %33 : vector<1x8x48xf32> to vector<3x8x48xf32>
    %c0_12 = arith.constant 0 : index
    %c0_13 = arith.constant 0 : index
    %c0_14 = arith.constant 0 : index
    %c0_15 = arith.constant 0 : index
    %35 = vector.load %arg4[%c0_12, %c0_13, %c0_14, %c0_15] : memref<3x3x48x16xf32, #tpu.memory_space<vmem>>, vector<1x3x48x16xf32>
    %36 = vector.shape_cast %35 : vector<1x3x48x16xf32> to vector<3x48x16xf32>
    "tpu.trace_start"() <{level = 10 : i32, message = "hnc,hcd->hnd"}> : () -> ()
    %cst_16 = arith.constant dense<0.000000e+00> : vector<3x8x16xf32>
    %37 = tpu.matmul %34, %36, %cst_16 {dimension_numbers = #tpu.dot_dimension_numbers<[2], [1], [1], [2], [0, 0, 0, 1, 1, 2], [0], [0]>} : vector<3x8x48xf32>, vector<3x48x16xf32>, vector<3x8x16xf32> -> vector<3x8x16xf32>
    "tpu.trace_stop"() : () -> ()
    %c0_17 = arith.constant 0 : index
    %c0_18 = arith.constant 0 : index
    %c0_19 = arith.constant 0 : index
    %c0_20 = arith.constant 0 : index
    %38 = vector.load %arg7[%c0_17, %c0_18, %c0_19, %c0_20] : memref<3x3x1x16xf32, #tpu.memory_space<vmem>>, vector<1x3x1x16xf32>
    %39 = vector.shape_cast %38 : vector<1x3x1x16xf32> to vector<3x1x16xf32>
    %40 = vector.broadcast %39 : vector<3x1x16xf32> to vector<3x8x16xf32>
    %41 = arith.addf %37, %40 : vector<3x8x16xf32>
    %cst_21 = arith.constant 2.500000e-01 : f32
    %42 = vector.broadcast %cst_21 : f32 to vector<3x8x16xf32>
    %43 = arith.mulf %41, %42 : vector<3x8x16xf32>
    %c0_22 = arith.constant 0 : index
    %c0_23 = arith.constant 0 : index
    %c0_24 = arith.constant 0 : index
    %c0_25 = arith.constant 0 : index
    %44 = vector.load %arg5[%c0_22, %c0_23, %c0_24, %c0_25] : memref<3x3x48x16xf32, #tpu.memory_space<vmem>>, vector<1x3x48x16xf32>
    %45 = vector.shape_cast %44 : vector<1x3x48x16xf32> to vector<3x48x16xf32>
    "tpu.trace_start"() <{level = 10 : i32, message = "hnc,hcd->hnd"}> : () -> ()
    %cst_26 = arith.constant dense<0.000000e+00> : vector<3x8x16xf32>
    %46 = tpu.matmul %34, %45, %cst_26 {dimension_numbers = #tpu.dot_dimension_numbers<[2], [1], [1], [2], [0, 0, 0, 1, 1, 2], [0], [0]>} : vector<3x8x48xf32>, vector<3x48x16xf32>, vector<3x8x16xf32> -> vector<3x8x16xf32>
    "tpu.trace_stop"() : () -> ()
    %c0_27 = arith.constant 0 : index
    %c0_28 = arith.constant 0 : index
    %c0_29 = arith.constant 0 : index
    %c0_30 = arith.constant 0 : index
    %47 = vector.load %arg8[%c0_27, %c0_28, %c0_29, %c0_30] : memref<3x3x1x16xf32, #tpu.memory_space<vmem>>, vector<1x3x1x16xf32>
    %48 = vector.shape_cast %47 : vector<1x3x1x16xf32> to vector<3x1x16xf32>
    %49 = vector.broadcast %48 : vector<3x1x16xf32> to vector<3x8x16xf32>
    %50 = arith.addf %46, %49 : vector<3x8x16xf32>
    %c0_31 = arith.constant 0 : index
    %c0_32 = arith.constant 0 : index
    %c0_33 = arith.constant 0 : index
    %c0_34 = arith.constant 0 : index
    %51 = vector.load %arg6[%c0_31, %c0_32, %c0_33, %c0_34] : memref<3x3x48x16xf32, #tpu.memory_space<vmem>>, vector<1x3x48x16xf32>
    %52 = vector.shape_cast %51 : vector<1x3x48x16xf32> to vector<3x48x16xf32>
    "tpu.trace_start"() <{level = 10 : i32, message = "hnc,hcd->hnd"}> : () -> ()
    %cst_35 = arith.constant dense<0.000000e+00> : vector<3x8x16xf32>
    %53 = tpu.matmul %34, %52, %cst_35 {dimension_numbers = #tpu.dot_dimension_numbers<[2], [1], [1], [2], [0, 0, 0, 1, 1, 2], [0], [0]>} : vector<3x8x48xf32>, vector<3x48x16xf32>, vector<3x8x16xf32> -> vector<3x8x16xf32>
    "tpu.trace_stop"() : () -> ()
    %c0_36 = arith.constant 0 : index
    %c0_37 = arith.constant 0 : index
    %c0_38 = arith.constant 0 : index
    %c0_39 = arith.constant 0 : index
    %54 = vector.load %arg9[%c0_36, %c0_37, %c0_38, %c0_39] : memref<3x3x1x16xf32, #tpu.memory_space<vmem>>, vector<1x3x1x16xf32>
    %55 = vector.shape_cast %54 : vector<1x3x1x16xf32> to vector<3x1x16xf32>
    %56 = vector.broadcast %55 : vector<3x1x16xf32> to vector<3x8x16xf32>
    %57 = arith.addf %53, %56 : vector<3x8x16xf32>
    "tpu.trace_start"() <{level = 10 : i32, message = "nqd,nkd->nqk"}> : () -> ()
    %cst_40 = arith.constant dense<0.000000e+00> : vector<3x8x8xf32>
    %58 = tpu.matmul %43, %50, %cst_40 {dimension_numbers = #tpu.dot_dimension_numbers<[2], [2], [1], [1], [0, 0, 0, 1, 1, 1], [0], [0]>} : vector<3x8x16xf32>, vector<3x8x16xf32>, vector<3x8x8xf32> -> vector<3x8x8xf32>
    %cst_41 = arith.constant -1.000000e+30 : f32
    "tpu.trace_stop"() : () -> ()
    %59 = vector.shape_cast %5 : vector<1x8x8xi1> to vector<1x8x8xi1>
    %60 = vector.broadcast %59 : vector<1x8x8xi1> to vector<3x8x8xi1>
    %61 = vector.broadcast %cst_41 : f32 to vector<3x8x8xf32>
    %62 = arith.select %60, %58, %61 : vector<3x8x8xi1>, vector<3x8x8xf32>
    %cst_42 = arith.constant dense<0xFF800000> : vector<3x8xf32>
    %63 = vector.multi_reduction <maximumf>, %62, %cst_42 [2] : vector<3x8x8xf32> to vector<3x8xf32>
    %64 = vector.shape_cast %63 : vector<3x8xf32> to vector<3x8x1xf32>
    %65 = vector.broadcast %64 : vector<3x8x1xf32> to vector<3x8x8xf32>
    %66 = arith.subf %62, %65 : vector<3x8x8xf32>
    %67 = math.exp %66 : vector<3x8x8xf32>
    "tpu.trace_start"() <{level = 10 : i32, message = "nqk,nkd->nqd"}> : () -> ()
    %cst_43 = arith.constant dense<0.000000e+00> : vector<3x8x16xf32>
    %68 = tpu.matmul %67, %57, %cst_43 {dimension_numbers = #tpu.dot_dimension_numbers<[2], [1], [1], [2], [0, 0, 0, 1, 1, 2], [0], [0]>} : vector<3x8x8xf32>, vector<3x8x16xf32>, vector<3x8x16xf32> -> vector<3x8x16xf32>
    "tpu.trace_stop"() : () -> ()
    %cst_44 = arith.constant dense<0.000000e+00> : vector<3x8xf32>
    %69 = vector.multi_reduction <add>, %67, %cst_44 [2] : vector<3x8x8xf32> to vector<3x8xf32>
    %70 = vector.shape_cast %69 : vector<3x8xf32> to vector<3x8x1xf32>
    %71 = tpu.reciprocal %70 {approx = true} : vector<3x8x1xf32> -> vector<3x8x1xf32>
    %72 = vector.broadcast %71 : vector<3x8x1xf32> to vector<3x8x16xf32>
    %73 = arith.mulf %68, %72 : vector<3x8x16xf32>
    %c0_45 = arith.constant 0 : index
    %c0_46 = arith.constant 0 : index
    %c0_47 = arith.constant 0 : index
    %c0_48 = arith.constant 0 : index
    %74 = vector.load %arg10[%c0_45, %c0_46, %c0_47, %c0_48] : memref<3x3x16x48xf32, #tpu.memory_space<vmem>>, vector<1x3x16x48xf32>
    %75 = vector.shape_cast %74 : vector<1x3x16x48xf32> to vector<3x16x48xf32>
    "tpu.trace_start"() <{level = 10 : i32, message = "hnd,hdc->hnc"}> : () -> ()
    %cst_49 = arith.constant dense<0.000000e+00> : vector<3x8x48xf32>
    %76 = tpu.matmul %73, %75, %cst_49 {dimension_numbers = #tpu.dot_dimension_numbers<[2], [1], [1], [2], [0, 0, 0, 1, 1, 2], [0], [0]>} : vector<3x8x16xf32>, vector<3x16x48xf32>, vector<3x8x48xf32> -> vector<3x8x48xf32>
    "tpu.trace_stop"() : () -> ()
    %cst_50 = arith.constant dense<0.000000e+00> : vector<8x48xf32>
    %77 = vector.multi_reduction <add>, %76, %cst_50 [0] : vector<3x8x48xf32> to vector<8x48xf32>
    %c0_51 = arith.constant 0 : index
    %c0_52 = arith.constant 0 : index
    %c0_53 = arith.constant 0 : index
    %78 = vector.load %arg11[%c0_51, %c0_52, %c0_53] : memref<3x1x48xf32, #tpu.memory_space<vmem>>, vector<1x1x48xf32>
    %79 = vector.shape_cast %78 : vector<1x1x48xf32> to vector<1x48xf32>
    %80 = vector.broadcast %79 : vector<1x48xf32> to vector<8x48xf32>
    %81 = arith.addf %77, %80 : vector<8x48xf32>
    %82 = arith.addf %1, %81 : vector<8x48xf32>
    %c0_54 = arith.constant 0 : index
    %c0_55 = arith.constant 0 : index
    %c0_56 = arith.constant 0 : index
    %83 = vector.load %arg12[%c0_54, %c0_55, %c0_56] : memref<3x1x48xf32, #tpu.memory_space<vmem>>, vector<1x1x48xf32>
    %84 = vector.shape_cast %83 : vector<1x1x48xf32> to vector<1x48xf32>
    %c0_57 = arith.constant 0 : index
    %c0_58 = arith.constant 0 : index
    %c0_59 = arith.constant 0 : index
    %85 = vector.load %arg13[%c0_57, %c0_58, %c0_59] : memref<3x1x48xf32, #tpu.memory_space<vmem>>, vector<1x1x48xf32>
    %86 = vector.shape_cast %85 : vector<1x1x48xf32> to vector<1x48xf32>
    %cst_60 = arith.constant dense<0.000000e+00> : vector<8xf32>
    %87 = vector.multi_reduction <add>, %82, %cst_60 [1] : vector<8x48xf32> to vector<8xf32>
    %88 = vector.shape_cast %87 : vector<8xf32> to vector<8x1xf32>
    %cst_61 = arith.constant 4.800000e+01 : f32
    %89 = vector.broadcast %cst_61 : f32 to vector<8x1xf32>
    %90 = arith.divf %88, %89 : vector<8x1xf32>
    %91 = vector.broadcast %90 : vector<8x1xf32> to vector<8x48xf32>
    %92 = arith.subf %82, %91 : vector<8x48xf32>
    %93 = arith.mulf %92, %92 : vector<8x48xf32>
    %cst_62 = arith.constant dense<0.000000e+00> : vector<8xf32>
    %94 = vector.multi_reduction <add>, %93, %cst_62 [1] : vector<8x48xf32> to vector<8xf32>
    %95 = vector.shape_cast %94 : vector<8xf32> to vector<8x1xf32>
    %cst_63 = arith.constant 4.800000e+01 : f32
    %96 = vector.broadcast %cst_63 : f32 to vector<8x1xf32>
    %97 = arith.divf %95, %96 : vector<8x1xf32>
    %98 = vector.broadcast %90 : vector<8x1xf32> to vector<8x48xf32>
    %99 = arith.subf %82, %98 : vector<8x48xf32>
    %cst_64 = arith.constant 9.99999974E-6 : f32
    %100 = vector.broadcast %cst_64 : f32 to vector<8x1xf32>
    %101 = arith.addf %97, %100 : vector<8x1xf32>
    %102 = math.rsqrt %101 : vector<8x1xf32>
    %103 = vector.broadcast %102 : vector<8x1xf32> to vector<8x48xf32>
    %104 = arith.mulf %99, %103 : vector<8x48xf32>
    %105 = vector.broadcast %84 : vector<1x48xf32> to vector<8x48xf32>
    %106 = arith.mulf %104, %105 : vector<8x48xf32>
    %107 = vector.broadcast %86 : vector<1x48xf32> to vector<8x48xf32>
    %108 = arith.addf %106, %107 : vector<8x48xf32>
    %c0_65 = arith.constant 0 : index
    %c0_66 = arith.constant 0 : index
    %c0_67 = arith.constant 0 : index
    %109 = vector.load %arg14[%c0_65, %c0_66, %c0_67] : memref<3x48x192xf32, #tpu.memory_space<vmem>>, vector<1x48x192xf32>
    %110 = vector.shape_cast %109 : vector<1x48x192xf32> to vector<48x192xf32>
    %cst_68 = arith.constant dense<0.000000e+00> : vector<8x192xf32>
    %111 = tpu.matmul %108, %110, %cst_68 {dimension_numbers = #tpu.dot_dimension_numbers<[1], [0], [0], [1], [0, 0, 1, 1], [], []>} : vector<8x48xf32>, vector<48x192xf32>, vector<8x192xf32> -> vector<8x192xf32>
    %c0_69 = arith.constant 0 : index
    %c0_70 = arith.constant 0 : index
    %c0_71 = arith.constant 0 : index
    %112 = vector.load %arg15[%c0_69, %c0_70, %c0_71] : memref<3x1x192xf32, #tpu.memory_space<vmem>>, vector<1x1x192xf32>
    %113 = vector.shape_cast %112 : vector<1x1x192xf32> to vector<1x192xf32>
    %114 = vector.broadcast %113 : vector<1x192xf32> to vector<8x192xf32>
    %115 = arith.addf %111, %114 : vector<8x192xf32>
    %116 = math.tanh %115 : vector<8x192xf32>
    %c0_72 = arith.constant 0 : index
    %c0_73 = arith.constant 0 : index
    %c0_74 = arith.constant 0 : index
    %117 = vector.load %arg16[%c0_72, %c0_73, %c0_74] : memref<3x192x48xf32, #tpu.memory_space<vmem>>, vector<1x192x48xf32>
    %118 = vector.shape_cast %117 : vector<1x192x48xf32> to vector<192x48xf32>
    %cst_75 = arith.constant dense<0.000000e+00> : vector<8x48xf32>
    %119 = tpu.matmul %116, %118, %cst_75 {dimension_numbers = #tpu.dot_dimension_numbers<[1], [0], [0], [1], [0, 0, 1, 1], [], []>} : vector<8x192xf32>, vector<192x48xf32>, vector<8x48xf32> -> vector<8x48xf32>
    %120 = arith.addf %82, %119 : vector<8x48xf32>
    %c0_76 = arith.constant 0 : index
    %c0_77 = arith.constant 0 : index
    %c0_78 = arith.constant 0 : index
    %121 = vector.load %arg17[%c0_76, %c0_77, %c0_78] : memref<3x1x48xf32, #tpu.memory_space<vmem>>, vector<1x1x48xf32>
    %122 = vector.shape_cast %121 : vector<1x1x48xf32> to vector<1x48xf32>
    %123 = vector.broadcast %122 : vector<1x48xf32> to vector<8x48xf32>
    %124 = arith.addf %120, %123 : vector<8x48xf32>
    %c1 = arith.constant 1 : index
    %c0_79 = arith.constant 0 : index
    %c0_80 = arith.constant 0 : index
    %125 = vector.load %arg2[%c1, %c0_79, %c0_80] : memref<3x1x48xf32, #tpu.memory_space<vmem>>, vector<1x1x48xf32>
    %126 = vector.shape_cast %125 : vector<1x1x48xf32> to vector<1x48xf32>
    %c1_81 = arith.constant 1 : index
    %c0_82 = arith.constant 0 : index
    %c0_83 = arith.constant 0 : index
    %127 = vector.load %arg3[%c1_81, %c0_82, %c0_83] : memref<3x1x48xf32, #tpu.memory_space<vmem>>, vector<1x1x48xf32>
    %128 = vector.shape_cast %127 : vector<1x1x48xf32> to vector<1x48xf32>
    %cst_84 = arith.constant dense<0.000000e+00> : vector<8xf32>
    %129 = vector.multi_reduction <add>, %124, %cst_84 [1] : vector<8x48xf32> to vector<8xf32>
    %130 = vector.shape_cast %129 : vector<8xf32> to vector<8x1xf32>
    %cst_85 = arith.constant 4.800000e+01 : f32
    %131 = vector.broadcast %cst_85 : f32 to vector<8x1xf32>
    %132 = arith.divf %130, %131 : vector<8x1xf32>
    %133 = vector.broadcast %132 : vector<8x1xf32> to vector<8x48xf32>
    %134 = arith.subf %124, %133 : vector<8x48xf32>
    %135 = arith.mulf %134, %134 : vector<8x48xf32>
    %cst_86 = arith.constant dense<0.000000e+00> : vector<8xf32>
    %136 = vector.multi_reduction <add>, %135, %cst_86 [1] : vector<8x48xf32> to vector<8xf32>
    %137 = vector.shape_cast %136 : vector<8xf32> to vector<8x1xf32>
    %cst_87 = arith.constant 4.800000e+01 : f32
    %138 = vector.broadcast %cst_87 : f32 to vector<8x1xf32>
    %139 = arith.divf %137, %138 : vector<8x1xf32>
    %140 = vector.broadcast %132 : vector<8x1xf32> to vector<8x48xf32>
    %141 = arith.subf %124, %140 : vector<8x48xf32>
    %cst_88 = arith.constant 9.99999974E-6 : f32
    %142 = vector.broadcast %cst_88 : f32 to vector<8x1xf32>
    %143 = arith.addf %139, %142 : vector<8x1xf32>
    %144 = math.rsqrt %143 : vector<8x1xf32>
    %145 = vector.broadcast %144 : vector<8x1xf32> to vector<8x48xf32>
    %146 = arith.mulf %141, %145 : vector<8x48xf32>
    %147 = vector.broadcast %126 : vector<1x48xf32> to vector<8x48xf32>
    %148 = arith.mulf %146, %147 : vector<8x48xf32>
    %149 = vector.broadcast %128 : vector<1x48xf32> to vector<8x48xf32>
    %150 = arith.addf %148, %149 : vector<8x48xf32>
    %151 = vector.shape_cast %150 : vector<8x48xf32> to vector<1x8x48xf32>
    %152 = vector.shape_cast %151 : vector<1x8x48xf32> to vector<1x8x48xf32>
    %153 = vector.broadcast %152 : vector<1x8x48xf32> to vector<3x8x48xf32>
    %c1_89 = arith.constant 1 : index
    %c0_90 = arith.constant 0 : index
    %c0_91 = arith.constant 0 : index
    %c0_92 = arith.constant 0 : index
    %154 = vector.load %arg4[%c1_89, %c0_90, %c0_91, %c0_92] : memref<3x3x48x16xf32, #tpu.memory_space<vmem>>, vector<1x3x48x16xf32>
    %155 = vector.shape_cast %154 : vector<1x3x48x16xf32> to vector<3x48x16xf32>
    "tpu.trace_start"() <{level = 10 : i32, message = "hnc,hcd->hnd"}> : () -> ()
    %cst_93 = arith.constant dense<0.000000e+00> : vector<3x8x16xf32>
    %156 = tpu.matmul %153, %155, %cst_93 {dimension_numbers = #tpu.dot_dimension_numbers<[2], [1], [1], [2], [0, 0, 0, 1, 1, 2], [0], [0]>} : vector<3x8x48xf32>, vector<3x48x16xf32>, vector<3x8x16xf32> -> vector<3x8x16xf32>
    "tpu.trace_stop"() : () -> ()
    %c1_94 = arith.constant 1 : index
    %c0_95 = arith.constant 0 : index
    %c0_96 = arith.constant 0 : index
    %c0_97 = arith.constant 0 : index
    %157 = vector.load %arg7[%c1_94, %c0_95, %c0_96, %c0_97] : memref<3x3x1x16xf32, #tpu.memory_space<vmem>>, vector<1x3x1x16xf32>
    %158 = vector.shape_cast %157 : vector<1x3x1x16xf32> to vector<3x1x16xf32>
    %159 = vector.broadcast %158 : vector<3x1x16xf32> to vector<3x8x16xf32>
    %160 = arith.addf %156, %159 : vector<3x8x16xf32>
    %cst_98 = arith.constant 2.500000e-01 : f32
    %161 = vector.broadcast %cst_98 : f32 to vector<3x8x16xf32>
    %162 = arith.mulf %160, %161 : vector<3x8x16xf32>
    %c1_99 = arith.constant 1 : index
    %c0_100 = arith.constant 0 : index
    %c0_101 = arith.constant 0 : index
    %c0_102 = arith.constant 0 : index
    %163 = vector.load %arg5[%c1_99, %c0_100, %c0_101, %c0_102] : memref<3x3x48x16xf32, #tpu.memory_space<vmem>>, vector<1x3x48x16xf32>
    %164 = vector.shape_cast %163 : vector<1x3x48x16xf32> to vector<3x48x16xf32>
    "tpu.trace_start"() <{level = 10 : i32, message = "hnc,hcd->hnd"}> : () -> ()
    %cst_103 = arith.constant dense<0.000000e+00> : vector<3x8x16xf32>
    %165 = tpu.matmul %153, %164, %cst_103 {dimension_numbers = #tpu.dot_dimension_numbers<[2], [1], [1], [2], [0, 0, 0, 1, 1, 2], [0], [0]>} : vector<3x8x48xf32>, vector<3x48x16xf32>, vector<3x8x16xf32> -> vector<3x8x16xf32>
    "tpu.trace_stop"() : () -> ()
    %c1_104 = arith.constant 1 : index
    %c0_105 = arith.constant 0 : index
    %c0_106 = arith.constant 0 : index
    %c0_107 = arith.constant 0 : index
    %166 = vector.load %arg8[%c1_104, %c0_105, %c0_106, %c0_107] : memref<3x3x1x16xf32, #tpu.memory_space<vmem>>, vector<1x3x1x16xf32>
    %167 = vector.shape_cast %166 : vector<1x3x1x16xf32> to vector<3x1x16xf32>
    %168 = vector.broadcast %167 : vector<3x1x16xf32> to vector<3x8x16xf32>
    %169 = arith.addf %165, %168 : vector<3x8x16xf32>
    %c1_108 = arith.constant 1 : index
    %c0_109 = arith.constant 0 : index
    %c0_110 = arith.constant 0 : index
    %c0_111 = arith.constant 0 : index
    %170 = vector.load %arg6[%c1_108, %c0_109, %c0_110, %c0_111] : memref<3x3x48x16xf32, #tpu.memory_space<vmem>>, vector<1x3x48x16xf32>
    %171 = vector.shape_cast %170 : vector<1x3x48x16xf32> to vector<3x48x16xf32>
    "tpu.trace_start"() <{level = 10 : i32, message = "hnc,hcd->hnd"}> : () -> ()
    %cst_112 = arith.constant dense<0.000000e+00> : vector<3x8x16xf32>
    %172 = tpu.matmul %153, %171, %cst_112 {dimension_numbers = #tpu.dot_dimension_numbers<[2], [1], [1], [2], [0, 0, 0, 1, 1, 2], [0], [0]>} : vector<3x8x48xf32>, vector<3x48x16xf32>, vector<3x8x16xf32> -> vector<3x8x16xf32>
    "tpu.trace_stop"() : () -> ()
    %c1_113 = arith.constant 1 : index
    %c0_114 = arith.constant 0 : index
    %c0_115 = arith.constant 0 : index
    %c0_116 = arith.constant 0 : index
    %173 = vector.load %arg9[%c1_113, %c0_114, %c0_115, %c0_116] : memref<3x3x1x16xf32, #tpu.memory_space<vmem>>, vector<1x3x1x16xf32>
    %174 = vector.shape_cast %173 : vector<1x3x1x16xf32> to vector<3x1x16xf32>
    %175 = vector.broadcast %174 : vector<3x1x16xf32> to vector<3x8x16xf32>
    %176 = arith.addf %172, %175 : vector<3x8x16xf32>
    "tpu.trace_start"() <{level = 10 : i32, message = "nqd,nkd->nqk"}> : () -> ()
    %cst_117 = arith.constant dense<0.000000e+00> : vector<3x8x8xf32>
    %177 = tpu.matmul %162, %169, %cst_117 {dimension_numbers = #tpu.dot_dimension_numbers<[2], [2], [1], [1], [0, 0, 0, 1, 1, 1], [0], [0]>} : vector<3x8x16xf32>, vector<3x8x16xf32>, vector<3x8x8xf32> -> vector<3x8x8xf32>
    %cst_118 = arith.constant -1.000000e+30 : f32
    "tpu.trace_stop"() : () -> ()
    %178 = vector.shape_cast %5 : vector<1x8x8xi1> to vector<1x8x8xi1>
    %179 = vector.broadcast %178 : vector<1x8x8xi1> to vector<3x8x8xi1>
    %180 = vector.broadcast %cst_118 : f32 to vector<3x8x8xf32>
    %181 = arith.select %179, %177, %180 : vector<3x8x8xi1>, vector<3x8x8xf32>
    %cst_119 = arith.constant dense<0xFF800000> : vector<3x8xf32>
    %182 = vector.multi_reduction <maximumf>, %181, %cst_119 [2] : vector<3x8x8xf32> to vector<3x8xf32>
    %183 = vector.shape_cast %182 : vector<3x8xf32> to vector<3x8x1xf32>
    %184 = vector.broadcast %183 : vector<3x8x1xf32> to vector<3x8x8xf32>
    %185 = arith.subf %181, %184 : vector<3x8x8xf32>
    %186 = math.exp %185 : vector<3x8x8xf32>
    "tpu.trace_start"() <{level = 10 : i32, message = "nqk,nkd->nqd"}> : () -> ()
    %cst_120 = arith.constant dense<0.000000e+00> : vector<3x8x16xf32>
    %187 = tpu.matmul %186, %176, %cst_120 {dimension_numbers = #tpu.dot_dimension_numbers<[2], [1], [1], [2], [0, 0, 0, 1, 1, 2], [0], [0]>} : vector<3x8x8xf32>, vector<3x8x16xf32>, vector<3x8x16xf32> -> vector<3x8x16xf32>
    "tpu.trace_stop"() : () -> ()
    %cst_121 = arith.constant dense<0.000000e+00> : vector<3x8xf32>
    %188 = vector.multi_reduction <add>, %186, %cst_121 [2] : vector<3x8x8xf32> to vector<3x8xf32>
    %189 = vector.shape_cast %188 : vector<3x8xf32> to vector<3x8x1xf32>
    %190 = tpu.reciprocal %189 {approx = true} : vector<3x8x1xf32> -> vector<3x8x1xf32>
    %191 = vector.broadcast %190 : vector<3x8x1xf32> to vector<3x8x16xf32>
    %192 = arith.mulf %187, %191 : vector<3x8x16xf32>
    %c1_122 = arith.constant 1 : index
    %c0_123 = arith.constant 0 : index
    %c0_124 = arith.constant 0 : index
    %c0_125 = arith.constant 0 : index
    %193 = vector.load %arg10[%c1_122, %c0_123, %c0_124, %c0_125] : memref<3x3x16x48xf32, #tpu.memory_space<vmem>>, vector<1x3x16x48xf32>
    %194 = vector.shape_cast %193 : vector<1x3x16x48xf32> to vector<3x16x48xf32>
    "tpu.trace_start"() <{level = 10 : i32, message = "hnd,hdc->hnc"}> : () -> ()
    %cst_126 = arith.constant dense<0.000000e+00> : vector<3x8x48xf32>
    %195 = tpu.matmul %192, %194, %cst_126 {dimension_numbers = #tpu.dot_dimension_numbers<[2], [1], [1], [2], [0, 0, 0, 1, 1, 2], [0], [0]>} : vector<3x8x16xf32>, vector<3x16x48xf32>, vector<3x8x48xf32> -> vector<3x8x48xf32>
    "tpu.trace_stop"() : () -> ()
    %cst_127 = arith.constant dense<0.000000e+00> : vector<8x48xf32>
    %196 = vector.multi_reduction <add>, %195, %cst_127 [0] : vector<3x8x48xf32> to vector<8x48xf32>
    %c1_128 = arith.constant 1 : index
    %c0_129 = arith.constant 0 : index
    %c0_130 = arith.constant 0 : index
    %197 = vector.load %arg11[%c1_128, %c0_129, %c0_130] : memref<3x1x48xf32, #tpu.memory_space<vmem>>, vector<1x1x48xf32>
    %198 = vector.shape_cast %197 : vector<1x1x48xf32> to vector<1x48xf32>
    %199 = vector.broadcast %198 : vector<1x48xf32> to vector<8x48xf32>
    %200 = arith.addf %196, %199 : vector<8x48xf32>
    %201 = arith.addf %124, %200 : vector<8x48xf32>
    %c1_131 = arith.constant 1 : index
    %c0_132 = arith.constant 0 : index
    %c0_133 = arith.constant 0 : index
    %202 = vector.load %arg12[%c1_131, %c0_132, %c0_133] : memref<3x1x48xf32, #tpu.memory_space<vmem>>, vector<1x1x48xf32>
    %203 = vector.shape_cast %202 : vector<1x1x48xf32> to vector<1x48xf32>
    %c1_134 = arith.constant 1 : index
    %c0_135 = arith.constant 0 : index
    %c0_136 = arith.constant 0 : index
    %204 = vector.load %arg13[%c1_134, %c0_135, %c0_136] : memref<3x1x48xf32, #tpu.memory_space<vmem>>, vector<1x1x48xf32>
    %205 = vector.shape_cast %204 : vector<1x1x48xf32> to vector<1x48xf32>
    %cst_137 = arith.constant dense<0.000000e+00> : vector<8xf32>
    %206 = vector.multi_reduction <add>, %201, %cst_137 [1] : vector<8x48xf32> to vector<8xf32>
    %207 = vector.shape_cast %206 : vector<8xf32> to vector<8x1xf32>
    %cst_138 = arith.constant 4.800000e+01 : f32
    %208 = vector.broadcast %cst_138 : f32 to vector<8x1xf32>
    %209 = arith.divf %207, %208 : vector<8x1xf32>
    %210 = vector.broadcast %209 : vector<8x1xf32> to vector<8x48xf32>
    %211 = arith.subf %201, %210 : vector<8x48xf32>
    %212 = arith.mulf %211, %211 : vector<8x48xf32>
    %cst_139 = arith.constant dense<0.000000e+00> : vector<8xf32>
    %213 = vector.multi_reduction <add>, %212, %cst_139 [1] : vector<8x48xf32> to vector<8xf32>
    %214 = vector.shape_cast %213 : vector<8xf32> to vector<8x1xf32>
    %cst_140 = arith.constant 4.800000e+01 : f32
    %215 = vector.broadcast %cst_140 : f32 to vector<8x1xf32>
    %216 = arith.divf %214, %215 : vector<8x1xf32>
    %217 = vector.broadcast %209 : vector<8x1xf32> to vector<8x48xf32>
    %218 = arith.subf %201, %217 : vector<8x48xf32>
    %cst_141 = arith.constant 9.99999974E-6 : f32
    %219 = vector.broadcast %cst_141 : f32 to vector<8x1xf32>
    %220 = arith.addf %216, %219 : vector<8x1xf32>
    %221 = math.rsqrt %220 : vector<8x1xf32>
    %222 = vector.broadcast %221 : vector<8x1xf32> to vector<8x48xf32>
    %223 = arith.mulf %218, %222 : vector<8x48xf32>
    %224 = vector.broadcast %203 : vector<1x48xf32> to vector<8x48xf32>
    %225 = arith.mulf %223, %224 : vector<8x48xf32>
    %226 = vector.broadcast %205 : vector<1x48xf32> to vector<8x48xf32>
    %227 = arith.addf %225, %226 : vector<8x48xf32>
    %c1_142 = arith.constant 1 : index
    %c0_143 = arith.constant 0 : index
    %c0_144 = arith.constant 0 : index
    %228 = vector.load %arg14[%c1_142, %c0_143, %c0_144] : memref<3x48x192xf32, #tpu.memory_space<vmem>>, vector<1x48x192xf32>
    %229 = vector.shape_cast %228 : vector<1x48x192xf32> to vector<48x192xf32>
    %cst_145 = arith.constant dense<0.000000e+00> : vector<8x192xf32>
    %230 = tpu.matmul %227, %229, %cst_145 {dimension_numbers = #tpu.dot_dimension_numbers<[1], [0], [0], [1], [0, 0, 1, 1], [], []>} : vector<8x48xf32>, vector<48x192xf32>, vector<8x192xf32> -> vector<8x192xf32>
    %c1_146 = arith.constant 1 : index
    %c0_147 = arith.constant 0 : index
    %c0_148 = arith.constant 0 : index
    %231 = vector.load %arg15[%c1_146, %c0_147, %c0_148] : memref<3x1x192xf32, #tpu.memory_space<vmem>>, vector<1x1x192xf32>
    %232 = vector.shape_cast %231 : vector<1x1x192xf32> to vector<1x192xf32>
    %233 = vector.broadcast %232 : vector<1x192xf32> to vector<8x192xf32>
    %234 = arith.addf %230, %233 : vector<8x192xf32>
    %235 = math.tanh %234 : vector<8x192xf32>
    %c1_149 = arith.constant 1 : index
    %c0_150 = arith.constant 0 : index
    %c0_151 = arith.constant 0 : index
    %236 = vector.load %arg16[%c1_149, %c0_150, %c0_151] : memref<3x192x48xf32, #tpu.memory_space<vmem>>, vector<1x192x48xf32>
    %237 = vector.shape_cast %236 : vector<1x192x48xf32> to vector<192x48xf32>
    %cst_152 = arith.constant dense<0.000000e+00> : vector<8x48xf32>
    %238 = tpu.matmul %235, %237, %cst_152 {dimension_numbers = #tpu.dot_dimension_numbers<[1], [0], [0], [1], [0, 0, 1, 1], [], []>} : vector<8x192xf32>, vector<192x48xf32>, vector<8x48xf32> -> vector<8x48xf32>
    %239 = arith.addf %201, %238 : vector<8x48xf32>
    %c1_153 = arith.constant 1 : index
    %c0_154 = arith.constant 0 : index
    %c0_155 = arith.constant 0 : index
    %240 = vector.load %arg17[%c1_153, %c0_154, %c0_155] : memref<3x1x48xf32, #tpu.memory_space<vmem>>, vector<1x1x48xf32>
    %241 = vector.shape_cast %240 : vector<1x1x48xf32> to vector<1x48xf32>
    %242 = vector.broadcast %241 : vector<1x48xf32> to vector<8x48xf32>
    %243 = arith.addf %239, %242 : vector<8x48xf32>
    %c2 = arith.constant 2 : index
    %c0_156 = arith.constant 0 : index
    %c0_157 = arith.constant 0 : index
    %244 = vector.load %arg2[%c2, %c0_156, %c0_157] : memref<3x1x48xf32, #tpu.memory_space<vmem>>, vector<1x1x48xf32>
    %245 = vector.shape_cast %244 : vector<1x1x48xf32> to vector<1x48xf32>
    %c2_158 = arith.constant 2 : index
    %c0_159 = arith.constant 0 : index
    %c0_160 = arith.constant 0 : index
    %246 = vector.load %arg3[%c2_158, %c0_159, %c0_160] : memref<3x1x48xf32, #tpu.memory_space<vmem>>, vector<1x1x48xf32>
    %247 = vector.shape_cast %246 : vector<1x1x48xf32> to vector<1x48xf32>
    %cst_161 = arith.constant dense<0.000000e+00> : vector<8xf32>
    %248 = vector.multi_reduction <add>, %243, %cst_161 [1] : vector<8x48xf32> to vector<8xf32>
    %249 = vector.shape_cast %248 : vector<8xf32> to vector<8x1xf32>
    %cst_162 = arith.constant 4.800000e+01 : f32
    %250 = vector.broadcast %cst_162 : f32 to vector<8x1xf32>
    %251 = arith.divf %249, %250 : vector<8x1xf32>
    %252 = vector.broadcast %251 : vector<8x1xf32> to vector<8x48xf32>
    %253 = arith.subf %243, %252 : vector<8x48xf32>
    %254 = arith.mulf %253, %253 : vector<8x48xf32>
    %cst_163 = arith.constant dense<0.000000e+00> : vector<8xf32>
    %255 = vector.multi_reduction <add>, %254, %cst_163 [1] : vector<8x48xf32> to vector<8xf32>
    %256 = vector.shape_cast %255 : vector<8xf32> to vector<8x1xf32>
    %cst_164 = arith.constant 4.800000e+01 : f32
    %257 = vector.broadcast %cst_164 : f32 to vector<8x1xf32>
    %258 = arith.divf %256, %257 : vector<8x1xf32>
    %259 = vector.broadcast %251 : vector<8x1xf32> to vector<8x48xf32>
    %260 = arith.subf %243, %259 : vector<8x48xf32>
    %cst_165 = arith.constant 9.99999974E-6 : f32
    %261 = vector.broadcast %cst_165 : f32 to vector<8x1xf32>
    %262 = arith.addf %258, %261 : vector<8x1xf32>
    %263 = math.rsqrt %262 : vector<8x1xf32>
    %264 = vector.broadcast %263 : vector<8x1xf32> to vector<8x48xf32>
    %265 = arith.mulf %260, %264 : vector<8x48xf32>
    %266 = vector.broadcast %245 : vector<1x48xf32> to vector<8x48xf32>
    %267 = arith.mulf %265, %266 : vector<8x48xf32>
    %268 = vector.broadcast %247 : vector<1x48xf32> to vector<8x48xf32>
    %269 = arith.addf %267, %268 : vector<8x48xf32>
    %270 = vector.shape_cast %269 : vector<8x48xf32> to vector<1x8x48xf32>
    %271 = vector.shape_cast %270 : vector<1x8x48xf32> to vector<1x8x48xf32>
    %272 = vector.broadcast %271 : vector<1x8x48xf32> to vector<3x8x48xf32>
    %c2_166 = arith.constant 2 : index
    %c0_167 = arith.constant 0 : index
    %c0_168 = arith.constant 0 : index
    %c0_169 = arith.constant 0 : index
    %273 = vector.load %arg5[%c2_166, %c0_167, %c0_168, %c0_169] : memref<3x3x48x16xf32, #tpu.memory_space<vmem>>, vector<1x3x48x16xf32>
    %274 = vector.shape_cast %273 : vector<1x3x48x16xf32> to vector<3x48x16xf32>
    "tpu.trace_start"() <{level = 10 : i32, message = "hnc,hcd->hnd"}> : () -> ()
    %cst_170 = arith.constant dense<0.000000e+00> : vector<3x8x16xf32>
    %275 = tpu.matmul %272, %274, %cst_170 {dimension_numbers = #tpu.dot_dimension_numbers<[2], [1], [1], [2], [0, 0, 0, 1, 1, 2], [0], [0]>} : vector<3x8x48xf32>, vector<3x48x16xf32>, vector<3x8x16xf32> -> vector<3x8x16xf32>
    "tpu.trace_stop"() : () -> ()
    %c2_171 = arith.constant 2 : index
    %c0_172 = arith.constant 0 : index
    %c0_173 = arith.constant 0 : index
    %c0_174 = arith.constant 0 : index
    %276 = vector.load %arg8[%c2_171, %c0_172, %c0_173, %c0_174] : memref<3x3x1x16xf32, #tpu.memory_space<vmem>>, vector<1x3x1x16xf32>
    %277 = vector.shape_cast %276 : vector<1x3x1x16xf32> to vector<3x1x16xf32>
    %278 = vector.broadcast %277 : vector<3x1x16xf32> to vector<3x8x16xf32>
    %279 = arith.addf %275, %278 : vector<3x8x16xf32>
    %c2_175 = arith.constant 2 : index
    %c0_176 = arith.constant 0 : index
    %c0_177 = arith.constant 0 : index
    %c0_178 = arith.constant 0 : index
    %280 = vector.load %arg6[%c2_175, %c0_176, %c0_177, %c0_178] : memref<3x3x48x16xf32, #tpu.memory_space<vmem>>, vector<1x3x48x16xf32>
    %281 = vector.shape_cast %280 : vector<1x3x48x16xf32> to vector<3x48x16xf32>
    "tpu.trace_start"() <{level = 10 : i32, message = "hnc,hcd->hnd"}> : () -> ()
    %cst_179 = arith.constant dense<0.000000e+00> : vector<3x8x16xf32>
    %282 = tpu.matmul %272, %281, %cst_179 {dimension_numbers = #tpu.dot_dimension_numbers<[2], [1], [1], [2], [0, 0, 0, 1, 1, 2], [0], [0]>} : vector<3x8x48xf32>, vector<3x48x16xf32>, vector<3x8x16xf32> -> vector<3x8x16xf32>
    "tpu.trace_stop"() : () -> ()
    %c2_180 = arith.constant 2 : index
    %c0_181 = arith.constant 0 : index
    %c0_182 = arith.constant 0 : index
    %c0_183 = arith.constant 0 : index
    %283 = vector.load %arg9[%c2_180, %c0_181, %c0_182, %c0_183] : memref<3x3x1x16xf32, #tpu.memory_space<vmem>>, vector<1x3x1x16xf32>
    %284 = vector.shape_cast %283 : vector<1x3x1x16xf32> to vector<3x1x16xf32>
    %285 = vector.broadcast %284 : vector<3x1x16xf32> to vector<3x8x16xf32>
    %286 = arith.addf %282, %285 : vector<3x8x16xf32>
    %287 = vector.shape_cast %269 : vector<8x48xf32> to vector<1x8x48xf32>
    %288 = vector.extract_strided_slice %287 {offsets = [0, 7, 0], sizes = [1, 1, 48], strides = [1, 1, 1]} : vector<1x8x48xf32> to vector<1x1x48xf32>
    %289 = vector.shape_cast %288 : vector<1x1x48xf32> to vector<1x48xf32>
    %290 = vector.shape_cast %289 : vector<1x48xf32> to vector<1x1x48xf32>
    %291 = vector.shape_cast %290 : vector<1x1x48xf32> to vector<1x1x48xf32>
    %292 = vector.broadcast %291 : vector<1x1x48xf32> to vector<3x1x48xf32>
    %c2_184 = arith.constant 2 : index
    %c0_185 = arith.constant 0 : index
    %c0_186 = arith.constant 0 : index
    %c0_187 = arith.constant 0 : index
    %293 = vector.load %arg4[%c2_184, %c0_185, %c0_186, %c0_187] : memref<3x3x48x16xf32, #tpu.memory_space<vmem>>, vector<1x3x48x16xf32>
    %294 = vector.shape_cast %293 : vector<1x3x48x16xf32> to vector<3x48x16xf32>
    "tpu.trace_start"() <{level = 10 : i32, message = "hbc,hcd->hbd"}> : () -> ()
    %cst_188 = arith.constant dense<0.000000e+00> : vector<3x1x16xf32>
    %295 = tpu.matmul %292, %294, %cst_188 {dimension_numbers = #tpu.dot_dimension_numbers<[2], [1], [1], [2], [0, 0, 0, 1, 1, 2], [0], [0]>} : vector<3x1x48xf32>, vector<3x48x16xf32>, vector<3x1x16xf32> -> vector<3x1x16xf32>
    "tpu.trace_stop"() : () -> ()
    %c2_189 = arith.constant 2 : index
    %c0_190 = arith.constant 0 : index
    %c0_191 = arith.constant 0 : index
    %c0_192 = arith.constant 0 : index
    %296 = vector.load %arg7[%c2_189, %c0_190, %c0_191, %c0_192] : memref<3x3x1x16xf32, #tpu.memory_space<vmem>>, vector<1x3x1x16xf32>
    %297 = vector.shape_cast %296 : vector<1x3x1x16xf32> to vector<3x1x16xf32>
    %298 = arith.addf %295, %297 : vector<3x1x16xf32>
    %cst_193 = arith.constant 2.500000e-01 : f32
    %299 = vector.broadcast %cst_193 : f32 to vector<3x1x16xf32>
    %300 = arith.mulf %298, %299 : vector<3x1x16xf32>
    "tpu.trace_start"() <{level = 10 : i32, message = "nqd,nkd->nqk"}> : () -> ()
    %cst_194 = arith.constant dense<0.000000e+00> : vector<3x1x8xf32>
    %301 = tpu.matmul %300, %279, %cst_194 {dimension_numbers = #tpu.dot_dimension_numbers<[2], [2], [1], [1], [0, 0, 0, 1, 1, 1], [0], [0]>} : vector<3x1x16xf32>, vector<3x8x16xf32>, vector<3x1x8xf32> -> vector<3x1x8xf32>
    "tpu.trace_stop"() : () -> ()
    %cst_195 = arith.constant dense<0xFF800000> : vector<3x1xf32>
    %302 = vector.multi_reduction <maximumf>, %301, %cst_195 [2] : vector<3x1x8xf32> to vector<3x1xf32>
    %303 = vector.shape_cast %302 : vector<3x1xf32> to vector<3x1x1xf32>
    %304 = vector.broadcast %303 : vector<3x1x1xf32> to vector<3x1x8xf32>
    %305 = arith.subf %301, %304 : vector<3x1x8xf32>
    %306 = math.exp %305 : vector<3x1x8xf32>
    "tpu.trace_start"() <{level = 10 : i32, message = "nqk,nkd->nqd"}> : () -> ()
    %cst_196 = arith.constant dense<0.000000e+00> : vector<3x1x16xf32>
    %307 = tpu.matmul %306, %286, %cst_196 {dimension_numbers = #tpu.dot_dimension_numbers<[2], [1], [1], [2], [0, 0, 0, 1, 1, 2], [0], [0]>} : vector<3x1x8xf32>, vector<3x8x16xf32>, vector<3x1x16xf32> -> vector<3x1x16xf32>
    "tpu.trace_stop"() : () -> ()
    %cst_197 = arith.constant dense<0.000000e+00> : vector<3x1xf32>
    %308 = vector.multi_reduction <add>, %306, %cst_197 [2] : vector<3x1x8xf32> to vector<3x1xf32>
    %309 = vector.shape_cast %308 : vector<3x1xf32> to vector<3x1x1xf32>
    %310 = tpu.reciprocal %309 {approx = true} : vector<3x1x1xf32> -> vector<3x1x1xf32>
    %311 = vector.broadcast %310 : vector<3x1x1xf32> to vector<3x1x16xf32>
    %312 = arith.mulf %307, %311 : vector<3x1x16xf32>
    %c2_198 = arith.constant 2 : index
    %c0_199 = arith.constant 0 : index
    %c0_200 = arith.constant 0 : index
    %c0_201 = arith.constant 0 : index
    %313 = vector.load %arg10[%c2_198, %c0_199, %c0_200, %c0_201] : memref<3x3x16x48xf32, #tpu.memory_space<vmem>>, vector<1x3x16x48xf32>
    %314 = vector.shape_cast %313 : vector<1x3x16x48xf32> to vector<3x16x48xf32>
    "tpu.trace_start"() <{level = 10 : i32, message = "hbd,hdc->hbc"}> : () -> ()
    %cst_202 = arith.constant dense<0.000000e+00> : vector<3x1x48xf32>
    %315 = tpu.matmul %312, %314, %cst_202 {dimension_numbers = #tpu.dot_dimension_numbers<[2], [1], [1], [2], [0, 0, 0, 1, 1, 2], [0], [0]>} : vector<3x1x16xf32>, vector<3x16x48xf32>, vector<3x1x48xf32> -> vector<3x1x48xf32>
    "tpu.trace_stop"() : () -> ()
    %cst_203 = arith.constant dense<0.000000e+00> : vector<1x48xf32>
    %316 = vector.multi_reduction <add>, %315, %cst_203 [0] : vector<3x1x48xf32> to vector<1x48xf32>
    %c2_204 = arith.constant 2 : index
    %c0_205 = arith.constant 0 : index
    %c0_206 = arith.constant 0 : index
    %317 = vector.load %arg11[%c2_204, %c0_205, %c0_206] : memref<3x1x48xf32, #tpu.memory_space<vmem>>, vector<1x1x48xf32>
    %318 = vector.shape_cast %317 : vector<1x1x48xf32> to vector<1x48xf32>
    %319 = arith.addf %316, %318 : vector<1x48xf32>
    %320 = vector.shape_cast %243 : vector<8x48xf32> to vector<1x8x48xf32>
    %321 = vector.extract_strided_slice %320 {offsets = [0, 7, 0], sizes = [1, 1, 48], strides = [1, 1, 1]} : vector<1x8x48xf32> to vector<1x1x48xf32>
    %322 = vector.shape_cast %321 : vector<1x1x48xf32> to vector<1x48xf32>
    %323 = arith.addf %322, %319 : vector<1x48xf32>
    %c2_207 = arith.constant 2 : index
    %c0_208 = arith.constant 0 : index
    %c0_209 = arith.constant 0 : index
    %324 = vector.load %arg12[%c2_207, %c0_208, %c0_209] : memref<3x1x48xf32, #tpu.memory_space<vmem>>, vector<1x1x48xf32>
    %325 = vector.shape_cast %324 : vector<1x1x48xf32> to vector<1x48xf32>
    %c2_210 = arith.constant 2 : index
    %c0_211 = arith.constant 0 : index
    %c0_212 = arith.constant 0 : index
    %326 = vector.load %arg13[%c2_210, %c0_211, %c0_212] : memref<3x1x48xf32, #tpu.memory_space<vmem>>, vector<1x1x48xf32>
    %327 = vector.shape_cast %326 : vector<1x1x48xf32> to vector<1x48xf32>
    %cst_213 = arith.constant dense<0.000000e+00> : vector<1xf32>
    %328 = vector.multi_reduction <add>, %323, %cst_213 [1] : vector<1x48xf32> to vector<1xf32>
    %329 = vector.shape_cast %328 : vector<1xf32> to vector<1x1xf32>
    %cst_214 = arith.constant 4.800000e+01 : f32
    %330 = vector.broadcast %cst_214 : f32 to vector<1x1xf32>
    %331 = arith.divf %329, %330 : vector<1x1xf32>
    %332 = vector.broadcast %331 : vector<1x1xf32> to vector<1x48xf32>
    %333 = arith.subf %323, %332 : vector<1x48xf32>
    %334 = arith.mulf %333, %333 : vector<1x48xf32>
    %cst_215 = arith.constant dense<0.000000e+00> : vector<1xf32>
    %335 = vector.multi_reduction <add>, %334, %cst_215 [1] : vector<1x48xf32> to vector<1xf32>
    %336 = vector.shape_cast %335 : vector<1xf32> to vector<1x1xf32>
    %cst_216 = arith.constant 4.800000e+01 : f32
    %337 = vector.broadcast %cst_216 : f32 to vector<1x1xf32>
    %338 = arith.divf %336, %337 : vector<1x1xf32>
    %339 = vector.broadcast %331 : vector<1x1xf32> to vector<1x48xf32>
    %340 = arith.subf %323, %339 : vector<1x48xf32>
    %cst_217 = arith.constant 9.99999974E-6 : f32
    %341 = vector.broadcast %cst_217 : f32 to vector<1x1xf32>
    %342 = arith.addf %338, %341 : vector<1x1xf32>
    %343 = math.rsqrt %342 : vector<1x1xf32>
    %344 = vector.broadcast %343 : vector<1x1xf32> to vector<1x48xf32>
    %345 = arith.mulf %340, %344 : vector<1x48xf32>
    %346 = arith.mulf %345, %325 : vector<1x48xf32>
    %347 = arith.addf %346, %327 : vector<1x48xf32>
    %c2_218 = arith.constant 2 : index
    %c0_219 = arith.constant 0 : index
    %c0_220 = arith.constant 0 : index
    %348 = vector.load %arg14[%c2_218, %c0_219, %c0_220] : memref<3x48x192xf32, #tpu.memory_space<vmem>>, vector<1x48x192xf32>
    %349 = vector.shape_cast %348 : vector<1x48x192xf32> to vector<48x192xf32>
    %cst_221 = arith.constant dense<0.000000e+00> : vector<1x192xf32>
    %350 = tpu.matmul %347, %349, %cst_221 {dimension_numbers = #tpu.dot_dimension_numbers<[1], [0], [0], [1], [0, 0, 1, 1], [], []>} : vector<1x48xf32>, vector<48x192xf32>, vector<1x192xf32> -> vector<1x192xf32>
    %c2_222 = arith.constant 2 : index
    %c0_223 = arith.constant 0 : index
    %c0_224 = arith.constant 0 : index
    %351 = vector.load %arg15[%c2_222, %c0_223, %c0_224] : memref<3x1x192xf32, #tpu.memory_space<vmem>>, vector<1x1x192xf32>
    %352 = vector.shape_cast %351 : vector<1x1x192xf32> to vector<1x192xf32>
    %353 = arith.addf %350, %352 : vector<1x192xf32>
    %354 = math.tanh %353 : vector<1x192xf32>
    %c2_225 = arith.constant 2 : index
    %c0_226 = arith.constant 0 : index
    %c0_227 = arith.constant 0 : index
    %355 = vector.load %arg16[%c2_225, %c0_226, %c0_227] : memref<3x192x48xf32, #tpu.memory_space<vmem>>, vector<1x192x48xf32>
    %356 = vector.shape_cast %355 : vector<1x192x48xf32> to vector<192x48xf32>
    %cst_228 = arith.constant dense<0.000000e+00> : vector<1x48xf32>
    %357 = tpu.matmul %354, %356, %cst_228 {dimension_numbers = #tpu.dot_dimension_numbers<[1], [0], [0], [1], [0, 0, 1, 1], [], []>} : vector<1x192xf32>, vector<192x48xf32>, vector<1x48xf32> -> vector<1x48xf32>
    %358 = arith.addf %323, %357 : vector<1x48xf32>
    %c2_229 = arith.constant 2 : index
    %c0_230 = arith.constant 0 : index
    %c0_231 = arith.constant 0 : index
    %359 = vector.load %arg17[%c2_229, %c0_230, %c0_231] : memref<3x1x48xf32, #tpu.memory_space<vmem>>, vector<1x1x48xf32>
    %360 = vector.shape_cast %359 : vector<1x1x48xf32> to vector<1x48xf32>
    %361 = arith.addf %358, %360 : vector<1x48xf32>
    %c0_232 = arith.constant 0 : index
    %c0_233 = arith.constant 0 : index
    %362 = vector.load %arg18[%c0_232, %c0_233] : memref<1x48xf32, #tpu.memory_space<vmem>>, vector<1x48xf32>
    %c0_234 = arith.constant 0 : index
    %c0_235 = arith.constant 0 : index
    %363 = vector.load %arg19[%c0_234, %c0_235] : memref<1x48xf32, #tpu.memory_space<vmem>>, vector<1x48xf32>
    %cst_236 = arith.constant dense<0.000000e+00> : vector<1xf32>
    %364 = vector.multi_reduction <add>, %361, %cst_236 [1] : vector<1x48xf32> to vector<1xf32>
    %365 = vector.shape_cast %364 : vector<1xf32> to vector<1x1xf32>
    %cst_237 = arith.constant 4.800000e+01 : f32
    %366 = vector.broadcast %cst_237 : f32 to vector<1x1xf32>
    %367 = arith.divf %365, %366 : vector<1x1xf32>
    %368 = vector.broadcast %367 : vector<1x1xf32> to vector<1x48xf32>
    %369 = arith.subf %361, %368 : vector<1x48xf32>
    %370 = arith.mulf %369, %369 : vector<1x48xf32>
    %cst_238 = arith.constant dense<0.000000e+00> : vector<1xf32>
    %371 = vector.multi_reduction <add>, %370, %cst_238 [1] : vector<1x48xf32> to vector<1xf32>
    %372 = vector.shape_cast %371 : vector<1xf32> to vector<1x1xf32>
    %cst_239 = arith.constant 4.800000e+01 : f32
    %373 = vector.broadcast %cst_239 : f32 to vector<1x1xf32>
    %374 = arith.divf %372, %373 : vector<1x1xf32>
    %375 = vector.broadcast %367 : vector<1x1xf32> to vector<1x48xf32>
    %376 = arith.subf %361, %375 : vector<1x48xf32>
    %cst_240 = arith.constant 9.99999974E-6 : f32
    %377 = vector.broadcast %cst_240 : f32 to vector<1x1xf32>
    %378 = arith.addf %374, %377 : vector<1x1xf32>
    %379 = math.rsqrt %378 : vector<1x1xf32>
    %380 = vector.broadcast %379 : vector<1x1xf32> to vector<1x48xf32>
    %381 = arith.mulf %376, %380 : vector<1x48xf32>
    %382 = arith.mulf %381, %362 : vector<1x48xf32>
    %383 = arith.addf %382, %363 : vector<1x48xf32>
    %c0_241 = arith.constant 0 : index
    %c0_242 = arith.constant 0 : index
    %384 = vector.load %arg20[%c0_241, %c0_242] : memref<48x1024xf32, #tpu.memory_space<vmem>>, vector<48x1024xf32>
    %cst_243 = arith.constant dense<0.000000e+00> : vector<1x1024xf32>
    %385 = tpu.matmul %383, %384, %cst_243 {dimension_numbers = #tpu.dot_dimension_numbers<[1], [0], [0], [1], [0, 0, 1, 1], [], []>} : vector<1x48xf32>, vector<48x1024xf32>, vector<1x1024xf32> -> vector<1x1024xf32>
    %386 = vector.shape_cast %385 : vector<1x1024xf32> to vector<1x1x1024xf32>
    %c0_244 = arith.constant 0 : index
    %c0_245 = arith.constant 0 : index
    %c0_246 = arith.constant 0 : index
    %387 = vector.load %arg21[%c0_244, %c0_245, %c0_246] : memref<1x1x1024xf32, #tpu.memory_space<vmem>>, vector<1x1x1024xf32>
    tpu.vector_store %arg21[%c0_244, %c0_245, %c0_246], %386 {strides = array<i32>} : memref<1x1x1024xf32, #tpu.memory_space<vmem>>, vector<1x1x1024xf32>,
    return
  }
  func.func @transform_0(%arg0: i32) -> (i32, i32, i32) {
    %c0_i32 = arith.constant 0 : i32
    %c0_i32_0 = arith.constant 0 : i32
    %c0_i32_1 = arith.constant 0 : i32
    return %arg0, %c0_i32, %c0_i32_0 : i32, i32, i32
  }
  func.func @transform_1(%arg0: i32) -> (i32, i32, i32) {
    %c0_i32 = arith.constant 0 : i32
    %c0_i32_0 = arith.constant 0 : i32
    %c0_i32_1 = arith.constant 0 : i32
    %c0_i32_2 = arith.constant 0 : i32
    return %c0_i32, %c0_i32_0, %c0_i32_1 : i32, i32, i32
  }
  func.func @transform_2(%arg0: i32) -> (i32, i32, i32) {
    %c0_i32 = arith.constant 0 : i32
    %c0_i32_0 = arith.constant 0 : i32
    %c0_i32_1 = arith.constant 0 : i32
    %c0_i32_2 = arith.constant 0 : i32
    return %c0_i32, %c0_i32_0, %c0_i32_1 : i32, i32, i32
  }
  func.func @transform_3(%arg0: i32) -> (i32, i32, i32, i32) {
    %c0_i32 = arith.constant 0 : i32
    %c0_i32_0 = arith.constant 0 : i32
    %c0_i32_1 = arith.constant 0 : i32
    %c0_i32_2 = arith.constant 0 : i32
    %c0_i32_3 = arith.constant 0 : i32
    return %c0_i32, %c0_i32_0, %c0_i32_1, %c0_i32_2 : i32, i32, i32, i32
  }
  func.func @transform_4(%arg0: i32) -> (i32, i32, i32, i32) {
    %c0_i32 = arith.constant 0 : i32
    %c0_i32_0 = arith.constant 0 : i32
    %c0_i32_1 = arith.constant 0 : i32
    %c0_i32_2 = arith.constant 0 : i32
    %c0_i32_3 = arith.constant 0 : i32
    return %c0_i32, %c0_i32_0, %c0_i32_1, %c0_i32_2 : i32, i32, i32, i32
  }
  func.func @transform_5(%arg0: i32) -> (i32, i32, i32, i32) {
    %c0_i32 = arith.constant 0 : i32
    %c0_i32_0 = arith.constant 0 : i32
    %c0_i32_1 = arith.constant 0 : i32
    %c0_i32_2 = arith.constant 0 : i32
    %c0_i32_3 = arith.constant 0 : i32
    return %c0_i32, %c0_i32_0, %c0_i32_1, %c0_i32_2 : i32, i32, i32, i32
  }
  func.func @transform_6(%arg0: i32) -> (i32, i32, i32, i32) {
    %c0_i32 = arith.constant 0 : i32
    %c0_i32_0 = arith.constant 0 : i32
    %c0_i32_1 = arith.constant 0 : i32
    %c0_i32_2 = arith.constant 0 : i32
    %c0_i32_3 = arith.constant 0 : i32
    return %c0_i32, %c0_i32_0, %c0_i32_1, %c0_i32_2 : i32, i32, i32, i32
  }
  func.func @transform_7(%arg0: i32) -> (i32, i32, i32, i32) {
    %c0_i32 = arith.constant 0 : i32
    %c0_i32_0 = arith.constant 0 : i32
    %c0_i32_1 = arith.constant 0 : i32
    %c0_i32_2 = arith.constant 0 : i32
    %c0_i32_3 = arith.constant 0 : i32
    return %c0_i32, %c0_i32_0, %c0_i32_1, %c0_i32_2 : i32, i32, i32, i32
  }
  func.func @transform_8(%arg0: i32) -> (i32, i32, i32, i32) {
    %c0_i32 = arith.constant 0 : i32
    %c0_i32_0 = arith.constant 0 : i32
    %c0_i32_1 = arith.constant 0 : i32
    %c0_i32_2 = arith.constant 0 : i32
    %c0_i32_3 = arith.constant 0 : i32
    return %c0_i32, %c0_i32_0, %c0_i32_1, %c0_i32_2 : i32, i32, i32, i32
  }
  func.func @transform_9(%arg0: i32) -> (i32, i32, i32, i32) {
    %c0_i32 = arith.constant 0 : i32
    %c0_i32_0 = arith.constant 0 : i32
    %c0_i32_1 = arith.constant 0 : i32
    %c0_i32_2 = arith.constant 0 : i32
    %c0_i32_3 = arith.constant 0 : i32
    return %c0_i32, %c0_i32_0, %c0_i32_1, %c0_i32_2 : i32, i32, i32, i32
  }
  func.func @transform_10(%arg0: i32) -> (i32, i32, i32) {
    %c0_i32 = arith.constant 0 : i32
    %c0_i32_0 = arith.constant 0 : i32
    %c0_i32_1 = arith.constant 0 : i32
    %c0_i32_2 = arith.constant 0 : i32
    return %c0_i32, %c0_i32_0, %c0_i32_1 : i32, i32, i32
  }
  func.func @transform_11(%arg0: i32) -> (i32, i32, i32) {
    %c0_i32 = arith.constant 0 : i32
    %c0_i32_0 = arith.constant 0 : i32
    %c0_i32_1 = arith.constant 0 : i32
    %c0_i32_2 = arith.constant 0 : i32
    return %c0_i32, %c0_i32_0, %c0_i32_1 : i32, i32, i32
  }
  func.func @transform_12(%arg0: i32) -> (i32, i32, i32) {
    %c0_i32 = arith.constant 0 : i32
    %c0_i32_0 = arith.constant 0 : i32
    %c0_i32_1 = arith.constant 0 : i32
    %c0_i32_2 = arith.constant 0 : i32
    return %c0_i32, %c0_i32_0, %c0_i32_1 : i32, i32, i32
  }
  func.func @transform_13(%arg0: i32) -> (i32, i32, i32) {
    %c0_i32 = arith.constant 0 : i32
    %c0_i32_0 = arith.constant 0 : i32
    %c0_i32_1 = arith.constant 0 : i32
    %c0_i32_2 = arith.constant 0 : i32
    return %c0_i32, %c0_i32_0, %c0_i32_1 : i32, i32, i32
  }
  func.func @transform_14(%arg0: i32) -> (i32, i32, i32) {
    %c0_i32 = arith.constant 0 : i32
    %c0_i32_0 = arith.constant 0 : i32
    %c0_i32_1 = arith.constant 0 : i32
    %c0_i32_2 = arith.constant 0 : i32
    return %c0_i32, %c0_i32_0, %c0_i32_1 : i32, i32, i32
  }
  func.func @transform_15(%arg0: i32) -> (i32, i32, i32) {
    %c0_i32 = arith.constant 0 : i32
    %c0_i32_0 = arith.constant 0 : i32
    %c0_i32_1 = arith.constant 0 : i32
    %c0_i32_2 = arith.constant 0 : i32
    return %c0_i32, %c0_i32_0, %c0_i32_1 : i32, i32, i32
  }
  func.func @transform_16(%arg0: i32) -> (i32, i32, i32) {
    %c0_i32 = arith.constant 0 : i32
    %c0_i32_0 = arith.constant 0 : i32
    %c0_i32_1 = arith.constant 0 : i32
    %c0_i32_2 = arith.constant 0 : i32
    return %c0_i32, %c0_i32_0, %c0_i32_1 : i32, i32, i32
  }
  func.func @transform_17(%arg0: i32) -> (i32, i32) {
    %c0_i32 = arith.constant 0 : i32
    %c0_i32_0 = arith.constant 0 : i32
    %c0_i32_1 = arith.constant 0 : i32
    return %c0_i32, %c0_i32_0 : i32, i32
  }
  func.func @transform_18(%arg0: i32) -> (i32, i32) {
    %c0_i32 = arith.constant 0 : i32
    %c0_i32_0 = arith.constant 0 : i32
    %c0_i32_1 = arith.constant 0 : i32
    return %c0_i32, %c0_i32_0 : i32, i32
  }
  func.func @transform_19(%arg0: i32) -> (i32, i32) {
    %c0_i32 = arith.constant 0 : i32
    %c0_i32_0 = arith.constant 0 : i32
    %c0_i32_1 = arith.constant 0 : i32
    return %c0_i32, %c0_i32_0 : i32, i32
  }
  func.func @transform_20(%arg0: i32) -> (i32, i32, i32) {
    %c0_i32 = arith.constant 0 : i32
    %c0_i32_0 = arith.constant 0 : i32
    %c0_i32_1 = arith.constant 0 : i32
    return %arg0, %c0_i32, %c0_i32_0 : i32, i32, i32
  }
}

</mosaic_0001>

<llo_original>
// kernel: gpt_forward.1
$region0: #{gpt_forward.1}
  #allocation0 [shape = 'u32[]', space=smem, size = 0x4, offset = 0x4, fixed_abs, tag = 'smem constant byte address 0x4 - core index']
  #allocation1 [shape = 'u32[144,128]{1,0:T(1,128)}', space=vmem, size = 0x12000, scoped, tag = 'internal scratch']
  %s0 = inlined_call_operand.vmem [shape: f32[2,8,48], index: 0, kind: input, shape index: {}]
  %s1 = inlined_call_operand.vmem [shape: f32[3,1,48], index: 1, kind: input, shape index: {}]
  %s2 = inlined_call_operand.vmem [shape: f32[3,1,48], index: 2, kind: input, shape index: {}]
  %s3 = inlined_call_operand.vmem [shape: f32[3,3,48,16], index: 3, kind: input, shape index: {}]
  %s4 = inlined_call_operand.vmem [shape: f32[3,3,48,16], index: 4, kind: input, shape index: {}]
  %s5 = inlined_call_operand.vmem [shape: f32[3,3,48,16], index: 5, kind: input, shape index: {}]
  %s6 = inlined_call_operand.vmem [shape: f32[3,3,1,16], index: 6, kind: input, shape index: {}]
  %s7 = inlined_call_operand.vmem [shape: f32[3,3,1,16], index: 7, kind: input, shape index: {}]
  %s8 = inlined_call_operand.vmem [shape: f32[3,3,1,16], index: 8, kind: input, shape index: {}]
  %s9 = inlined_call_operand.vmem [shape: f32[3,3,16,48], index: 9, kind: input, shape index: {}]
  %s10 = inlined_call_operand.vmem [shape: f32[3,1,48], index: 10, kind: input, shape index: {}]
  %s11 = inlined_call_operand.vmem [shape: f32[3,1,48], index: 11, kind: input, shape index: {}]
  %s12 = inlined_call_operand.vmem [shape: f32[3,1,48], index: 12, kind: input, shape index: {}]
  %s13 = inlined_call_operand.vmem [shape: f32[3,48,192], index: 13, kind: input, shape index: {}]
  %s14 = inlined_call_operand.vmem [shape: f32[3,1,192], index: 14, kind: input, shape index: {}]
  %s15 = inlined_call_operand.vmem [shape: f32[3,192,48], index: 15, kind: input, shape index: {}]
  %s16 = inlined_call_operand.vmem [shape: f32[3,1,48], index: 16, kind: input, shape index: {}]
  %s17 = inlined_call_operand.vmem [shape: f32[1,48], index: 17, kind: input, shape index: {}]
  %s18 = inlined_call_operand.vmem [shape: f32[1,48], index: 18, kind: input, shape index: {}]
  %s19 = inlined_call_operand.vmem [shape: f32[48,1024], index: 19, kind: input, shape index: {}]
  %s20 = inlined_call_operand.hbm [shape: f32[2,1,1024], index: 20, kind: output, shape index: {}]
  %s21 = sld [smem:[#allocation0]]
  $region113: #{gpt_forward.1} parent=0
    _
  %s23 = ssub.s32 1, %s21
  %s24 = scalar_select 0, %s23, %s21
  $region1: #{gpt_forward.1} parent=0
    #allocation2 [shape = 'u8[8192]{0}', space=vmem, size = 0x2000, scoped, tag = 'output window, operand 0']
    #allocation3 [shape = 's32[2]{0}', space=sflag, size = 0x8, scoped, tag = 'scoped memory for gpt_forward.1']
    %25 = vsyncpa [#allocation3], 0
    %s26 = scalar_lea.sflag [#allocation3], 1
    %27 = vsyncpa %s26, 0
    loop: start=0, step=1, limit=4
    $region2: #{gpt_forward.1} parent=1 // loop_pre_header
      _
    $region3: #{gpt_forward.1} parent=1 // loop_header
      %s29 = sphi 0, %s33
      %p30 = scmp.ge.s32.totalorder %s29, 4
      %s39 = sphi 0, %s41
      %s42 = sphi 0, %s39
      %s43 = sphi 0, %s42
      %s59 = sphi 0, %s43
      %s63 = sphi 0, %s63
      %s65 = sphi 0, %s63
      %s66 = sphi 0, %s65
      %s80 = sphi 0, %s66
      %s84 = sphi 0, %s84
      %s86 = sphi 0, %s84
      %s87 = sphi 0, %s86
      %s101 = sphi 0, %s87
      %s105 = sphi 0, %s105
      %s107 = sphi 0, %s105
      %s108 = sphi 0, %s107
      %s122 = sphi 0, %s108
      %s126 = sphi 0, %s126
      %s128 = sphi 0, %s126
      %s129 = sphi 0, %s128
      %s143 = sphi 0, %s129
      %s147 = sphi 0, %s147
      %s149 = sphi 0, %s147
      %s150 = sphi 0, %s149
      %s164 = sphi 0, %s150
      %s168 = sphi 0, %s168
      %s170 = sphi 0, %s168
      %s171 = sphi 0, %s170
      %s185 = sphi 0, %s171
      %s189 = sphi 0, %s189
      %s191 = sphi 0, %s189
      %s192 = sphi 0, %s191
      %s206 = sphi 0, %s192
      %s210 = sphi 0, %s210
      %s212 = sphi 0, %s210
      %s213 = sphi 0, %s212
      %s227 = sphi 0, %s213
      %s231 = sphi 0, %s231
      %s233 = sphi 0, %s231
      %s234 = sphi 0, %s233
      %s248 = sphi 0, %s234
      %s252 = sphi 0, %s252
      %s254 = sphi 0, %s252
      %s255 = sphi 0, %s254
      %s269 = sphi 0, %s255
      %s273 = sphi 0, %s273
      %s275 = sphi 0, %s273
      %s276 = sphi 0, %s275
      %s290 = sphi 0, %s276
      %s294 = sphi 0, %s294
      %s296 = sphi 0, %s294
      %s297 = sphi 0, %s296
      %s311 = sphi 0, %s297
      %s315 = sphi 0, %s315
      %s317 = sphi 0, %s315
      %s318 = sphi 0, %s317
      %s332 = sphi 0, %s318
      %s336 = sphi 0, %s336
      %s338 = sphi 0, %s336
      %s339 = sphi 0, %s338
      %s353 = sphi 0, %s339
      %s357 = sphi 0, %s357
      %s359 = sphi 0, %s357
      %s360 = sphi 0, %s359
      %s374 = sphi 0, %s360
      %s378 = sphi 0, %s378
      %s380 = sphi 0, %s378
      %s381 = sphi 0, %s380
      %s395 = sphi 0, %s381
      %s399 = sphi 0, %s399
      %s401 = sphi 0, %s399
      %s402 = sphi 0, %s401
      %s416 = sphi 0, %s402
      %s420 = sphi 0, %s420
      %s422 = sphi 0, %s420
      %s423 = sphi 0, %s422
      %s437 = sphi 0, %s423
      %s441 = sphi 0, %s441
      %s443 = sphi 0, %s441
      %s444 = sphi 0, %s443
      %s458 = sphi 0, %s444
      %s464 = sphi 0, %s466
      %s467 = sphi 0, %s464
      %s468 = sphi 0, %s467
      %s484 = sphi 0, %s468
    $region4: #{gpt_forward.1} parent=1 // loop_header_branch
      %32 = sbr.rel (%p30) target = $region8
    $region5: #{gpt_forward.1} parent=1 // loop_body
      %s34 = ssub.s32 %s29, 1
      %s35 = ssub.s32 %s29, 2
      %s36 = sadd.s32 %s29, 1
      %s37 = ssub.s32 %s29, %s36
      %p38 = scmp.eq.s32.totalorder %s37, 0
      %s40 = sadd.s32 %s39, 1
      %s41 = scalar_select %p38, %s39, %s40
      %p44 = pneg %p38
      %p45 = scmp.eq.s32.totalorder %s29, 1
      %p46 = por %p44, %p45
      %p47 = scmp.ne.s32.totalorder %s39, %s42
      %p48 = scmp.eq.s32.totalorder %s29, 0
      %p49 = por %p47, %p48
      %p50 = scmp.ne.s32.totalorder %s39, %s42
      %p51 = scmp.eq.s32.totalorder %s34, 1
      %p52 = por %p50, %p51
      %p53 = scmp.ne.s32.totalorder %s42, %s43
      %p54 = scmp.eq.s32.totalorder %s34, 0
      %p55 = por %p53, %p54
      %p56 = scmp.ne.s32.totalorder %s42, %s43
      %p57 = scmp.eq.s32.totalorder %s35, 1
      %p58 = por %p56, %p57
      %p60 = scmp.ne.s32.totalorder %s43, %s59
      %p61 = scmp.eq.s32.totalorder %s35, 0
      %p62 = por %p60, %p61
      %s64 = sadd.s32 %s63, 1
      %p67 = scmp.eq.s32.totalorder %s29, 1
      %p68 = scmp.ne.s32.totalorder %s63, %s65
      %p69 = scmp.eq.s32.totalorder %s29, 0
      %p70 = por %p68, %p69
      %p71 = scmp.ne.s32.totalorder %s63, %s65
      %p72 = scmp.eq.s32.totalorder %s34, 1
      %p73 = por %p71, %p72
      %p74 = scmp.ne.s32.totalorder %s65, %s66
      %p75 = scmp.eq.s32.totalorder %s34, 0
      %p76 = por %p74, %p75
      %p77 = scmp.ne.s32.totalorder %s65, %s66
      %p78 = scmp.eq.s32.totalorder %s35, 1
      %p79 = por %p77, %p78
      %p81 = scmp.ne.s32.totalorder %s66, %s80
      %p82 = scmp.eq.s32.totalorder %s35, 0
      %p83 = por %p81, %p82
      %s85 = sadd.s32 %s84, 1
      %p88 = scmp.eq.s32.totalorder %s29, 1
      %p89 = scmp.ne.s32.totalorder %s84, %s86
      %p90 = scmp.eq.s32.totalorder %s29, 0
      %p91 = por %p89, %p90
      %p92 = scmp.ne.s32.totalorder %s84, %s86
      %p93 = scmp.eq.s32.totalorder %s34, 1
      %p94 = por %p92, %p93
      %p95 = scmp.ne.s32.totalorder %s86, %s87
      %p96 = scmp.eq.s32.totalorder %s34, 0
      %p97 = por %p95, %p96
      %p98 = scmp.ne.s32.totalorder %s86, %s87
      %p99 = scmp.eq.s32.totalorder %s35, 1
      %p100 = por %p98, %p99
      %p102 = scmp.ne.s32.totalorder %s87, %s101
      %p103 = scmp.eq.s32.totalorder %s35, 0
      %p104 = por %p102, %p103
      %s106 = sadd.s32 %s105, 1
      %p109 = scmp.eq.s32.totalorder %s29, 1
      %p110 = scmp.ne.s32.totalorder %s105, %s107
      %p111 = scmp.eq.s32.totalorder %s29, 0
      %p112 = por %p110, %p111
      %p113 = scmp.ne.s32.totalorder %s105, %s107
      %p114 = scmp.eq.s32.totalorder %s34, 1
      %p115 = por %p113, %p114
      %p116 = scmp.ne.s32.totalorder %s107, %s108
      %p117 = scmp.eq.s32.totalorder %s34, 0
      %p118 = por %p116, %p117
      %p119 = scmp.ne.s32.totalorder %s107, %s108
      %p120 = scmp.eq.s32.totalorder %s35, 1
      %p121 = por %p119, %p120
      %p123 = scmp.ne.s32.totalorder %s108, %s122
      %p124 = scmp.eq.s32.totalorder %s35, 0
      %p125 = por %p123, %p124
      %s127 = sadd.s32 %s126, 1
      %p130 = scmp.eq.s32.totalorder %s29, 1
      %p131 = scmp.ne.s32.totalorder %s126, %s128
      %p132 = scmp.eq.s32.totalorder %s29, 0
      %p133 = por %p131, %p132
      %p134 = scmp.ne.s32.totalorder %s126, %s128
      %p135 = scmp.eq.s32.totalorder %s34, 1
      %p136 = por %p134, %p135
      %p137 = scmp.ne.s32.totalorder %s128, %s129
      %p138 = scmp.eq.s32.totalorder %s34, 0
      %p139 = por %p137, %p138
      %p140 = scmp.ne.s32.totalorder %s128, %s129
      %p141 = scmp.eq.s32.totalorder %s35, 1
      %p142 = por %p140, %p141
      %p144 = scmp.ne.s32.totalorder %s129, %s143
      %p145 = scmp.eq.s32.totalorder %s35, 0
      %p146 = por %p144, %p145
      %s148 = sadd.s32 %s147, 1
      %p151 = scmp.eq.s32.totalorder %s29, 1
      %p152 = scmp.ne.s32.totalorder %s147, %s149
      %p153 = scmp.eq.s32.totalorder %s29, 0
      %p154 = por %p152, %p153
      %p155 = scmp.ne.s32.totalorder %s147, %s149
      %p156 = scmp.eq.s32.totalorder %s34, 1
      %p157 = por %p155, %p156
      %p158 = scmp.ne.s32.totalorder %s149, %s150
      %p159 = scmp.eq.s32.totalorder %s34, 0
      %p160 = por %p158, %p159
      %p161 = scmp.ne.s32.totalorder %s149, %s150
      %p162 = scmp.eq.s32.totalorder %s35, 1
      %p163 = por %p161, %p162
      %p165 = scmp.ne.s32.totalorder %s150, %s164
      %p166 = scmp.eq.s32.totalorder %s35, 0
      %p167 = por %p165, %p166
      %s169 = sadd.s32 %s168, 1
      %p172 = scmp.eq.s32.totalorder %s29, 1
      %p173 = scmp.ne.s32.totalorder %s168, %s170
      %p174 = scmp.eq.s32.totalorder %s29, 0
      %p175 = por %p173, %p174
      %p176 = scmp.ne.s32.totalorder %s168, %s170
      %p177 = scmp.eq.s32.totalorder %s34, 1
      %p178 = por %p176, %p177
      %p179 = scmp.ne.s32.totalorder %s170, %s171
      %p180 = scmp.eq.s32.totalorder %s34, 0
      %p181 = por %p179, %p180
      %p182 = scmp.ne.s32.totalorder %s170, %s171
      %p183 = scmp.eq.s32.totalorder %s35, 1
      %p184 = por %p182, %p183
      %p186 = scmp.ne.s32.totalorder %s171, %s185
      %p187 = scmp.eq.s32.totalorder %s35, 0
      %p188 = por %p186, %p187
      %s190 = sadd.s32 %s189, 1
      %p193 = scmp.eq.s32.totalorder %s29, 1
      %p194 = scmp.ne.s32.totalorder %s189, %s191
      %p195 = scmp.eq.s32.totalorder %s29, 0
      %p196 = por %p194, %p195
      %p197 = scmp.ne.s32.totalorder %s189, %s191
      %p198 = scmp.eq.s32.totalorder %s34, 1
      %p199 = por %p197, %p198
      %p200 = scmp.ne.s32.totalorder %s191, %s192
      %p201 = scmp.eq.s32.totalorder %s34, 0
      %p202 = por %p200, %p201
      %p203 = scmp.ne.s32.totalorder %s191, %s192
      %p204 = scmp.eq.s32.totalorder %s35, 1
      %p205 = por %p203, %p204
      %p207 = scmp.ne.s32.totalorder %s192, %s206
      %p208 = scmp.eq.s32.totalorder %s35, 0
      %p209 = por %p207, %p208
      %s211 = sadd.s32 %s210, 1
      %p214 = scmp.eq.s32.totalorder %s29, 1
      %p215 = scmp.ne.s32.totalorder %s210, %s212
      %p216 = scmp.eq.s32.totalorder %s29, 0
      %p217 = por %p215, %p216
      %p218 = scmp.ne.s32.totalorder %s210, %s212
      %p219 = scmp.eq.s32.totalorder %s34, 1
      %p220 = por %p218, %p219
      %p221 = scmp.ne.s32.totalorder %s212, %s213
      %p222 = scmp.eq.s32.totalorder %s34, 0
      %p223 = por %p221, %p222
      %p224 = scmp.ne.s32.totalorder %s212, %s213
      %p225 = scmp.eq.s32.totalorder %s35, 1
      %p226 = por %p224, %p225
      %p228 = scmp.ne.s32.totalorder %s213, %s227
      %p229 = scmp.eq.s32.totalorder %s35, 0
      %p230 = por %p228, %p229
      %s232 = sadd.s32 %s231, 1
      %p235 = scmp.eq.s32.totalorder %s29, 1
      %p236 = scmp.ne.s32.totalorder %s231, %s233
      %p237 = scmp.eq.s32.totalorder %s29, 0
      %p238 = por %p236, %p237
      %p239 = scmp.ne.s32.totalorder %s231, %s233
      %p240 = scmp.eq.s32.totalorder %s34, 1
      %p241 = por %p239, %p240
      %p242 = scmp.ne.s32.totalorder %s233, %s234
      %p243 = scmp.eq.s32.totalorder %s34, 0
      %p244 = por %p242, %p243
      %p245 = scmp.ne.s32.totalorder %s233, %s234
      %p246 = scmp.eq.s32.totalorder %s35, 1
      %p247 = por %p245, %p246
      %p249 = scmp.ne.s32.totalorder %s234, %s248
      %p250 = scmp.eq.s32.totalorder %s35, 0
      %p251 = por %p249, %p250
      %s253 = sadd.s32 %s252, 1
      %p256 = scmp.eq.s32.totalorder %s29, 1
      %p257 = scmp.ne.s32.totalorder %s252, %s254
      %p258 = scmp.eq.s32.totalorder %s29, 0
      %p259 = por %p257, %p258
      %p260 = scmp.ne.s32.totalorder %s252, %s254
      %p261 = scmp.eq.s32.totalorder %s34, 1
      %p262 = por %p260, %p261
      %p263 = scmp.ne.s32.totalorder %s254, %s255
      %p264 = scmp.eq.s32.totalorder %s34, 0
      %p265 = por %p263, %p264
      %p266 = scmp.ne.s32.totalorder %s254, %s255
      %p267 = scmp.eq.s32.totalorder %s35, 1
      %p268 = por %p266, %p267
      %p270 = scmp.ne.s32.totalorder %s255, %s269
      %p271 = scmp.eq.s32.totalorder %s35, 0
      %p272 = por %p270, %p271
      %s274 = sadd.s32 %s273, 1
      %p277 = scmp.eq.s32.totalorder %s29, 1
      %p278 = scmp.ne.s32.totalorder %s273, %s275
      %p279 = scmp.eq.s32.totalorder %s29, 0
      %p280 = por %p278, %p279
      %p281 = scmp.ne.s32.totalorder %s273, %s275
      %p282 = scmp.eq.s32.totalorder %s34, 1
      %p283 = por %p281, %p282
      %p284 = scmp.ne.s32.totalorder %s275, %s276
      %p285 = scmp.eq.s32.totalorder %s34, 0
      %p286 = por %p284, %p285
      %p287 = scmp.ne.s32.totalorder %s275, %s276
      %p288 = scmp.eq.s32.totalorder %s35, 1
      %p289 = por %p287, %p288
      %p291 = scmp.ne.s32.totalorder %s276, %s290
      %p292 = scmp.eq.s32.totalorder %s35, 0
      %p293 = por %p291, %p292
      %s295 = sadd.s32 %s294, 1
      %p298 = scmp.eq.s32.totalorder %s29, 1
      %p299 = scmp.ne.s32.totalorder %s294, %s296
      %p300 = scmp.eq.s32.totalorder %s29, 0
      %p301 = por %p299, %p300
      %p302 = scmp.ne.s32.totalorder %s294, %s296
      %p303 = scmp.eq.s32.totalorder %s34, 1
      %p304 = por %p302, %p303
      %p305 = scmp.ne.s32.totalorder %s296, %s297
      %p306 = scmp.eq.s32.totalorder %s34, 0
      %p307 = por %p305, %p306
      %p308 = scmp.ne.s32.totalorder %s296, %s297
      %p309 = scmp.eq.s32.totalorder %s35, 1
      %p310 = por %p308, %p309
      %p312 = scmp.ne.s32.totalorder %s297, %s311
      %p313 = scmp.eq.s32.totalorder %s35, 0
      %p314 = por %p312, %p313
      %s316 = sadd.s32 %s315, 1
      %p319 = scmp.eq.s32.totalorder %s29, 1
      %p320 = scmp.ne.s32.totalorder %s315, %s317
      %p321 = scmp.eq.s32.totalorder %s29, 0
      %p322 = por %p320, %p321
      %p323 = scmp.ne.s32.totalorder %s315, %s317
      %p324 = scmp.eq.s32.totalorder %s34, 1
      %p325 = por %p323, %p324
      %p326 = scmp.ne.s32.totalorder %s317, %s318
      %p327 = scmp.eq.s32.totalorder %s34, 0
      %p328 = por %p326, %p327
      %p329 = scmp.ne.s32.totalorder %s317, %s318
      %p330 = scmp.eq.s32.totalorder %s35, 1
      %p331 = por %p329, %p330
      %p333 = scmp.ne.s32.totalorder %s318, %s332
      %p334 = scmp.eq.s32.totalorder %s35, 0
      %p335 = por %p333, %p334
      %s337 = sadd.s32 %s336, 1
      %p340 = scmp.eq.s32.totalorder %s29, 1
      %p341 = scmp.ne.s32.totalorder %s336, %s338
      %p342 = scmp.eq.s32.totalorder %s29, 0
      %p343 = por %p341, %p342
      %p344 = scmp.ne.s32.totalorder %s336, %s338
      %p345 = scmp.eq.s32.totalorder %s34, 1
      %p346 = por %p344, %p345
      %p347 = scmp.ne.s32.totalorder %s338, %s339
      %p348 = scmp.eq.s32.totalorder %s34, 0
      %p349 = por %p347, %p348
      %p350 = scmp.ne.s32.totalorder %s338, %s339
      %p351 = scmp.eq.s32.totalorder %s35, 1
      %p352 = por %p350, %p351
      %p354 = scmp.ne.s32.totalorder %s339, %s353
      %p355 = scmp.eq.s32.totalorder %s35, 0
      %p356 = por %p354, %p355
      %s358 = sadd.s32 %s357, 1
      %p361 = scmp.eq.s32.totalorder %s29, 1
      %p362 = scmp.ne.s32.totalorder %s357, %s359
      %p363 = scmp.eq.s32.totalorder %s29, 0
      %p364 = por %p362, %p363
      %p365 = scmp.ne.s32.totalorder %s357, %s359
      %p366 = scmp.eq.s32.totalorder %s34, 1
      %p367 = por %p365, %p366
      %p368 = scmp.ne.s32.totalorder %s359, %s360
      %p369 = scmp.eq.s32.totalorder %s34, 0
      %p370 = por %p368, %p369
      %p371 = scmp.ne.s32.totalorder %s359, %s360
      %p372 = scmp.eq.s32.totalorder %s35, 1
      %p373 = por %p371, %p372
      %p375 = scmp.ne.s32.totalorder %s360, %s374
      %p376 = scmp.eq.s32.totalorder %s35, 0
      %p377 = por %p375, %p376
      %s379 = sadd.s32 %s378, 1
      %p382 = scmp.eq.s32.totalorder %s29, 1
      %p383 = scmp.ne.s32.totalorder %s378, %s380
      %p384 = scmp.eq.s32.totalorder %s29, 0
      %p385 = por %p383, %p384
      %p386 = scmp.ne.s32.totalorder %s378, %s380
      %p387 = scmp.eq.s32.totalorder %s34, 1
      %p388 = por %p386, %p387
      %p389 = scmp.ne.s32.totalorder %s380, %s381
      %p390 = scmp.eq.s32.totalorder %s34, 0
      %p391 = por %p389, %p390
      %p392 = scmp.ne.s32.totalorder %s380, %s381
      %p393 = scmp.eq.s32.totalorder %s35, 1
      %p394 = por %p392, %p393
      %p396 = scmp.ne.s32.totalorder %s381, %s395
      %p397 = scmp.eq.s32.totalorder %s35, 0
      %p398 = por %p396, %p397
      %s400 = sadd.s32 %s399, 1
      %p403 = scmp.eq.s32.totalorder %s29, 1
      %p404 = scmp.ne.s32.totalorder %s399, %s401
      %p405 = scmp.eq.s32.totalorder %s29, 0
      %p406 = por %p404, %p405
      %p407 = scmp.ne.s32.totalorder %s399, %s401
      %p408 = scmp.eq.s32.totalorder %s34, 1
      %p409 = por %p407, %p408
      %p410 = scmp.ne.s32.totalorder %s401, %s402
      %p411 = scmp.eq.s32.totalorder %s34, 0
      %p412 = por %p410, %p411
      %p413 = scmp.ne.s32.totalorder %s401, %s402
      %p414 = scmp.eq.s32.totalorder %s35, 1
      %p415 = por %p413, %p414
      %p417 = scmp.ne.s32.totalorder %s402, %s416
      %p418 = scmp.eq.s32.totalorder %s35, 0
      %p419 = por %p417, %p418
      %s421 = sadd.s32 %s420, 1
      %p424 = scmp.eq.s32.totalorder %s29, 1
      %p425 = scmp.ne.s32.totalorder %s420, %s422
      %p426 = scmp.eq.s32.totalorder %s29, 0
      %p427 = por %p425, %p426
      %p428 = scmp.ne.s32.totalorder %s420, %s422
      %p429 = scmp.eq.s32.totalorder %s34, 1
      %p430 = por %p428, %p429
      %p431 = scmp.ne.s32.totalorder %s422, %s423
      %p432 = scmp.eq.s32.totalorder %s34, 0
      %p433 = por %p431, %p432
      %p434 = scmp.ne.s32.totalorder %s422, %s423
      %p435 = scmp.eq.s32.totalorder %s35, 1
      %p436 = por %p434, %p435
      %p438 = scmp.ne.s32.totalorder %s423, %s437
      %p439 = scmp.eq.s32.totalorder %s35, 0
      %p440 = por %p438, %p439
      %s442 = sadd.s32 %s441, 1
      %p445 = scmp.eq.s32.totalorder %s29, 1
      %p446 = scmp.ne.s32.totalorder %s441, %s443
      %p447 = scmp.eq.s32.totalorder %s29, 0
      %p448 = por %p446, %p447
      %p449 = scmp.ne.s32.totalorder %s441, %s443
      %p450 = scmp.eq.s32.totalorder %s34, 1
      %p451 = por %p449, %p450
      %p452 = scmp.ne.s32.totalorder %s443, %s444
      %p453 = scmp.eq.s32.totalorder %s34, 0
      %p454 = por %p452, %p453
      %p455 = scmp.ne.s32.totalorder %s443, %s444
      %p456 = scmp.eq.s32.totalorder %s35, 1
      %p457 = por %p455, %p456
      %p459 = scmp.ne.s32.totalorder %s444, %s458
      %p460 = scmp.eq.s32.totalorder %s35, 0
      %p461 = por %p459, %p460
      %s462 = ssub.s32 %s29, %s36
      %p463 = scmp.eq.s32.totalorder %s462, 0
      %s465 = sadd.s32 %s464, 1
      %s466 = scalar_select %p463, %s464, %s465
      %p469 = pneg %p463
      %p470 = scmp.eq.s32.totalorder %s29, 1
      %p471 = por %p469, %p470
      %p472 = scmp.ne.s32.totalorder %s464, %s467
      %p473 = scmp.eq.s32.totalorder %s29, 0
      %p474 = por %p472, %p473
      %p475 = scmp.ne.s32.totalorder %s464, %s467
      %p476 = scmp.eq.s32.totalorder %s34, 1
      %p477 = por %p475, %p476
      %p478 = scmp.ne.s32.totalorder %s467, %s468
      %p479 = scmp.eq.s32.totalorder %s34, 0
      %p480 = por %p478, %p479
      %p481 = scmp.ne.s32.totalorder %s467, %s468
      %p482 = scmp.eq.s32.totalorder %s35, 1
      %p483 = por %p481, %p482
      %p485 = scmp.ne.s32.totalorder %s468, %s484
      %p486 = scmp.eq.s32.totalorder %s35, 0
      %p487 = por %p485, %p486
      %p488 = scmp.le.s32.totalorder 1, %s29
      %p489 = scmp.lt.s32.totalorder %s29, 3
      %p490 = pnand %p488, %p489
      %p491 = pneg %p490
      // Predicated region
      $region9: #{gpt_forward.1} parent=5 // pred_check
        _
      $region10: #{gpt_forward.1} parent=5 // pred_check_branch
        %493 = sbr.rel (%p490) target = $region12
      $region11: #{gpt_forward.1} parent=5 // pred_region
        %s494 = ssub.s32 %s29, 1
        // Predicated region
        $region13: #{gpt_forward.1} parent=11 // pred_check
          %p495 = pneg %p76
        $region14: #{gpt_forward.1} parent=11 // pred_check_branch
          %497 = sbr.rel (%p495) target = $region16
        $region15: #{gpt_forward.1} parent=11 // pred_region
          _
        $region16: #{gpt_forward.1} parent=11 // pred_fallthru
          _
        // Predicated region
        $region17: #{gpt_forward.1} parent=11 // pred_check
          %p498 = pneg %p97
        $region18: #{gpt_forward.1} parent=11 // pred_check_branch
          %500 = sbr.rel (%p498) target = $region20
        $region19: #{gpt_forward.1} parent=11 // pred_region
          _
        $region20: #{gpt_forward.1} parent=11 // pred_fallthru
          _
        // Predicated region
        $region21: #{gpt_forward.1} parent=11 // pred_check
          %p501 = pneg %p118
        $region22: #{gpt_forward.1} parent=11 // pred_check_branch
          %503 = sbr.rel (%p501) target = $region24
        $region23: #{gpt_forward.1} parent=11 // pred_region
          _
        $region24: #{gpt_forward.1} parent=11 // pred_fallthru
          _
        // Predicated region
        $region25: #{gpt_forward.1} parent=11 // pred_check
          %p504 = pneg %p139
        $region26: #{gpt_forward.1} parent=11 // pred_check_branch
          %506 = sbr.rel (%p504) target = $region28
        $region27: #{gpt_forward.1} parent=11 // pred_region
          _
        $region28: #{gpt_forward.1} parent=11 // pred_fallthru
          _
        // Predicated region
        $region29: #{gpt_forward.1} parent=11 // pred_check
          %p507 = pneg %p160
        $region30: #{gpt_forward.1} parent=11 // pred_check_branch
          %509 = sbr.rel (%p507) target = $region32
        $region31: #{gpt_forward.1} parent=11 // pred_region
          _
        $region32: #{gpt_forward.1} parent=11 // pred_fallthru
          _
        // Predicated region
        $region33: #{gpt_forward.1} parent=11 // pred_check
          %p510 = pneg %p181
        $region34: #{gpt_forward.1} parent=11 // pred_check_branch
          %512 = sbr.rel (%p510) target = $region36
        $region35: #{gpt_forward.1} parent=11 // pred_region
          _
        $region36: #{gpt_forward.1} parent=11 // pred_fallthru
          _
        // Predicated region
        $region37: #{gpt_forward.1} parent=11 // pred_check
          %p513 = pneg %p202
        $region38: #{gpt_forward.1} parent=11 // pred_check_branch
          %515 = sbr.rel (%p513) target = $region40
        $region39: #{gpt_forward.1} parent=11 // pred_region
          _
        $region40: #{gpt_forward.1} parent=11 // pred_fallthru
          _
        // Predicated region
        $region41: #{gpt_forward.1} parent=11 // pred_check
          %p516 = pneg %p223
        $region42: #{gpt_forward.1} parent=11 // pred_check_branch
          %518 = sbr.rel (%p516) target = $region44
        $region43: #{gpt_forward.1} parent=11 // pred_region
          _
        $region44: #{gpt_forward.1} parent=11 // pred_fallthru
          _
        // Predicated region
        $region45: #{gpt_forward.1} parent=11 // pred_check
          %p519 = pneg %p244
        $region46: #{gpt_forward.1} parent=11 // pred_check_branch
          %521 = sbr.rel (%p519) target = $region48
        $region47: #{gpt_forward.1} parent=11 // pred_region
          _
        $region48: #{gpt_forward.1} parent=11 // pred_fallthru
          _
        // Predicated region
        $region49: #{gpt_forward.1} parent=11 // pred_check
          %p522 = pneg %p265
        $region50: #{gpt_forward.1} parent=11 // pred_check_branch
          %524 = sbr.rel (%p522) target = $region52
        $region51: #{gpt_forward.1} parent=11 // pred_region
          _
        $region52: #{gpt_forward.1} parent=11 // pred_fallthru
          _
        // Predicated region
        $region53: #{gpt_forward.1} parent=11 // pred_check
          %p525 = pneg %p286
        $region54: #{gpt_forward.1} parent=11 // pred_check_branch
          %527 = sbr.rel (%p525) target = $region56
        $region55: #{gpt_forward.1} parent=11 // pred_region
          _
        $region56: #{gpt_forward.1} parent=11 // pred_fallthru
          _
        // Predicated region
        $region57: #{gpt_forward.1} parent=11 // pred_check
          %p528 = pneg %p307
        $region58: #{gpt_forward.1} parent=11 // pred_check_branch
          %530 = sbr.rel (%p528) target = $region60
        $region59: #{gpt_forward.1} parent=11 // pred_region
          _
        $region60: #{gpt_forward.1} parent=11 // pred_fallthru
          _
        // Predicated region
        $region61: #{gpt_forward.1} parent=11 // pred_check
          %p531 = pneg %p328
        $region62: #{gpt_forward.1} parent=11 // pred_check_branch
          %533 = sbr.rel (%p531) target = $region64
        $region63: #{gpt_forward.1} parent=11 // pred_region
          _
        $region64: #{gpt_forward.1} parent=11 // pred_fallthru
          _
        // Predicated region
        $region65: #{gpt_forward.1} parent=11 // pred_check
          %p534 = pneg %p349
        $region66: #{gpt_forward.1} parent=11 // pred_check_branch
          %536 = sbr.rel (%p534) target = $region68
        $region67: #{gpt_forward.1} parent=11 // pred_region
          _
        $region68: #{gpt_forward.1} parent=11 // pred_fallthru
          _
        // Predicated region
        $region69: #{gpt_forward.1} parent=11 // pred_check
          %p537 = pneg %p370
        $region70: #{gpt_forward.1} parent=11 // pred_check_branch
          %539 = sbr.rel (%p537) target = $region72
        $region71: #{gpt_forward.1} parent=11 // pred_region
          _
        $region72: #{gpt_forward.1} parent=11 // pred_fallthru
          _
        // Predicated region
        $region73: #{gpt_forward.1} parent=11 // pred_check
          %p540 = pneg %p391
        $region74: #{gpt_forward.1} parent=11 // pred_check_branch
          %542 = sbr.rel (%p540) target = $region76
        $region75: #{gpt_forward.1} parent=11 // pred_region
          _
        $region76: #{gpt_forward.1} parent=11 // pred_fallthru
          _
        // Predicated region
        $region77: #{gpt_forward.1} parent=11 // pred_check
          %p543 = pneg %p412
        $region78: #{gpt_forward.1} parent=11 // pred_check_branch
          %545 = sbr.rel (%p543) target = $region80
        $region79: #{gpt_forward.1} parent=11 // pred_region
          _
        $region80: #{gpt_forward.1} parent=11 // pred_fallthru
          _
        // Predicated region
        $region81: #{gpt_forward.1} parent=11 // pred_check
          %p546 = pneg %p433
        $region82: #{gpt_forward.1} parent=11 // pred_check_branch
          %548 = sbr.rel (%p546) target = $region84
        $region83: #{gpt_forward.1} parent=11 // pred_region
          _
        $region84: #{gpt_forward.1} parent=11 // pred_fallthru
          _
        // Predicated region
        $region85: #{gpt_forward.1} parent=11 // pred_check
          %p549 = pneg %p454
        $region86: #{gpt_forward.1} parent=11 // pred_check_branch
          %551 = sbr.rel (%p549) target = $region88
        $region87: #{gpt_forward.1} parent=11 // pred_region
          _
        $region88: #{gpt_forward.1} parent=11 // pred_fallthru
          _
      $region12: #{gpt_forward.1} parent=5 // pred_fallthru
        _
      %p552 = scmp.lt.s32.totalorder %s29, 2
      // Predicated region
      $region89: #{gpt_forward.1} parent=5 // pred_check
        %p553 = pneg %p552
      $region90: #{gpt_forward.1} parent=5 // pred_check_branch
        %555 = sbr.rel (%p553) target = $region92
      $region91: #{gpt_forward.1} parent=5 // pred_region
        // Predicated region
        $region93: #{gpt_forward.1} parent=91 // pred_check
          %p556 = pneg %p49
        $region94: #{gpt_forward.1} parent=91 // pred_check_branch
          %558 = sbr.rel (%p556) target = $region96
        $region95: #{gpt_forward.1} parent=91 // pred_region
          %p559 = scmp.lt.s32.totalorder %s29, 1
          %s560 = scalar_select %p559, %s29, 1
          %s561 = smul.addr %s560, 8
          %s562 = scalar_lea.vmem %s0, %s561
        $region96: #{gpt_forward.1} parent=91 // pred_fallthru
          _
      $region92: #{gpt_forward.1} parent=5 // pred_fallthru
        _
      %p563 = scmp.le.s32.totalorder 1, %s29
      %p564 = scmp.lt.s32.totalorder %s29, 3
      %p565 = pnand %p563, %p564
      %p566 = pneg %p565
      // Predicated region
      $region97: #{gpt_forward.1} parent=5 // pred_check
        _
      $region98: #{gpt_forward.1} parent=5 // pred_check_branch
        %568 = sbr.rel (%p565) target = $region100
      $region99: #{gpt_forward.1} parent=5 // pred_region
        %s569 = ssub.s32 %s29, 1
        %p570 = scmp.lt.s32.totalorder %s34, 1
        %s571 = scalar_select %p570, %s34, 1
        %s572 = smul.addr %s571, 8
        %s573 = scalar_lea.vmem %s0, %s572
        %p574 = pneg %p55
        %p575 = pneg %p52
        %p576 = pneg %p76
        %p577 = pneg %p73
        %p578 = pneg %p97
        %p579 = pneg %p94
        %p580 = pneg %p118
        %p581 = pneg %p115
        %p582 = pneg %p139
        %p583 = pneg %p136
        %p584 = pneg %p160
        %p585 = pneg %p157
        %p586 = pneg %p181
        %p587 = pneg %p178
        %p588 = pneg %p202
        %p589 = pneg %p199
        %p590 = pneg %p223
        %p591 = pneg %p220
        %p592 = pneg %p244
        %p593 = pneg %p241
        %p594 = pneg %p265
        %p595 = pneg %p262
        %p596 = pneg %p286
        %p597 = pneg %p283
        %p598 = pneg %p307
        %p599 = pneg %p304
        %p600 = pneg %p328
        %p601 = pneg %p325
        %p602 = pneg %p349
        %p603 = pneg %p346
        %p604 = pneg %p370
        %p605 = pneg %p367
        %p606 = pneg %p391
        %p607 = pneg %p388
        %p608 = pneg %p412
        %p609 = pneg %p409
        %p610 = pneg %p433
        %p611 = pneg %p430
        %p612 = pneg %p454
        %p613 = pneg %p451
        %p614 = pneg %p480
        %p615 = pneg %p477
        %s616 = sand.u32 %s467, 1
        %s617 = scalar_lea.sflag [#allocation3], %s616
        %s618 = sand.u32 %s467, 1
        %s619 = smul.addr %s618, 8
        %s620 = scalar_lea.vmem [#allocation2], %s619
        %p621 = scmp.lt.s32.totalorder %s34, 1
        %s622 = scalar_select %p621, %s34, 1
        %s623 = smul.addr %s622, 8
        %s624 = scalar_lea.vmem %s0, %s623
        %v625 = vld [vmem:[%s624] sm:$0xff]
        %v626 = vlaneseq
        %v627 = vshrl.u32 %v626, 7
        %v628 = vlaneseq
        %v629 = vand.u32 %v628, 127
        %vm630 = vcmp.le.s32.totalorder %v629, %v627
        %v631 = vld [vmem:[%s1] sm:$0x1]
        %v632 = vld [vmem:[%s2] sm:$0x1]
        %vm633 = vcmask 392192
        %v634 = vsel %vm633, %v625, 0.0
        %635 = vadd.xlane.f32.xlu0 %v634
        %v636 = vpop.xlane.xlu0 %635
        %v637 = vrcp.pop 48.0
        %v638 = vmul.f32 %v636, %v637
        %v639 = vsub.f32 %v625, %v638
        %v640 = vmul.f32 %v639, %v639
        %v641 = vsel %vm633, %v640, 0.0
        %642 = vadd.xlane.f32.xlu0 %v641
        %v643 = vpop.xlane.xlu0 %642
        %v644 = vmul.f32 %v643, %v637
        %v645 = vadd.f32 %v644, 1e-05
        %v646 = vrsqrt.pop %v645
        %v647 = vmul.f32 %v639, %v646
        %v649 = vlaneseq
        %v650 = vshrl.u32 %v649, 7
        %v651 = vsub.s32 0, %v650
        %v652 = vrot.slane %v631, %v651
        %v654 = vmul.f32 %v647, %v652
        %v656 = vlaneseq
        %v657 = vshrl.u32 %v656, 7
        %v658 = vsub.s32 0, %v657
        %v659 = vrot.slane %v632, %v658
        %v661 = vadd.f32 %v654, %v659
        %v662 = vld [vmem:[%s3] sm:$0xff]
        %v663 = vld [vmem:[%s3 + $0x8] sm:$0xff]
        %v664 = vld [vmem:[%s3 + $0x10] sm:$0xff]
        %v665 = vld [vmem:[%s3 + $0x18] sm:$0xff]
        %v666 = vld [vmem:[%s3 + $0x20] sm:$0xff]
        %v667 = vld [vmem:[%s3 + $0x28] sm:$0xff]
        %v668 = vld [vmem:[%s3 + $0x30] sm:$0xff]
        %v669 = vld [vmem:[%s3 + $0x38] sm:$0xff]
        %v670 = vld [vmem:[%s3 + $0x40] sm:$0xff]
        %v671 = vld [vmem:[%s3 + $0x48] sm:$0xff]
        %v672 = vld [vmem:[%s3 + $0x50] sm:$0xff]
        %v673 = vld [vmem:[%s3 + $0x58] sm:$0xff]
        %v674 = vld [vmem:[%s3 + $0x60] sm:$0xff]
        %v675 = vld [vmem:[%s3 + $0x68] sm:$0xff]
        %v676 = vld [vmem:[%s3 + $0x70] sm:$0xff]
        %v677 = vld [vmem:[%s3 + $0x78] sm:$0xff]
        %v678 = vld [vmem:[%s3 + $0x80] sm:$0xff]
        %v679 = vld [vmem:[%s3 + $0x88] sm:$0xff]
        %v680 = vld [vmem:[%s6] sm:$0x1]
        %v681 = vld [vmem:[%s6 + $0x1] sm:$0x1]
        %v682 = vld [vmem:[%s6 + $0x2] sm:$0x1]
        %v686 = vlaneseq
        %v687 = vshrl.u32 %v686, 7
        %v688 = vsub.s32 0, %v687
        %v689 = vrot.slane %v680, %v688
        %v690 = vlaneseq
        %v691 = vshrl.u32 %v690, 7
        %v692 = vsub.s32 0, %v691
        %v693 = vrot.slane %v681, %v692
        %v694 = vlaneseq
        %v695 = vshrl.u32 %v694, 7
        %v696 = vsub.s32 0, %v695
        %v697 = vrot.slane %v682, %v696
        %v702 = vsel %vm633, %v661, 0
        %704 = vmatprep.subr.mxu0 0.0
        %705 = vmatpush1.msra.mxu0 %v662
        %706 = vmatprep.subr.mxu0 0.0
        %707 = vmatpush1.msra.mxu0 %v663
        %708 = vmatprep.subr.mxu0 0.0
        %709 = vmatpush1.msra.mxu0 %v664
        %710 = vmatprep.subr.mxu0 0.0
        %711 = vmatpush1.msra.mxu0 %v665
        %712 = vmatprep.subr.mxu0 0.0
        %713 = vmatpush1.msra.mxu0 %v666
        %714 = vmatprep.subr.mxu0 0.0
        %715 = vmatpush1.msra.mxu0 %v667
        %716 = vmatprep.subr.mxu0 0.0
        %717 = vmatpush1.msra.mxu0 0.0
        %718 = vmatprep.subr.mxu0 0.0
        %719 = vmatpush1.msra.mxu0 0.0
        %720 = vmatprep.subr.mxu0 0.0
        %721 = vmatpush1.msra.mxu0 0.0
        %722 = vmatprep.subr.mxu0 0.0
        %723 = vmatpush1.msra.mxu0 0.0
        %724 = vmatprep.subr.mxu0 0.0
        %725 = vmatpush1.msra.mxu0 0.0
        %726 = vmatprep.subr.mxu0 0.0
        %727 = vmatpush1.msra.mxu0 0.0
        %728 = vmatprep.subr.mxu0 0.0
        %729 = vmatpush1.msra.mxu0 0.0
        %730 = vmatprep.subr.mxu0 0.0
        %731 = vmatpush1.msra.mxu0 0.0
        %732 = vmatprep.subr.mxu0 0.0
        %733 = vmatpush1.msra.mxu0 0.0
        %734 = vmatprep.subr.mxu0 0.0
        %735 = vmatpush1.msra.mxu0 0.0
        %736 = vmatprep.subr.mxu0 0.0
        %737 = vmatpush1.msra.mxu0 0.0
        %738 = vmatprep.subr.mxu0 0.0
        %739 = vmatpush1.msra.mxu0 0.0
        %740 = vmatprep.subr.mxu0 0.0
        %741 = vmatpush1.msra.mxu0 0.0
        %742 = vmatprep.subr.mxu0 0.0
        %743 = vmatpush1.msra.mxu0 0.0
        %744 = vmatprep.subr.mxu0 0.0
        %745 = vmatpush1.msra.mxu0 0.0
        %746 = vmatprep.subr.mxu0 0.0
        %747 = vmatpush1.msra.mxu0 0.0
        %748 = vmatprep.subr.mxu0 0.0
        %749 = vmatpush1.msra.mxu0 0.0
        %750 = vmatprep.subr.mxu0 0.0
        %751 = vmatpush1.msra.mxu0 0.0
        %752 = vmatprep.subr.mxu0 0.0
        %753 = vmatpush1.msra.mxu0 0.0
        %754 = vmatprep.subr.mxu0 0.0
        %755 = vmatpush1.msra.mxu0 0.0
        %756 = vmatprep.subr.mxu0 0.0
        %757 = vmatpush1.msra.mxu0 0.0
        %758 = vmatprep.subr.mxu0 0.0
        %759 = vmatpush1.msra.mxu0 0.0
        %760 = vmatprep.subr.mxu0 0.0
        %761 = vmatpush1.msra.mxu0 0.0
        %762 = vmatprep.subr.mxu0 0.0
        %763 = vmatpush1.msra.mxu0 0.0
        %764 = vmatprep.subr.mxu0 0.0
        %765 = vmatpush1.msra.mxu0 0.0
        %766 = vmatprep.subr.mxu0 0.0
        %767 = vmatpush1.msra.mxu0 0.0
        %768 = vmatprep.mubr.f32.mxu0 0.0
        %769 = vmatmul.mubr.f32.gmra.mrb[0].mxu0 %v702
        %v770 = vpop.f32.mrb[0].mxu0
        %v771 = vadd.f32 %v689, %v770
        %v772 = vpop.f32.mrb[0].mxu0
        %773 = vdwg.mxu0
        %774 = vmatprep.subr.mxu0 0.0
        %775 = vmatpush1.msra.mxu0 %v668
        %776 = vmatprep.subr.mxu0 0.0
        %777 = vmatpush1.msra.mxu0 %v669
        %778 = vmatprep.subr.mxu0 0.0
        %779 = vmatpush1.msra.mxu0 %v670
        %780 = vmatprep.subr.mxu0 0.0
        %781 = vmatpush1.msra.mxu0 %v671
        %782 = vmatprep.subr.mxu0 0.0
        %783 = vmatpush1.msra.mxu0 %v672
        %784 = vmatprep.subr.mxu0 0.0
        %785 = vmatpush1.msra.mxu0 %v673
        %786 = vmatprep.subr.mxu0 0.0
        %787 = vmatpush1.msra.mxu0 0.0
        %788 = vmatprep.subr.mxu0 0.0
        %789 = vmatpush1.msra.mxu0 0.0
        %790 = vmatprep.subr.mxu0 0.0
        %791 = vmatpush1.msra.mxu0 0.0
        %792 = vmatprep.subr.mxu0 0.0
        %793 = vmatpush1.msra.mxu0 0.0
        %794 = vmatprep.subr.mxu0 0.0
        %795 = vmatpush1.msra.mxu0 0.0
        %796 = vmatprep.subr.mxu0 0.0
        %797 = vmatpush1.msra.mxu0 0.0
        %798 = vmatprep.subr.mxu0 0.0
        %799 = vmatpush1.msra.mxu0 0.0
        %800 = vmatprep.subr.mxu0 0.0
        %801 = vmatpush1.msra.mxu0 0.0
        %802 = vmatprep.subr.mxu0 0.0
        %803 = vmatpush1.msra.mxu0 0.0
        %804 = vmatprep.subr.mxu0 0.0
        %805 = vmatpush1.msra.mxu0 0.0
        %806 = vmatprep.subr.mxu0 0.0
        %807 = vmatpush1.msra.mxu0 0.0
        %808 = vmatprep.subr.mxu0 0.0
        %809 = vmatpush1.msra.mxu0 0.0
        %810 = vmatprep.subr.mxu0 0.0
        %811 = vmatpush1.msra.mxu0 0.0
        %812 = vmatprep.subr.mxu0 0.0
        %813 = vmatpush1.msra.mxu0 0.0
        %814 = vmatprep.subr.mxu0 0.0
        %815 = vmatpush1.msra.mxu0 0.0
        %816 = vmatprep.subr.mxu0 0.0
        %817 = vmatpush1.msra.mxu0 0.0
        %818 = vmatprep.subr.mxu0 0.0
        %819 = vmatpush1.msra.mxu0 0.0
        %820 = vmatprep.subr.mxu0 0.0
        %821 = vmatpush1.msra.mxu0 0.0
        %822 = vmatprep.subr.mxu0 0.0
        %823 = vmatpush1.msra.mxu0 0.0
        %824 = vmatprep.subr.mxu0 0.0
        %825 = vmatpush1.msra.mxu0 0.0
        %826 = vmatprep.subr.mxu0 0.0
        %827 = vmatpush1.msra.mxu0 0.0
        %828 = vmatprep.subr.mxu0 0.0
        %829 = vmatpush1.msra.mxu0 0.0
        %830 = vmatprep.subr.mxu0 0.0
        %831 = vmatpush1.msra.mxu0 0.0
        %832 = vmatprep.subr.mxu0 0.0
        %833 = vmatpush1.msra.mxu0 0.0
        %834 = vmatprep.subr.mxu0 0.0
        %835 = vmatpush1.msra.mxu0 0.0
        %836 = vmatprep.subr.mxu0 0.0
        %837 = vmatpush1.msra.mxu0 0.0
        %838 = vmatprep.mubr.f32.mxu0 0.0
        %839 = vmatmul.mubr.f32.gmra.mrb[0].mxu0 %v702
        %v840 = vpop.f32.mrb[0].mxu0
        %v841 = vadd.f32 %v693, %v840
        %v842 = vpop.f32.mrb[0].mxu0
        %843 = vdwg.mxu0
        %844 = vmatprep.subr.mxu0 0.0
        %845 = vmatpush1.msra.mxu0 %v674
        %846 = vmatprep.subr.mxu0 0.0
        %847 = vmatpush1.msra.mxu0 %v675
        %848 = vmatprep.subr.mxu0 0.0
        %849 = vmatpush1.msra.mxu0 %v676
        %850 = vmatprep.subr.mxu0 0.0
        %851 = vmatpush1.msra.mxu0 %v677
        %852 = vmatprep.subr.mxu0 0.0
        %853 = vmatpush1.msra.mxu0 %v678
        %854 = vmatprep.subr.mxu0 0.0
        %855 = vmatpush1.msra.mxu0 %v679
        %856 = vmatprep.subr.mxu0 0.0
        %857 = vmatpush1.msra.mxu0 0.0
        %858 = vmatprep.subr.mxu0 0.0
        %859 = vmatpush1.msra.mxu0 0.0
        %860 = vmatprep.subr.mxu0 0.0
        %861 = vmatpush1.msra.mxu0 0.0
        %862 = vmatprep.subr.mxu0 0.0
        %863 = vmatpush1.msra.mxu0 0.0
        %864 = vmatprep.subr.mxu0 0.0
        %865 = vmatpush1.msra.mxu0 0.0
        %866 = vmatprep.subr.mxu0 0.0
        %867 = vmatpush1.msra.mxu0 0.0
        %868 = vmatprep.subr.mxu0 0.0
        %869 = vmatpush1.msra.mxu0 0.0
        %870 = vmatprep.subr.mxu0 0.0
        %871 = vmatpush1.msra.mxu0 0.0
        %872 = vmatprep.subr.mxu0 0.0
        %873 = vmatpush1.msra.mxu0 0.0
        %874 = vmatprep.subr.mxu0 0.0
        %875 = vmatpush1.msra.mxu0 0.0
        %876 = vmatprep.subr.mxu0 0.0
        %877 = vmatpush1.msra.mxu0 0.0
        %878 = vmatprep.subr.mxu0 0.0
        %879 = vmatpush1.msra.mxu0 0.0
        %880 = vmatprep.subr.mxu0 0.0
        %881 = vmatpush1.msra.mxu0 0.0
        %882 = vmatprep.subr.mxu0 0.0
        %883 = vmatpush1.msra.mxu0 0.0
        %884 = vmatprep.subr.mxu0 0.0
        %885 = vmatpush1.msra.mxu0 0.0
        %886 = vmatprep.subr.mxu0 0.0
        %887 = vmatpush1.msra.mxu0 0.0
        %888 = vmatprep.subr.mxu0 0.0
        %889 = vmatpush1.msra.mxu0 0.0
        %890 = vmatprep.subr.mxu0 0.0
        %891 = vmatpush1.msra.mxu0 0.0
        %892 = vmatprep.subr.mxu0 0.0
        %893 = vmatpush1.msra.mxu0 0.0
        %894 = vmatprep.subr.mxu0 0.0
        %895 = vmatpush1.msra.mxu0 0.0
        %896 = vmatprep.subr.mxu0 0.0
        %897 = vmatpush1.msra.mxu0 0.0
        %898 = vmatprep.subr.mxu0 0.0
        %899 = vmatpush1.msra.mxu0 0.0
        %900 = vmatprep.subr.mxu0 0.0
        %901 = vmatpush1.msra.mxu0 0.0
        %902 = vmatprep.subr.mxu0 0.0
        %903 = vmatpush1.msra.mxu0 0.0
        %904 = vmatprep.subr.mxu0 0.0
        %905 = vmatpush1.msra.mxu0 0.0
        %906 = vmatprep.subr.mxu0 0.0
        %907 = vmatpush1.msra.mxu0 0.0
        %908 = vmatprep.mubr.f32.mxu0 0.0
        %909 = vmatmul.mubr.f32.gmra.mrb[0].mxu0 %v702
        %v910 = vpop.f32.mrb[0].mxu0
        %v911 = vadd.f32 %v697, %v910
        %v912 = vpop.f32.mrb[0].mxu0
        %913 = vdwg.mxu0
        %v914 = vmul.f32 %v771, 0.25
        %v915 = vmul.f32 %v841, 0.25
        %v916 = vmul.f32 %v911, 0.25
        %v917 = vld [vmem:[%s4] sm:$0xff]
        %v918 = vld [vmem:[%s4 + $0x8] sm:$0xff]
        %v919 = vld [vmem:[%s4 + $0x10] sm:$0xff]
        %v920 = vld [vmem:[%s4 + $0x18] sm:$0xff]
        %v921 = vld [vmem:[%s4 + $0x20] sm:$0xff]
        %v922 = vld [vmem:[%s4 + $0x28] sm:$0xff]
        %v923 = vld [vmem:[%s4 + $0x30] sm:$0xff]
        %v924 = vld [vmem:[%s4 + $0x38] sm:$0xff]
        %v925 = vld [vmem:[%s4 + $0x40] sm:$0xff]
        %v926 = vld [vmem:[%s4 + $0x48] sm:$0xff]
        %v927 = vld [vmem:[%s4 + $0x50] sm:$0xff]
        %v928 = vld [vmem:[%s4 + $0x58] sm:$0xff]
        %v929 = vld [vmem:[%s4 + $0x60] sm:$0xff]
        %v930 = vld [vmem:[%s4 + $0x68] sm:$0xff]
        %v931 = vld [vmem:[%s4 + $0x70] sm:$0xff]
        %v932 = vld [vmem:[%s4 + $0x78] sm:$0xff]
        %v933 = vld [vmem:[%s4 + $0x80] sm:$0xff]
        %v934 = vld [vmem:[%s4 + $0x88] sm:$0xff]
        %v935 = vld [vmem:[%s7] sm:$0x1]
        %v936 = vld [vmem:[%s7 + $0x1] sm:$0x1]
        %v937 = vld [vmem:[%s7 + $0x2] sm:$0x1]
        %v941 = vlaneseq
        %v942 = vshrl.u32 %v941, 7
        %v943 = vsub.s32 0, %v942
        %v944 = vrot.slane %v935, %v943
        %v945 = vlaneseq
        %v946 = vshrl.u32 %v945, 7
        %v947 = vsub.s32 0, %v946
        %v948 = vrot.slane %v936, %v947
        %v949 = vlaneseq
        %v950 = vshrl.u32 %v949, 7
        %v951 = vsub.s32 0, %v950
        %v952 = vrot.slane %v937, %v951
        %956 = vmatprep.subr.mxu0 0.0
        %957 = vmatpush1.msra.mxu0 %v917
        %958 = vmatprep.subr.mxu0 0.0
        %959 = vmatpush1.msra.mxu0 %v918
        %960 = vmatprep.subr.mxu0 0.0
        %961 = vmatpush1.msra.mxu0 %v919
        %962 = vmatprep.subr.mxu0 0.0
        %963 = vmatpush1.msra.mxu0 %v920
        %964 = vmatprep.subr.mxu0 0.0
        %965 = vmatpush1.msra.mxu0 %v921
        %966 = vmatprep.subr.mxu0 0.0
        %967 = vmatpush1.msra.mxu0 %v922
        %968 = vmatprep.subr.mxu0 0.0
        %969 = vmatpush1.msra.mxu0 0.0
        %970 = vmatprep.subr.mxu0 0.0
        %971 = vmatpush1.msra.mxu0 0.0
        %972 = vmatprep.subr.mxu0 0.0
        %973 = vmatpush1.msra.mxu0 0.0
        %974 = vmatprep.subr.mxu0 0.0
        %975 = vmatpush1.msra.mxu0 0.0
        %976 = vmatprep.subr.mxu0 0.0
        %977 = vmatpush1.msra.mxu0 0.0
        %978 = vmatprep.subr.mxu0 0.0
        %979 = vmatpush1.msra.mxu0 0.0
        %980 = vmatprep.subr.mxu0 0.0
        %981 = vmatpush1.msra.mxu0 0.0
        %982 = vmatprep.subr.mxu0 0.0
        %983 = vmatpush1.msra.mxu0 0.0
        %984 = vmatprep.subr.mxu0 0.0
        %985 = vmatpush1.msra.mxu0 0.0
        %986 = vmatprep.subr.mxu0 0.0
        %987 = vmatpush1.msra.mxu0 0.0
        %988 = vmatprep.subr.mxu0 0.0
        %989 = vmatpush1.msra.mxu0 0.0
        %990 = vmatprep.subr.mxu0 0.0
        %991 = vmatpush1.msra.mxu0 0.0
        %992 = vmatprep.subr.mxu0 0.0
        %993 = vmatpush1.msra.mxu0 0.0
        %994 = vmatprep.subr.mxu0 0.0
        %995 = vmatpush1.msra.mxu0 0.0
        %996 = vmatprep.subr.mxu0 0.0
        %997 = vmatpush1.msra.mxu0 0.0
        %998 = vmatprep.subr.mxu0 0.0
        %999 = vmatpush1.msra.mxu0 0.0
        %1000 = vmatprep.subr.mxu0 0.0
        %1001 = vmatpush1.msra.mxu0 0.0
        %1002 = vmatprep.subr.mxu0 0.0
        %1003 = vmatpush1.msra.mxu0 0.0
        %1004 = vmatprep.subr.mxu0 0.0
        %1005 = vmatpush1.msra.mxu0 0.0
        %1006 = vmatprep.subr.mxu0 0.0
        %1007 = vmatpush1.msra.mxu0 0.0
        %1008 = vmatprep.subr.mxu0 0.0
        %1009 = vmatpush1.msra.mxu0 0.0
        %1010 = vmatprep.subr.mxu0 0.0
        %1011 = vmatpush1.msra.mxu0 0.0
        %1012 = vmatprep.subr.mxu0 0.0
        %1013 = vmatpush1.msra.mxu0 0.0
        %1014 = vmatprep.subr.mxu0 0.0
        %1015 = vmatpush1.msra.mxu0 0.0
        %1016 = vmatprep.subr.mxu0 0.0
        %1017 = vmatpush1.msra.mxu0 0.0
        %1018 = vmatprep.subr.mxu0 0.0
        %1019 = vmatpush1.msra.mxu0 0.0
        %1020 = vmatprep.mubr.f32.mxu0 0.0
        %1021 = vmatmul.mubr.f32.gmra.mrb[0].mxu0 %v702
        %v1022 = vpop.f32.mrb[0].mxu0
        %v1023 = vadd.f32 %v944, %v1022
        %v1024 = vpop.f32.mrb[0].mxu0
        %1025 = vdwg.mxu0
        %1026 = vmatprep.subr.mxu0 0.0
        %1027 = vmatpush1.msra.mxu0 %v923
        %1028 = vmatprep.subr.mxu0 0.0
        %1029 = vmatpush1.msra.mxu0 %v924
        %1030 = vmatprep.subr.mxu0 0.0
        %1031 = vmatpush1.msra.mxu0 %v925
        %1032 = vmatprep.subr.mxu0 0.0
        %1033 = vmatpush1.msra.mxu0 %v926
        %1034 = vmatprep.subr.mxu0 0.0
        %1035 = vmatpush1.msra.mxu0 %v927
        %1036 = vmatprep.subr.mxu0 0.0
        %1037 = vmatpush1.msra.mxu0 %v928
        %1038 = vmatprep.subr.mxu0 0.0
        %1039 = vmatpush1.msra.mxu0 0.0
        %1040 = vmatprep.subr.mxu0 0.0
        %1041 = vmatpush1.msra.mxu0 0.0
        %1042 = vmatprep.subr.mxu0 0.0
        %1043 = vmatpush1.msra.mxu0 0.0
        %1044 = vmatprep.subr.mxu0 0.0
        %1045 = vmatpush1.msra.mxu0 0.0
        %1046 = vmatprep.subr.mxu0 0.0
        %1047 = vmatpush1.msra.mxu0 0.0
        %1048 = vmatprep.subr.mxu0 0.0
        %1049 = vmatpush1.msra.mxu0 0.0
        %1050 = vmatprep.subr.mxu0 0.0
        %1051 = vmatpush1.msra.mxu0 0.0
        %1052 = vmatprep.subr.mxu0 0.0
        %1053 = vmatpush1.msra.mxu0 0.0
        %1054 = vmatprep.subr.mxu0 0.0
        %1055 = vmatpush1.msra.mxu0 0.0
        %1056 = vmatprep.subr.mxu0 0.0
        %1057 = vmatpush1.msra.mxu0 0.0
        %1058 = vmatprep.subr.mxu0 0.0
        %1059 = vmatpush1.msra.mxu0 0.0
        %1060 = vmatprep.subr.mxu0 0.0
        %1061 = vmatpush1.msra.mxu0 0.0
        %1062 = vmatprep.subr.mxu0 0.0
        %1063 = vmatpush1.msra.mxu0 0.0
        %1064 = vmatprep.subr.mxu0 0.0
        %1065 = vmatpush1.msra.mxu0 0.0
        %1066 = vmatprep.subr.mxu0 0.0
        %1067 = vmatpush1.msra.mxu0 0.0
        %1068 = vmatprep.subr.mxu0 0.0
        %1069 = vmatpush1.msra.mxu0 0.0
        %1070 = vmatprep.subr.mxu0 0.0
        %1071 = vmatpush1.msra.mxu0 0.0
        %1072 = vmatprep.subr.mxu0 0.0
        %1073 = vmatpush1.msra.mxu0 0.0
        %1074 = vmatprep.subr.mxu0 0.0
        %1075 = vmatpush1.msra.mxu0 0.0
        %1076 = vmatprep.subr.mxu0 0.0
        %1077 = vmatpush1.msra.mxu0 0.0
        %1078 = vmatprep.subr.mxu0 0.0
        %1079 = vmatpush1.msra.mxu0 0.0
        %1080 = vmatprep.subr.mxu0 0.0
        %1081 = vmatpush1.msra.mxu0 0.0
        %1082 = vmatprep.subr.mxu0 0.0
        %1083 = vmatpush1.msra.mxu0 0.0
        %1084 = vmatprep.subr.mxu0 0.0
        %1085 = vmatpush1.msra.mxu0 0.0
        %1086 = vmatprep.subr.mxu0 0.0
        %1087 = vmatpush1.msra.mxu0 0.0
        %1088 = vmatprep.subr.mxu0 0.0
        %1089 = vmatpush1.msra.mxu0 0.0
        %1090 = vmatprep.mubr.f32.mxu0 0.0
        %1091 = vmatmul.mubr.f32.gmra.mrb[0].mxu0 %v702
        %v1092 = vpop.f32.mrb[0].mxu0
        %v1093 = vadd.f32 %v948, %v1092
        %v1094 = vpop.f32.mrb[0].mxu0
        %1095 = vdwg.mxu0
        %1096 = vmatprep.subr.mxu0 0.0
        %1097 = vmatpush1.msra.mxu0 %v929
        %1098 = vmatprep.subr.mxu0 0.0
        %1099 = vmatpush1.msra.mxu0 %v930
        %1100 = vmatprep.subr.mxu0 0.0
        %1101 = vmatpush1.msra.mxu0 %v931
        %1102 = vmatprep.subr.mxu0 0.0
        %1103 = vmatpush1.msra.mxu0 %v932
        %1104 = vmatprep.subr.mxu0 0.0
        %1105 = vmatpush1.msra.mxu0 %v933
        %1106 = vmatprep.subr.mxu0 0.0
        %1107 = vmatpush1.msra.mxu0 %v934
        %1108 = vmatprep.subr.mxu0 0.0
        %1109 = vmatpush1.msra.mxu0 0.0
        %1110 = vmatprep.subr.mxu0 0.0
        %1111 = vmatpush1.msra.mxu0 0.0
        %1112 = vmatprep.subr.mxu0 0.0
        %1113 = vmatpush1.msra.mxu0 0.0
        %1114 = vmatprep.subr.mxu0 0.0
        %1115 = vmatpush1.msra.mxu0 0.0
        %1116 = vmatprep.subr.mxu0 0.0
        %1117 = vmatpush1.msra.mxu0 0.0
        %1118 = vmatprep.subr.mxu0 0.0
        %1119 = vmatpush1.msra.mxu0 0.0
        %1120 = vmatprep.subr.mxu0 0.0
        %1121 = vmatpush1.msra.mxu0 0.0
        %1122 = vmatprep.subr.mxu0 0.0
        %1123 = vmatpush1.msra.mxu0 0.0
        %1124 = vmatprep.subr.mxu0 0.0
        %1125 = vmatpush1.msra.mxu0 0.0
        %1126 = vmatprep.subr.mxu0 0.0
        %1127 = vmatpush1.msra.mxu0 0.0
        %1128 = vmatprep.subr.mxu0 0.0
        %1129 = vmatpush1.msra.mxu0 0.0
        %1130 = vmatprep.subr.mxu0 0.0
        %1131 = vmatpush1.msra.mxu0 0.0
        %1132 = vmatprep.subr.mxu0 0.0
        %1133 = vmatpush1.msra.mxu0 0.0
        %1134 = vmatprep.subr.mxu0 0.0
        %1135 = vmatpush1.msra.mxu0 0.0
        %1136 = vmatprep.subr.mxu0 0.0
        %1137 = vmatpush1.msra.mxu0 0.0
        %1138 = vmatprep.subr.mxu0 0.0
        %1139 = vmatpush1.msra.mxu0 0.0
        %1140 = vmatprep.subr.mxu0 0.0
        %1141 = vmatpush1.msra.mxu0 0.0
        %1142 = vmatprep.subr.mxu0 0.0
        %1143 = vmatpush1.msra.mxu0 0.0
        %1144 = vmatprep.subr.mxu0 0.0
        %1145 = vmatpush1.msra.mxu0 0.0
        %1146 = vmatprep.subr.mxu0 0.0
        %1147 = vmatpush1.msra.mxu0 0.0
        %1148 = vmatprep.subr.mxu0 0.0
        %1149 = vmatpush1.msra.mxu0 0.0
        %1150 = vmatprep.subr.mxu0 0.0
        %1151 = vmatpush1.msra.mxu0 0.0
        %1152 = vmatprep.subr.mxu0 0.0
        %1153 = vmatpush1.msra.mxu0 0.0
        %1154 = vmatprep.subr.mxu0 0.0
        %1155 = vmatpush1.msra.mxu0 0.0
        %1156 = vmatprep.subr.mxu0 0.0
        %1157 = vmatpush1.msra.mxu0 0.0
        %1158 = vmatprep.subr.mxu0 0.0
        %1159 = vmatpush1.msra.mxu0 0.0
        %1160 = vmatprep.mubr.f32.mxu0 0.0
        %1161 = vmatmul.mubr.f32.gmra.mrb[0].mxu0 %v702
        %v1162 = vpop.f32.mrb[0].mxu0
        %v1163 = vadd.f32 %v952, %v1162
        %v1164 = vpop.f32.mrb[0].mxu0
        %1165 = vdwg.mxu0
        %v1166 = vld [vmem:[%s5] sm:$0xff]
        %v1167 = vld [vmem:[%s5 + $0x8] sm:$0xff]
        %v1168 = vld [vmem:[%s5 + $0x10] sm:$0xff]
        %v1169 = vld [vmem:[%s5 + $0x18] sm:$0xff]
        %v1170 = vld [vmem:[%s5 + $0x20] sm:$0xff]
        %v1171 = vld [vmem:[%s5 + $0x28] sm:$0xff]
        %v1172 = vld [vmem:[%s5 + $0x30] sm:$0xff]
        %v1173 = vld [vmem:[%s5 + $0x38] sm:$0xff]
        %v1174 = vld [vmem:[%s5 + $0x40] sm:$0xff]
        %v1175 = vld [vmem:[%s5 + $0x48] sm:$0xff]
        %v1176 = vld [vmem:[%s5 + $0x50] sm:$0xff]
        %v1177 = vld [vmem:[%s5 + $0x58] sm:$0xff]
        %v1178 = vld [vmem:[%s5 + $0x60] sm:$0xff]
        %v1179 = vld [vmem:[%s5 + $0x68] sm:$0xff]
        %v1180 = vld [vmem:[%s5 + $0x70] sm:$0xff]
        %v1181 = vld [vmem:[%s5 + $0x78] sm:$0xff]
        %v1182 = vld [vmem:[%s5 + $0x80] sm:$0xff]
        %v1183 = vld [vmem:[%s5 + $0x88] sm:$0xff]
        %v1184 = vld [vmem:[%s8] sm:$0x1]
        %v1185 = vld [vmem:[%s8 + $0x1] sm:$0x1]
        %v1186 = vld [vmem:[%s8 + $0x2] sm:$0x1]
        %v1190 = vlaneseq
        %v1191 = vshrl.u32 %v1190, 7
        %v1192 = vsub.s32 0, %v1191
        %v1193 = vrot.slane %v1184, %v1192
        %v1194 = vlaneseq
        %v1195 = vshrl.u32 %v1194, 7
        %v1196 = vsub.s32 0, %v1195
        %v1197 = vrot.slane %v1185, %v1196
        %v1198 = vlaneseq
        %v1199 = vshrl.u32 %v1198, 7
        %v1200 = vsub.s32 0, %v1199
        %v1201 = vrot.slane %v1186, %v1200
        %1205 = vmatprep.subr.mxu0 0.0
        %1206 = vmatpush1.msra.mxu0 %v1166
        %1207 = vmatprep.subr.mxu0 0.0
        %1208 = vmatpush1.msra.mxu0 %v1167
        %1209 = vmatprep.subr.mxu0 0.0
        %1210 = vmatpush1.msra.mxu0 %v1168
        %1211 = vmatprep.subr.mxu0 0.0
        %1212 = vmatpush1.msra.mxu0 %v1169
        %1213 = vmatprep.subr.mxu0 0.0
        %1214 = vmatpush1.msra.mxu0 %v1170
        %1215 = vmatprep.subr.mxu0 0.0
        %1216 = vmatpush1.msra.mxu0 %v1171
        %1217 = vmatprep.subr.mxu0 0.0
        %1218 = vmatpush1.msra.mxu0 0.0
        %1219 = vmatprep.subr.mxu0 0.0
        %1220 = vmatpush1.msra.mxu0 0.0
        %1221 = vmatprep.subr.mxu0 0.0
        %1222 = vmatpush1.msra.mxu0 0.0
        %1223 = vmatprep.subr.mxu0 0.0
        %1224 = vmatpush1.msra.mxu0 0.0
        %1225 = vmatprep.subr.mxu0 0.0
        %1226 = vmatpush1.msra.mxu0 0.0
        %1227 = vmatprep.subr.mxu0 0.0
        %1228 = vmatpush1.msra.mxu0 0.0
        %1229 = vmatprep.subr.mxu0 0.0
        %1230 = vmatpush1.msra.mxu0 0.0
        %1231 = vmatprep.subr.mxu0 0.0
        %1232 = vmatpush1.msra.mxu0 0.0
        %1233 = vmatprep.subr.mxu0 0.0
        %1234 = vmatpush1.msra.mxu0 0.0
        %1235 = vmatprep.subr.mxu0 0.0
        %1236 = vmatpush1.msra.mxu0 0.0
        %1237 = vmatprep.subr.mxu0 0.0
        %1238 = vmatpush1.msra.mxu0 0.0
        %1239 = vmatprep.subr.mxu0 0.0
        %1240 = vmatpush1.msra.mxu0 0.0
        %1241 = vmatprep.subr.mxu0 0.0
        %1242 = vmatpush1.msra.mxu0 0.0
        %1243 = vmatprep.subr.mxu0 0.0
        %1244 = vmatpush1.msra.mxu0 0.0
        %1245 = vmatprep.subr.mxu0 0.0
        %1246 = vmatpush1.msra.mxu0 0.0
        %1247 = vmatprep.subr.mxu0 0.0
        %1248 = vmatpush1.msra.mxu0 0.0
        %1249 = vmatprep.subr.mxu0 0.0
        %1250 = vmatpush1.msra.mxu0 0.0
        %1251 = vmatprep.subr.mxu0 0.0
        %1252 = vmatpush1.msra.mxu0 0.0
        %1253 = vmatprep.subr.mxu0 0.0
        %1254 = vmatpush1.msra.mxu0 0.0
        %1255 = vmatprep.subr.mxu0 0.0
        %1256 = vmatpush1.msra.mxu0 0.0
        %1257 = vmatprep.subr.mxu0 0.0
        %1258 = vmatpush1.msra.mxu0 0.0
        %1259 = vmatprep.subr.mxu0 0.0
        %1260 = vmatpush1.msra.mxu0 0.0
        %1261 = vmatprep.subr.mxu0 0.0
        %1262 = vmatpush1.msra.mxu0 0.0
        %1263 = vmatprep.subr.mxu0 0.0
        %1264 = vmatpush1.msra.mxu0 0.0
        %1265 = vmatprep.subr.mxu0 0.0
        %1266 = vmatpush1.msra.mxu0 0.0
        %1267 = vmatprep.subr.mxu0 0.0
        %1268 = vmatpush1.msra.mxu0 0.0
        %1269 = vmatprep.mubr.f32.mxu0 0.0
        %1270 = vmatmul.mubr.f32.gmra.mrb[0].mxu0 %v702
        %v1271 = vpop.f32.mrb[0].mxu0
        %v1272 = vadd.f32 %v1193, %v1271
        %v1273 = vpop.f32.mrb[0].mxu0
        %1274 = vdwg.mxu0
        %1275 = vmatprep.subr.mxu0 0.0
        %1276 = vmatpush1.msra.mxu0 %v1172
        %1277 = vmatprep.subr.mxu0 0.0
        %1278 = vmatpush1.msra.mxu0 %v1173
        %1279 = vmatprep.subr.mxu0 0.0
        %1280 = vmatpush1.msra.mxu0 %v1174
        %1281 = vmatprep.subr.mxu0 0.0
        %1282 = vmatpush1.msra.mxu0 %v1175
        %1283 = vmatprep.subr.mxu0 0.0
        %1284 = vmatpush1.msra.mxu0 %v1176
        %1285 = vmatprep.subr.mxu0 0.0
        %1286 = vmatpush1.msra.mxu0 %v1177
        %1287 = vmatprep.subr.mxu0 0.0
        %1288 = vmatpush1.msra.mxu0 0.0
        %1289 = vmatprep.subr.mxu0 0.0
        %1290 = vmatpush1.msra.mxu0 0.0
        %1291 = vmatprep.subr.mxu0 0.0
        %1292 = vmatpush1.msra.mxu0 0.0
        %1293 = vmatprep.subr.mxu0 0.0
        %1294 = vmatpush1.msra.mxu0 0.0
        %1295 = vmatprep.subr.mxu0 0.0
        %1296 = vmatpush1.msra.mxu0 0.0
        %1297 = vmatprep.subr.mxu0 0.0
        %1298 = vmatpush1.msra.mxu0 0.0
        %1299 = vmatprep.subr.mxu0 0.0
        %1300 = vmatpush1.msra.mxu0 0.0
        %1301 = vmatprep.subr.mxu0 0.0
        %1302 = vmatpush1.msra.mxu0 0.0
        %1303 = vmatprep.subr.mxu0 0.0
        %1304 = vmatpush1.msra.mxu0 0.0
        %1305 = vmatprep.subr.mxu0 0.0
        %1306 = vmatpush1.msra.mxu0 0.0
        %1307 = vmatprep.subr.mxu0 0.0
        %1308 = vmatpush1.msra.mxu0 0.0
        %1309 = vmatprep.subr.mxu0 0.0
        %1310 = vmatpush1.msra.mxu0 0.0
        %1311 = vmatprep.subr.mxu0 0.0
        %1312 = vmatpush1.msra.mxu0 0.0
        %1313 = vmatprep.subr.mxu0 0.0
        %1314 = vmatpush1.msra.mxu0 0.0
        %1315 = vmatprep.subr.mxu0 0.0
        %1316 = vmatpush1.msra.mxu0 0.0
        %1317 = vmatprep.subr.mxu0 0.0
        %1318 = vmatpush1.msra.mxu0 0.0
        %1319 = vmatprep.subr.mxu0 0.0
        %1320 = vmatpush1.msra.mxu0 0.0
        %1321 = vmatprep.subr.mxu0 0.0
        %1322 = vmatpush1.msra.mxu0 0.0
        %1323 = vmatprep.subr.mxu0 0.0
        %1324 = vmatpush1.msra.mxu0 0.0
        %1325 = vmatprep.subr.mxu0 0.0
        %1326 = vmatpush1.msra.mxu0 0.0
        %1327 = vmatprep.subr.mxu0 0.0
        %1328 = vmatpush1.msra.mxu0 0.0
        %1329 = vmatprep.subr.mxu0 0.0
        %1330 = vmatpush1.msra.mxu0 0.0
        %1331 = vmatprep.subr.mxu0 0.0
        %1332 = vmatpush1.msra.mxu0 0.0
        %1333 = vmatprep.subr.mxu0 0.0
        %1334 = vmatpush1.msra.mxu0 0.0
        %1335 = vmatprep.subr.mxu0 0.0
        %1336 = vmatpush1.msra.mxu0 0.0
        %1337 = vmatprep.subr.mxu0 0.0
        %1338 = vmatpush1.msra.mxu0 0.0
        %1339 = vmatprep.mubr.f32.mxu0 0.0
        %1340 = vmatmul.mubr.f32.gmra.mrb[0].mxu0 %v702
        %v1341 = vpop.f32.mrb[0].mxu0
        %v1342 = vadd.f32 %v1197, %v1341
        %v1343 = vpop.f32.mrb[0].mxu0
        %1344 = vdwg.mxu0
        %1345 = vmatprep.subr.mxu0 0.0
        %1346 = vmatpush1.msra.mxu0 %v1178
        %1347 = vmatprep.subr.mxu0 0.0
        %1348 = vmatpush1.msra.mxu0 %v1179
        %1349 = vmatprep.subr.mxu0 0.0
        %1350 = vmatpush1.msra.mxu0 %v1180
        %1351 = vmatprep.subr.mxu0 0.0
        %1352 = vmatpush1.msra.mxu0 %v1181
        %1353 = vmatprep.subr.mxu0 0.0
        %1354 = vmatpush1.msra.mxu0 %v1182
        %1355 = vmatprep.subr.mxu0 0.0
        %1356 = vmatpush1.msra.mxu0 %v1183
        %1357 = vmatprep.subr.mxu0 0.0
        %1358 = vmatpush1.msra.mxu0 0.0
        %1359 = vmatprep.subr.mxu0 0.0
        %1360 = vmatpush1.msra.mxu0 0.0
        %1361 = vmatprep.subr.mxu0 0.0
        %1362 = vmatpush1.msra.mxu0 0.0
        %1363 = vmatprep.subr.mxu0 0.0
        %1364 = vmatpush1.msra.mxu0 0.0
        %1365 = vmatprep.subr.mxu0 0.0
        %1366 = vmatpush1.msra.mxu0 0.0
        %1367 = vmatprep.subr.mxu0 0.0
        %1368 = vmatpush1.msra.mxu0 0.0
        %1369 = vmatprep.subr.mxu0 0.0
        %1370 = vmatpush1.msra.mxu0 0.0
        %1371 = vmatprep.subr.mxu0 0.0
        %1372 = vmatpush1.msra.mxu0 0.0
        %1373 = vmatprep.subr.mxu0 0.0
        %1374 = vmatpush1.msra.mxu0 0.0
        %1375 = vmatprep.subr.mxu0 0.0
        %1376 = vmatpush1.msra.mxu0 0.0
        %1377 = vmatprep.subr.mxu0 0.0
        %1378 = vmatpush1.msra.mxu0 0.0
        %1379 = vmatprep.subr.mxu0 0.0
        %1380 = vmatpush1.msra.mxu0 0.0
        %1381 = vmatprep.subr.mxu0 0.0
        %1382 = vmatpush1.msra.mxu0 0.0
        %1383 = vmatprep.subr.mxu0 0.0
        %1384 = vmatpush1.msra.mxu0 0.0
        %1385 = vmatprep.subr.mxu0 0.0
        %1386 = vmatpush1.msra.mxu0 0.0
        %1387 = vmatprep.subr.mxu0 0.0
        %1388 = vmatpush1.msra.mxu0 0.0
        %1389 = vmatprep.subr.mxu0 0.0
        %1390 = vmatpush1.msra.mxu0 0.0
        %1391 = vmatprep.subr.mxu0 0.0
        %1392 = vmatpush1.msra.mxu0 0.0
        %1393 = vmatprep.subr.mxu0 0.0
        %1394 = vmatpush1.msra.mxu0 0.0
        %1395 = vmatprep.subr.mxu0 0.0
        %1396 = vmatpush1.msra.mxu0 0.0
        %1397 = vmatprep.subr.mxu0 0.0
        %1398 = vmatpush1.msra.mxu0 0.0
        %1399 = vmatprep.subr.mxu0 0.0
        %1400 = vmatpush1.msra.mxu0 0.0
        %1401 = vmatprep.subr.mxu0 0.0
        %1402 = vmatpush1.msra.mxu0 0.0
        %1403 = vmatprep.subr.mxu0 0.0
        %1404 = vmatpush1.msra.mxu0 0.0
        %1405 = vmatprep.subr.mxu0 0.0
        %1406 = vmatpush1.msra.mxu0 0.0
        %1407 = vmatprep.subr.mxu0 0.0
        %1408 = vmatpush1.msra.mxu0 0.0
        %1409 = vmatprep.mubr.f32.mxu0 0.0
        %1410 = vmatmul.mubr.f32.gmra.mrb[0].mxu0 %v702
        %v1411 = vpop.f32.mrb[0].mxu0
        %v1412 = vadd.f32 %v1201, %v1411
        %v1413 = vpop.f32.mrb[0].mxu0
        %1414 = vdwg.mxu0
        %vm1415 = vcmask 130048
        %v1417 = vsel %vm1415, %v914, 0
        %v1420 = vsel %vm1415, %v1023, 0
        %1422 = vmatprep.subr.mxu0 0.0
        %1423 = vmatpush1.xpose.msra.mxu0 %v1420
        %1424 = vmatprep.subr.mxu0 0.0
        %1425 = vmatpush1.xpose.msra.mxu0 0.0
        %1426 = vmatprep.subr.mxu0 0.0
        %1427 = vmatpush1.xpose.msra.mxu0 0.0
        %1428 = vmatprep.subr.mxu0 0.0
        %1429 = vmatpush1.xpose.msra.mxu0 0.0
        %1430 = vmatprep.subr.mxu0 0.0
        %1431 = vmatpush1.xpose.msra.mxu0 0.0
        %1432 = vmatprep.subr.mxu0 0.0
        %1433 = vmatpush1.xpose.msra.mxu0 0.0
        %1434 = vmatprep.subr.mxu0 0.0
        %1435 = vmatpush1.xpose.msra.mxu0 0.0
        %1436 = vmatprep.subr.mxu0 0.0
        %1437 = vmatpush1.xpose.msra.mxu0 0.0
        %1438 = vmatprep.subr.mxu0 0.0
        %1439 = vmatpush1.xpose.msra.mxu0 0.0
        %1440 = vmatprep.subr.mxu0 0.0
        %1441 = vmatpush1.xpose.msra.mxu0 0.0
        %1442 = vmatprep.subr.mxu0 0.0
        %1443 = vmatpush1.xpose.msra.mxu0 0.0
        %1444 = vmatprep.subr.mxu0 0.0
        %1445 = vmatpush1.xpose.msra.mxu0 0.0
        %1446 = vmatprep.subr.mxu0 0.0
        %1447 = vmatpush1.xpose.msra.mxu0 0.0
        %1448 = vmatprep.subr.mxu0 0.0
        %1449 = vmatpush1.xpose.msra.mxu0 0.0
        %1450 = vmatprep.subr.mxu0 0.0
        %1451 = vmatpush1.xpose.msra.mxu0 0.0
        %1452 = vmatprep.subr.mxu0 0.0
        %1453 = vmatpush1.xpose.msra.mxu0 0.0
        %1454 = vmatprep.subr.mxu0 0.0
        %1455 = vmatpush1.xpose.msra.mxu0 0.0
        %1456 = vmatprep.subr.mxu0 0.0
        %1457 = vmatpush1.xpose.msra.mxu0 0.0
        %1458 = vmatprep.subr.mxu0 0.0
        %1459 = vmatpush1.xpose.msra.mxu0 0.0
        %1460 = vmatprep.subr.mxu0 0.0
        %1461 = vmatpush1.xpose.msra.mxu0 0.0
        %1462 = vmatprep.subr.mxu0 0.0
        %1463 = vmatpush1.xpose.msra.mxu0 0.0
        %1464 = vmatprep.subr.mxu0 0.0
        %1465 = vmatpush1.xpose.msra.mxu0 0.0
        %1466 = vmatprep.subr.mxu0 0.0
        %1467 = vmatpush1.xpose.msra.mxu0 0.0
        %1468 = vmatprep.subr.mxu0 0.0
        %1469 = vmatpush1.xpose.msra.mxu0 0.0
        %1470 = vmatprep.subr.mxu0 0.0
        %1471 = vmatpush1.xpose.msra.mxu0 0.0
        %1472 = vmatprep.subr.mxu0 0.0
        %1473 = vmatpush1.xpose.msra.mxu0 0.0
        %1474 = vmatprep.subr.mxu0 0.0
        %1475 = vmatpush1.xpose.msra.mxu0 0.0
        %1476 = vmatprep.subr.mxu0 0.0
        %1477 = vmatpush1.xpose.msra.mxu0 0.0
        %1478 = vmatprep.subr.mxu0 0.0
        %1479 = vmatpush1.xpose.msra.mxu0 0.0
        %1480 = vmatprep.subr.mxu0 0.0
        %1481 = vmatpush1.xpose.msra.mxu0 0.0
        %1482 = vmatprep.subr.mxu0 0.0
        %1483 = vmatpush1.xpose.msra.mxu0 0.0
        %1484 = vmatprep.subr.mxu0 0.0
        %1485 = vmatpush1.xpose.msra.mxu0 0.0
        %1486 = vmatprep.mubr.f32.mxu0 0.0
        %1487 = vmatmul.mubr.f32.gmra.mrb[0].mxu0 %v1417
        %v1488 = vpop.f32.mrb[0].mxu0
        %v1489 = vadd.f32 0.0, %v1488
        %v1490 = vpop.f32.mrb[0].mxu0
        %1491 = vdwg.mxu0
        %v1493 = vsel %vm1415, %v915, 0
        %v1496 = vsel %vm1415, %v1093, 0
        %1498 = vmatprep.subr.mxu0 0.0
        %1499 = vmatpush1.xpose.msra.mxu0 %v1496
        %1500 = vmatprep.subr.mxu0 0.0
        %1501 = vmatpush1.xpose.msra.mxu0 0.0
        %1502 = vmatprep.subr.mxu0 0.0
        %1503 = vmatpush1.xpose.msra.mxu0 0.0
        %1504 = vmatprep.subr.mxu0 0.0
        %1505 = vmatpush1.xpose.msra.mxu0 0.0
        %1506 = vmatprep.subr.mxu0 0.0
        %1507 = vmatpush1.xpose.msra.mxu0 0.0
        %1508 = vmatprep.subr.mxu0 0.0
        %1509 = vmatpush1.xpose.msra.mxu0 0.0
        %1510 = vmatprep.subr.mxu0 0.0
        %1511 = vmatpush1.xpose.msra.mxu0 0.0
        %1512 = vmatprep.subr.mxu0 0.0
        %1513 = vmatpush1.xpose.msra.mxu0 0.0
        %1514 = vmatprep.subr.mxu0 0.0
        %1515 = vmatpush1.xpose.msra.mxu0 0.0
        %1516 = vmatprep.subr.mxu0 0.0
        %1517 = vmatpush1.xpose.msra.mxu0 0.0
        %1518 = vmatprep.subr.mxu0 0.0
        %1519 = vmatpush1.xpose.msra.mxu0 0.0
        %1520 = vmatprep.subr.mxu0 0.0
        %1521 = vmatpush1.xpose.msra.mxu0 0.0
        %1522 = vmatprep.subr.mxu0 0.0
        %1523 = vmatpush1.xpose.msra.mxu0 0.0
        %1524 = vmatprep.subr.mxu0 0.0
        %1525 = vmatpush1.xpose.msra.mxu0 0.0
        %1526 = vmatprep.subr.mxu0 0.0
        %1527 = vmatpush1.xpose.msra.mxu0 0.0
        %1528 = vmatprep.subr.mxu0 0.0
        %1529 = vmatpush1.xpose.msra.mxu0 0.0
        %1530 = vmatprep.subr.mxu0 0.0
        %1531 = vmatpush1.xpose.msra.mxu0 0.0
        %1532 = vmatprep.subr.mxu0 0.0
        %1533 = vmatpush1.xpose.msra.mxu0 0.0
        %1534 = vmatprep.subr.mxu0 0.0
        %1535 = vmatpush1.xpose.msra.mxu0 0.0
        %1536 = vmatprep.subr.mxu0 0.0
        %1537 = vmatpush1.xpose.msra.mxu0 0.0
        %1538 = vmatprep.subr.mxu0 0.0
        %1539 = vmatpush1.xpose.msra.mxu0 0.0
        %1540 = vmatprep.subr.mxu0 0.0
        %1541 = vmatpush1.xpose.msra.mxu0 0.0
        %1542 = vmatprep.subr.mxu0 0.0
        %1543 = vmatpush1.xpose.msra.mxu0 0.0
        %1544 = vmatprep.subr.mxu0 0.0
        %1545 = vmatpush1.xpose.msra.mxu0 0.0
        %1546 = vmatprep.subr.mxu0 0.0
        %1547 = vmatpush1.xpose.msra.mxu0 0.0
        %1548 = vmatprep.subr.mxu0 0.0
        %1549 = vmatpush1.xpose.msra.mxu0 0.0
        %1550 = vmatprep.subr.mxu0 0.0
        %1551 = vmatpush1.xpose.msra.mxu0 0.0
        %1552 = vmatprep.subr.mxu0 0.0
        %1553 = vmatpush1.xpose.msra.mxu0 0.0
        %1554 = vmatprep.subr.mxu0 0.0
        %1555 = vmatpush1.xpose.msra.mxu0 0.0
        %1556 = vmatprep.subr.mxu0 0.0
        %1557 = vmatpush1.xpose.msra.mxu0 0.0
        %1558 = vmatprep.subr.mxu0 0.0
        %1559 = vmatpush1.xpose.msra.mxu0 0.0
        %1560 = vmatprep.subr.mxu0 0.0
        %1561 = vmatpush1.xpose.msra.mxu0 0.0
        %1562 = vmatprep.mubr.f32.mxu0 0.0
        %1563 = vmatmul.mubr.f32.gmra.mrb[0].mxu0 %v1493
        %v1564 = vpop.f32.mrb[0].mxu0
        %v1565 = vadd.f32 0.0, %v1564
        %v1566 = vpop.f32.mrb[0].mxu0
        %1567 = vdwg.mxu0
        %v1569 = vsel %vm1415, %v916, 0
        %v1572 = vsel %vm1415, %v1163, 0
        %1574 = vmatprep.subr.mxu0 0.0
        %1575 = vmatpush1.xpose.msra.mxu0 %v1572
        %1576 = vmatprep.subr.mxu0 0.0
        %1577 = vmatpush1.xpose.msra.mxu0 0.0
        %1578 = vmatprep.subr.mxu0 0.0
        %1579 = vmatpush1.xpose.msra.mxu0 0.0
        %1580 = vmatprep.subr.mxu0 0.0
        %1581 = vmatpush1.xpose.msra.mxu0 0.0
        %1582 = vmatprep.subr.mxu0 0.0
        %1583 = vmatpush1.xpose.msra.mxu0 0.0
        %1584 = vmatprep.subr.mxu0 0.0
        %1585 = vmatpush1.xpose.msra.mxu0 0.0
        %1586 = vmatprep.subr.mxu0 0.0
        %1587 = vmatpush1.xpose.msra.mxu0 0.0
        %1588 = vmatprep.subr.mxu0 0.0
        %1589 = vmatpush1.xpose.msra.mxu0 0.0
        %1590 = vmatprep.subr.mxu0 0.0
        %1591 = vmatpush1.xpose.msra.mxu0 0.0
        %1592 = vmatprep.subr.mxu0 0.0
        %1593 = vmatpush1.xpose.msra.mxu0 0.0
        %1594 = vmatprep.subr.mxu0 0.0
        %1595 = vmatpush1.xpose.msra.mxu0 0.0
        %1596 = vmatprep.subr.mxu0 0.0
        %1597 = vmatpush1.xpose.msra.mxu0 0.0
        %1598 = vmatprep.subr.mxu0 0.0
        %1599 = vmatpush1.xpose.msra.mxu0 0.0
        %1600 = vmatprep.subr.mxu0 0.0
        %1601 = vmatpush1.xpose.msra.mxu0 0.0
        %1602 = vmatprep.subr.mxu0 0.0
        %1603 = vmatpush1.xpose.msra.mxu0 0.0
        %1604 = vmatprep.subr.mxu0 0.0
        %1605 = vmatpush1.xpose.msra.mxu0 0.0
        %1606 = vmatprep.subr.mxu0 0.0
        %1607 = vmatpush1.xpose.msra.mxu0 0.0
        %1608 = vmatprep.subr.mxu0 0.0
        %1609 = vmatpush1.xpose.msra.mxu0 0.0
        %1610 = vmatprep.subr.mxu0 0.0
        %1611 = vmatpush1.xpose.msra.mxu0 0.0
        %1612 = vmatprep.subr.mxu0 0.0
        %1613 = vmatpush1.xpose.msra.mxu0 0.0
        %1614 = vmatprep.subr.mxu0 0.0
        %1615 = vmatpush1.xpose.msra.mxu0 0.0
        %1616 = vmatprep.subr.mxu0 0.0
        %1617 = vmatpush1.xpose.msra.mxu0 0.0
        %1618 = vmatprep.subr.mxu0 0.0
        %1619 = vmatpush1.xpose.msra.mxu0 0.0
        %1620 = vmatprep.subr.mxu0 0.0
        %1621 = vmatpush1.xpose.msra.mxu0 0.0
        %1622 = vmatprep.subr.mxu0 0.0
        %1623 = vmatpush1.xpose.msra.mxu0 0.0
        %1624 = vmatprep.subr.mxu0 0.0
        %1625 = vmatpush1.xpose.msra.mxu0 0.0
        %1626 = vmatprep.subr.mxu0 0.0
        %1627 = vmatpush1.xpose.msra.mxu0 0.0
        %1628 = vmatprep.subr.mxu0 0.0
        %1629 = vmatpush1.xpose.msra.mxu0 0.0
        %1630 = vmatprep.subr.mxu0 0.0
        %1631 = vmatpush1.xpose.msra.mxu0 0.0
        %1632 = vmatprep.subr.mxu0 0.0
        %1633 = vmatpush1.xpose.msra.mxu0 0.0
        %1634 = vmatprep.subr.mxu0 0.0
        %1635 = vmatpush1.xpose.msra.mxu0 0.0
        %1636 = vmatprep.subr.mxu0 0.0
        %1637 = vmatpush1.xpose.msra.mxu0 0.0
        %1638 = vmatprep.mubr.f32.mxu0 0.0
        %1639 = vmatmul.mubr.f32.gmra.mrb[0].mxu0 %v1569
        %v1640 = vpop.f32.mrb[0].mxu0
        %v1641 = vadd.f32 0.0, %v1640
        %v1642 = vpop.f32.mrb[0].mxu0
        %1643 = vdwg.mxu0
        %v1644 = vsel %vm630, 1, 0
        %vm1645 = vcmp.eq.s32.totalorder %v1644, 1
        %v1646 = vsel %vm1645, %v1489, -1e+30
        %v1647 = vsel %vm1645, %v1565, -1e+30
        %v1648 = vsel %vm1645, %v1641, -1e+30
        %vm1649 = vcmask 64512
        %v1650 = vsel %vm1649, %v1646, -inf
        %1651 = vmax.xlane.f32.xlu0 %v1650
        %v1652 = vpop.xlane.xlu0 %1651
        %v1653 = vsel %vm1649, %v1647, -inf
        %1654 = vmax.xlane.f32.xlu0 %v1653
        %v1655 = vpop.xlane.xlu0 %1654
        %v1656 = vsel %vm1649, %v1648, -inf
        %1657 = vmax.xlane.f32.xlu0 %v1656
        %v1658 = vpop.xlane.xlu0 %1657
        %v1659 = vsub.f32 %v1646, %v1652
        %v1660 = vsub.f32 %v1647, %v1655
        %v1661 = vsub.f32 %v1648, %v1658
        %v1662 = vmul.f32 %v1659, 1.442695
        %v1663 = vpow.pop %v1662
        %v1664 = vmul.f32 %v1660, 1.442695
        %v1665 = vpow.pop %v1664
        %v1666 = vmul.f32 %v1661, 1.442695
        %v1667 = vpow.pop %v1666
        %v1669 = vsel %vm1649, %v1663, 0
        %1671 = vmatprep.subr.mxu0 0.0
        %1672 = vmatpush1.msra.mxu0 %v1272
        %1673 = vmatprep.subr.mxu0 0.0
        %1674 = vmatpush1.msra.mxu0 0.0
        %1675 = vmatprep.subr.mxu0 0.0
        %1676 = vmatpush1.msra.mxu0 0.0
        %1677 = vmatprep.subr.mxu0 0.0
        %1678 = vmatpush1.msra.mxu0 0.0
        %1679 = vmatprep.subr.mxu0 0.0
        %1680 = vmatpush1.msra.mxu0 0.0
        %1681 = vmatprep.subr.mxu0 0.0
        %1682 = vmatpush1.msra.mxu0 0.0
        %1683 = vmatprep.subr.mxu0 0.0
        %1684 = vmatpush1.msra.mxu0 0.0
        %1685 = vmatprep.subr.mxu0 0.0
        %1686 = vmatpush1.msra.mxu0 0.0
        %1687 = vmatprep.subr.mxu0 0.0
        %1688 = vmatpush1.msra.mxu0 0.0
        %1689 = vmatprep.subr.mxu0 0.0
        %1690 = vmatpush1.msra.mxu0 0.0
        %1691 = vmatprep.subr.mxu0 0.0
        %1692 = vmatpush1.msra.mxu0 0.0
        %1693 = vmatprep.subr.mxu0 0.0
        %1694 = vmatpush1.msra.mxu0 0.0
        %1695 = vmatprep.subr.mxu0 0.0
        %1696 = vmatpush1.msra.mxu0 0.0
        %1697 = vmatprep.subr.mxu0 0.0
        %1698 = vmatpush1.msra.mxu0 0.0
        %1699 = vmatprep.subr.mxu0 0.0
        %1700 = vmatpush1.msra.mxu0 0.0
        %1701 = vmatprep.subr.mxu0 0.0
        %1702 = vmatpush1.msra.mxu0 0.0
        %1703 = vmatprep.subr.mxu0 0.0
        %1704 = vmatpush1.msra.mxu0 0.0
        %1705 = vmatprep.subr.mxu0 0.0
        %1706 = vmatpush1.msra.mxu0 0.0
        %1707 = vmatprep.subr.mxu0 0.0
        %1708 = vmatpush1.msra.mxu0 0.0
        %1709 = vmatprep.subr.mxu0 0.0
        %1710 = vmatpush1.msra.mxu0 0.0
        %1711 = vmatprep.subr.mxu0 0.0
        %1712 = vmatpush1.msra.mxu0 0.0
        %1713 = vmatprep.subr.mxu0 0.0
        %1714 = vmatpush1.msra.mxu0 0.0
        %1715 = vmatprep.subr.mxu0 0.0
        %1716 = vmatpush1.msra.mxu0 0.0
        %1717 = vmatprep.subr.mxu0 0.0
        %1718 = vmatpush1.msra.mxu0 0.0
        %1719 = vmatprep.subr.mxu0 0.0
        %1720 = vmatpush1.msra.mxu0 0.0
        %1721 = vmatprep.subr.mxu0 0.0
        %1722 = vmatpush1.msra.mxu0 0.0
        %1723 = vmatprep.subr.mxu0 0.0
        %1724 = vmatpush1.msra.mxu0 0.0
        %1725 = vmatprep.subr.mxu0 0.0
        %1726 = vmatpush1.msra.mxu0 0.0
        %1727 = vmatprep.subr.mxu0 0.0
        %1728 = vmatpush1.msra.mxu0 0.0
        %1729 = vmatprep.subr.mxu0 0.0
        %1730 = vmatpush1.msra.mxu0 0.0
        %1731 = vmatprep.subr.mxu0 0.0
        %1732 = vmatpush1.msra.mxu0 0.0
        %1733 = vmatprep.subr.mxu0 0.0
        %1734 = vmatpush1.msra.mxu0 0.0
        %1735 = vmatprep.mubr.f32.mxu0 0.0
        %1736 = vmatmul.mubr.f32.gmra.mrb[0].mxu0 %v1669
        %v1737 = vpop.f32.mrb[0].mxu0
        %v1738 = vadd.f32 0.0, %v1737
        %v1739 = vpop.f32.mrb[0].mxu0
        %1740 = vdwg.mxu0
        %v1742 = vsel %vm1649, %v1665, 0
        %1744 = vmatprep.subr.mxu0 0.0
        %1745 = vmatpush1.msra.mxu0 %v1342
        %1746 = vmatprep.subr.mxu0 0.0
        %1747 = vmatpush1.msra.mxu0 0.0
        %1748 = vmatprep.subr.mxu0 0.0
        %1749 = vmatpush1.msra.mxu0 0.0
        %1750 = vmatprep.subr.mxu0 0.0
        %1751 = vmatpush1.msra.mxu0 0.0
        %1752 = vmatprep.subr.mxu0 0.0
        %1753 = vmatpush1.msra.mxu0 0.0
        %1754 = vmatprep.subr.mxu0 0.0
        %1755 = vmatpush1.msra.mxu0 0.0
        %1756 = vmatprep.subr.mxu0 0.0
        %1757 = vmatpush1.msra.mxu0 0.0
        %1758 = vmatprep.subr.mxu0 0.0
        %1759 = vmatpush1.msra.mxu0 0.0
        %1760 = vmatprep.subr.mxu0 0.0
        %1761 = vmatpush1.msra.mxu0 0.0
        %1762 = vmatprep.subr.mxu0 0.0
        %1763 = vmatpush1.msra.mxu0 0.0
        %1764 = vmatprep.subr.mxu0 0.0
        %1765 = vmatpush1.msra.mxu0 0.0
        %1766 = vmatprep.subr.mxu0 0.0
        %1767 = vmatpush1.msra.mxu0 0.0
        %1768 = vmatprep.subr.mxu0 0.0
        %1769 = vmatpush1.msra.mxu0 0.0
        %1770 = vmatprep.subr.mxu0 0.0
        %1771 = vmatpush1.msra.mxu0 0.0
        %1772 = vmatprep.subr.mxu0 0.0
        %1773 = vmatpush1.msra.mxu0 0.0
        %1774 = vmatprep.subr.mxu0 0.0
        %1775 = vmatpush1.msra.mxu0 0.0
        %1776 = vmatprep.subr.mxu0 0.0
        %1777 = vmatpush1.msra.mxu0 0.0
        %1778 = vmatprep.subr.mxu0 0.0
        %1779 = vmatpush1.msra.mxu0 0.0
        %1780 = vmatprep.subr.mxu0 0.0
        %1781 = vmatpush1.msra.mxu0 0.0
        %1782 = vmatprep.subr.mxu0 0.0
        %1783 = vmatpush1.msra.mxu0 0.0
        %1784 = vmatprep.subr.mxu0 0.0
        %1785 = vmatpush1.msra.mxu0 0.0
        %1786 = vmatprep.subr.mxu0 0.0
        %1787 = vmatpush1.msra.mxu0 0.0
        %1788 = vmatprep.subr.mxu0 0.0
        %1789 = vmatpush1.msra.mxu0 0.0
        %1790 = vmatprep.subr.mxu0 0.0
        %1791 = vmatpush1.msra.mxu0 0.0
        %1792 = vmatprep.subr.mxu0 0.0
        %1793 = vmatpush1.msra.mxu0 0.0
        %1794 = vmatprep.subr.mxu0 0.0
        %1795 = vmatpush1.msra.mxu0 0.0
        %1796 = vmatprep.subr.mxu0 0.0
        %1797 = vmatpush1.msra.mxu0 0.0
        %1798 = vmatprep.subr.mxu0 0.0
        %1799 = vmatpush1.msra.mxu0 0.0
        %1800 = vmatprep.subr.mxu0 0.0
        %1801 = vmatpush1.msra.mxu0 0.0
        %1802 = vmatprep.subr.mxu0 0.0
        %1803 = vmatpush1.msra.mxu0 0.0
        %1804 = vmatprep.subr.mxu0 0.0
        %1805 = vmatpush1.msra.mxu0 0.0
        %1806 = vmatprep.subr.mxu0 0.0
        %1807 = vmatpush1.msra.mxu0 0.0
        %1808 = vmatprep.mubr.f32.mxu0 0.0
        %1809 = vmatmul.mubr.f32.gmra.mrb[0].mxu0 %v1742
        %v1810 = vpop.f32.mrb[0].mxu0
        %v1811 = vadd.f32 0.0, %v1810
        %v1812 = vpop.f32.mrb[0].mxu0
        %1813 = vdwg.mxu0
        %v1815 = vsel %vm1649, %v1667, 0
        %1817 = vmatprep.subr.mxu0 0.0
        %1818 = vmatpush1.msra.mxu0 %v1412
        %1819 = vmatprep.subr.mxu0 0.0
        %1820 = vmatpush1.msra.mxu0 0.0
        %1821 = vmatprep.subr.mxu0 0.0
        %1822 = vmatpush1.msra.mxu0 0.0
        %1823 = vmatprep.subr.mxu0 0.0
        %1824 = vmatpush1.msra.mxu0 0.0
        %1825 = vmatprep.subr.mxu0 0.0
        %1826 = vmatpush1.msra.mxu0 0.0
        %1827 = vmatprep.subr.mxu0 0.0
        %1828 = vmatpush1.msra.mxu0 0.0
        %1829 = vmatprep.subr.mxu0 0.0
        %1830 = vmatpush1.msra.mxu0 0.0
        %1831 = vmatprep.subr.mxu0 0.0
        %1832 = vmatpush1.msra.mxu0 0.0
        %1833 = vmatprep.subr.mxu0 0.0
        %1834 = vmatpush1.msra.mxu0 0.0
        %1835 = vmatprep.subr.mxu0 0.0
        %1836 = vmatpush1.msra.mxu0 0.0
        %1837 = vmatprep.subr.mxu0 0.0
        %1838 = vmatpush1.msra.mxu0 0.0
        %1839 = vmatprep.subr.mxu0 0.0
        %1840 = vmatpush1.msra.mxu0 0.0
        %1841 = vmatprep.subr.mxu0 0.0
        %1842 = vmatpush1.msra.mxu0 0.0
        %1843 = vmatprep.subr.mxu0 0.0
        %1844 = vmatpush1.msra.mxu0 0.0
        %1845 = vmatprep.subr.mxu0 0.0
        %1846 = vmatpush1.msra.mxu0 0.0
        %1847 = vmatprep.subr.mxu0 0.0
        %1848 = vmatpush1.msra.mxu0 0.0
        %1849 = vmatprep.subr.mxu0 0.0
        %1850 = vmatpush1.msra.mxu0 0.0
        %1851 = vmatprep.subr.mxu0 0.0
        %1852 = vmatpush1.msra.mxu0 0.0
        %1853 = vmatprep.subr.mxu0 0.0
        %1854 = vmatpush1.msra.mxu0 0.0
        %1855 = vmatprep.subr.mxu0 0.0
        %1856 = vmatpush1.msra.mxu0 0.0
        %1857 = vmatprep.subr.mxu0 0.0
        %1858 = vmatpush1.msra.mxu0 0.0
        %1859 = vmatprep.subr.mxu0 0.0
        %1860 = vmatpush1.msra.mxu0 0.0
        %1861 = vmatprep.subr.mxu0 0.0
        %1862 = vmatpush1.msra.mxu0 0.0
        %1863 = vmatprep.subr.mxu0 0.0
        %1864 = vmatpush1.msra.mxu0 0.0
        %1865 = vmatprep.subr.mxu0 0.0
        %1866 = vmatpush1.msra.mxu0 0.0
        %1867 = vmatprep.subr.mxu0 0.0
        %1868 = vmatpush1.msra.mxu0 0.0
        %1869 = vmatprep.subr.mxu0 0.0
        %1870 = vmatpush1.msra.mxu0 0.0
        %1871 = vmatprep.subr.mxu0 0.0
        %1872 = vmatpush1.msra.mxu0 0.0
        %1873 = vmatprep.subr.mxu0 0.0
        %1874 = vmatpush1.msra.mxu0 0.0
        %1875 = vmatprep.subr.mxu0 0.0
        %1876 = vmatpush1.msra.mxu0 0.0
        %1877 = vmatprep.subr.mxu0 0.0
        %1878 = vmatpush1.msra.mxu0 0.0
        %1879 = vmatprep.subr.mxu0 0.0
        %1880 = vmatpush1.msra.mxu0 0.0
        %1881 = vmatprep.mubr.f32.mxu0 0.0
        %1882 = vmatmul.mubr.f32.gmra.mrb[0].mxu0 %v1815
        %v1883 = vpop.f32.mrb[0].mxu0
        %v1884 = vadd.f32 0.0, %v1883
        %v1885 = vpop.f32.mrb[0].mxu0
        %1886 = vdwg.mxu0
        %v1887 = vsel %vm1649, %v1663, 0.0
        %1888 = vadd.xlane.f32.xlu0 %v1887
        %v1889 = vpop.xlane.xlu0 %1888
        %v1890 = vsel %vm1649, %v1665, 0.0
        %1891 = vadd.xlane.f32.xlu0 %v1890
        %v1892 = vpop.xlane.xlu0 %1891
        %v1893 = vsel %vm1649, %v1667, 0.0
        %1894 = vadd.xlane.f32.xlu0 %v1893
        %v1895 = vpop.xlane.xlu0 %1894
        %v1896 = vrcp.pop %v1889
        %v1897 = vrcp.pop %v1892
        %v1898 = vrcp.pop %v1895
        %v1899 = vmul.f32 %v1738, %v1896
        %v1900 = vmul.f32 %v1811, %v1897
        %v1901 = vmul.f32 %v1884, %v1898
        %v1902 = vld [vmem:[%s9] sm:$0xff]
        %v1903 = vld [vmem:[%s9 + $0x8] sm:$0xff]
        %v1904 = vld [vmem:[%s9 + $0x10] sm:$0xff]
        %v1905 = vld [vmem:[%s9 + $0x18] sm:$0xff]
        %v1906 = vld [vmem:[%s9 + $0x20] sm:$0xff]
        %v1907 = vld [vmem:[%s9 + $0x28] sm:$0xff]
        %v1909 = vsel %vm1415, %v1899, 0
        %1911 = vmatprep.subr.mxu0 0.0
        %1912 = vmatpush1.msra.mxu0 %v1902
        %1913 = vmatprep.subr.mxu0 0.0
        %1914 = vmatpush1.msra.mxu0 %v1903
        %1915 = vmatprep.subr.mxu0 0.0
        %1916 = vmatpush1.msra.mxu0 0.0
        %1917 = vmatprep.subr.mxu0 0.0
        %1918 = vmatpush1.msra.mxu0 0.0
        %1919 = vmatprep.subr.mxu0 0.0
        %1920 = vmatpush1.msra.mxu0 0.0
        %1921 = vmatprep.subr.mxu0 0.0
        %1922 = vmatpush1.msra.mxu0 0.0
        %1923 = vmatprep.subr.mxu0 0.0
        %1924 = vmatpush1.msra.mxu0 0.0
        %1925 = vmatprep.subr.mxu0 0.0
        %1926 = vmatpush1.msra.mxu0 0.0
        %1927 = vmatprep.subr.mxu0 0.0
        %1928 = vmatpush1.msra.mxu0 0.0
        %1929 = vmatprep.subr.mxu0 0.0
        %1930 = vmatpush1.msra.mxu0 0.0
        %1931 = vmatprep.subr.mxu0 0.0
        %1932 = vmatpush1.msra.mxu0 0.0
        %1933 = vmatprep.subr.mxu0 0.0
        %1934 = vmatpush1.msra.mxu0 0.0
        %1935 = vmatprep.subr.mxu0 0.0
        %1936 = vmatpush1.msra.mxu0 0.0
        %1937 = vmatprep.subr.mxu0 0.0
        %1938 = vmatpush1.msra.mxu0 0.0
        %1939 = vmatprep.subr.mxu0 0.0
        %1940 = vmatpush1.msra.mxu0 0.0
        %1941 = vmatprep.subr.mxu0 0.0
        %1942 = vmatpush1.msra.mxu0 0.0
        %1943 = vmatprep.subr.mxu0 0.0
        %1944 = vmatpush1.msra.mxu0 0.0
        %1945 = vmatprep.subr.mxu0 0.0
        %1946 = vmatpush1.msra.mxu0 0.0
        %1947 = vmatprep.subr.mxu0 0.0
        %1948 = vmatpush1.msra.mxu0 0.0
        %1949 = vmatprep.subr.mxu0 0.0
        %1950 = vmatpush1.msra.mxu0 0.0
        %1951 = vmatprep.subr.mxu0 0.0
        %1952 = vmatpush1.msra.mxu0 0.0
        %1953 = vmatprep.subr.mxu0 0.0
        %1954 = vmatpush1.msra.mxu0 0.0
        %1955 = vmatprep.subr.mxu0 0.0
        %1956 = vmatpush1.msra.mxu0 0.0
        %1957 = vmatprep.subr.mxu0 0.0
        %1958 = vmatpush1.msra.mxu0 0.0
        %1959 = vmatprep.subr.mxu0 0.0
        %1960 = vmatpush1.msra.mxu0 0.0
        %1961 = vmatprep.subr.mxu0 0.0
        %1962 = vmatpush1.msra.mxu0 0.0
        %1963 = vmatprep.subr.mxu0 0.0
        %1964 = vmatpush1.msra.mxu0 0.0
        %1965 = vmatprep.subr.mxu0 0.0
        %1966 = vmatpush1.msra.mxu0 0.0
        %1967 = vmatprep.subr.mxu0 0.0
        %1968 = vmatpush1.msra.mxu0 0.0
        %1969 = vmatprep.subr.mxu0 0.0
        %1970 = vmatpush1.msra.mxu0 0.0
        %1971 = vmatprep.subr.mxu0 0.0
        %1972 = vmatpush1.msra.mxu0 0.0
        %1973 = vmatprep.subr.mxu0 0.0
        %1974 = vmatpush1.msra.mxu0 0.0
        %1975 = vmatprep.mubr.f32.mxu0 0.0
        %1976 = vmatmul.mubr.f32.gmra.mrb[0].mxu0 %v1909
        %v1977 = vpop.f32.mrb[0].mxu0
        %v1978 = vadd.f32 0.0, %v1977
        %v1979 = vpop.f32.mrb[0].mxu0
        %1980 = vdwg.mxu0
        %v1982 = vsel %vm1415, %v1900, 0
        %1984 = vmatprep.subr.mxu0 0.0
        %1985 = vmatpush1.msra.mxu0 %v1904
        %1986 = vmatprep.subr.mxu0 0.0
        %1987 = vmatpush1.msra.mxu0 %v1905
        %1988 = vmatprep.subr.mxu0 0.0
        %1989 = vmatpush1.msra.mxu0 0.0
        %1990 = vmatprep.subr.mxu0 0.0
        %1991 = vmatpush1.msra.mxu0 0.0
        %1992 = vmatprep.subr.mxu0 0.0
        %1993 = vmatpush1.msra.mxu0 0.0
        %1994 = vmatprep.subr.mxu0 0.0
        %1995 = vmatpush1.msra.mxu0 0.0
        %1996 = vmatprep.subr.mxu0 0.0
        %1997 = vmatpush1.msra.mxu0 0.0
        %1998 = vmatprep.subr.mxu0 0.0
        %1999 = vmatpush1.msra.mxu0 0.0
        %2000 = vmatprep.subr.mxu0 0.0
        %2001 = vmatpush1.msra.mxu0 0.0
        %2002 = vmatprep.subr.mxu0 0.0
        %2003 = vmatpush1.msra.mxu0 0.0
        %2004 = vmatprep.subr.mxu0 0.0
        %2005 = vmatpush1.msra.mxu0 0.0
        %2006 = vmatprep.subr.mxu0 0.0
        %2007 = vmatpush1.msra.mxu0 0.0
        %2008 = vmatprep.subr.mxu0 0.0
        %2009 = vmatpush1.msra.mxu0 0.0
        %2010 = vmatprep.subr.mxu0 0.0
        %2011 = vmatpush1.msra.mxu0 0.0
        %2012 = vmatprep.subr.mxu0 0.0
        %2013 = vmatpush1.msra.mxu0 0.0
        %2014 = vmatprep.subr.mxu0 0.0
        %2015 = vmatpush1.msra.mxu0 0.0
        %2016 = vmatprep.subr.mxu0 0.0
        %2017 = vmatpush1.msra.mxu0 0.0
        %2018 = vmatprep.subr.mxu0 0.0
        %2019 = vmatpush1.msra.mxu0 0.0
        %2020 = vmatprep.subr.mxu0 0.0
        %2021 = vmatpush1.msra.mxu0 0.0
        %2022 = vmatprep.subr.mxu0 0.0
        %2023 = vmatpush1.msra.mxu0 0.0
        %2024 = vmatprep.subr.mxu0 0.0
        %2025 = vmatpush1.msra.mxu0 0.0
        %2026 = vmatprep.subr.mxu0 0.0
        %2027 = vmatpush1.msra.mxu0 0.0
        %2028 = vmatprep.subr.mxu0 0.0
        %2029 = vmatpush1.msra.mxu0 0.0
        %2030 = vmatprep.subr.mxu0 0.0
        %2031 = vmatpush1.msra.mxu0 0.0
        %2032 = vmatprep.subr.mxu0 0.0
        %2033 = vmatpush1.msra.mxu0 0.0
        %2034 = vmatprep.subr.mxu0 0.0
        %2035 = vmatpush1.msra.mxu0 0.0
        %2036 = vmatprep.subr.mxu0 0.0
        %2037 = vmatpush1.msra.mxu0 0.0
        %2038 = vmatprep.subr.mxu0 0.0
        %2039 = vmatpush1.msra.mxu0 0.0
        %2040 = vmatprep.subr.mxu0 0.0
        %2041 = vmatpush1.msra.mxu0 0.0
        %2042 = vmatprep.subr.mxu0 0.0
        %2043 = vmatpush1.msra.mxu0 0.0
        %2044 = vmatprep.subr.mxu0 0.0
        %2045 = vmatpush1.msra.mxu0 0.0
        %2046 = vmatprep.subr.mxu0 0.0
        %2047 = vmatpush1.msra.mxu0 0.0
        %2048 = vmatprep.mubr.f32.mxu0 0.0
        %2049 = vmatmul.mubr.f32.gmra.mrb[0].mxu0 %v1982
        %v2050 = vpop.f32.mrb[0].mxu0
        %v2051 = vadd.f32 0.0, %v2050
        %v2052 = vpop.f32.mrb[0].mxu0
        %2053 = vdwg.mxu0
        %v2055 = vsel %vm1415, %v1901, 0
        %2057 = vmatprep.subr.mxu0 0.0
        %2058 = vmatpush1.msra.mxu0 %v1906
        %2059 = vmatprep.subr.mxu0 0.0
        %2060 = vmatpush1.msra.mxu0 %v1907
        %2061 = vmatprep.subr.mxu0 0.0
        %2062 = vmatpush1.msra.mxu0 0.0
        %2063 = vmatprep.subr.mxu0 0.0
        %2064 = vmatpush1.msra.mxu0 0.0
        %2065 = vmatprep.subr.mxu0 0.0
        %2066 = vmatpush1.msra.mxu0 0.0
        %2067 = vmatprep.subr.mxu0 0.0
        %2068 = vmatpush1.msra.mxu0 0.0
        %2069 = vmatprep.subr.mxu0 0.0
        %2070 = vmatpush1.msra.mxu0 0.0
        %2071 = vmatprep.subr.mxu0 0.0
        %2072 = vmatpush1.msra.mxu0 0.0
        %2073 = vmatprep.subr.mxu0 0.0
        %2074 = vmatpush1.msra.mxu0 0.0
        %2075 = vmatprep.subr.mxu0 0.0
        %2076 = vmatpush1.msra.mxu0 0.0
        %2077 = vmatprep.subr.mxu0 0.0
        %2078 = vmatpush1.msra.mxu0 0.0
        %2079 = vmatprep.subr.mxu0 0.0
        %2080 = vmatpush1.msra.mxu0 0.0
        %2081 = vmatprep.subr.mxu0 0.0
        %2082 = vmatpush1.msra.mxu0 0.0
        %2083 = vmatprep.subr.mxu0 0.0
        %2084 = vmatpush1.msra.mxu0 0.0
        %2085 = vmatprep.subr.mxu0 0.0
        %2086 = vmatpush1.msra.mxu0 0.0
        %2087 = vmatprep.subr.mxu0 0.0
        %2088 = vmatpush1.msra.mxu0 0.0
        %2089 = vmatprep.subr.mxu0 0.0
        %2090 = vmatpush1.msra.mxu0 0.0
        %2091 = vmatprep.subr.mxu0 0.0
        %2092 = vmatpush1.msra.mxu0 0.0
        %2093 = vmatprep.subr.mxu0 0.0
        %2094 = vmatpush1.msra.mxu0 0.0
        %2095 = vmatprep.subr.mxu0 0.0
        %2096 = vmatpush1.msra.mxu0 0.0
        %2097 = vmatprep.subr.mxu0 0.0
        %2098 = vmatpush1.msra.mxu0 0.0
        %2099 = vmatprep.subr.mxu0 0.0
        %2100 = vmatpush1.msra.mxu0 0.0
        %2101 = vmatprep.subr.mxu0 0.0
        %2102 = vmatpush1.msra.mxu0 0.0
        %2103 = vmatprep.subr.mxu0 0.0
        %2104 = vmatpush1.msra.mxu0 0.0
        %2105 = vmatprep.subr.mxu0 0.0
        %2106 = vmatpush1.msra.mxu0 0.0
        %2107 = vmatprep.subr.mxu0 0.0
        %2108 = vmatpush1.msra.mxu0 0.0
        %2109 = vmatprep.subr.mxu0 0.0
        %2110 = vmatpush1.msra.mxu0 0.0
        %2111 = vmatprep.subr.mxu0 0.0
        %2112 = vmatpush1.msra.mxu0 0.0
        %2113 = vmatprep.subr.mxu0 0.0
        %2114 = vmatpush1.msra.mxu0 0.0
        %2115 = vmatprep.subr.mxu0 0.0
        %2116 = vmatpush1.msra.mxu0 0.0
        %2117 = vmatprep.subr.mxu0 0.0
        %2118 = vmatpush1.msra.mxu0 0.0
        %2119 = vmatprep.subr.mxu0 0.0
        %2120 = vmatpush1.msra.mxu0 0.0
        %2121 = vmatprep.mubr.f32.mxu0 0.0
        %2122 = vmatmul.mubr.f32.gmra.mrb[0].mxu0 %v2055
        %v2123 = vpop.f32.mrb[0].mxu0
        %v2124 = vadd.f32 0.0, %v2123
        %v2125 = vpop.f32.mrb[0].mxu0
        %2126 = vdwg.mxu0
        %v2127 = vsel %vm633, %v1978, 0.0
        %v2128 = vsel %vm633, %v2051, 0.0
        %v2129 = vadd.f32 %v2127, %v2128
        %v2130 = vsel %vm633, %v2124, 0.0
        %v2131 = vadd.f32 %v2129, %v2130
        %v2132 = vld [vmem:[%s10] sm:$0x1]
        %v2134 = vlaneseq
        %v2135 = vshrl.u32 %v2134, 7
        %v2136 = vsub.s32 0, %v2135
        %v2137 = vrot.slane %v2132, %v2136
        %v2139 = vadd.f32 %v2131, %v2137
        %v2140 = vadd.f32 %v625, %v2139
        %v2141 = vld [vmem:[%s11] sm:$0x1]
        %v2142 = vld [vmem:[%s12] sm:$0x1]
        %v2143 = vsel %vm633, %v2140, 0.0
        %2144 = vadd.xlane.f32.xlu0 %v2143
        %v2145 = vpop.xlane.xlu0 %2144
        %v2146 = vmul.f32 %v2145, %v637
        %v2147 = vsub.f32 %v2140, %v2146
        %v2148 = vmul.f32 %v2147, %v2147
        %v2149 = vsel %vm633, %v2148, 0.0
        %2150 = vadd.xlane.f32.xlu0 %v2149
        %v2151 = vpop.xlane.xlu0 %2150
        %v2152 = vmul.f32 %v2151, %v637
        %v2153 = vadd.f32 %v2152, 1e-05
        %v2154 = vrsqrt.pop %v2153
        %v2155 = vmul.f32 %v2147, %v2154
        %v2157 = vlaneseq
        %v2158 = vshrl.u32 %v2157, 7
        %v2159 = vsub.s32 0, %v2158
        %v2160 = vrot.slane %v2141, %v2159
        %v2162 = vmul.f32 %v2155, %v2160
        %v2164 = vlaneseq
        %v2165 = vshrl.u32 %v2164, 7
        %v2166 = vsub.s32 0, %v2165
        %v2167 = vrot.slane %v2142, %v2166
        %v2169 = vadd.f32 %v2162, %v2167
        %v2170 = vld [vmem:[%s13] sm:$0xff]
        %v2171 = vld [vmem:[%s13 + $0x8] sm:$0xff]
        %v2172 = vld [vmem:[%s13 + $0x10] sm:$0xff]
        %v2173 = vld [vmem:[%s13 + $0x18] sm:$0xff]
        %v2174 = vld [vmem:[%s13 + $0x20] sm:$0xff]
        %v2175 = vld [vmem:[%s13 + $0x28] sm:$0xff]
        %v2176 = vld [vmem:[%s13 + $0x30] sm:$0xff]
        %v2177 = vld [vmem:[%s13 + $0x38] sm:$0xff]
        %v2178 = vld [vmem:[%s13 + $0x40] sm:$0xff]
        %v2179 = vld [vmem:[%s13 + $0x48] sm:$0xff]
        %v2180 = vld [vmem:[%s13 + $0x50] sm:$0xff]
        %v2181 = vld [vmem:[%s13 + $0x58] sm:$0xff]
        %v2182 = vld [vmem:[%s14] sm:$0x3]
        %v2184 = vlaneseq
        %v2185 = vshrl.u32 %v2184, 7
        %v2186 = vsub.s32 0, %v2185
        %v2187 = vrot.slane %v2182, %v2186
        %v2188 = vlaneseq
        %v2189 = vshrl.u32 %v2188, 7
        %v2190 = vsub.s32 1, %v2189
        %v2191 = vrot.slane %v2182, %v2190
        %v2195 = vsel %vm633, %v2169, 0
        %2197 = vmatprep.subr.mxu0 %v2171
        %2198 = vmatpush1.msra.mxu0 %v2170
        %2199 = vmatprep.subr.mxu0 %v2173
        %2200 = vmatpush1.msra.mxu0 %v2172
        %2201 = vmatprep.subr.mxu0 %v2175
        %2202 = vmatpush1.msra.mxu0 %v2174
        %2203 = vmatprep.subr.mxu0 %v2177
        %2204 = vmatpush1.msra.mxu0 %v2176
        %2205 = vmatprep.subr.mxu0 %v2179
        %2206 = vmatpush1.msra.mxu0 %v2178
        %2207 = vmatprep.subr.mxu0 %v2181
        %2208 = vmatpush1.msra.mxu0 %v2180
        %2209 = vmatprep.subr.mxu0 0.0
        %2210 = vmatpush1.msra.mxu0 0.0
        %2211 = vmatprep.subr.mxu0 0.0
        %2212 = vmatpush1.msra.mxu0 0.0
        %2213 = vmatprep.subr.mxu0 0.0
        %2214 = vmatpush1.msra.mxu0 0.0
        %2215 = vmatprep.subr.mxu0 0.0
        %2216 = vmatpush1.msra.mxu0 0.0
        %2217 = vmatprep.subr.mxu0 0.0
        %2218 = vmatpush1.msra.mxu0 0.0
        %2219 = vmatprep.subr.mxu0 0.0
        %2220 = vmatpush1.msra.mxu0 0.0
        %2221 = vmatprep.subr.mxu0 0.0
        %2222 = vmatpush1.msra.mxu0 0.0
        %2223 = vmatprep.subr.mxu0 0.0
        %2224 = vmatpush1.msra.mxu0 0.0
        %2225 = vmatprep.subr.mxu0 0.0
        %2226 = vmatpush1.msra.mxu0 0.0
        %2227 = vmatprep.subr.mxu0 0.0
        %2228 = vmatpush1.msra.mxu0 0.0
        %2229 = vmatprep.subr.mxu0 0.0
        %2230 = vmatpush1.msra.mxu0 0.0
        %2231 = vmatprep.subr.mxu0 0.0
        %2232 = vmatpush1.msra.mxu0 0.0
        %2233 = vmatprep.subr.mxu0 0.0
        %2234 = vmatpush1.msra.mxu0 0.0
        %2235 = vmatprep.subr.mxu0 0.0
        %2236 = vmatpush1.msra.mxu0 0.0
        %2237 = vmatprep.subr.mxu0 0.0
        %2238 = vmatpush1.msra.mxu0 0.0
        %2239 = vmatprep.subr.mxu0 0.0
        %2240 = vmatpush1.msra.mxu0 0.0
        %2241 = vmatprep.subr.mxu0 0.0
        %2242 = vmatpush1.msra.mxu0 0.0
        %2243 = vmatprep.subr.mxu0 0.0
        %2244 = vmatpush1.msra.mxu0 0.0
        %2245 = vmatprep.subr.mxu0 0.0
        %2246 = vmatpush1.msra.mxu0 0.0
        %2247 = vmatprep.subr.mxu0 0.0
        %2248 = vmatpush1.msra.mxu0 0.0
        %2249 = vmatprep.subr.mxu0 0.0
        %2250 = vmatpush1.msra.mxu0 0.0
        %2251 = vmatprep.subr.mxu0 0.0
        %2252 = vmatpush1.msra.mxu0 0.0
        %2253 = vmatprep.subr.mxu0 0.0
        %2254 = vmatpush1.msra.mxu0 0.0
        %2255 = vmatprep.subr.mxu0 0.0
        %2256 = vmatpush1.msra.mxu0 0.0
        %2257 = vmatprep.subr.mxu0 0.0
        %2258 = vmatpush1.msra.mxu0 0.0
        %2259 = vmatprep.subr.mxu0 0.0
        %2260 = vmatpush1.msra.mxu0 0.0
        %2261 = vmatprep.mubr.f32.mxu0 0.0
        %2262 = vmatmul.mubr.f32.gmra.mrb[0].mxu0 %v2195
        %v2263 = vpop.f32.mrb[0].mxu0
        %v2264 = vadd.f32 %v2187, %v2263
        %v2265 = vpop.f32.mrb[0].mxu0
        %v2266 = vadd.f32 %v2191, %v2265
        %2267 = vdwg.mxu0
        %v2268 = vtanh.pop %v2264
        %v2269 = vtanh.pop %v2266
        %v2270 = vld [vmem:[%s15] sm:$0xff]
        %v2271 = vld [vmem:[%s15 + $0x8] sm:$0xff]
        %v2272 = vld [vmem:[%s15 + $0x10] sm:$0xff]
        %v2273 = vld [vmem:[%s15 + $0x18] sm:$0xff]
        %v2274 = vld [vmem:[%s15 + $0x20] sm:$0xff]
        %v2275 = vld [vmem:[%s15 + $0x28] sm:$0xff]
        %v2276 = vld [vmem:[%s15 + $0x30] sm:$0xff]
        %v2277 = vld [vmem:[%s15 + $0x38] sm:$0xff]
        %v2278 = vld [vmem:[%s15 + $0x40] sm:$0xff]
        %v2279 = vld [vmem:[%s15 + $0x48] sm:$0xff]
        %v2280 = vld [vmem:[%s15 + $0x50] sm:$0xff]
        %v2281 = vld [vmem:[%s15 + $0x58] sm:$0xff]
        %v2282 = vld [vmem:[%s15 + $0x60] sm:$0xff]
        %v2283 = vld [vmem:[%s15 + $0x68] sm:$0xff]
        %v2284 = vld [vmem:[%s15 + $0x70] sm:$0xff]
        %v2285 = vld [vmem:[%s15 + $0x78] sm:$0xff]
        %v2286 = vld [vmem:[%s15 + $0x80] sm:$0xff]
        %v2287 = vld [vmem:[%s15 + $0x88] sm:$0xff]
        %v2288 = vld [vmem:[%s15 + $0x90] sm:$0xff]
        %v2289 = vld [vmem:[%s15 + $0x98] sm:$0xff]
        %v2290 = vld [vmem:[%s15 + $0xa0] sm:$0xff]
        %v2291 = vld [vmem:[%s15 + $0xa8] sm:$0xff]
        %v2292 = vld [vmem:[%s15 + $0xb0] sm:$0xff]
        %v2293 = vld [vmem:[%s15 + $0xb8] sm:$0xff]
        %vm2294 = vcmask 523264
        %v2296 = vsel %vm2294, %v2269, 0
        %2298 = vmatprep.subr.mxu0 0.0
        %2299 = vmatpush1.msra.mxu0 %v2270
        %2300 = vmatprep.subr.mxu0 0.0
        %2301 = vmatpush1.msra.mxu0 %v2271
        %2302 = vmatprep.subr.mxu0 0.0
        %2303 = vmatpush1.msra.mxu0 %v2272
        %2304 = vmatprep.subr.mxu0 0.0
        %2305 = vmatpush1.msra.mxu0 %v2273
        %2306 = vmatprep.subr.mxu0 0.0
        %2307 = vmatpush1.msra.mxu0 %v2274
        %2308 = vmatprep.subr.mxu0 0.0
        %2309 = vmatpush1.msra.mxu0 %v2275
        %2310 = vmatprep.subr.mxu0 0.0
        %2311 = vmatpush1.msra.mxu0 %v2276
        %2312 = vmatprep.subr.mxu0 0.0
        %2313 = vmatpush1.msra.mxu0 %v2277
        %2314 = vmatprep.subr.mxu0 0.0
        %2315 = vmatpush1.msra.mxu0 %v2278
        %2316 = vmatprep.subr.mxu0 0.0
        %2317 = vmatpush1.msra.mxu0 %v2279
        %2318 = vmatprep.subr.mxu0 0.0
        %2319 = vmatpush1.msra.mxu0 %v2280
        %2320 = vmatprep.subr.mxu0 0.0
        %2321 = vmatpush1.msra.mxu0 %v2281
        %2322 = vmatprep.subr.mxu0 0.0
        %2323 = vmatpush1.msra.mxu0 %v2282
        %2324 = vmatprep.subr.mxu0 0.0
        %2325 = vmatpush1.msra.mxu0 %v2283
        %2326 = vmatprep.subr.mxu0 0.0
        %2327 = vmatpush1.msra.mxu0 %v2284
        %2328 = vmatprep.subr.mxu0 0.0
        %2329 = vmatpush1.msra.mxu0 %v2285
        %2330 = vmatprep.subr.mxu0 0.0
        %2331 = vmatpush1.msra.mxu0 %v2286
        %2332 = vmatprep.subr.mxu0 0.0
        %2333 = vmatpush1.msra.mxu0 %v2287
        %2334 = vmatprep.subr.mxu0 0.0
        %2335 = vmatpush1.msra.mxu0 %v2288
        %2336 = vmatprep.subr.mxu0 0.0
        %2337 = vmatpush1.msra.mxu0 %v2289
        %2338 = vmatprep.subr.mxu0 0.0
        %2339 = vmatpush1.msra.mxu0 %v2290
        %2340 = vmatprep.subr.mxu0 0.0
        %2341 = vmatpush1.msra.mxu0 %v2291
        %2342 = vmatprep.subr.mxu0 0.0
        %2343 = vmatpush1.msra.mxu0 %v2292
        %2344 = vmatprep.subr.mxu0 0.0
        %2345 = vmatpush1.msra.mxu0 %v2293
        %2346 = vmatprep.subr.mxu0 0.0
        %2347 = vmatpush1.msra.mxu0 0.0
        %2348 = vmatprep.subr.mxu0 0.0
        %2349 = vmatpush1.msra.mxu0 0.0
        %2350 = vmatprep.subr.mxu0 0.0
        %2351 = vmatpush1.msra.mxu0 0.0
        %2352 = vmatprep.subr.mxu0 0.0
        %2353 = vmatpush1.msra.mxu0 0.0
        %2354 = vmatprep.subr.mxu0 0.0
        %2355 = vmatpush1.msra.mxu0 0.0
        %2356 = vmatprep.subr.mxu0 0.0
        %2357 = vmatpush1.msra.mxu0 0.0
        %2358 = vmatprep.subr.mxu0 0.0
        %2359 = vmatpush1.msra.mxu0 0.0
        %2360 = vmatprep.subr.mxu0 0.0
        %2361 = vmatpush1.msra.mxu0 0.0
        %2362 = vmatprep.mubr.f32.mxu0 %v2296
        %2363 = vmatmul.mubr.f32.gmra.mrb[0].mxu0 %v2268
        %v2364 = vpop.f32.mrb[0].mxu0
        %v2365 = vadd.f32 0.0, %v2364
        %v2366 = vpop.f32.mrb[0].mxu0
        %2367 = vdwg.mxu0
        %v2368 = vadd.f32 %v2140, %v2365
        %v2369 = vld [vmem:[%s16] sm:$0x1]
        %v2371 = vlaneseq
        %v2372 = vshrl.u32 %v2371, 7
        %v2373 = vsub.s32 0, %v2372
        %v2374 = vrot.slane %v2369, %v2373
        %v2376 = vadd.f32 %v2368, %v2374
        %s2377 = scalar_lea.vmem %s1, 1
        %v2378 = vld [vmem:[%s2377] sm:$0x1]
        %s2379 = scalar_lea.vmem %s2, 1
        %v2380 = vld [vmem:[%s2379] sm:$0x1]
        %v2381 = vsel %vm633, %v2376, 0.0
        %2382 = vadd.xlane.f32.xlu0 %v2381
        %v2383 = vpop.xlane.xlu0 %2382
        %v2384 = vmul.f32 %v2383, %v637
        %v2385 = vsub.f32 %v2376, %v2384
        %v2386 = vmul.f32 %v2385, %v2385
        %v2387 = vsel %vm633, %v2386, 0.0
        %2388 = vadd.xlane.f32.xlu0 %v2387
        %v2389 = vpop.xlane.xlu0 %2388
        %v2390 = vmul.f32 %v2389, %v637
        %v2391 = vadd.f32 %v2390, 1e-05
        %v2392 = vrsqrt.pop %v2391
        %v2393 = vmul.f32 %v2385, %v2392
        %v2395 = vlaneseq
        %v2396 = vshrl.u32 %v2395, 7
        %v2397 = vsub.s32 0, %v2396
        %v2398 = vrot.slane %v2378, %v2397
        %v2400 = vmul.f32 %v2393, %v2398
        %v2402 = vlaneseq
        %v2403 = vshrl.u32 %v2402, 7
        %v2404 = vsub.s32 0, %v2403
        %v2405 = vrot.slane %v2380, %v2404
        %v2407 = vadd.f32 %v2400, %v2405
        %s2408 = scalar_lea.vmem %s3, 144
        %v2409 = vld [vmem:[%s2408] sm:$0xff]
        %v2410 = vld [vmem:[%s2408 + $0x8] sm:$0xff]
        %v2411 = vld [vmem:[%s2408 + $0x10] sm:$0xff]
        %v2412 = vld [vmem:[%s2408 + $0x18] sm:$0xff]
        %v2413 = vld [vmem:[%s2408 + $0x20] sm:$0xff]
        %v2414 = vld [vmem:[%s2408 + $0x28] sm:$0xff]
        %v2415 = vld [vmem:[%s2408 + $0x30] sm:$0xff]
        %v2416 = vld [vmem:[%s2408 + $0x38] sm:$0xff]
        %v2417 = vld [vmem:[%s2408 + $0x40] sm:$0xff]
        %v2418 = vld [vmem:[%s2408 + $0x48] sm:$0xff]
        %v2419 = vld [vmem:[%s2408 + $0x50] sm:$0xff]
        %v2420 = vld [vmem:[%s2408 + $0x58] sm:$0xff]
        %v2421 = vld [vmem:[%s2408 + $0x60] sm:$0xff]
        %v2422 = vld [vmem:[%s2408 + $0x68] sm:$0xff]
        %v2423 = vld [vmem:[%s2408 + $0x70] sm:$0xff]
        %v2424 = vld [vmem:[%s2408 + $0x78] sm:$0xff]
        %v2425 = vld [vmem:[%s2408 + $0x80] sm:$0xff]
        %v2426 = vld [vmem:[%s2408 + $0x88] sm:$0xff]
        %s2427 = scalar_lea.vmem %s6, 3
        %v2428 = vld [vmem:[%s2427] sm:$0x1]
        %v2429 = vld [vmem:[%s2427 + $0x1] sm:$0x1]
        %v2430 = vld [vmem:[%s2427 + $0x2] sm:$0x1]
        %v2434 = vlaneseq
        %v2435 = vshrl.u32 %v2434, 7
        %v2436 = vsub.s32 0, %v2435
        %v2437 = vrot.slane %v2428, %v2436
        %v2438 = vlaneseq
        %v2439 = vshrl.u32 %v2438, 7
        %v2440 = vsub.s32 0, %v2439
        %v2441 = vrot.slane %v2429, %v2440
        %v2442 = vlaneseq
        %v2443 = vshrl.u32 %v2442, 7
        %v2444 = vsub.s32 0, %v2443
        %v2445 = vrot.slane %v2430, %v2444
        %v2450 = vsel %vm633, %v2407, 0
        %2452 = vmatprep.subr.mxu0 0.0
        %2453 = vmatpush1.msra.mxu0 %v2409
        %2454 = vmatprep.subr.mxu0 0.0
        %2455 = vmatpush1.msra.mxu0 %v2410
        %2456 = vmatprep.subr.mxu0 0.0
        %2457 = vmatpush1.msra.mxu0 %v2411
        %2458 = vmatprep.subr.mxu0 0.0
        %2459 = vmatpush1.msra.mxu0 %v2412
        %2460 = vmatprep.subr.mxu0 0.0
        %2461 = vmatpush1.msra.mxu0 %v2413
        %2462 = vmatprep.subr.mxu0 0.0
        %2463 = vmatpush1.msra.mxu0 %v2414
        %2464 = vmatprep.subr.mxu0 0.0
        %2465 = vmatpush1.msra.mxu0 0.0
        %2466 = vmatprep.subr.mxu0 0.0
        %2467 = vmatpush1.msra.mxu0 0.0
        %2468 = vmatprep.subr.mxu0 0.0
        %2469 = vmatpush1.msra.mxu0 0.0
        %2470 = vmatprep.subr.mxu0 0.0
        %2471 = vmatpush1.msra.mxu0 0.0
        %2472 = vmatprep.subr.mxu0 0.0
        %2473 = vmatpush1.msra.mxu0 0.0
        %2474 = vmatprep.subr.mxu0 0.0
        %2475 = vmatpush1.msra.mxu0 0.0
        %2476 = vmatprep.subr.mxu0 0.0
        %2477 = vmatpush1.msra.mxu0 0.0
        %2478 = vmatprep.subr.mxu0 0.0
        %2479 = vmatpush1.msra.mxu0 0.0
        %2480 = vmatprep.subr.mxu0 0.0
        %2481 = vmatpush1.msra.mxu0 0.0
        %2482 = vmatprep.subr.mxu0 0.0
        %2483 = vmatpush1.msra.mxu0 0.0
        %2484 = vmatprep.subr.mxu0 0.0
        %2485 = vmatpush1.msra.mxu0 0.0
        %2486 = vmatprep.subr.mxu0 0.0
        %2487 = vmatpush1.msra.mxu0 0.0
        %2488 = vmatprep.subr.mxu0 0.0
        %2489 = vmatpush1.msra.mxu0 0.0
        %2490 = vmatprep.subr.mxu0 0.0
        %2491 = vmatpush1.msra.mxu0 0.0
        %2492 = vmatprep.subr.mxu0 0.0
        %2493 = vmatpush1.msra.mxu0 0.0
        %2494 = vmatprep.subr.mxu0 0.0
        %2495 = vmatpush1.msra.mxu0 0.0
        %2496 = vmatprep.subr.mxu0 0.0
        %2497 = vmatpush1.msra.mxu0 0.0
        %2498 = vmatprep.subr.mxu0 0.0
        %2499 = vmatpush1.msra.mxu0 0.0
        %2500 = vmatprep.subr.mxu0 0.0
        %2501 = vmatpush1.msra.mxu0 0.0
        %2502 = vmatprep.subr.mxu0 0.0
        %2503 = vmatpush1.msra.mxu0 0.0
        %2504 = vmatprep.subr.mxu0 0.0
        %2505 = vmatpush1.msra.mxu0 0.0
        %2506 = vmatprep.subr.mxu0 0.0
        %2507 = vmatpush1.msra.mxu0 0.0
        %2508 = vmatprep.subr.mxu0 0.0
        %2509 = vmatpush1.msra.mxu0 0.0
        %2510 = vmatprep.subr.mxu0 0.0
        %2511 = vmatpush1.msra.mxu0 0.0
        %2512 = vmatprep.subr.mxu0 0.0
        %2513 = vmatpush1.msra.mxu0 0.0
        %2514 = vmatprep.subr.mxu0 0.0
        %2515 = vmatpush1.msra.mxu0 0.0
        %2516 = vmatprep.mubr.f32.mxu0 0.0
        %2517 = vmatmul.mubr.f32.gmra.mrb[0].mxu0 %v2450
        %v2518 = vpop.f32.mrb[0].mxu0
        %v2519 = vadd.f32 %v2437, %v2518
        %v2520 = vpop.f32.mrb[0].mxu0
        %2521 = vdwg.mxu0
        %2522 = vmatprep.subr.mxu0 0.0
        %2523 = vmatpush1.msra.mxu0 %v2415
        %2524 = vmatprep.subr.mxu0 0.0
        %2525 = vmatpush1.msra.mxu0 %v2416
        %2526 = vmatprep.subr.mxu0 0.0
        %2527 = vmatpush1.msra.mxu0 %v2417
        %2528 = vmatprep.subr.mxu0 0.0
        %2529 = vmatpush1.msra.mxu0 %v2418
        %2530 = vmatprep.subr.mxu0 0.0
        %2531 = vmatpush1.msra.mxu0 %v2419
        %2532 = vmatprep.subr.mxu0 0.0
        %2533 = vmatpush1.msra.mxu0 %v2420
        %2534 = vmatprep.subr.mxu0 0.0
        %2535 = vmatpush1.msra.mxu0 0.0
        %2536 = vmatprep.subr.mxu0 0.0
        %2537 = vmatpush1.msra.mxu0 0.0
        %2538 = vmatprep.subr.mxu0 0.0
        %2539 = vmatpush1.msra.mxu0 0.0
        %2540 = vmatprep.subr.mxu0 0.0
        %2541 = vmatpush1.msra.mxu0 0.0
        %2542 = vmatprep.subr.mxu0 0.0
        %2543 = vmatpush1.msra.mxu0 0.0
        %2544 = vmatprep.subr.mxu0 0.0
        %2545 = vmatpush1.msra.mxu0 0.0
        %2546 = vmatprep.subr.mxu0 0.0
        %2547 = vmatpush1.msra.mxu0 0.0
        %2548 = vmatprep.subr.mxu0 0.0
        %2549 = vmatpush1.msra.mxu0 0.0
        %2550 = vmatprep.subr.mxu0 0.0
        %2551 = vmatpush1.msra.mxu0 0.0
        %2552 = vmatprep.subr.mxu0 0.0
        %2553 = vmatpush1.msra.mxu0 0.0
        %2554 = vmatprep.subr.mxu0 0.0
        %2555 = vmatpush1.msra.mxu0 0.0
        %2556 = vmatprep.subr.mxu0 0.0
        %2557 = vmatpush1.msra.mxu0 0.0
        %2558 = vmatprep.subr.mxu0 0.0
        %2559 = vmatpush1.msra.mxu0 0.0
        %2560 = vmatprep.subr.mxu0 0.0
        %2561 = vmatpush1.msra.mxu0 0.0
        %2562 = vmatprep.subr.mxu0 0.0
        %2563 = vmatpush1.msra.mxu0 0.0
        %2564 = vmatprep.subr.mxu0 0.0
        %2565 = vmatpush1.msra.mxu0 0.0
        %2566 = vmatprep.subr.mxu0 0.0
        %2567 = vmatpush1.msra.mxu0 0.0
        %2568 = vmatprep.subr.mxu0 0.0
        %2569 = vmatpush1.msra.mxu0 0.0
        %2570 = vmatprep.subr.mxu0 0.0
        %2571 = vmatpush1.msra.mxu0 0.0
        %2572 = vmatprep.subr.mxu0 0.0
        %2573 = vmatpush1.msra.mxu0 0.0
        %2574 = vmatprep.subr.mxu0 0.0
        %2575 = vmatpush1.msra.mxu0 0.0
        %2576 = vmatprep.subr.mxu0 0.0
        %2577 = vmatpush1.msra.mxu0 0.0
        %2578 = vmatprep.subr.mxu0 0.0
        %2579 = vmatpush1.msra.mxu0 0.0
        %2580 = vmatprep.subr.mxu0 0.0
        %2581 = vmatpush1.msra.mxu0 0.0
        %2582 = vmatprep.subr.mxu0 0.0
        %2583 = vmatpush1.msra.mxu0 0.0
        %2584 = vmatprep.subr.mxu0 0.0
        %2585 = vmatpush1.msra.mxu0 0.0
        %2586 = vmatprep.mubr.f32.mxu0 0.0
        %2587 = vmatmul.mubr.f32.gmra.mrb[0].mxu0 %v2450
        %v2588 = vpop.f32.mrb[0].mxu0
        %v2589 = vadd.f32 %v2441, %v2588
        %v2590 = vpop.f32.mrb[0].mxu0
        %2591 = vdwg.mxu0
        %2592 = vmatprep.subr.mxu0 0.0
        %2593 = vmatpush1.msra.mxu0 %v2421
        %2594 = vmatprep.subr.mxu0 0.0
        %2595 = vmatpush1.msra.mxu0 %v2422
        %2596 = vmatprep.subr.mxu0 0.0
        %2597 = vmatpush1.msra.mxu0 %v2423
        %2598 = vmatprep.subr.mxu0 0.0
        %2599 = vmatpush1.msra.mxu0 %v2424
        %2600 = vmatprep.subr.mxu0 0.0
        %2601 = vmatpush1.msra.mxu0 %v2425
        %2602 = vmatprep.subr.mxu0 0.0
        %2603 = vmatpush1.msra.mxu0 %v2426
        %2604 = vmatprep.subr.mxu0 0.0
        %2605 = vmatpush1.msra.mxu0 0.0
        %2606 = vmatprep.subr.mxu0 0.0
        %2607 = vmatpush1.msra.mxu0 0.0
        %2608 = vmatprep.subr.mxu0 0.0
        %2609 = vmatpush1.msra.mxu0 0.0
        %2610 = vmatprep.subr.mxu0 0.0
        %2611 = vmatpush1.msra.mxu0 0.0
        %2612 = vmatprep.subr.mxu0 0.0
        %2613 = vmatpush1.msra.mxu0 0.0
        %2614 = vmatprep.subr.mxu0 0.0
        %2615 = vmatpush1.msra.mxu0 0.0
        %2616 = vmatprep.subr.mxu0 0.0
        %2617 = vmatpush1.msra.mxu0 0.0
        %2618 = vmatprep.subr.mxu0 0.0
        %2619 = vmatpush1.msra.mxu0 0.0
        %2620 = vmatprep.subr.mxu0 0.0
        %2621 = vmatpush1.msra.mxu0 0.0
        %2622 = vmatprep.subr.mxu0 0.0
        %2623 = vmatpush1.msra.mxu0 0.0
        %2624 = vmatprep.subr.mxu0 0.0
        %2625 = vmatpush1.msra.mxu0 0.0
        %2626 = vmatprep.subr.mxu0 0.0
        %2627 = vmatpush1.msra.mxu0 0.0
        %2628 = vmatprep.subr.mxu0 0.0
        %2629 = vmatpush1.msra.mxu0 0.0
        %2630 = vmatprep.subr.mxu0 0.0
        %2631 = vmatpush1.msra.mxu0 0.0
        %2632 = vmatprep.subr.mxu0 0.0
        %2633 = vmatpush1.msra.mxu0 0.0
        %2634 = vmatprep.subr.mxu0 0.0
        %2635 = vmatpush1.msra.mxu0 0.0
        %2636 = vmatprep.subr.mxu0 0.0
        %2637 = vmatpush1.msra.mxu0 0.0
        %2638 = vmatprep.subr.mxu0 0.0
        %2639 = vmatpush1.msra.mxu0 0.0
        %2640 = vmatprep.subr.mxu0 0.0
        %2641 = vmatpush1.msra.mxu0 0.0
        %2642 = vmatprep.subr.mxu0 0.0
        %2643 = vmatpush1.msra.mxu0 0.0
        %2644 = vmatprep.subr.mxu0 0.0
        %2645 = vmatpush1.msra.mxu0 0.0
        %2646 = vmatprep.subr.mxu0 0.0
        %2647 = vmatpush1.msra.mxu0 0.0
        %2648 = vmatprep.subr.mxu0 0.0
        %2649 = vmatpush1.msra.mxu0 0.0
        %2650 = vmatprep.subr.mxu0 0.0
        %2651 = vmatpush1.msra.mxu0 0.0
        %2652 = vmatprep.subr.mxu0 0.0
        %2653 = vmatpush1.msra.mxu0 0.0
        %2654 = vmatprep.subr.mxu0 0.0
        %2655 = vmatpush1.msra.mxu0 0.0
        %2656 = vmatprep.mubr.f32.mxu0 0.0
        %2657 = vmatmul.mubr.f32.gmra.mrb[0].mxu0 %v2450
        %v2658 = vpop.f32.mrb[0].mxu0
        %v2659 = vadd.f32 %v2445, %v2658
        %v2660 = vpop.f32.mrb[0].mxu0
        %2661 = vdwg.mxu0
        %v2662 = vmul.f32 %v2519, 0.25
        %v2663 = vmul.f32 %v2589, 0.25
        %v2664 = vmul.f32 %v2659, 0.25
        %s2665 = scalar_lea.vmem %s4, 144
        %v2666 = vld [vmem:[%s2665] sm:$0xff]
        %v2667 = vld [vmem:[%s2665 + $0x8] sm:$0xff]
        %v2668 = vld [vmem:[%s2665 + $0x10] sm:$0xff]
        %v2669 = vld [vmem:[%s2665 + $0x18] sm:$0xff]
        %v2670 = vld [vmem:[%s2665 + $0x20] sm:$0xff]
        %v2671 = vld [vmem:[%s2665 + $0x28] sm:$0xff]
        %v2672 = vld [vmem:[%s2665 + $0x30] sm:$0xff]
        %v2673 = vld [vmem:[%s2665 + $0x38] sm:$0xff]
        %v2674 = vld [vmem:[%s2665 + $0x40] sm:$0xff]
        %v2675 = vld [vmem:[%s2665 + $0x48] sm:$0xff]
        %v2676 = vld [vmem:[%s2665 + $0x50] sm:$0xff]
        %v2677 = vld [vmem:[%s2665 + $0x58] sm:$0xff]
        %v2678 = vld [vmem:[%s2665 + $0x60] sm:$0xff]
        %v2679 = vld [vmem:[%s2665 + $0x68] sm:$0xff]
        %v2680 = vld [vmem:[%s2665 + $0x70] sm:$0xff]
        %v2681 = vld [vmem:[%s2665 + $0x78] sm:$0xff]
        %v2682 = vld [vmem:[%s2665 + $0x80] sm:$0xff]
        %v2683 = vld [vmem:[%s2665 + $0x88] sm:$0xff]
        %s2684 = scalar_lea.vmem %s7, 3
        %v2685 = vld [vmem:[%s2684] sm:$0x1]
        %v2686 = vld [vmem:[%s2684 + $0x1] sm:$0x1]
        %v2687 = vld [vmem:[%s2684 + $0x2] sm:$0x1]
        %v2691 = vlaneseq
        %v2692 = vshrl.u32 %v2691, 7
        %v2693 = vsub.s32 0, %v2692
        %v2694 = vrot.slane %v2685, %v2693
        %v2695 = vlaneseq
        %v2696 = vshrl.u32 %v2695, 7
        %v2697 = vsub.s32 0, %v2696
        %v2698 = vrot.slane %v2686, %v2697
        %v2699 = vlaneseq
        %v2700 = vshrl.u32 %v2699, 7
        %v2701 = vsub.s32 0, %v2700
        %v2702 = vrot.slane %v2687, %v2701
        %2706 = vmatprep.subr.mxu0 0.0
        %2707 = vmatpush1.msra.mxu0 %v2666
        %2708 = vmatprep.subr.mxu0 0.0
        %2709 = vmatpush1.msra.mxu0 %v2667
        %2710 = vmatprep.subr.mxu0 0.0
        %2711 = vmatpush1.msra.mxu0 %v2668
        %2712 = vmatprep.subr.mxu0 0.0
        %2713 = vmatpush1.msra.mxu0 %v2669
        %2714 = vmatprep.subr.mxu0 0.0
        %2715 = vmatpush1.msra.mxu0 %v2670
        %2716 = vmatprep.subr.mxu0 0.0
        %2717 = vmatpush1.msra.mxu0 %v2671
        %2718 = vmatprep.subr.mxu0 0.0
        %2719 = vmatpush1.msra.mxu0 0.0
        %2720 = vmatprep.subr.mxu0 0.0
        %2721 = vmatpush1.msra.mxu0 0.0
        %2722 = vmatprep.subr.mxu0 0.0
        %2723 = vmatpush1.msra.mxu0 0.0
        %2724 = vmatprep.subr.mxu0 0.0
        %2725 = vmatpush1.msra.mxu0 0.0
        %2726 = vmatprep.subr.mxu0 0.0
        %2727 = vmatpush1.msra.mxu0 0.0
        %2728 = vmatprep.subr.mxu0 0.0
        %2729 = vmatpush1.msra.mxu0 0.0
        %2730 = vmatprep.subr.mxu0 0.0
        %2731 = vmatpush1.msra.mxu0 0.0
        %2732 = vmatprep.subr.mxu0 0.0
        %2733 = vmatpush1.msra.mxu0 0.0
        %2734 = vmatprep.subr.mxu0 0.0
        %2735 = vmatpush1.msra.mxu0 0.0
        %2736 = vmatprep.subr.mxu0 0.0
        %2737 = vmatpush1.msra.mxu0 0.0
        %2738 = vmatprep.subr.mxu0 0.0
        %2739 = vmatpush1.msra.mxu0 0.0
        %2740 = vmatprep.subr.mxu0 0.0
        %2741 = vmatpush1.msra.mxu0 0.0
        %2742 = vmatprep.subr.mxu0 0.0
        %2743 = vmatpush1.msra.mxu0 0.0
        %2744 = vmatprep.subr.mxu0 0.0
        %2745 = vmatpush1.msra.mxu0 0.0
        %2746 = vmatprep.subr.mxu0 0.0
        %2747 = vmatpush1.msra.mxu0 0.0
        %2748 = vmatprep.subr.mxu0 0.0
        %2749 = vmatpush1.msra.mxu0 0.0
        %2750 = vmatprep.subr.mxu0 0.0
        %2751 = vmatpush1.msra.mxu0 0.0
        %2752 = vmatprep.subr.mxu0 0.0
        %2753 = vmatpush1.msra.mxu0 0.0
        %2754 = vmatprep.subr.mxu0 0.0
        %2755 = vmatpush1.msra.mxu0 0.0
        %2756 = vmatprep.subr.mxu0 0.0
        %2757 = vmatpush1.msra.mxu0 0.0
        %2758 = vmatprep.subr.mxu0 0.0
        %2759 = vmatpush1.msra.mxu0 0.0
        %2760 = vmatprep.subr.mxu0 0.0
        %2761 = vmatpush1.msra.mxu0 0.0
        %2762 = vmatprep.subr.mxu0 0.0
        %2763 = vmatpush1.msra.mxu0 0.0
        %2764 = vmatprep.subr.mxu0 0.0
        %2765 = vmatpush1.msra.mxu0 0.0
        %2766 = vmatprep.subr.mxu0 0.0
        %2767 = vmatpush1.msra.mxu0 0.0
        %2768 = vmatprep.subr.mxu0 0.0
        %2769 = vmatpush1.msra.mxu0 0.0
        %2770 = vmatprep.mubr.f32.mxu0 0.0
        %2771 = vmatmul.mubr.f32.gmra.mrb[0].mxu0 %v2450
        %v2772 = vpop.f32.mrb[0].mxu0
        %v2773 = vadd.f32 %v2694, %v2772
        %v2774 = vpop.f32.mrb[0].mxu0
        %2775 = vdwg.mxu0
        %2776 = vmatprep.subr.mxu0 0.0
        %2777 = vmatpush1.msra.mxu0 %v2672
        %2778 = vmatprep.subr.mxu0 0.0
        %2779 = vmatpush1.msra.mxu0 %v2673
        %2780 = vmatprep.subr.mxu0 0.0
        %2781 = vmatpush1.msra.mxu0 %v2674
        %2782 = vmatprep.subr.mxu0 0.0
        %2783 = vmatpush1.msra.mxu0 %v2675
        %2784 = vmatprep.subr.mxu0 0.0
        %2785 = vmatpush1.msra.mxu0 %v2676
        %2786 = vmatprep.subr.mxu0 0.0
        %2787 = vmatpush1.msra.mxu0 %v2677
        %2788 = vmatprep.subr.mxu0 0.0
        %2789 = vmatpush1.msra.mxu0 0.0
        %2790 = vmatprep.subr.mxu0 0.0
        %2791 = vmatpush1.msra.mxu0 0.0
        %2792 = vmatprep.subr.mxu0 0.0
        %2793 = vmatpush1.msra.mxu0 0.0
        %2794 = vmatprep.subr.mxu0 0.0
        %2795 = vmatpush1.msra.mxu0 0.0
        %2796 = vmatprep.subr.mxu0 0.0
        %2797 = vmatpush1.msra.mxu0 0.0
        %2798 = vmatprep.subr.mxu0 0.0
        %2799 = vmatpush1.msra.mxu0 0.0
        %2800 = vmatprep.subr.mxu0 0.0
        %2801 = vmatpush1.msra.mxu0 0.0
        %2802 = vmatprep.subr.mxu0 0.0
        %2803 = vmatpush1.msra.mxu0 0.0
        %2804 = vmatprep.subr.mxu0 0.0
        %2805 = vmatpush1.msra.mxu0 0.0
        %2806 = vmatprep.subr.mxu0 0.0
        %2807 = vmatpush1.msra.mxu0 0.0
        %2808 = vmatprep.subr.mxu0 0.0
        %2809 = vmatpush1.msra.mxu0 0.0
        %2810 = vmatprep.subr.mxu0 0.0
        %2811 = vmatpush1.msra.mxu0 0.0
        %2812 = vmatprep.subr.mxu0 0.0
        %2813 = vmatpush1.msra.mxu0 0.0
        %2814 = vmatprep.subr.mxu0 0.0
        %2815 = vmatpush1.msra.mxu0 0.0
        %2816 = vmatprep.subr.mxu0 0.0
        %2817 = vmatpush1.msra.mxu0 0.0
        %2818 = vmatprep.subr.mxu0 0.0
        %2819 = vmatpush1.msra.mxu0 0.0
        %2820 = vmatprep.subr.mxu0 0.0
        %2821 = vmatpush1.msra.mxu0 0.0
        %2822 = vmatprep.subr.mxu0 0.0
        %2823 = vmatpush1.msra.mxu0 0.0
        %2824 = vmatprep.subr.mxu0 0.0
        %2825 = vmatpush1.msra.mxu0 0.0
        %2826 = vmatprep.subr.mxu0 0.0
        %2827 = vmatpush1.msra.mxu0 0.0
        %2828 = vmatprep.subr.mxu0 0.0
        %2829 = vmatpush1.msra.mxu0 0.0
        %2830 = vmatprep.subr.mxu0 0.0
        %2831 = vmatpush1.msra.mxu0 0.0
        %2832 = vmatprep.subr.mxu0 0.0
        %2833 = vmatpush1.msra.mxu0 0.0
        %2834 = vmatprep.subr.mxu0 0.0
        %2835 = vmatpush1.msra.mxu0 0.0
        %2836 = vmatprep.subr.mxu0 0.0
        %2837 = vmatpush1.msra.mxu0 0.0
        %2838 = vmatprep.subr.mxu0 0.0
        %2839 = vmatpush1.msra.mxu0 0.0
        %2840 = vmatprep.mubr.f32.mxu0 0.0
        %2841 = vmatmul.mubr.f32.gmra.mrb[0].mxu0 %v2450
        %v2842 = vpop.f32.mrb[0].mxu0
        %v2843 = vadd.f32 %v2698, %v2842
        %v2844 = vpop.f32.mrb[0].mxu0
        %2845 = vdwg.mxu0
        %2846 = vmatprep.subr.mxu0 0.0
        %2847 = vmatpush1.msra.mxu0 %v2678
        %2848 = vmatprep.subr.mxu0 0.0
        %2849 = vmatpush1.msra.mxu0 %v2679
        %2850 = vmatprep.subr.mxu0 0.0
        %2851 = vmatpush1.msra.mxu0 %v2680
        %2852 = vmatprep.subr.mxu0 0.0
        %2853 = vmatpush1.msra.mxu0 %v2681
        %2854 = vmatprep.subr.mxu0 0.0
        %2855 = vmatpush1.msra.mxu0 %v2682
        %2856 = vmatprep.subr.mxu0 0.0
        %2857 = vmatpush1.msra.mxu0 %v2683
        %2858 = vmatprep.subr.mxu0 0.0
        %2859 = vmatpush1.msra.mxu0 0.0
        %2860 = vmatprep.subr.mxu0 0.0
        %2861 = vmatpush1.msra.mxu0 0.0
        %2862 = vmatprep.subr.mxu0 0.0
        %2863 = vmatpush1.msra.mxu0 0.0
        %2864 = vmatprep.subr.mxu0 0.0
        %2865 = vmatpush1.msra.mxu0 0.0
        %2866 = vmatprep.subr.mxu0 0.0
        %2867 = vmatpush1.msra.mxu0 0.0
        %2868 = vmatprep.subr.mxu0 0.0
        %2869 = vmatpush1.msra.mxu0 0.0
        %2870 = vmatprep.subr.mxu0 0.0
        %2871 = vmatpush1.msra.mxu0 0.0
        %2872 = vmatprep.subr.mxu0 0.0
        %2873 = vmatpush1.msra.mxu0 0.0
        %2874 = vmatprep.subr.mxu0 0.0
        %2875 = vmatpush1.msra.mxu0 0.0
        %2876 = vmatprep.subr.mxu0 0.0
        %2877 = vmatpush1.msra.mxu0 0.0
        %2878 = vmatprep.subr.mxu0 0.0
        %2879 = vmatpush1.msra.mxu0 0.0
        %2880 = vmatprep.subr.mxu0 0.0
        %2881 = vmatpush1.msra.mxu0 0.0
        %2882 = vmatprep.subr.mxu0 0.0
        %2883 = vmatpush1.msra.mxu0 0.0
        %2884 = vmatprep.subr.mxu0 0.0
        %2885 = vmatpush1.msra.mxu0 0.0
        %2886 = vmatprep.subr.mxu0 0.0
        %2887 = vmatpush1.msra.mxu0 0.0
        %2888 = vmatprep.subr.mxu0 0.0
        %2889 = vmatpush1.msra.mxu0 0.0
        %2890 = vmatprep.subr.mxu0 0.0
        %2891 = vmatpush1.msra.mxu0 0.0
        %2892 = vmatprep.subr.mxu0 0.0
        %2893 = vmatpush1.msra.mxu0 0.0
        %2894 = vmatprep.subr.mxu0 0.0
        %2895 = vmatpush1.msra.mxu0 0.0
        %2896 = vmatprep.subr.mxu0 0.0
        %2897 = vmatpush1.msra.mxu0 0.0
        %2898 = vmatprep.subr.mxu0 0.0
        %2899 = vmatpush1.msra.mxu0 0.0
        %2900 = vmatprep.subr.mxu0 0.0
        %2901 = vmatpush1.msra.mxu0 0.0
        %2902 = vmatprep.subr.mxu0 0.0
        %2903 = vmatpush1.msra.mxu0 0.0
        %2904 = vmatprep.subr.mxu0 0.0
        %2905 = vmatpush1.msra.mxu0 0.0
        %2906 = vmatprep.subr.mxu0 0.0
        %2907 = vmatpush1.msra.mxu0 0.0
        %2908 = vmatprep.subr.mxu0 0.0
        %2909 = vmatpush1.msra.mxu0 0.0
        %2910 = vmatprep.mubr.f32.mxu0 0.0
        %2911 = vmatmul.mubr.f32.gmra.mrb[0].mxu0 %v2450
        %v2912 = vpop.f32.mrb[0].mxu0
        %v2913 = vadd.f32 %v2702, %v2912
        %v2914 = vpop.f32.mrb[0].mxu0
        %2915 = vdwg.mxu0
        %s2916 = scalar_lea.vmem %s5, 144
        %v2917 = vld [vmem:[%s2916] sm:$0xff]
        %v2918 = vld [vmem:[%s2916 + $0x8] sm:$0xff]
        %v2919 = vld [vmem:[%s2916 + $0x10] sm:$0xff]
        %v2920 = vld [vmem:[%s2916 + $0x18] sm:$0xff]
        %v2921 = vld [vmem:[%s2916 + $0x20] sm:$0xff]
        %v2922 = vld [vmem:[%s2916 + $0x28] sm:$0xff]
        %v2923 = vld [vmem:[%s2916 + $0x30] sm:$0xff]
        %v2924 = vld [vmem:[%s2916 + $0x38] sm:$0xff]
        %v2925 = vld [vmem:[%s2916 + $0x40] sm:$0xff]
        %v2926 = vld [vmem:[%s2916 + $0x48] sm:$0xff]
        %v2927 = vld [vmem:[%s2916 + $0x50] sm:$0xff]
        %v2928 = vld [vmem:[%s2916 + $0x58] sm:$0xff]
        %v2929 = vld [vmem:[%s2916 + $0x60] sm:$0xff]
        %v2930 = vld [vmem:[%s2916 + $0x68] sm:$0xff]
        %v2931 = vld [vmem:[%s2916 + $0x70] sm:$0xff]
        %v2932 = vld [vmem:[%s2916 + $0x78] sm:$0xff]
        %v2933 = vld [vmem:[%s2916 + $0x80] sm:$0xff]
        %v2934 = vld [vmem:[%s2916 + $0x88] sm:$0xff]
        %s2935 = scalar_lea.vmem %s8, 3
        %v2936 = vld [vmem:[%s2935] sm:$0x1]
        %v2937 = vld [vmem:[%s2935 + $0x1] sm:$0x1]
        %v2938 = vld [vmem:[%s2935 + $0x2] sm:$0x1]
        %v2942 = vlaneseq
        %v2943 = vshrl.u32 %v2942, 7
        %v2944 = vsub.s32 0, %v2943
        %v2945 = vrot.slane %v2936, %v2944
        %v2946 = vlaneseq
        %v2947 = vshrl.u32 %v2946, 7
        %v2948 = vsub.s32 0, %v2947
        %v2949 = vrot.slane %v2937, %v2948
        %v2950 = vlaneseq
        %v2951 = vshrl.u32 %v2950, 7
        %v2952 = vsub.s32 0, %v2951
        %v2953 = vrot.slane %v2938, %v2952
        %2957 = vmatprep.subr.mxu0 0.0
        %2958 = vmatpush1.msra.mxu0 %v2917
        %2959 = vmatprep.subr.mxu0 0.0
        %2960 = vmatpush1.msra.mxu0 %v2918
        %2961 = vmatprep.subr.mxu0 0.0
        %2962 = vmatpush1.msra.mxu0 %v2919
        %2963 = vmatprep.subr.mxu0 0.0
        %2964 = vmatpush1.msra.mxu0 %v2920
        %2965 = vmatprep.subr.mxu0 0.0
        %2966 = vmatpush1.msra.mxu0 %v2921
        %2967 = vmatprep.subr.mxu0 0.0
        %2968 = vmatpush1.msra.mxu0 %v2922
        %2969 = vmatprep.subr.mxu0 0.0
        %2970 = vmatpush1.msra.mxu0 0.0
        %2971 = vmatprep.subr.mxu0 0.0
        %2972 = vmatpush1.msra.mxu0 0.0
        %2973 = vmatprep.subr.mxu0 0.0
        %2974 = vmatpush1.msra.mxu0 0.0
        %2975 = vmatprep.subr.mxu0 0.0
        %2976 = vmatpush1.msra.mxu0 0.0
        %2977 = vmatprep.subr.mxu0 0.0
        %2978 = vmatpush1.msra.mxu0 0.0
        %2979 = vmatprep.subr.mxu0 0.0
        %2980 = vmatpush1.msra.mxu0 0.0
        %2981 = vmatprep.subr.mxu0 0.0
        %2982 = vmatpush1.msra.mxu0 0.0
        %2983 = vmatprep.subr.mxu0 0.0
        %2984 = vmatpush1.msra.mxu0 0.0
        %2985 = vmatprep.subr.mxu0 0.0
        %2986 = vmatpush1.msra.mxu0 0.0
        %2987 = vmatprep.subr.mxu0 0.0
        %2988 = vmatpush1.msra.mxu0 0.0
        %2989 = vmatprep.subr.mxu0 0.0
        %2990 = vmatpush1.msra.mxu0 0.0
        %2991 = vmatprep.subr.mxu0 0.0
        %2992 = vmatpush1.msra.mxu0 0.0
        %2993 = vmatprep.subr.mxu0 0.0
        %2994 = vmatpush1.msra.mxu0 0.0
        %2995 = vmatprep.subr.mxu0 0.0
        %2996 = vmatpush1.msra.mxu0 0.0
        %2997 = vmatprep.subr.mxu0 0.0
        %2998 = vmatpush1.msra.mxu0 0.0
        %2999 = vmatprep.subr.mxu0 0.0
        %3000 = vmatpush1.msra.mxu0 0.0
        %3001 = vmatprep.subr.mxu0 0.0
        %3002 = vmatpush1.msra.mxu0 0.0
        %3003 = vmatprep.subr.mxu0 0.0
        %3004 = vmatpush1.msra.mxu0 0.0
        %3005 = vmatprep.subr.mxu0 0.0
        %3006 = vmatpush1.msra.mxu0 0.0
        %3007 = vmatprep.subr.mxu0 0.0
        %3008 = vmatpush1.msra.mxu0 0.0
        %3009 = vmatprep.subr.mxu0 0.0
        %3010 = vmatpush1.msra.mxu0 0.0
        %3011 = vmatprep.subr.mxu0 0.0
        %3012 = vmatpush1.msra.mxu0 0.0
        %3013 = vmatprep.subr.mxu0 0.0
        %3014 = vmatpush1.msra.mxu0 0.0
        %3015 = vmatprep.subr.mxu0 0.0
        %3016 = vmatpush1.msra.mxu0 0.0
        %3017 = vmatprep.subr.mxu0 0.0
        %3018 = vmatpush1.msra.mxu0 0.0
        %3019 = vmatprep.subr.mxu0 0.0
        %3020 = vmatpush1.msra.mxu0 0.0
        %3021 = vmatprep.mubr.f32.mxu0 0.0
        %3022 = vmatmul.mubr.f32.gmra.mrb[0].mxu0 %v2450
        %v3023 = vpop.f32.mrb[0].mxu0
        %v3024 = vadd.f32 %v2945, %v3023
        %v3025 = vpop.f32.mrb[0].mxu0
        %3026 = vdwg.mxu0
        %3027 = vmatprep.subr.mxu0 0.0
        %3028 = vmatpush1.msra.mxu0 %v2923
        %3029 = vmatprep.subr.mxu0 0.0
        %3030 = vmatpush1.msra.mxu0 %v2924
        %3031 = vmatprep.subr.mxu0 0.0
        %3032 = vmatpush1.msra.mxu0 %v2925
        %3033 = vmatprep.subr.mxu0 0.0
        %3034 = vmatpush1.msra.mxu0 %v2926
        %3035 = vmatprep.subr.mxu0 0.0
        %3036 = vmatpush1.msra.mxu0 %v2927
        %3037 = vmatprep.subr.mxu0 0.0
        %3038 = vmatpush1.msra.mxu0 %v2928
        %3039 = vmatprep.subr.mxu0 0.0
        %3040 = vmatpush1.msra.mxu0 0.0
        %3041 = vmatprep.subr.mxu0 0.0
        %3042 = vmatpush1.msra.mxu0 0.0
        %3043 = vmatprep.subr.mxu0 0.0
        %3044 = vmatpush1.msra.mxu0 0.0
        %3045 = vmatprep.subr.mxu0 0.0
        %3046 = vmatpush1.msra.mxu0 0.0
        %3047 = vmatprep.subr.mxu0 0.0
        %3048 = vmatpush1.msra.mxu0 0.0
        %3049 = vmatprep.subr.mxu0 0.0
        %3050 = vmatpush1.msra.mxu0 0.0
        %3051 = vmatprep.subr.mxu0 0.0
        %3052 = vmatpush1.msra.mxu0 0.0
        %3053 = vmatprep.subr.mxu0 0.0
        %3054 = vmatpush1.msra.mxu0 0.0
        %3055 = vmatprep.subr.mxu0 0.0
        %3056 = vmatpush1.msra.mxu0 0.0
        %3057 = vmatprep.subr.mxu0 0.0
        %3058 = vmatpush1.msra.mxu0 0.0
        %3059 = vmatprep.subr.mxu0 0.0
        %3060 = vmatpush1.msra.mxu0 0.0
        %3061 = vmatprep.subr.mxu0 0.0
        %3062 = vmatpush1.msra.mxu0 0.0
        %3063 = vmatprep.subr.mxu0 0.0
        %3064 = vmatpush1.msra.mxu0 0.0
        %3065 = vmatprep.subr.mxu0 0.0
        %3066 = vmatpush1.msra.mxu0 0.0
        %3067 = vmatprep.subr.mxu0 0.0
        %3068 = vmatpush1.msra.mxu0 0.0
        %3069 = vmatprep.subr.mxu0 0.0
        %3070 = vmatpush1.msra.mxu0 0.0
        %3071 = vmatprep.subr.mxu0 0.0
        %3072 = vmatpush1.msra.mxu0 0.0
        %3073 = vmatprep.subr.mxu0 0.0
        %3074 = vmatpush1.msra.mxu0 0.0
        %3075 = vmatprep.subr.mxu0 0.0
        %3076 = vmatpush1.msra.mxu0 0.0
        %3077 = vmatprep.subr.mxu0 0.0
        %3078 = vmatpush1.msra.mxu0 0.0
        %3079 = vmatprep.subr.mxu0 0.0
        %3080 = vmatpush1.msra.mxu0 0.0
        %3081 = vmatprep.subr.mxu0 0.0
        %3082 = vmatpush1.msra.mxu0 0.0
        %3083 = vmatprep.subr.mxu0 0.0
        %3084 = vmatpush1.msra.mxu0 0.0
        %3085 = vmatprep.subr.mxu0 0.0
        %3086 = vmatpush1.msra.mxu0 0.0
        %3087 = vmatprep.subr.mxu0 0.0
        %3088 = vmatpush1.msra.mxu0 0.0
        %3089 = vmatprep.subr.mxu0 0.0
        %3090 = vmatpush1.msra.mxu0 0.0
        %3091 = vmatprep.mubr.f32.mxu0 0.0
        %3092 = vmatmul.mubr.f32.gmra.mrb[0].mxu0 %v2450
        %v3093 = vpop.f32.mrb[0].mxu0
        %v3094 = vadd.f32 %v2949, %v3093
        %v3095 = vpop.f32.mrb[0].mxu0
        %3096 = vdwg.mxu0
        %3097 = vmatprep.subr.mxu0 0.0
        %3098 = vmatpush1.msra.mxu0 %v2929
        %3099 = vmatprep.subr.mxu0 0.0
        %3100 = vmatpush1.msra.mxu0 %v2930
        %3101 = vmatprep.subr.mxu0 0.0
        %3102 = vmatpush1.msra.mxu0 %v2931
        %3103 = vmatprep.subr.mxu0 0.0
        %3104 = vmatpush1.msra.mxu0 %v2932
        %3105 = vmatprep.subr.mxu0 0.0
        %3106 = vmatpush1.msra.mxu0 %v2933
        %3107 = vmatprep.subr.mxu0 0.0
        %3108 = vmatpush1.msra.mxu0 %v2934
        %3109 = vmatprep.subr.mxu0 0.0
        %3110 = vmatpush1.msra.mxu0 0.0
        %3111 = vmatprep.subr.mxu0 0.0
        %3112 = vmatpush1.msra.mxu0 0.0
        %3113 = vmatprep.subr.mxu0 0.0
        %3114 = vmatpush1.msra.mxu0 0.0
        %3115 = vmatprep.subr.mxu0 0.0
        %3116 = vmatpush1.msra.mxu0 0.0
        %3117 = vmatprep.subr.mxu0 0.0
        %3118 = vmatpush1.msra.mxu0 0.0
        %3119 = vmatprep.subr.mxu0 0.0
        %3120 = vmatpush1.msra.mxu0 0.0
        %3121 = vmatprep.subr.mxu0 0.0
        %3122 = vmatpush1.msra.mxu0 0.0
        %3123 = vmatprep.subr.mxu0 0.0
        %3124 = vmatpush1.msra.mxu0 0.0
        %3125 = vmatprep.subr.mxu0 0.0
        %3126 = vmatpush1.msra.mxu0 0.0
        %3127 = vmatprep.subr.mxu0 0.0
        %3128 = vmatpush1.msra.mxu0 0.0
        %3129 = vmatprep.subr.mxu0 0.0
        %3130 = vmatpush1.msra.mxu0 0.0
        %3131 = vmatprep.subr.mxu0 0.0
        %3132 = vmatpush1.msra.mxu0 0.0
        %3133 = vmatprep.subr.mxu0 0.0
        %3134 = vmatpush1.msra.mxu0 0.0
        %3135 = vmatprep.subr.mxu0 0.0
        %3136 = vmatpush1.msra.mxu0 0.0
        %3137 = vmatprep.subr.mxu0 0.0
        %3138 = vmatpush1.msra.mxu0 0.0
        %3139 = vmatprep.subr.mxu0 0.0
        %3140 = vmatpush1.msra.mxu0 0.0
        %3141 = vmatprep.subr.mxu0 0.0
        %3142 = vmatpush1.msra.mxu0 0.0
        %3143 = vmatprep.subr.mxu0 0.0
        %3144 = vmatpush1.msra.mxu0 0.0
        %3145 = vmatprep.subr.mxu0 0.0
        %3146 = vmatpush1.msra.mxu0 0.0
        %3147 = vmatprep.subr.mxu0 0.0
        %3148 = vmatpush1.msra.mxu0 0.0
        %3149 = vmatprep.subr.mxu0 0.0
        %3150 = vmatpush1.msra.mxu0 0.0
        %3151 = vmatprep.subr.mxu0 0.0
        %3152 = vmatpush1.msra.mxu0 0.0
        %3153 = vmatprep.subr.mxu0 0.0
        %3154 = vmatpush1.msra.mxu0 0.0
        %3155 = vmatprep.subr.mxu0 0.0
        %3156 = vmatpush1.msra.mxu0 0.0
        %3157 = vmatprep.subr.mxu0 0.0
        %3158 = vmatpush1.msra.mxu0 0.0
        %3159 = vmatprep.subr.mxu0 0.0
        %3160 = vmatpush1.msra.mxu0 0.0
        %3161 = vmatprep.mubr.f32.mxu0 0.0
        %3162 = vmatmul.mubr.f32.gmra.mrb[0].mxu0 %v2450
        %v3163 = vpop.f32.mrb[0].mxu0
        %v3164 = vadd.f32 %v2953, %v3163
        %v3165 = vpop.f32.mrb[0].mxu0
        %3166 = vdwg.mxu0
        %v3168 = vsel %vm1415, %v2662, 0
        %v3171 = vsel %vm1415, %v2773, 0
        %3173 = vmatprep.subr.mxu0 0.0
        %3174 = vmatpush1.xpose.msra.mxu0 %v3171
        %3175 = vmatprep.subr.mxu0 0.0
        %3176 = vmatpush1.xpose.msra.mxu0 0.0
        %3177 = vmatprep.subr.mxu0 0.0
        %3178 = vmatpush1.xpose.msra.mxu0 0.0
        %3179 = vmatprep.subr.mxu0 0.0
        %3180 = vmatpush1.xpose.msra.mxu0 0.0
        %3181 = vmatprep.subr.mxu0 0.0
        %3182 = vmatpush1.xpose.msra.mxu0 0.0
        %3183 = vmatprep.subr.mxu0 0.0
        %3184 = vmatpush1.xpose.msra.mxu0 0.0
        %3185 = vmatprep.subr.mxu0 0.0
        %3186 = vmatpush1.xpose.msra.mxu0 0.0
        %3187 = vmatprep.subr.mxu0 0.0
        %3188 = vmatpush1.xpose.msra.mxu0 0.0
        %3189 = vmatprep.subr.mxu0 0.0
        %3190 = vmatpush1.xpose.msra.mxu0 0.0
        %3191 = vmatprep.subr.mxu0 0.0
        %3192 = vmatpush1.xpose.msra.mxu0 0.0
        %3193 = vmatprep.subr.mxu0 0.0
        %3194 = vmatpush1.xpose.msra.mxu0 0.0
        %3195 = vmatprep.subr.mxu0 0.0
        %3196 = vmatpush1.xpose.msra.mxu0 0.0
        %3197 = vmatprep.subr.mxu0 0.0
        %3198 = vmatpush1.xpose.msra.mxu0 0.0
        %3199 = vmatprep.subr.mxu0 0.0
        %3200 = vmatpush1.xpose.msra.mxu0 0.0
        %3201 = vmatprep.subr.mxu0 0.0
        %3202 = vmatpush1.xpose.msra.mxu0 0.0
        %3203 = vmatprep.subr.mxu0 0.0
        %3204 = vmatpush1.xpose.msra.mxu0 0.0
        %3205 = vmatprep.subr.mxu0 0.0
        %3206 = vmatpush1.xpose.msra.mxu0 0.0
        %3207 = vmatprep.subr.mxu0 0.0
        %3208 = vmatpush1.xpose.msra.mxu0 0.0
        %3209 = vmatprep.subr.mxu0 0.0
        %3210 = vmatpush1.xpose.msra.mxu0 0.0
        %3211 = vmatprep.subr.mxu0 0.0
        %3212 = vmatpush1.xpose.msra.mxu0 0.0
        %3213 = vmatprep.subr.mxu0 0.0
        %3214 = vmatpush1.xpose.msra.mxu0 0.0
        %3215 = vmatprep.subr.mxu0 0.0
        %3216 = vmatpush1.xpose.msra.mxu0 0.0
        %3217 = vmatprep.subr.mxu0 0.0
        %3218 = vmatpush1.xpose.msra.mxu0 0.0
        %3219 = vmatprep.subr.mxu0 0.0
        %3220 = vmatpush1.xpose.msra.mxu0 0.0
        %3221 = vmatprep.subr.mxu0 0.0
        %3222 = vmatpush1.xpose.msra.mxu0 0.0
        %3223 = vmatprep.subr.mxu0 0.0
        %3224 = vmatpush1.xpose.msra.mxu0 0.0
        %3225 = vmatprep.subr.mxu0 0.0
        %3226 = vmatpush1.xpose.msra.mxu0 0.0
        %3227 = vmatprep.subr.mxu0 0.0
        %3228 = vmatpush1.xpose.msra.mxu0 0.0
        %3229 = vmatprep.subr.mxu0 0.0
        %3230 = vmatpush1.xpose.msra.mxu0 0.0
        %3231 = vmatprep.subr.mxu0 0.0
        %3232 = vmatpush1.xpose.msra.mxu0 0.0
        %3233 = vmatprep.subr.mxu0 0.0
        %3234 = vmatpush1.xpose.msra.mxu0 0.0
        %3235 = vmatprep.subr.mxu0 0.0
        %3236 = vmatpush1.xpose.msra.mxu0 0.0
        %3237 = vmatprep.mubr.f32.mxu0 0.0
        %3238 = vmatmul.mubr.f32.gmra.mrb[0].mxu0 %v3168
        %v3239 = vpop.f32.mrb[0].mxu0
        %v3240 = vadd.f32 0.0, %v3239
        %v3241 = vpop.f32.mrb[0].mxu0
        %3242 = vdwg.mxu0
        %v3244 = vsel %vm1415, %v2663, 0
        %v3247 = vsel %vm1415, %v2843, 0
        %3249 = vmatprep.subr.mxu0 0.0
        %3250 = vmatpush1.xpose.msra.mxu0 %v3247
        %3251 = vmatprep.subr.mxu0 0.0
        %3252 = vmatpush1.xpose.msra.mxu0 0.0
        %3253 = vmatprep.subr.mxu0 0.0
        %3254 = vmatpush1.xpose.msra.mxu0 0.0
        %3255 = vmatprep.subr.mxu0 0.0
        %3256 = vmatpush1.xpose.msra.mxu0 0.0
        %3257 = vmatprep.subr.mxu0 0.0
        %3258 = vmatpush1.xpose.msra.mxu0 0.0
        %3259 = vmatprep.subr.mxu0 0.0
        %3260 = vmatpush1.xpose.msra.mxu0 0.0
        %3261 = vmatprep.subr.mxu0 0.0
        %3262 = vmatpush1.xpose.msra.mxu0 0.0
        %3263 = vmatprep.subr.mxu0 0.0
        %3264 = vmatpush1.xpose.msra.mxu0 0.0
        %3265 = vmatprep.subr.mxu0 0.0
        %3266 = vmatpush1.xpose.msra.mxu0 0.0
        %3267 = vmatprep.subr.mxu0 0.0
        %3268 = vmatpush1.xpose.msra.mxu0 0.0
        %3269 = vmatprep.subr.mxu0 0.0
        %3270 = vmatpush1.xpose.msra.mxu0 0.0
        %3271 = vmatprep.subr.mxu0 0.0
        %3272 = vmatpush1.xpose.msra.mxu0 0.0
        %3273 = vmatprep.subr.mxu0 0.0
        %3274 = vmatpush1.xpose.msra.mxu0 0.0
        %3275 = vmatprep.subr.mxu0 0.0
        %3276 = vmatpush1.xpose.msra.mxu0 0.0
        %3277 = vmatprep.subr.mxu0 0.0
        %3278 = vmatpush1.xpose.msra.mxu0 0.0
        %3279 = vmatprep.subr.mxu0 0.0
        %3280 = vmatpush1.xpose.msra.mxu0 0.0
        %3281 = vmatprep.subr.mxu0 0.0
        %3282 = vmatpush1.xpose.msra.mxu0 0.0
        %3283 = vmatprep.subr.mxu0 0.0
        %3284 = vmatpush1.xpose.msra.mxu0 0.0
        %3285 = vmatprep.subr.mxu0 0.0
        %3286 = vmatpush1.xpose.msra.mxu0 0.0
        %3287 = vmatprep.subr.mxu0 0.0
        %3288 = vmatpush1.xpose.msra.mxu0 0.0
        %3289 = vmatprep.subr.mxu0 0.0
        %3290 = vmatpush1.xpose.msra.mxu0 0.0
        %3291 = vmatprep.subr.mxu0 0.0
        %3292 = vmatpush1.xpose.msra.mxu0 0.0
        %3293 = vmatprep.subr.mxu0 0.0
        %3294 = vmatpush1.xpose.msra.mxu0 0.0
        %3295 = vmatprep.subr.mxu0 0.0
        %3296 = vmatpush1.xpose.msra.mxu0 0.0
        %3297 = vmatprep.subr.mxu0 0.0
        %3298 = vmatpush1.xpose.msra.mxu0 0.0
        %3299 = vmatprep.subr.mxu0 0.0
        %3300 = vmatpush1.xpose.msra.mxu0 0.0
        %3301 = vmatprep.subr.mxu0 0.0
        %3302 = vmatpush1.xpose.msra.mxu0 0.0
        %3303 = vmatprep.subr.mxu0 0.0
        %3304 = vmatpush1.xpose.msra.mxu0 0.0
        %3305 = vmatprep.subr.mxu0 0.0
        %3306 = vmatpush1.xpose.msra.mxu0 0.0
        %3307 = vmatprep.subr.mxu0 0.0
        %3308 = vmatpush1.xpose.msra.mxu0 0.0
        %3309 = vmatprep.subr.mxu0 0.0
        %3310 = vmatpush1.xpose.msra.mxu0 0.0
        %3311 = vmatprep.subr.mxu0 0.0
        %3312 = vmatpush1.xpose.msra.mxu0 0.0
        %3313 = vmatprep.mubr.f32.mxu0 0.0
        %3314 = vmatmul.mubr.f32.gmra.mrb[0].mxu0 %v3244
        %v3315 = vpop.f32.mrb[0].mxu0
        %v3316 = vadd.f32 0.0, %v3315
        %v3317 = vpop.f32.mrb[0].mxu0
        %3318 = vdwg.mxu0
        %v3320 = vsel %vm1415, %v2664, 0
        %v3323 = vsel %vm1415, %v2913, 0
        %3325 = vmatprep.subr.mxu0 0.0
        %3326 = vmatpush1.xpose.msra.mxu0 %v3323
        %3327 = vmatprep.subr.mxu0 0.0
        %3328 = vmatpush1.xpose.msra.mxu0 0.0
        %3329 = vmatprep.subr.mxu0 0.0
        %3330 = vmatpush1.xpose.msra.mxu0 0.0
        %3331 = vmatprep.subr.mxu0 0.0
        %3332 = vmatpush1.xpose.msra.mxu0 0.0
        %3333 = vmatprep.subr.mxu0 0.0
        %3334 = vmatpush1.xpose.msra.mxu0 0.0
        %3335 = vmatprep.subr.mxu0 0.0
        %3336 = vmatpush1.xpose.msra.mxu0 0.0
        %3337 = vmatprep.subr.mxu0 0.0
        %3338 = vmatpush1.xpose.msra.mxu0 0.0
        %3339 = vmatprep.subr.mxu0 0.0
        %3340 = vmatpush1.xpose.msra.mxu0 0.0
        %3341 = vmatprep.subr.mxu0 0.0
        %3342 = vmatpush1.xpose.msra.mxu0 0.0
        %3343 = vmatprep.subr.mxu0 0.0
        %3344 = vmatpush1.xpose.msra.mxu0 0.0
        %3345 = vmatprep.subr.mxu0 0.0
        %3346 = vmatpush1.xpose.msra.mxu0 0.0
        %3347 = vmatprep.subr.mxu0 0.0
        %3348 = vmatpush1.xpose.msra.mxu0 0.0
        %3349 = vmatprep.subr.mxu0 0.0
        %3350 = vmatpush1.xpose.msra.mxu0 0.0
        %3351 = vmatprep.subr.mxu0 0.0
        %3352 = vmatpush1.xpose.msra.mxu0 0.0
        %3353 = vmatprep.subr.mxu0 0.0
        %3354 = vmatpush1.xpose.msra.mxu0 0.0
        %3355 = vmatprep.subr.mxu0 0.0
        %3356 = vmatpush1.xpose.msra.mxu0 0.0
        %3357 = vmatprep.subr.mxu0 0.0
        %3358 = vmatpush1.xpose.msra.mxu0 0.0
        %3359 = vmatprep.subr.mxu0 0.0
        %3360 = vmatpush1.xpose.msra.mxu0 0.0
        %3361 = vmatprep.subr.mxu0 0.0
        %3362 = vmatpush1.xpose.msra.mxu0 0.0
        %3363 = vmatprep.subr.mxu0 0.0
        %3364 = vmatpush1.xpose.msra.mxu0 0.0
        %3365 = vmatprep.subr.mxu0 0.0
        %3366 = vmatpush1.xpose.msra.mxu0 0.0
        %3367 = vmatprep.subr.mxu0 0.0
        %3368 = vmatpush1.xpose.msra.mxu0 0.0
        %3369 = vmatprep.subr.mxu0 0.0
        %3370 = vmatpush1.xpose.msra.mxu0 0.0
        %3371 = vmatprep.subr.mxu0 0.0
        %3372 = vmatpush1.xpose.msra.mxu0 0.0
        %3373 = vmatprep.subr.mxu0 0.0
        %3374 = vmatpush1.xpose.msra.mxu0 0.0
        %3375 = vmatprep.subr.mxu0 0.0
        %3376 = vmatpush1.xpose.msra.mxu0 0.0
        %3377 = vmatprep.subr.mxu0 0.0
        %3378 = vmatpush1.xpose.msra.mxu0 0.0
        %3379 = vmatprep.subr.mxu0 0.0
        %3380 = vmatpush1.xpose.msra.mxu0 0.0
        %3381 = vmatprep.subr.mxu0 0.0
        %3382 = vmatpush1.xpose.msra.mxu0 0.0
        %3383 = vmatprep.subr.mxu0 0.0
        %3384 = vmatpush1.xpose.msra.mxu0 0.0
        %3385 = vmatprep.subr.mxu0 0.0
        %3386 = vmatpush1.xpose.msra.mxu0 0.0
        %3387 = vmatprep.subr.mxu0 0.0
        %3388 = vmatpush1.xpose.msra.mxu0 0.0
        %3389 = vmatprep.mubr.f32.mxu0 0.0
        %3390 = vmatmul.mubr.f32.gmra.mrb[0].mxu0 %v3320
        %v3391 = vpop.f32.mrb[0].mxu0
        %v3392 = vadd.f32 0.0, %v3391
        %v3393 = vpop.f32.mrb[0].mxu0
        %3394 = vdwg.mxu0
        %v3395 = vsel %vm1645, %v3240, -1e+30
        %v3396 = vsel %vm1645, %v3316, -1e+30
        %v3397 = vsel %vm1645, %v3392, -1e+30
        %v3398 = vsel %vm1649, %v3395, -inf
        %3399 = vmax.xlane.f32.xlu0 %v3398
        %v3400 = vpop.xlane.xlu0 %3399
        %v3401 = vsel %vm1649, %v3396, -inf
        %3402 = vmax.xlane.f32.xlu0 %v3401
        %v3403 = vpop.xlane.xlu0 %3402
        %v3404 = vsel %vm1649, %v3397, -inf
        %3405 = vmax.xlane.f32.xlu0 %v3404
        %v3406 = vpop.xlane.xlu0 %3405
        %v3407 = vsub.f32 %v3395, %v3400
        %v3408 = vsub.f32 %v3396, %v3403
        %v3409 = vsub.f32 %v3397, %v3406
        %v3410 = vmul.f32 %v3407, 1.442695
        %v3411 = vpow.pop %v3410
        %v3412 = vmul.f32 %v3408, 1.442695
        %v3413 = vpow.pop %v3412
        %v3414 = vmul.f32 %v3409, 1.442695
        %v3415 = vpow.pop %v3414
        %v3417 = vsel %vm1649, %v3411, 0
        %3419 = vmatprep.subr.mxu0 0.0
        %3420 = vmatpush1.msra.mxu0 %v3024
        %3421 = vmatprep.subr.mxu0 0.0
        %3422 = vmatpush1.msra.mxu0 0.0
        %3423 = vmatprep.subr.mxu0 0.0
        %3424 = vmatpush1.msra.mxu0 0.0
        %3425 = vmatprep.subr.mxu0 0.0
        %3426 = vmatpush1.msra.mxu0 0.0
        %3427 = vmatprep.subr.mxu0 0.0
        %3428 = vmatpush1.msra.mxu0 0.0
        %3429 = vmatprep.subr.mxu0 0.0
        %3430 = vmatpush1.msra.mxu0 0.0
        %3431 = vmatprep.subr.mxu0 0.0
        %3432 = vmatpush1.msra.mxu0 0.0
        %3433 = vmatprep.subr.mxu0 0.0
        %3434 = vmatpush1.msra.mxu0 0.0
        %3435 = vmatprep.subr.mxu0 0.0
        %3436 = vmatpush1.msra.mxu0 0.0
        %3437 = vmatprep.subr.mxu0 0.0
        %3438 = vmatpush1.msra.mxu0 0.0
        %3439 = vmatprep.subr.mxu0 0.0
        %3440 = vmatpush1.msra.mxu0 0.0
        %3441 = vmatprep.subr.mxu0 0.0
        %3442 = vmatpush1.msra.mxu0 0.0
        %3443 = vmatprep.subr.mxu0 0.0
        %3444 = vmatpush1.msra.mxu0 0.0
        %3445 = vmatprep.subr.mxu0 0.0
        %3446 = vmatpush1.msra.mxu0 0.0
        %3447 = vmatprep.subr.mxu0 0.0
        %3448 = vmatpush1.msra.mxu0 0.0
        %3449 = vmatprep.subr.mxu0 0.0
        %3450 = vmatpush1.msra.mxu0 0.0
        %3451 = vmatprep.subr.mxu0 0.0
        %3452 = vmatpush1.msra.mxu0 0.0
        %3453 = vmatprep.subr.mxu0 0.0
        %3454 = vmatpush1.msra.mxu0 0.0
        %3455 = vmatprep.subr.mxu0 0.0
        %3456 = vmatpush1.msra.mxu0 0.0
        %3457 = vmatprep.subr.mxu0 0.0
        %3458 = vmatpush1.msra.mxu0 0.0
        %3459 = vmatprep.subr.mxu0 0.0
        %3460 = vmatpush1.msra.mxu0 0.0
        %3461 = vmatprep.subr.mxu0 0.0
        %3462 = vmatpush1.msra.mxu0 0.0
        %3463 = vmatprep.subr.mxu0 0.0
        %3464 = vmatpush1.msra.mxu0 0.0
        %3465 = vmatprep.subr.mxu0 0.0
        %3466 = vmatpush1.msra.mxu0 0.0
        %3467 = vmatprep.subr.mxu0 0.0
        %3468 = vmatpush1.msra.mxu0 0.0
        %3469 = vmatprep.subr.mxu0 0.0
        %3470 = vmatpush1.msra.mxu0 0.0
        %3471 = vmatprep.subr.mxu0 0.0
        %3472 = vmatpush1.msra.mxu0 0.0
        %3473 = vmatprep.subr.mxu0 0.0
        %3474 = vmatpush1.msra.mxu0 0.0
        %3475 = vmatprep.subr.mxu0 0.0
        %3476 = vmatpush1.msra.mxu0 0.0
        %3477 = vmatprep.subr.mxu0 0.0
        %3478 = vmatpush1.msra.mxu0 0.0
        %3479 = vmatprep.subr.mxu0 0.0
        %3480 = vmatpush1.msra.mxu0 0.0
        %3481 = vmatprep.subr.mxu0 0.0
        %3482 = vmatpush1.msra.mxu0 0.0
        %3483 = vmatprep.mubr.f32.mxu0 0.0
        %3484 = vmatmul.mubr.f32.gmra.mrb[0].mxu0 %v3417
        %v3485 = vpop.f32.mrb[0].mxu0
        %v3486 = vadd.f32 0.0, %v3485
        %v3487 = vpop.f32.mrb[0].mxu0
        %3488 = vdwg.mxu0
        %v3490 = vsel %vm1649, %v3413, 0
        %3492 = vmatprep.subr.mxu0 0.0
        %3493 = vmatpush1.msra.mxu0 %v3094
        %3494 = vmatprep.subr.mxu0 0.0
        %3495 = vmatpush1.msra.mxu0 0.0
        %3496 = vmatprep.subr.mxu0 0.0
        %3497 = vmatpush1.msra.mxu0 0.0
        %3498 = vmatprep.subr.mxu0 0.0
        %3499 = vmatpush1.msra.mxu0 0.0
        %3500 = vmatprep.subr.mxu0 0.0
        %3501 = vmatpush1.msra.mxu0 0.0
        %3502 = vmatprep.subr.mxu0 0.0
        %3503 = vmatpush1.msra.mxu0 0.0
        %3504 = vmatprep.subr.mxu0 0.0
        %3505 = vmatpush1.msra.mxu0 0.0
        %3506 = vmatprep.subr.mxu0 0.0
        %3507 = vmatpush1.msra.mxu0 0.0
        %3508 = vmatprep.subr.mxu0 0.0
        %3509 = vmatpush1.msra.mxu0 0.0
        %3510 = vmatprep.subr.mxu0 0.0
        %3511 = vmatpush1.msra.mxu0 0.0
        %3512 = vmatprep.subr.mxu0 0.0
        %3513 = vmatpush1.msra.mxu0 0.0
        %3514 = vmatprep.subr.mxu0 0.0
        %3515 = vmatpush1.msra.mxu0 0.0
        %3516 = vmatprep.subr.mxu0 0.0
        %3517 = vmatpush1.msra.mxu0 0.0
        %3518 = vmatprep.subr.mxu0 0.0
        %3519 = vmatpush1.msra.mxu0 0.0
        %3520 = vmatprep.subr.mxu0 0.0
        %3521 = vmatpush1.msra.mxu0 0.0
        %3522 = vmatprep.subr.mxu0 0.0
        %3523 = vmatpush1.msra.mxu0 0.0
        %3524 = vmatprep.subr.mxu0 0.0
        %3525 = vmatpush1.msra.mxu0 0.0
        %3526 = vmatprep.subr.mxu0 0.0
        %3527 = vmatpush1.msra.mxu0 0.0
        %3528 = vmatprep.subr.mxu0 0.0
        %3529 = vmatpush1.msra.mxu0 0.0
        %3530 = vmatprep.subr.mxu0 0.0
        %3531 = vmatpush1.msra.mxu0 0.0
        %3532 = vmatprep.subr.mxu0 0.0
        %3533 = vmatpush1.msra.mxu0 0.0
        %3534 = vmatprep.subr.mxu0 0.0
        %3535 = vmatpush1.msra.mxu0 0.0
        %3536 = vmatprep.subr.mxu0 0.0
        %3537 = vmatpush1.msra.mxu0 0.0
        %3538 = vmatprep.subr.mxu0 0.0
        %3539 = vmatpush1.msra.mxu0 0.0
        %3540 = vmatprep.subr.mxu0 0.0
        %3541 = vmatpush1.msra.mxu0 0.0
        %3542 = vmatprep.subr.mxu0 0.0
        %3543 = vmatpush1.msra.mxu0 0.0
        %3544 = vmatprep.subr.mxu0 0.0
        %3545 = vmatpush1.msra.mxu0 0.0
        %3546 = vmatprep.subr.mxu0 0.0
        %3547 = vmatpush1.msra.mxu0 0.0
        %3548 = vmatprep.subr.mxu0 0.0
        %3549 = vmatpush1.msra.mxu0 0.0
        %3550 = vmatprep.subr.mxu0 0.0
        %3551 = vmatpush1.msra.mxu0 0.0
        %3552 = vmatprep.subr.mxu0 0.0
        %3553 = vmatpush1.msra.mxu0 0.0
        %3554 = vmatprep.subr.mxu0 0.0
        %3555 = vmatpush1.msra.mxu0 0.0
        %3556 = vmatprep.mubr.f32.mxu0 0.0
        %3557 = vmatmul.mubr.f32.gmra.mrb[0].mxu0 %v3490
        %v3558 = vpop.f32.mrb[0].mxu0
        %v3559 = vadd.f32 0.0, %v3558
        %v3560 = vpop.f32.mrb[0].mxu0
        %3561 = vdwg.mxu0
        %v3563 = vsel %vm1649, %v3415, 0
        %3565 = vmatprep.subr.mxu0 0.0
        %3566 = vmatpush1.msra.mxu0 %v3164
        %3567 = vmatprep.subr.mxu0 0.0
        %3568 = vmatpush1.msra.mxu0 0.0
        %3569 = vmatprep.subr.mxu0 0.0
        %3570 = vmatpush1.msra.mxu0 0.0
        %3571 = vmatprep.subr.mxu0 0.0
        %3572 = vmatpush1.msra.mxu0 0.0
        %3573 = vmatprep.subr.mxu0 0.0
        %3574 = vmatpush1.msra.mxu0 0.0
        %3575 = vmatprep.subr.mxu0 0.0
        %3576 = vmatpush1.msra.mxu0 0.0
        %3577 = vmatprep.subr.mxu0 0.0
        %3578 = vmatpush1.msra.mxu0 0.0
        %3579 = vmatprep.subr.mxu0 0.0
        %3580 = vmatpush1.msra.mxu0 0.0
        %3581 = vmatprep.subr.mxu0 0.0
        %3582 = vmatpush1.msra.mxu0 0.0
        %3583 = vmatprep.subr.mxu0 0.0
        %3584 = vmatpush1.msra.mxu0 0.0
        %3585 = vmatprep.subr.mxu0 0.0
        %3586 = vmatpush1.msra.mxu0 0.0
        %3587 = vmatprep.subr.mxu0 0.0
        %3588 = vmatpush1.msra.mxu0 0.0
        %3589 = vmatprep.subr.mxu0 0.0
        %3590 = vmatpush1.msra.mxu0 0.0
        %3591 = vmatprep.subr.mxu0 0.0
        %3592 = vmatpush1.msra.mxu0 0.0
        %3593 = vmatprep.subr.mxu0 0.0
        %3594 = vmatpush1.msra.mxu0 0.0
        %3595 = vmatprep.subr.mxu0 0.0
        %3596 = vmatpush1.msra.mxu0 0.0
        %3597 = vmatprep.subr.mxu0 0.0
        %3598 = vmatpush1.msra.mxu0 0.0
        %3599 = vmatprep.subr.mxu0 0.0
        %3600 = vmatpush1.msra.mxu0 0.0
        %3601 = vmatprep.subr.mxu0 0.0
        %3602 = vmatpush1.msra.mxu0 0.0
        %3603 = vmatprep.subr.mxu0 0.0
        %3604 = vmatpush1.msra.mxu0 0.0
        %3605 = vmatprep.subr.mxu0 0.0
        %3606 = vmatpush1.msra.mxu0 0.0
        %3607 = vmatprep.subr.mxu0 0.0
        %3608 = vmatpush1.msra.mxu0 0.0
        %3609 = vmatprep.subr.mxu0 0.0
        %3610 = vmatpush1.msra.mxu0 0.0
        %3611 = vmatprep.subr.mxu0 0.0
        %3612 = vmatpush1.msra.mxu0 0.0
        %3613 = vmatprep.subr.mxu0 0.0
        %3614 = vmatpush1.msra.mxu0 0.0
        %3615 = vmatprep.subr.mxu0 0.0
        %3616 = vmatpush1.msra.mxu0 0.0
        %3617 = vmatprep.subr.mxu0 0.0
        %3618 = vmatpush1.msra.mxu0 0.0
        %3619 = vmatprep.subr.mxu0 0.0
        %3620 = vmatpush1.msra.mxu0 0.0
        %3621 = vmatprep.subr.mxu0 0.0
        %3622 = vmatpush1.msra.mxu0 0.0
        %3623 = vmatprep.subr.mxu0 0.0
        %3624 = vmatpush1.msra.mxu0 0.0
        %3625 = vmatprep.subr.mxu0 0.0
        %3626 = vmatpush1.msra.mxu0 0.0
        %3627 = vmatprep.subr.mxu0 0.0
        %3628 = vmatpush1.msra.mxu0 0.0
        %3629 = vmatprep.mubr.f32.mxu0 0.0
        %3630 = vmatmul.mubr.f32.gmra.mrb[0].mxu0 %v3563
        %v3631 = vpop.f32.mrb[0].mxu0
        %v3632 = vadd.f32 0.0, %v3631
        %v3633 = vpop.f32.mrb[0].mxu0
        %3634 = vdwg.mxu0
        %v3635 = vsel %vm1649, %v3411, 0.0
        %3636 = vadd.xlane.f32.xlu0 %v3635
        %v3637 = vpop.xlane.xlu0 %3636
        %v3638 = vsel %vm1649, %v3413, 0.0
        %3639 = vadd.xlane.f32.xlu0 %v3638
        %v3640 = vpop.xlane.xlu0 %3639
        %v3641 = vsel %vm1649, %v3415, 0.0
        %3642 = vadd.xlane.f32.xlu0 %v3641
        %v3643 = vpop.xlane.xlu0 %3642
        %v3644 = vrcp.pop %v3637
        %v3645 = vrcp.pop %v3640
        %v3646 = vrcp.pop %v3643
        %v3647 = vmul.f32 %v3486, %v3644
        %v3648 = vmul.f32 %v3559, %v3645
        %v3649 = vmul.f32 %v3632, %v3646
        %s3650 = scalar_lea.vmem %s9, 48
        %v3651 = vld [vmem:[%s3650] sm:$0xff]
        %v3652 = vld [vmem:[%s3650 + $0x8] sm:$0xff]
        %v3653 = vld [vmem:[%s3650 + $0x10] sm:$0xff]
        %v3654 = vld [vmem:[%s3650 + $0x18] sm:$0xff]
        %v3655 = vld [vmem:[%s3650 + $0x20] sm:$0xff]
        %v3656 = vld [vmem:[%s3650 + $0x28] sm:$0xff]
        %v3658 = vsel %vm1415, %v3647, 0
        %3660 = vmatprep.subr.mxu0 0.0
        %3661 = vmatpush1.msra.mxu0 %v3651
        %3662 = vmatprep.subr.mxu0 0.0
        %3663 = vmatpush1.msra.mxu0 %v3652
        %3664 = vmatprep.subr.mxu0 0.0
        %3665 = vmatpush1.msra.mxu0 0.0
        %3666 = vmatprep.subr.mxu0 0.0
        %3667 = vmatpush1.msra.mxu0 0.0
        %3668 = vmatprep.subr.mxu0 0.0
        %3669 = vmatpush1.msra.mxu0 0.0
        %3670 = vmatprep.subr.mxu0 0.0
        %3671 = vmatpush1.msra.mxu0 0.0
        %3672 = vmatprep.subr.mxu0 0.0
        %3673 = vmatpush1.msra.mxu0 0.0
        %3674 = vmatprep.subr.mxu0 0.0
        %3675 = vmatpush1.msra.mxu0 0.0
        %3676 = vmatprep.subr.mxu0 0.0
        %3677 = vmatpush1.msra.mxu0 0.0
        %3678 = vmatprep.subr.mxu0 0.0
        %3679 = vmatpush1.msra.mxu0 0.0
        %3680 = vmatprep.subr.mxu0 0.0
        %3681 = vmatpush1.msra.mxu0 0.0
        %3682 = vmatprep.subr.mxu0 0.0
        %3683 = vmatpush1.msra.mxu0 0.0
        %3684 = vmatprep.subr.mxu0 0.0
        %3685 = vmatpush1.msra.mxu0 0.0
        %3686 = vmatprep.subr.mxu0 0.0
        %3687 = vmatpush1.msra.mxu0 0.0
        %3688 = vmatprep.subr.mxu0 0.0
        %3689 = vmatpush1.msra.mxu0 0.0
        %3690 = vmatprep.subr.mxu0 0.0
        %3691 = vmatpush1.msra.mxu0 0.0
        %3692 = vmatprep.subr.mxu0 0.0
        %3693 = vmatpush1.msra.mxu0 0.0
        %3694 = vmatprep.subr.mxu0 0.0
        %3695 = vmatpush1.msra.mxu0 0.0
        %3696 = vmatprep.subr.mxu0 0.0
        %3697 = vmatpush1.msra.mxu0 0.0
        %3698 = vmatprep.subr.mxu0 0.0
        %3699 = vmatpush1.msra.mxu0 0.0
        %3700 = vmatprep.subr.mxu0 0.0
        %3701 = vmatpush1.msra.mxu0 0.0
        %3702 = vmatprep.subr.mxu0 0.0
        %3703 = vmatpush1.msra.mxu0 0.0
        %3704 = vmatprep.subr.mxu0 0.0
        %3705 = vmatpush1.msra.mxu0 0.0
        %3706 = vmatprep.subr.mxu0 0.0
        %3707 = vmatpush1.msra.mxu0 0.0
        %3708 = vmatprep.subr.mxu0 0.0
        %3709 = vmatpush1.msra.mxu0 0.0
        %3710 = vmatprep.subr.mxu0 0.0
        %3711 = vmatpush1.msra.mxu0 0.0
        %3712 = vmatprep.subr.mxu0 0.0
        %3713 = vmatpush1.msra.mxu0 0.0
        %3714 = vmatprep.subr.mxu0 0.0
        %3715 = vmatpush1.msra.mxu0 0.0
        %3716 = vmatprep.subr.mxu0 0.0
        %3717 = vmatpush1.msra.mxu0 0.0
        %3718 = vmatprep.subr.mxu0 0.0
        %3719 = vmatpush1.msra.mxu0 0.0
        %3720 = vmatprep.subr.mxu0 0.0
        %3721 = vmatpush1.msra.mxu0 0.0
        %3722 = vmatprep.subr.mxu0 0.0
        %3723 = vmatpush1.msra.mxu0 0.0
        %3724 = vmatprep.mubr.f32.mxu0 0.0
        %3725 = vmatmul.mubr.f32.gmra.mrb[0].mxu0 %v3658
        %v3726 = vpop.f32.mrb[0].mxu0
        %v3727 = vadd.f32 0.0, %v3726
        %v3728 = vpop.f32.mrb[0].mxu0
        %3729 = vdwg.mxu0
        %v3731 = vsel %vm1415, %v3648, 0
        %3733 = vmatprep.subr.mxu0 0.0
        %3734 = vmatpush1.msra.mxu0 %v3653
        %3735 = vmatprep.subr.mxu0 0.0
        %3736 = vmatpush1.msra.mxu0 %v3654
        %3737 = vmatprep.subr.mxu0 0.0
        %3738 = vmatpush1.msra.mxu0 0.0
        %3739 = vmatprep.subr.mxu0 0.0
        %3740 = vmatpush1.msra.mxu0 0.0
        %3741 = vmatprep.subr.mxu0 0.0
        %3742 = vmatpush1.msra.mxu0 0.0
        %3743 = vmatprep.subr.mxu0 0.0
        %3744 = vmatpush1.msra.mxu0 0.0
        %3745 = vmatprep.subr.mxu0 0.0
        %3746 = vmatpush1.msra.mxu0 0.0
        %3747 = vmatprep.subr.mxu0 0.0
        %3748 = vmatpush1.msra.mxu0 0.0
        %3749 = vmatprep.subr.mxu0 0.0
        %3750 = vmatpush1.msra.mxu0 0.0
        %3751 = vmatprep.subr.mxu0 0.0
        %3752 = vmatpush1.msra.mxu0 0.0
        %3753 = vmatprep.subr.mxu0 0.0
        %3754 = vmatpush1.msra.mxu0 0.0
        %3755 = vmatprep.subr.mxu0 0.0
        %3756 = vmatpush1.msra.mxu0 0.0
        %3757 = vmatprep.subr.mxu0 0.0
        %3758 = vmatpush1.msra.mxu0 0.0
        %3759 = vmatprep.subr.mxu0 0.0
        %3760 = vmatpush1.msra.mxu0 0.0
        %3761 = vmatprep.subr.mxu0 0.0
        %3762 = vmatpush1.msra.mxu0 0.0
        %3763 = vmatprep.subr.mxu0 0.0
        %3764 = vmatpush1.msra.mxu0 0.0
        %3765 = vmatprep.subr.mxu0 0.0
        %3766 = vmatpush1.msra.mxu0 0.0
        %3767 = vmatprep.subr.mxu0 0.0
        %3768 = vmatpush1.msra.mxu0 0.0
        %3769 = vmatprep.subr.mxu0 0.0
        %3770 = vmatpush1.msra.mxu0 0.0
        %3771 = vmatprep.subr.mxu0 0.0
        %3772 = vmatpush1.msra.mxu0 0.0
        %3773 = vmatprep.subr.mxu0 0.0
        %3774 = vmatpush1.msra.mxu0 0.0
        %3775 = vmatprep.subr.mxu0 0.0
        %3776 = vmatpush1.msra.mxu0 0.0
        %3777 = vmatprep.subr.mxu0 0.0
        %3778 = vmatpush1.msra.mxu0 0.0
        %3779 = vmatprep.subr.mxu0 0.0
        %3780 = vmatpush1.msra.mxu0 0.0
        %3781 = vmatprep.subr.mxu0 0.0
        %3782 = vmatpush1.msra.mxu0 0.0
        %3783 = vmatprep.subr.mxu0 0.0
        %3784 = vmatpush1.msra.mxu0 0.0
        %3785 = vmatprep.subr.mxu0 0.0
        %3786 = vmatpush1.msra.mxu0 0.0
        %3787 = vmatprep.subr.mxu0 0.0
        %3788 = vmatpush1.msra.mxu0 0.0
        %3789 = vmatprep.subr.mxu0 0.0
        %3790 = vmatpush1.msra.mxu0 0.0
        %3791 = vmatprep.subr.mxu0 0.0
        %3792 = vmatpush1.msra.mxu0 0.0
        %3793 = vmatprep.subr.mxu0 0.0
        %3794 = vmatpush1.msra.mxu0 0.0
        %3795 = vmatprep.subr.mxu0 0.0
        %3796 = vmatpush1.msra.mxu0 0.0
        %3797 = vmatprep.mubr.f32.mxu0 0.0
        %3798 = vmatmul.mubr.f32.gmra.mrb[0].mxu0 %v3731
        %v3799 = vpop.f32.mrb[0].mxu0
        %v3800 = vadd.f32 0.0, %v3799
        %v3801 = vpop.f32.mrb[0].mxu0
        %3802 = vdwg.mxu0
        %v3804 = vsel %vm1415, %v3649, 0
        %3806 = vmatprep.subr.mxu0 0.0
        %3807 = vmatpush1.msra.mxu0 %v3655
        %3808 = vmatprep.subr.mxu0 0.0
        %3809 = vmatpush1.msra.mxu0 %v3656
        %3810 = vmatprep.subr.mxu0 0.0
        %3811 = vmatpush1.msra.mxu0 0.0
        %3812 = vmatprep.subr.mxu0 0.0
        %3813 = vmatpush1.msra.mxu0 0.0
        %3814 = vmatprep.subr.mxu0 0.0
        %3815 = vmatpush1.msra.mxu0 0.0
        %3816 = vmatprep.subr.mxu0 0.0
        %3817 = vmatpush1.msra.mxu0 0.0
        %3818 = vmatprep.subr.mxu0 0.0
        %3819 = vmatpush1.msra.mxu0 0.0
        %3820 = vmatprep.subr.mxu0 0.0
        %3821 = vmatpush1.msra.mxu0 0.0
        %3822 = vmatprep.subr.mxu0 0.0
        %3823 = vmatpush1.msra.mxu0 0.0
        %3824 = vmatprep.subr.mxu0 0.0
        %3825 = vmatpush1.msra.mxu0 0.0
        %3826 = vmatprep.subr.mxu0 0.0
        %3827 = vmatpush1.msra.mxu0 0.0
        %3828 = vmatprep.subr.mxu0 0.0
        %3829 = vmatpush1.msra.mxu0 0.0
        %3830 = vmatprep.subr.mxu0 0.0
        %3831 = vmatpush1.msra.mxu0 0.0
        %3832 = vmatprep.subr.mxu0 0.0
        %3833 = vmatpush1.msra.mxu0 0.0
        %3834 = vmatprep.subr.mxu0 0.0
        %3835 = vmatpush1.msra.mxu0 0.0
        %3836 = vmatprep.subr.mxu0 0.0
        %3837 = vmatpush1.msra.mxu0 0.0
        %3838 = vmatprep.subr.mxu0 0.0
        %3839 = vmatpush1.msra.mxu0 0.0
        %3840 = vmatprep.subr.mxu0 0.0
        %3841 = vmatpush1.msra.mxu0 0.0
        %3842 = vmatprep.subr.mxu0 0.0
        %3843 = vmatpush1.msra.mxu0 0.0
        %3844 = vmatprep.subr.mxu0 0.0
        %3845 = vmatpush1.msra.mxu0 0.0
        %3846 = vmatprep.subr.mxu0 0.0
        %3847 = vmatpush1.msra.mxu0 0.0
        %3848 = vmatprep.subr.mxu0 0.0
        %3849 = vmatpush1.msra.mxu0 0.0
        %3850 = vmatprep.subr.mxu0 0.0
        %3851 = vmatpush1.msra.mxu0 0.0
        %3852 = vmatprep.subr.mxu0 0.0
        %3853 = vmatpush1.msra.mxu0 0.0
        %3854 = vmatprep.subr.mxu0 0.0
        %3855 = vmatpush1.msra.mxu0 0.0
        %3856 = vmatprep.subr.mxu0 0.0
        %3857 = vmatpush1.msra.mxu0 0.0
        %3858 = vmatprep.subr.mxu0 0.0
        %3859 = vmatpush1.msra.mxu0 0.0
        %3860 = vmatprep.subr.mxu0 0.0
        %3861 = vmatpush1.msra.mxu0 0.0
        %3862 = vmatprep.subr.mxu0 0.0
        %3863 = vmatpush1.msra.mxu0 0.0
        %3864 = vmatprep.subr.mxu0 0.0
        %3865 = vmatpush1.msra.mxu0 0.0
        %3866 = vmatprep.subr.mxu0 0.0
        %3867 = vmatpush1.msra.mxu0 0.0
        %3868 = vmatprep.subr.mxu0 0.0
        %3869 = vmatpush1.msra.mxu0 0.0
        %3870 = vmatprep.mubr.f32.mxu0 0.0
        %3871 = vmatmul.mubr.f32.gmra.mrb[0].mxu0 %v3804
        %v3872 = vpop.f32.mrb[0].mxu0
        %v3873 = vadd.f32 0.0, %v3872
        %v3874 = vpop.f32.mrb[0].mxu0
        %3875 = vdwg.mxu0
        %v3876 = vsel %vm633, %v3727, 0.0
        %v3877 = vsel %vm633, %v3800, 0.0
        %v3878 = vadd.f32 %v3876, %v3877
        %v3879 = vsel %vm633, %v3873, 0.0
        %v3880 = vadd.f32 %v3878, %v3879
        %s3881 = scalar_lea.vmem %s10, 1
        %v3882 = vld [vmem:[%s3881] sm:$0x1]
        %v3884 = vlaneseq
        %v3885 = vshrl.u32 %v3884, 7
        %v3886 = vsub.s32 0, %v3885
        %v3887 = vrot.slane %v3882, %v3886
        %v3889 = vadd.f32 %v3880, %v3887
        %v3890 = vadd.f32 %v2376, %v3889
        %s3891 = scalar_lea.vmem %s11, 1
        %v3892 = vld [vmem:[%s3891] sm:$0x1]
        %s3893 = scalar_lea.vmem %s12, 1
        %v3894 = vld [vmem:[%s3893] sm:$0x1]
        %v3895 = vsel %vm633, %v3890, 0.0
        %3896 = vadd.xlane.f32.xlu0 %v3895
        %v3897 = vpop.xlane.xlu0 %3896
        %v3898 = vmul.f32 %v3897, %v637
        %v3899 = vsub.f32 %v3890, %v3898
        %v3900 = vmul.f32 %v3899, %v3899
        %v3901 = vsel %vm633, %v3900, 0.0
        %3902 = vadd.xlane.f32.xlu0 %v3901
        %v3903 = vpop.xlane.xlu0 %3902
        %v3904 = vmul.f32 %v3903, %v637
        %v3905 = vadd.f32 %v3904, 1e-05
        %v3906 = vrsqrt.pop %v3905
        %v3907 = vmul.f32 %v3899, %v3906
        %v3909 = vlaneseq
        %v3910 = vshrl.u32 %v3909, 7
        %v3911 = vsub.s32 0, %v3910
        %v3912 = vrot.slane %v3892, %v3911
        %v3914 = vmul.f32 %v3907, %v3912
        %v3916 = vlaneseq
        %v3917 = vshrl.u32 %v3916, 7
        %v3918 = vsub.s32 0, %v3917
        %v3919 = vrot.slane %v3894, %v3918
        %v3921 = vadd.f32 %v3914, %v3919
        %s3922 = scalar_lea.vmem %s13, 96
        %v3923 = vld [vmem:[%s3922] sm:$0xff]
        %v3924 = vld [vmem:[%s3922 + $0x8] sm:$0xff]
        %v3925 = vld [vmem:[%s3922 + $0x10] sm:$0xff]
        %v3926 = vld [vmem:[%s3922 + $0x18] sm:$0xff]
        %v3927 = vld [vmem:[%s3922 + $0x20] sm:$0xff]
        %v3928 = vld [vmem:[%s3922 + $0x28] sm:$0xff]
        %v3929 = vld [vmem:[%s3922 + $0x30] sm:$0xff]
        %v3930 = vld [vmem:[%s3922 + $0x38] sm:$0xff]
        %v3931 = vld [vmem:[%s3922 + $0x40] sm:$0xff]
        %v3932 = vld [vmem:[%s3922 + $0x48] sm:$0xff]
        %v3933 = vld [vmem:[%s3922 + $0x50] sm:$0xff]
        %v3934 = vld [vmem:[%s3922 + $0x58] sm:$0xff]
        %s3935 = scalar_lea.vmem %s14, 2
        %v3936 = vld [vmem:[%s3935] sm:$0x3]
        %v3938 = vlaneseq
        %v3939 = vshrl.u32 %v3938, 7
        %v3940 = vsub.s32 0, %v3939
        %v3941 = vrot.slane %v3936, %v3940
        %v3942 = vlaneseq
        %v3943 = vshrl.u32 %v3942, 7
        %v3944 = vsub.s32 1, %v3943
        %v3945 = vrot.slane %v3936, %v3944
        %v3949 = vsel %vm633, %v3921, 0
        %3951 = vmatprep.subr.mxu0 %v3924
        %3952 = vmatpush1.msra.mxu0 %v3923
        %3953 = vmatprep.subr.mxu0 %v3926
        %3954 = vmatpush1.msra.mxu0 %v3925
        %3955 = vmatprep.subr.mxu0 %v3928
        %3956 = vmatpush1.msra.mxu0 %v3927
        %3957 = vmatprep.subr.mxu0 %v3930
        %3958 = vmatpush1.msra.mxu0 %v3929
        %3959 = vmatprep.subr.mxu0 %v3932
        %3960 = vmatpush1.msra.mxu0 %v3931
        %3961 = vmatprep.subr.mxu0 %v3934
        %3962 = vmatpush1.msra.mxu0 %v3933
        %3963 = vmatprep.subr.mxu0 0.0
        %3964 = vmatpush1.msra.mxu0 0.0
        %3965 = vmatprep.subr.mxu0 0.0
        %3966 = vmatpush1.msra.mxu0 0.0
        %3967 = vmatprep.subr.mxu0 0.0
        %3968 = vmatpush1.msra.mxu0 0.0
        %3969 = vmatprep.subr.mxu0 0.0
        %3970 = vmatpush1.msra.mxu0 0.0
        %3971 = vmatprep.subr.mxu0 0.0
        %3972 = vmatpush1.msra.mxu0 0.0
        %3973 = vmatprep.subr.mxu0 0.0
        %3974 = vmatpush1.msra.mxu0 0.0
        %3975 = vmatprep.subr.mxu0 0.0
        %3976 = vmatpush1.msra.mxu0 0.0
        %3977 = vmatprep.subr.mxu0 0.0
        %3978 = vmatpush1.msra.mxu0 0.0
        %3979 = vmatprep.subr.mxu0 0.0
        %3980 = vmatpush1.msra.mxu0 0.0
        %3981 = vmatprep.subr.mxu0 0.0
        %3982 = vmatpush1.msra.mxu0 0.0
        %3983 = vmatprep.subr.mxu0 0.0
        %3984 = vmatpush1.msra.mxu0 0.0
        %3985 = vmatprep.subr.mxu0 0.0
        %3986 = vmatpush1.msra.mxu0 0.0
        %3987 = vmatprep.subr.mxu0 0.0
        %3988 = vmatpush1.msra.mxu0 0.0
        %3989 = vmatprep.subr.mxu0 0.0
        %3990 = vmatpush1.msra.mxu0 0.0
        %3991 = vmatprep.subr.mxu0 0.0
        %3992 = vmatpush1.msra.mxu0 0.0
        %3993 = vmatprep.subr.mxu0 0.0
        %3994 = vmatpush1.msra.mxu0 0.0
        %3995 = vmatprep.subr.mxu0 0.0
        %3996 = vmatpush1.msra.mxu0 0.0
        %3997 = vmatprep.subr.mxu0 0.0
        %3998 = vmatpush1.msra.mxu0 0.0
        %3999 = vmatprep.subr.mxu0 0.0
        %4000 = vmatpush1.msra.mxu0 0.0
        %4001 = vmatprep.subr.mxu0 0.0
        %4002 = vmatpush1.msra.mxu0 0.0
        %4003 = vmatprep.subr.mxu0 0.0
        %4004 = vmatpush1.msra.mxu0 0.0
        %4005 = vmatprep.subr.mxu0 0.0
        %4006 = vmatpush1.msra.mxu0 0.0
        %4007 = vmatprep.subr.mxu0 0.0
        %4008 = vmatpush1.msra.mxu0 0.0
        %4009 = vmatprep.subr.mxu0 0.0
        %4010 = vmatpush1.msra.mxu0 0.0
        %4011 = vmatprep.subr.mxu0 0.0
        %4012 = vmatpush1.msra.mxu0 0.0
        %4013 = vmatprep.subr.mxu0 0.0
        %4014 = vmatpush1.msra.mxu0 0.0
        %4015 = vmatprep.mubr.f32.mxu0 0.0
        %4016 = vmatmul.mubr.f32.gmra.mrb[0].mxu0 %v3949
        %v4017 = vpop.f32.mrb[0].mxu0
        %v4018 = vadd.f32 %v3941, %v4017
        %v4019 = vpop.f32.mrb[0].mxu0
        %v4020 = vadd.f32 %v3945, %v4019
        %4021 = vdwg.mxu0
        %v4022 = vtanh.pop %v4018
        %v4023 = vtanh.pop %v4020
        %s4024 = scalar_lea.vmem %s15, 192
        %v4025 = vld [vmem:[%s4024] sm:$0xff]
        %v4026 = vld [vmem:[%s4024 + $0x8] sm:$0xff]
        %v4027 = vld [vmem:[%s4024 + $0x10] sm:$0xff]
        %v4028 = vld [vmem:[%s4024 + $0x18] sm:$0xff]
        %v4029 = vld [vmem:[%s4024 + $0x20] sm:$0xff]
        %v4030 = vld [vmem:[%s4024 + $0x28] sm:$0xff]
        %v4031 = vld [vmem:[%s4024 + $0x30] sm:$0xff]
        %v4032 = vld [vmem:[%s4024 + $0x38] sm:$0xff]
        %v4033 = vld [vmem:[%s4024 + $0x40] sm:$0xff]
        %v4034 = vld [vmem:[%s4024 + $0x48] sm:$0xff]
        %v4035 = vld [vmem:[%s4024 + $0x50] sm:$0xff]
        %v4036 = vld [vmem:[%s4024 + $0x58] sm:$0xff]
        %v4037 = vld [vmem:[%s4024 + $0x60] sm:$0xff]
        %v4038 = vld [vmem:[%s4024 + $0x68] sm:$0xff]
        %v4039 = vld [vmem:[%s4024 + $0x70] sm:$0xff]
        %v4040 = vld [vmem:[%s4024 + $0x78] sm:$0xff]
        %v4041 = vld [vmem:[%s4024 + $0x80] sm:$0xff]
        %v4042 = vld [vmem:[%s4024 + $0x88] sm:$0xff]
        %v4043 = vld [vmem:[%s4024 + $0x90] sm:$0xff]
        %v4044 = vld [vmem:[%s4024 + $0x98] sm:$0xff]
        %v4045 = vld [vmem:[%s4024 + $0xa0] sm:$0xff]
        %v4046 = vld [vmem:[%s4024 + $0xa8] sm:$0xff]
        %v4047 = vld [vmem:[%s4024 + $0xb0] sm:$0xff]
        %v4048 = vld [vmem:[%s4024 + $0xb8] sm:$0xff]
        %v4050 = vsel %vm2294, %v4023, 0
        %4052 = vmatprep.subr.mxu0 0.0
        %4053 = vmatpush1.msra.mxu0 %v4025
        %4054 = vmatprep.subr.mxu0 0.0
        %4055 = vmatpush1.msra.mxu0 %v4026
        %4056 = vmatprep.subr.mxu0 0.0
        %4057 = vmatpush1.msra.mxu0 %v4027
        %4058 = vmatprep.subr.mxu0 0.0
        %4059 = vmatpush1.msra.mxu0 %v4028
        %4060 = vmatprep.subr.mxu0 0.0
        %4061 = vmatpush1.msra.mxu0 %v4029
        %4062 = vmatprep.subr.mxu0 0.0
        %4063 = vmatpush1.msra.mxu0 %v4030
        %4064 = vmatprep.subr.mxu0 0.0
        %4065 = vmatpush1.msra.mxu0 %v4031
        %4066 = vmatprep.subr.mxu0 0.0
        %4067 = vmatpush1.msra.mxu0 %v4032
        %4068 = vmatprep.subr.mxu0 0.0
        %4069 = vmatpush1.msra.mxu0 %v4033
        %4070 = vmatprep.subr.mxu0 0.0
        %4071 = vmatpush1.msra.mxu0 %v4034
        %4072 = vmatprep.subr.mxu0 0.0
        %4073 = vmatpush1.msra.mxu0 %v4035
        %4074 = vmatprep.subr.mxu0 0.0
        %4075 = vmatpush1.msra.mxu0 %v4036
        %4076 = vmatprep.subr.mxu0 0.0
        %4077 = vmatpush1.msra.mxu0 %v4037
        %4078 = vmatprep.subr.mxu0 0.0
        %4079 = vmatpush1.msra.mxu0 %v4038
        %4080 = vmatprep.subr.mxu0 0.0
        %4081 = vmatpush1.msra.mxu0 %v4039
        %4082 = vmatprep.subr.mxu0 0.0
        %4083 = vmatpush1.msra.mxu0 %v4040
        %4084 = vmatprep.subr.mxu0 0.0
        %4085 = vmatpush1.msra.mxu0 %v4041
        %4086 = vmatprep.subr.mxu0 0.0
        %4087 = vmatpush1.msra.mxu0 %v4042
        %4088 = vmatprep.subr.mxu0 0.0
        %4089 = vmatpush1.msra.mxu0 %v4043
        %4090 = vmatprep.subr.mxu0 0.0
        %4091 = vmatpush1.msra.mxu0 %v4044
        %4092 = vmatprep.subr.mxu0 0.0
        %4093 = vmatpush1.msra.mxu0 %v4045
        %4094 = vmatprep.subr.mxu0 0.0
        %4095 = vmatpush1.msra.mxu0 %v4046
        %4096 = vmatprep.subr.mxu0 0.0
        %4097 = vmatpush1.msra.mxu0 %v4047
        %4098 = vmatprep.subr.mxu0 0.0
        %4099 = vmatpush1.msra.mxu0 %v4048
        %4100 = vmatprep.subr.mxu0 0.0
        %4101 = vmatpush1.msra.mxu0 0.0
        %4102 = vmatprep.subr.mxu0 0.0
        %4103 = vmatpush1.msra.mxu0 0.0
        %4104 = vmatprep.subr.mxu0 0.0
        %4105 = vmatpush1.msra.mxu0 0.0
        %4106 = vmatprep.subr.mxu0 0.0
        %4107 = vmatpush1.msra.mxu0 0.0
        %4108 = vmatprep.subr.mxu0 0.0
        %4109 = vmatpush1.msra.mxu0 0.0
        %4110 = vmatprep.subr.mxu0 0.0
        %4111 = vmatpush1.msra.mxu0 0.0
        %4112 = vmatprep.subr.mxu0 0.0
        %4113 = vmatpush1.msra.mxu0 0.0
        %4114 = vmatprep.subr.mxu0 0.0
        %4115 = vmatpush1.msra.mxu0 0.0
        %4116 = vmatprep.mubr.f32.mxu0 %v4050
        %4117 = vmatmul.mubr.f32.gmra.mrb[0].mxu0 %v4022
        %v4118 = vpop.f32.mrb[0].mxu0
        %v4119 = vadd.f32 0.0, %v4118
        %v4120 = vpop.f32.mrb[0].mxu0
        %4121 = vdwg.mxu0
        %v4122 = vadd.f32 %v3890, %v4119
        %s4123 = scalar_lea.vmem %s16, 1
        %v4124 = vld [vmem:[%s4123] sm:$0x1]
        %v4126 = vlaneseq
        %v4127 = vshrl.u32 %v4126, 7
        %v4128 = vsub.s32 0, %v4127
        %v4129 = vrot.slane %v4124, %v4128
        %v4131 = vadd.f32 %v4122, %v4129
        %s4132 = scalar_lea.vmem %s1, 2
        %v4133 = vld [vmem:[%s4132] sm:$0x1]
        %s4134 = scalar_lea.vmem %s2, 2
        %v4135 = vld [vmem:[%s4134] sm:$0x1]
        %v4136 = vsel %vm633, %v4131, 0.0
        %4137 = vadd.xlane.f32.xlu0 %v4136
        %v4138 = vpop.xlane.xlu0 %4137
        %v4139 = vmul.f32 %v4138, %v637
        %v4140 = vsub.f32 %v4131, %v4139
        %v4141 = vmul.f32 %v4140, %v4140
        %v4142 = vsel %vm633, %v4141, 0.0
        %4143 = vadd.xlane.f32.xlu0 %v4142
        %v4144 = vpop.xlane.xlu0 %4143
        %v4145 = vmul.f32 %v4144, %v637
        %v4146 = vadd.f32 %v4145, 1e-05
        %v4147 = vrsqrt.pop %v4146
        %v4148 = vmul.f32 %v4140, %v4147
        %v4150 = vlaneseq
        %v4151 = vshrl.u32 %v4150, 7
        %v4152 = vsub.s32 0, %v4151
        %v4153 = vrot.slane %v4133, %v4152
        %v4155 = vmul.f32 %v4148, %v4153
        %v4157 = vlaneseq
        %v4158 = vshrl.u32 %v4157, 7
        %v4159 = vsub.s32 0, %v4158
        %v4160 = vrot.slane %v4135, %v4159
        %v4162 = vadd.f32 %v4155, %v4160
        %s4163 = scalar_lea.vmem %s4, 288
        %v4164 = vld [vmem:[%s4163] sm:$0xff]
        %v4165 = vld [vmem:[%s4163 + $0x8] sm:$0xff]
        %v4166 = vld [vmem:[%s4163 + $0x10] sm:$0xff]
        %v4167 = vld [vmem:[%s4163 + $0x18] sm:$0xff]
        %v4168 = vld [vmem:[%s4163 + $0x20] sm:$0xff]
        %v4169 = vld [vmem:[%s4163 + $0x28] sm:$0xff]
        %v4170 = vld [vmem:[%s4163 + $0x30] sm:$0xff]
        %v4171 = vld [vmem:[%s4163 + $0x38] sm:$0xff]
        %v4172 = vld [vmem:[%s4163 + $0x40] sm:$0xff]
        %v4173 = vld [vmem:[%s4163 + $0x48] sm:$0xff]
        %v4174 = vld [vmem:[%s4163 + $0x50] sm:$0xff]
        %v4175 = vld [vmem:[%s4163 + $0x58] sm:$0xff]
        %v4176 = vld [vmem:[%s4163 + $0x60] sm:$0xff]
        %v4177 = vld [vmem:[%s4163 + $0x68] sm:$0xff]
        %v4178 = vld [vmem:[%s4163 + $0x70] sm:$0xff]
        %v4179 = vld [vmem:[%s4163 + $0x78] sm:$0xff]
        %v4180 = vld [vmem:[%s4163 + $0x80] sm:$0xff]
        %v4181 = vld [vmem:[%s4163 + $0x88] sm:$0xff]
        %s4182 = scalar_lea.vmem %s7, 6
        %v4183 = vld [vmem:[%s4182] sm:$0x1]
        %v4184 = vld [vmem:[%s4182 + $0x1] sm:$0x1]
        %v4185 = vld [vmem:[%s4182 + $0x2] sm:$0x1]
        %v4189 = vlaneseq
        %v4190 = vshrl.u32 %v4189, 7
        %v4191 = vsub.s32 0, %v4190
        %v4192 = vrot.slane %v4183, %v4191
        %v4193 = vlaneseq
        %v4194 = vshrl.u32 %v4193, 7
        %v4195 = vsub.s32 0, %v4194
        %v4196 = vrot.slane %v4184, %v4195
        %v4197 = vlaneseq
        %v4198 = vshrl.u32 %v4197, 7
        %v4199 = vsub.s32 0, %v4198
        %v4200 = vrot.slane %v4185, %v4199
        %v4205 = vsel %vm633, %v4162, 0
        %4207 = vmatprep.subr.mxu0 0.0
        %4208 = vmatpush1.msra.mxu0 %v4164
        %4209 = vmatprep.subr.mxu0 0.0
        %4210 = vmatpush1.msra.mxu0 %v4165
        %4211 = vmatprep.subr.mxu0 0.0
        %4212 = vmatpush1.msra.mxu0 %v4166
        %4213 = vmatprep.subr.mxu0 0.0
        %4214 = vmatpush1.msra.mxu0 %v4167
        %4215 = vmatprep.subr.mxu0 0.0
        %4216 = vmatpush1.msra.mxu0 %v4168
        %4217 = vmatprep.subr.mxu0 0.0
        %4218 = vmatpush1.msra.mxu0 %v4169
        %4219 = vmatprep.subr.mxu0 0.0
        %4220 = vmatpush1.msra.mxu0 0.0
        %4221 = vmatprep.subr.mxu0 0.0
        %4222 = vmatpush1.msra.mxu0 0.0
        %4223 = vmatprep.subr.mxu0 0.0
        %4224 = vmatpush1.msra.mxu0 0.0
        %4225 = vmatprep.subr.mxu0 0.0
        %4226 = vmatpush1.msra.mxu0 0.0
        %4227 = vmatprep.subr.mxu0 0.0
        %4228 = vmatpush1.msra.mxu0 0.0
        %4229 = vmatprep.subr.mxu0 0.0
        %4230 = vmatpush1.msra.mxu0 0.0
        %4231 = vmatprep.subr.mxu0 0.0
        %4232 = vmatpush1.msra.mxu0 0.0
        %4233 = vmatprep.subr.mxu0 0.0
        %4234 = vmatpush1.msra.mxu0 0.0
        %4235 = vmatprep.subr.mxu0 0.0
        %4236 = vmatpush1.msra.mxu0 0.0
        %4237 = vmatprep.subr.mxu0 0.0
        %4238 = vmatpush1.msra.mxu0 0.0
        %4239 = vmatprep.subr.mxu0 0.0
        %4240 = vmatpush1.msra.mxu0 0.0
        %4241 = vmatprep.subr.mxu0 0.0
        %4242 = vmatpush1.msra.mxu0 0.0
        %4243 = vmatprep.subr.mxu0 0.0
        %4244 = vmatpush1.msra.mxu0 0.0
        %4245 = vmatprep.subr.mxu0 0.0
        %4246 = vmatpush1.msra.mxu0 0.0
        %4247 = vmatprep.subr.mxu0 0.0
        %4248 = vmatpush1.msra.mxu0 0.0
        %4249 = vmatprep.subr.mxu0 0.0
        %4250 = vmatpush1.msra.mxu0 0.0
        %4251 = vmatprep.subr.mxu0 0.0
        %4252 = vmatpush1.msra.mxu0 0.0
        %4253 = vmatprep.subr.mxu0 0.0
        %4254 = vmatpush1.msra.mxu0 0.0
        %4255 = vmatprep.subr.mxu0 0.0
        %4256 = vmatpush1.msra.mxu0 0.0
        %4257 = vmatprep.subr.mxu0 0.0
        %4258 = vmatpush1.msra.mxu0 0.0
        %4259 = vmatprep.subr.mxu0 0.0
        %4260 = vmatpush1.msra.mxu0 0.0
        %4261 = vmatprep.subr.mxu0 0.0
        %4262 = vmatpush1.msra.mxu0 0.0
        %4263 = vmatprep.subr.mxu0 0.0
        %4264 = vmatpush1.msra.mxu0 0.0
        %4265 = vmatprep.subr.mxu0 0.0
        %4266 = vmatpush1.msra.mxu0 0.0
        %4267 = vmatprep.subr.mxu0 0.0
        %4268 = vmatpush1.msra.mxu0 0.0
        %4269 = vmatprep.subr.mxu0 0.0
        %4270 = vmatpush1.msra.mxu0 0.0
        %4271 = vmatprep.mubr.f32.mxu0 0.0
        %4272 = vmatmul.mubr.f32.gmra.mrb[0].mxu0 %v4205
        %v4273 = vpop.f32.mrb[0].mxu0
        %v4274 = vadd.f32 %v4192, %v4273
        %v4275 = vpop.f32.mrb[0].mxu0
        %4276 = vdwg.mxu0
        %4277 = vmatprep.subr.mxu0 0.0
        %4278 = vmatpush1.msra.mxu0 %v4170
        %4279 = vmatprep.subr.mxu0 0.0
        %4280 = vmatpush1.msra.mxu0 %v4171
        %4281 = vmatprep.subr.mxu0 0.0
        %4282 = vmatpush1.msra.mxu0 %v4172
        %4283 = vmatprep.subr.mxu0 0.0
        %4284 = vmatpush1.msra.mxu0 %v4173
        %4285 = vmatprep.subr.mxu0 0.0
        %4286 = vmatpush1.msra.mxu0 %v4174
        %4287 = vmatprep.subr.mxu0 0.0
        %4288 = vmatpush1.msra.mxu0 %v4175
        %4289 = vmatprep.subr.mxu0 0.0
        %4290 = vmatpush1.msra.mxu0 0.0
        %4291 = vmatprep.subr.mxu0 0.0
        %4292 = vmatpush1.msra.mxu0 0.0
        %4293 = vmatprep.subr.mxu0 0.0
        %4294 = vmatpush1.msra.mxu0 0.0
        %4295 = vmatprep.subr.mxu0 0.0
        %4296 = vmatpush1.msra.mxu0 0.0
        %4297 = vmatprep.subr.mxu0 0.0
        %4298 = vmatpush1.msra.mxu0 0.0
        %4299 = vmatprep.subr.mxu0 0.0
        %4300 = vmatpush1.msra.mxu0 0.0
        %4301 = vmatprep.subr.mxu0 0.0
        %4302 = vmatpush1.msra.mxu0 0.0
        %4303 = vmatprep.subr.mxu0 0.0
        %4304 = vmatpush1.msra.mxu0 0.0
        %4305 = vmatprep.subr.mxu0 0.0
        %4306 = vmatpush1.msra.mxu0 0.0
        %4307 = vmatprep.subr.mxu0 0.0
        %4308 = vmatpush1.msra.mxu0 0.0
        %4309 = vmatprep.subr.mxu0 0.0
        %4310 = vmatpush1.msra.mxu0 0.0
        %4311 = vmatprep.subr.mxu0 0.0
        %4312 = vmatpush1.msra.mxu0 0.0
        %4313 = vmatprep.subr.mxu0 0.0
        %4314 = vmatpush1.msra.mxu0 0.0
        %4315 = vmatprep.subr.mxu0 0.0
        %4316 = vmatpush1.msra.mxu0 0.0
        %4317 = vmatprep.subr.mxu0 0.0
        %4318 = vmatpush1.msra.mxu0 0.0
        %4319 = vmatprep.subr.mxu0 0.0
        %4320 = vmatpush1.msra.mxu0 0.0
        %4321 = vmatprep.subr.mxu0 0.0
        %4322 = vmatpush1.msra.mxu0 0.0
        %4323 = vmatprep.subr.mxu0 0.0
        %4324 = vmatpush1.msra.mxu0 0.0
        %4325 = vmatprep.subr.mxu0 0.0
        %4326 = vmatpush1.msra.mxu0 0.0
        %4327 = vmatprep.subr.mxu0 0.0
        %4328 = vmatpush1.msra.mxu0 0.0
        %4329 = vmatprep.subr.mxu0 0.0
        %4330 = vmatpush1.msra.mxu0 0.0
        %4331 = vmatprep.subr.mxu0 0.0
        %4332 = vmatpush1.msra.mxu0 0.0
        %4333 = vmatprep.subr.mxu0 0.0
        %4334 = vmatpush1.msra.mxu0 0.0
        %4335 = vmatprep.subr.mxu0 0.0
        %4336 = vmatpush1.msra.mxu0 0.0
        %4337 = vmatprep.subr.mxu0 0.0
        %4338 = vmatpush1.msra.mxu0 0.0
        %4339 = vmatprep.subr.mxu0 0.0
        %4340 = vmatpush1.msra.mxu0 0.0
        %4341 = vmatprep.mubr.f32.mxu0 0.0
        %4342 = vmatmul.mubr.f32.gmra.mrb[0].mxu0 %v4205
        %v4343 = vpop.f32.mrb[0].mxu0
        %v4344 = vadd.f32 %v4196, %v4343
        %v4345 = vpop.f32.mrb[0].mxu0
        %4346 = vdwg.mxu0
        %4347 = vmatprep.subr.mxu0 0.0
        %4348 = vmatpush1.msra.mxu0 %v4176
        %4349 = vmatprep.subr.mxu0 0.0
        %4350 = vmatpush1.msra.mxu0 %v4177
        %4351 = vmatprep.subr.mxu0 0.0
        %4352 = vmatpush1.msra.mxu0 %v4178
        %4353 = vmatprep.subr.mxu0 0.0
        %4354 = vmatpush1.msra.mxu0 %v4179
        %4355 = vmatprep.subr.mxu0 0.0
        %4356 = vmatpush1.msra.mxu0 %v4180
        %4357 = vmatprep.subr.mxu0 0.0
        %4358 = vmatpush1.msra.mxu0 %v4181
        %4359 = vmatprep.subr.mxu0 0.0
        %4360 = vmatpush1.msra.mxu0 0.0
        %4361 = vmatprep.subr.mxu0 0.0
        %4362 = vmatpush1.msra.mxu0 0.0
        %4363 = vmatprep.subr.mxu0 0.0
        %4364 = vmatpush1.msra.mxu0 0.0
        %4365 = vmatprep.subr.mxu0 0.0
        %4366 = vmatpush1.msra.mxu0 0.0
        %4367 = vmatprep.subr.mxu0 0.0
        %4368 = vmatpush1.msra.mxu0 0.0
        %4369 = vmatprep.subr.mxu0 0.0
        %4370 = vmatpush1.msra.mxu0 0.0
        %4371 = vmatprep.subr.mxu0 0.0
        %4372 = vmatpush1.msra.mxu0 0.0
        %4373 = vmatprep.subr.mxu0 0.0
        %4374 = vmatpush1.msra.mxu0 0.0
        %4375 = vmatprep.subr.mxu0 0.0
        %4376 = vmatpush1.msra.mxu0 0.0
        %4377 = vmatprep.subr.mxu0 0.0
        %4378 = vmatpush1.msra.mxu0 0.0
        %4379 = vmatprep.subr.mxu0 0.0
        %4380 = vmatpush1.msra.mxu0 0.0
        %4381 = vmatprep.subr.mxu0 0.0
        %4382 = vmatpush1.msra.mxu0 0.0
        %4383 = vmatprep.subr.mxu0 0.0
        %4384 = vmatpush1.msra.mxu0 0.0
        %4385 = vmatprep.subr.mxu0 0.0
        %4386 = vmatpush1.msra.mxu0 0.0
        %4387 = vmatprep.subr.mxu0 0.0
        %4388 = vmatpush1.msra.mxu0 0.0
        %4389 = vmatprep.subr.mxu0 0.0
        %4390 = vmatpush1.msra.mxu0 0.0
        %4391 = vmatprep.subr.mxu0 0.0
        %4392 = vmatpush1.msra.mxu0 0.0
        %4393 = vmatprep.subr.mxu0 0.0
        %4394 = vmatpush1.msra.mxu0 0.0
        %4395 = vmatprep.subr.mxu0 0.0
        %4396 = vmatpush1.msra.mxu0 0.0
        %4397 = vmatprep.subr.mxu0 0.0
        %4398 = vmatpush1.msra.mxu0 0.0
        %4399 = vmatprep.subr.mxu0 0.0
        %4400 = vmatpush1.msra.mxu0 0.0
        %4401 = vmatprep.subr.mxu0 0.0
        %4402 = vmatpush1.msra.mxu0 0.0
        %4403 = vmatprep.subr.mxu0 0.0
        %4404 = vmatpush1.msra.mxu0 0.0
        %4405 = vmatprep.subr.mxu0 0.0
        %4406 = vmatpush1.msra.mxu0 0.0
        %4407 = vmatprep.subr.mxu0 0.0
        %4408 = vmatpush1.msra.mxu0 0.0
        %4409 = vmatprep.subr.mxu0 0.0
        %4410 = vmatpush1.msra.mxu0 0.0
        %4411 = vmatprep.mubr.f32.mxu0 0.0
        %4412 = vmatmul.mubr.f32.gmra.mrb[0].mxu0 %v4205
        %v4413 = vpop.f32.mrb[0].mxu0
        %v4414 = vadd.f32 %v4200, %v4413
        %v4415 = vpop.f32.mrb[0].mxu0
        %4416 = vdwg.mxu0
        %s4417 = scalar_lea.vmem %s5, 288
        %v4418 = vld [vmem:[%s4417] sm:$0xff]
        %v4419 = vld [vmem:[%s4417 + $0x8] sm:$0xff]
        %v4420 = vld [vmem:[%s4417 + $0x10] sm:$0xff]
        %v4421 = vld [vmem:[%s4417 + $0x18] sm:$0xff]
        %v4422 = vld [vmem:[%s4417 + $0x20] sm:$0xff]
        %v4423 = vld [vmem:[%s4417 + $0x28] sm:$0xff]
        %v4424 = vld [vmem:[%s4417 + $0x30] sm:$0xff]
        %v4425 = vld [vmem:[%s4417 + $0x38] sm:$0xff]
        %v4426 = vld [vmem:[%s4417 + $0x40] sm:$0xff]
        %v4427 = vld [vmem:[%s4417 + $0x48] sm:$0xff]
        %v4428 = vld [vmem:[%s4417 + $0x50] sm:$0xff]
        %v4429 = vld [vmem:[%s4417 + $0x58] sm:$0xff]
        %v4430 = vld [vmem:[%s4417 + $0x60] sm:$0xff]
        %v4431 = vld [vmem:[%s4417 + $0x68] sm:$0xff]
        %v4432 = vld [vmem:[%s4417 + $0x70] sm:$0xff]
        %v4433 = vld [vmem:[%s4417 + $0x78] sm:$0xff]
        %v4434 = vld [vmem:[%s4417 + $0x80] sm:$0xff]
        %v4435 = vld [vmem:[%s4417 + $0x88] sm:$0xff]
        %s4436 = scalar_lea.vmem %s8, 6
        %v4437 = vld [vmem:[%s4436] sm:$0x1]
        %v4438 = vld [vmem:[%s4436 + $0x1] sm:$0x1]
        %v4439 = vld [vmem:[%s4436 + $0x2] sm:$0x1]
        %v4443 = vlaneseq
        %v4444 = vshrl.u32 %v4443, 7
        %v4445 = vsub.s32 0, %v4444
        %v4446 = vrot.slane %v4437, %v4445
        %v4447 = vlaneseq
        %v4448 = vshrl.u32 %v4447, 7
        %v4449 = vsub.s32 0, %v4448
        %v4450 = vrot.slane %v4438, %v4449
        %v4451 = vlaneseq
        %v4452 = vshrl.u32 %v4451, 7
        %v4453 = vsub.s32 0, %v4452
        %v4454 = vrot.slane %v4439, %v4453
        %4458 = vmatprep.subr.mxu0 0.0
        %4459 = vmatpush1.msra.mxu0 %v4418
        %4460 = vmatprep.subr.mxu0 0.0
        %4461 = vmatpush1.msra.mxu0 %v4419
        %4462 = vmatprep.subr.mxu0 0.0
        %4463 = vmatpush1.msra.mxu0 %v4420
        %4464 = vmatprep.subr.mxu0 0.0
        %4465 = vmatpush1.msra.mxu0 %v4421
        %4466 = vmatprep.subr.mxu0 0.0
        %4467 = vmatpush1.msra.mxu0 %v4422
        %4468 = vmatprep.subr.mxu0 0.0
        %4469 = vmatpush1.msra.mxu0 %v4423
        %4470 = vmatprep.subr.mxu0 0.0
        %4471 = vmatpush1.msra.mxu0 0.0
        %4472 = vmatprep.subr.mxu0 0.0
        %4473 = vmatpush1.msra.mxu0 0.0
        %4474 = vmatprep.subr.mxu0 0.0
        %4475 = vmatpush1.msra.mxu0 0.0
        %4476 = vmatprep.subr.mxu0 0.0
        %4477 = vmatpush1.msra.mxu0 0.0
        %4478 = vmatprep.subr.mxu0 0.0
        %4479 = vmatpush1.msra.mxu0 0.0
        %4480 = vmatprep.subr.mxu0 0.0
        %4481 = vmatpush1.msra.mxu0 0.0
        %4482 = vmatprep.subr.mxu0 0.0
        %4483 = vmatpush1.msra.mxu0 0.0
        %4484 = vmatprep.subr.mxu0 0.0
        %4485 = vmatpush1.msra.mxu0 0.0
        %4486 = vmatprep.subr.mxu0 0.0
        %4487 = vmatpush1.msra.mxu0 0.0
        %4488 = vmatprep.subr.mxu0 0.0
        %4489 = vmatpush1.msra.mxu0 0.0
        %4490 = vmatprep.subr.mxu0 0.0
        %4491 = vmatpush1.msra.mxu0 0.0
        %4492 = vmatprep.subr.mxu0 0.0
        %4493 = vmatpush1.msra.mxu0 0.0
        %4494 = vmatprep.subr.mxu0 0.0
        %4495 = vmatpush1.msra.mxu0 0.0
        %4496 = vmatprep.subr.mxu0 0.0
        %4497 = vmatpush1.msra.mxu0 0.0
        %4498 = vmatprep.subr.mxu0 0.0
        %4499 = vmatpush1.msra.mxu0 0.0
        %4500 = vmatprep.subr.mxu0 0.0
        %4501 = vmatpush1.msra.mxu0 0.0
        %4502 = vmatprep.subr.mxu0 0.0
        %4503 = vmatpush1.msra.mxu0 0.0
        %4504 = vmatprep.subr.mxu0 0.0
        %4505 = vmatpush1.msra.mxu0 0.0
        %4506 = vmatprep.subr.mxu0 0.0
        %4507 = vmatpush1.msra.mxu0 0.0
        %4508 = vmatprep.subr.mxu0 0.0
        %4509 = vmatpush1.msra.mxu0 0.0
        %4510 = vmatprep.subr.mxu0 0.0
        %4511 = vmatpush1.msra.mxu0 0.0
        %4512 = vmatprep.subr.mxu0 0.0
        %4513 = vmatpush1.msra.mxu0 0.0
        %4514 = vmatprep.subr.mxu0 0.0
        %4515 = vmatpush1.msra.mxu0 0.0
        %4516 = vmatprep.subr.mxu0 0.0
        %4517 = vmatpush1.msra.mxu0 0.0
        %4518 = vmatprep.subr.mxu0 0.0
        %4519 = vmatpush1.msra.mxu0 0.0
        %4520 = vmatprep.subr.mxu0 0.0
        %4521 = vmatpush1.msra.mxu0 0.0
        %4522 = vmatprep.mubr.f32.mxu0 0.0
        %4523 = vmatmul.mubr.f32.gmra.mrb[0].mxu0 %v4205
        %v4524 = vpop.f32.mrb[0].mxu0
        %v4525 = vadd.f32 %v4446, %v4524
        %v4526 = vpop.f32.mrb[0].mxu0
        %4527 = vdwg.mxu0
        %4528 = vmatprep.subr.mxu0 0.0
        %4529 = vmatpush1.msra.mxu0 %v4424
        %4530 = vmatprep.subr.mxu0 0.0
        %4531 = vmatpush1.msra.mxu0 %v4425
        %4532 = vmatprep.subr.mxu0 0.0
        %4533 = vmatpush1.msra.mxu0 %v4426
        %4534 = vmatprep.subr.mxu0 0.0
        %4535 = vmatpush1.msra.mxu0 %v4427
        %4536 = vmatprep.subr.mxu0 0.0
        %4537 = vmatpush1.msra.mxu0 %v4428
        %4538 = vmatprep.subr.mxu0 0.0
        %4539 = vmatpush1.msra.mxu0 %v4429
        %4540 = vmatprep.subr.mxu0 0.0
        %4541 = vmatpush1.msra.mxu0 0.0
        %4542 = vmatprep.subr.mxu0 0.0
        %4543 = vmatpush1.msra.mxu0 0.0
        %4544 = vmatprep.subr.mxu0 0.0
        %4545 = vmatpush1.msra.mxu0 0.0
        %4546 = vmatprep.subr.mxu0 0.0
        %4547 = vmatpush1.msra.mxu0 0.0
        %4548 = vmatprep.subr.mxu0 0.0
        %4549 = vmatpush1.msra.mxu0 0.0
        %4550 = vmatprep.subr.mxu0 0.0
        %4551 = vmatpush1.msra.mxu0 0.0
        %4552 = vmatprep.subr.mxu0 0.0
        %4553 = vmatpush1.msra.mxu0 0.0
        %4554 = vmatprep.subr.mxu0 0.0
        %4555 = vmatpush1.msra.mxu0 0.0
        %4556 = vmatprep.subr.mxu0 0.0
        %4557 = vmatpush1.msra.mxu0 0.0
        %4558 = vmatprep.subr.mxu0 0.0
        %4559 = vmatpush1.msra.mxu0 0.0
        %4560 = vmatprep.subr.mxu0 0.0
        %4561 = vmatpush1.msra.mxu0 0.0
        %4562 = vmatprep.subr.mxu0 0.0
        %4563 = vmatpush1.msra.mxu0 0.0
        %4564 = vmatprep.subr.mxu0 0.0
        %4565 = vmatpush1.msra.mxu0 0.0
        %4566 = vmatprep.subr.mxu0 0.0
        %4567 = vmatpush1.msra.mxu0 0.0
        %4568 = vmatprep.subr.mxu0 0.0
        %4569 = vmatpush1.msra.mxu0 0.0
        %4570 = vmatprep.subr.mxu0 0.0
        %4571 = vmatpush1.msra.mxu0 0.0
        %4572 = vmatprep.subr.mxu0 0.0
        %4573 = vmatpush1.msra.mxu0 0.0
        %4574 = vmatprep.subr.mxu0 0.0
        %4575 = vmatpush1.msra.mxu0 0.0
        %4576 = vmatprep.subr.mxu0 0.0
        %4577 = vmatpush1.msra.mxu0 0.0
        %4578 = vmatprep.subr.mxu0 0.0
        %4579 = vmatpush1.msra.mxu0 0.0
        %4580 = vmatprep.subr.mxu0 0.0
        %4581 = vmatpush1.msra.mxu0 0.0
        %4582 = vmatprep.subr.mxu0 0.0
        %4583 = vmatpush1.msra.mxu0 0.0
        %4584 = vmatprep.subr.mxu0 0.0
        %4585 = vmatpush1.msra.mxu0 0.0
        %4586 = vmatprep.subr.mxu0 0.0
        %4587 = vmatpush1.msra.mxu0 0.0
        %4588 = vmatprep.subr.mxu0 0.0
        %4589 = vmatpush1.msra.mxu0 0.0
        %4590 = vmatprep.subr.mxu0 0.0
        %4591 = vmatpush1.msra.mxu0 0.0
        %4592 = vmatprep.mubr.f32.mxu0 0.0
        %4593 = vmatmul.mubr.f32.gmra.mrb[0].mxu0 %v4205
        %v4594 = vpop.f32.mrb[0].mxu0
        %v4595 = vadd.f32 %v4450, %v4594
        %v4596 = vpop.f32.mrb[0].mxu0
        %4597 = vdwg.mxu0
        %4598 = vmatprep.subr.mxu0 0.0
        %4599 = vmatpush1.msra.mxu0 %v4430
        %4600 = vmatprep.subr.mxu0 0.0
        %4601 = vmatpush1.msra.mxu0 %v4431
        %4602 = vmatprep.subr.mxu0 0.0
        %4603 = vmatpush1.msra.mxu0 %v4432
        %4604 = vmatprep.subr.mxu0 0.0
        %4605 = vmatpush1.msra.mxu0 %v4433
        %4606 = vmatprep.subr.mxu0 0.0
        %4607 = vmatpush1.msra.mxu0 %v4434
        %4608 = vmatprep.subr.mxu0 0.0
        %4609 = vmatpush1.msra.mxu0 %v4435
        %4610 = vmatprep.subr.mxu0 0.0
        %4611 = vmatpush1.msra.mxu0 0.0
        %4612 = vmatprep.subr.mxu0 0.0
        %4613 = vmatpush1.msra.mxu0 0.0
        %4614 = vmatprep.subr.mxu0 0.0
        %4615 = vmatpush1.msra.mxu0 0.0
        %4616 = vmatprep.subr.mxu0 0.0
        %4617 = vmatpush1.msra.mxu0 0.0
        %4618 = vmatprep.subr.mxu0 0.0
        %4619 = vmatpush1.msra.mxu0 0.0
        %4620 = vmatprep.subr.mxu0 0.0
        %4621 = vmatpush1.msra.mxu0 0.0
        %4622 = vmatprep.subr.mxu0 0.0
        %4623 = vmatpush1.msra.mxu0 0.0
        %4624 = vmatprep.subr.mxu0 0.0
        %4625 = vmatpush1.msra.mxu0 0.0
        %4626 = vmatprep.subr.mxu0 0.0
        %4627 = vmatpush1.msra.mxu0 0.0
        %4628 = vmatprep.subr.mxu0 0.0
        %4629 = vmatpush1.msra.mxu0 0.0
        %4630 = vmatprep.subr.mxu0 0.0
        %4631 = vmatpush1.msra.mxu0 0.0
        %4632 = vmatprep.subr.mxu0 0.0
        %4633 = vmatpush1.msra.mxu0 0.0
        %4634 = vmatprep.subr.mxu0 0.0
        %4635 = vmatpush1.msra.mxu0 0.0
        %4636 = vmatprep.subr.mxu0 0.0
        %4637 = vmatpush1.msra.mxu0 0.0
        %4638 = vmatprep.subr.mxu0 0.0
        %4639 = vmatpush1.msra.mxu0 0.0
        %4640 = vmatprep.subr.mxu0 0.0
        %4641 = vmatpush1.msra.mxu0 0.0
        %4642 = vmatprep.subr.mxu0 0.0
        %4643 = vmatpush1.msra.mxu0 0.0
        %4644 = vmatprep.subr.mxu0 0.0
        %4645 = vmatpush1.msra.mxu0 0.0
        %4646 = vmatprep.subr.mxu0 0.0
        %4647 = vmatpush1.msra.mxu0 0.0
        %4648 = vmatprep.subr.mxu0 0.0
        %4649 = vmatpush1.msra.mxu0 0.0
        %4650 = vmatprep.subr.mxu0 0.0
        %4651 = vmatpush1.msra.mxu0 0.0
        %4652 = vmatprep.subr.mxu0 0.0
        %4653 = vmatpush1.msra.mxu0 0.0
        %4654 = vmatprep.subr.mxu0 0.0
        %4655 = vmatpush1.msra.mxu0 0.0
        %4656 = vmatprep.subr.mxu0 0.0
        %4657 = vmatpush1.msra.mxu0 0.0
        %4658 = vmatprep.subr.mxu0 0.0
        %4659 = vmatpush1.msra.mxu0 0.0
        %4660 = vmatprep.subr.mxu0 0.0
        %4661 = vmatpush1.msra.mxu0 0.0
        %4662 = vmatprep.mubr.f32.mxu0 0.0
        %4663 = vmatmul.mubr.f32.gmra.mrb[0].mxu0 %v4205
        %v4664 = vpop.f32.mrb[0].mxu0
        %v4665 = vadd.f32 %v4454, %v4664
        %v4666 = vpop.f32.mrb[0].mxu0
        %4667 = vdwg.mxu0
        %s4668 = scalar_lea.vmem %s3, 288
        %v4669 = vld [vmem:[%s4668] sm:$0xff]
        %v4670 = vld [vmem:[%s4668 + $0x8] sm:$0xff]
        %v4671 = vld [vmem:[%s4668 + $0x10] sm:$0xff]
        %v4672 = vld [vmem:[%s4668 + $0x18] sm:$0xff]
        %v4673 = vld [vmem:[%s4668 + $0x20] sm:$0xff]
        %v4674 = vld [vmem:[%s4668 + $0x28] sm:$0xff]
        %v4675 = vld [vmem:[%s4668 + $0x30] sm:$0xff]
        %v4676 = vld [vmem:[%s4668 + $0x38] sm:$0xff]
        %v4677 = vld [vmem:[%s4668 + $0x40] sm:$0xff]
        %v4678 = vld [vmem:[%s4668 + $0x48] sm:$0xff]
        %v4679 = vld [vmem:[%s4668 + $0x50] sm:$0xff]
        %v4680 = vld [vmem:[%s4668 + $0x58] sm:$0xff]
        %v4681 = vld [vmem:[%s4668 + $0x60] sm:$0xff]
        %v4682 = vld [vmem:[%s4668 + $0x68] sm:$0xff]
        %v4683 = vld [vmem:[%s4668 + $0x70] sm:$0xff]
        %v4684 = vld [vmem:[%s4668 + $0x78] sm:$0xff]
        %v4685 = vld [vmem:[%s4668 + $0x80] sm:$0xff]
        %v4686 = vld [vmem:[%s4668 + $0x88] sm:$0xff]
        %s4687 = scalar_lea.vmem %s6, 6
        %v4688 = vld [vmem:[%s4687] sm:$0x1]
        %v4689 = vld [vmem:[%s4687 + $0x1] sm:$0x1]
        %v4690 = vld [vmem:[%s4687 + $0x2] sm:$0x1]
        %v4691 = vrot.slane %v4162, 7
        %v4692 = vsel %vm633, %v4691, 0
        %4694 = vmatprep.subr.mxu0 0.0
        %4695 = vmatpush1.msra.mxu0 %v4669
        %4696 = vmatprep.subr.mxu0 0.0
        %4697 = vmatpush1.msra.mxu0 %v4670
        %4698 = vmatprep.subr.mxu0 0.0
        %4699 = vmatpush1.msra.mxu0 %v4671
        %4700 = vmatprep.subr.mxu0 0.0
        %4701 = vmatpush1.msra.mxu0 %v4672
        %4702 = vmatprep.subr.mxu0 0.0
        %4703 = vmatpush1.msra.mxu0 %v4673
        %4704 = vmatprep.subr.mxu0 0.0
        %4705 = vmatpush1.msra.mxu0 %v4674
        %4706 = vmatprep.subr.mxu0 0.0
        %4707 = vmatpush1.msra.mxu0 0.0
        %4708 = vmatprep.subr.mxu0 0.0
        %4709 = vmatpush1.msra.mxu0 0.0
        %4710 = vmatprep.subr.mxu0 0.0
        %4711 = vmatpush1.msra.mxu0 0.0
        %4712 = vmatprep.subr.mxu0 0.0
        %4713 = vmatpush1.msra.mxu0 0.0
        %4714 = vmatprep.subr.mxu0 0.0
        %4715 = vmatpush1.msra.mxu0 0.0
        %4716 = vmatprep.subr.mxu0 0.0
        %4717 = vmatpush1.msra.mxu0 0.0
        %4718 = vmatprep.subr.mxu0 0.0
        %4719 = vmatpush1.msra.mxu0 0.0
        %4720 = vmatprep.subr.mxu0 0.0
        %4721 = vmatpush1.msra.mxu0 0.0
        %4722 = vmatprep.subr.mxu0 0.0
        %4723 = vmatpush1.msra.mxu0 0.0
        %4724 = vmatprep.subr.mxu0 0.0
        %4725 = vmatpush1.msra.mxu0 0.0
        %4726 = vmatprep.subr.mxu0 0.0
        %4727 = vmatpush1.msra.mxu0 0.0
        %4728 = vmatprep.subr.mxu0 0.0
        %4729 = vmatpush1.msra.mxu0 0.0
        %4730 = vmatprep.subr.mxu0 0.0
        %4731 = vmatpush1.msra.mxu0 0.0
        %4732 = vmatprep.subr.mxu0 0.0
        %4733 = vmatpush1.msra.mxu0 0.0
        %4734 = vmatprep.subr.mxu0 0.0
        %4735 = vmatpush1.msra.mxu0 0.0
        %4736 = vmatprep.subr.mxu0 0.0
        %4737 = vmatpush1.msra.mxu0 0.0
        %4738 = vmatprep.subr.mxu0 0.0
        %4739 = vmatpush1.msra.mxu0 0.0
        %4740 = vmatprep.subr.mxu0 0.0
        %4741 = vmatpush1.msra.mxu0 0.0
        %4742 = vmatprep.subr.mxu0 0.0
        %4743 = vmatpush1.msra.mxu0 0.0
        %4744 = vmatprep.subr.mxu0 0.0
        %4745 = vmatpush1.msra.mxu0 0.0
        %4746 = vmatprep.subr.mxu0 0.0
        %4747 = vmatpush1.msra.mxu0 0.0
        %4748 = vmatprep.subr.mxu0 0.0
        %4749 = vmatpush1.msra.mxu0 0.0
        %4750 = vmatprep.subr.mxu0 0.0
        %4751 = vmatpush1.msra.mxu0 0.0
        %4752 = vmatprep.subr.mxu0 0.0
        %4753 = vmatpush1.msra.mxu0 0.0
        %4754 = vmatprep.subr.mxu0 0.0
        %4755 = vmatpush1.msra.mxu0 0.0
        %4756 = vmatprep.subr.mxu0 0.0
        %4757 = vmatpush1.msra.mxu0 0.0
        %4758 = vmatprep.mubr.f32.mxu0 0.0
        %4759 = vmatmul.mubr.f32.gmra.mrb[0].mxu0 %v4692
        %v4760 = vpop.f32.mrb[0].mxu0
        %v4761 = vadd.f32 %v4688, %v4760
        %v4762 = vpop.f32.mrb[0].mxu0
        %4763 = vdwg.mxu0
        %4764 = vmatprep.subr.mxu0 0.0
        %4765 = vmatpush1.msra.mxu0 %v4675
        %4766 = vmatprep.subr.mxu0 0.0
        %4767 = vmatpush1.msra.mxu0 %v4676
        %4768 = vmatprep.subr.mxu0 0.0
        %4769 = vmatpush1.msra.mxu0 %v4677
        %4770 = vmatprep.subr.mxu0 0.0
        %4771 = vmatpush1.msra.mxu0 %v4678
        %4772 = vmatprep.subr.mxu0 0.0
        %4773 = vmatpush1.msra.mxu0 %v4679
        %4774 = vmatprep.subr.mxu0 0.0
        %4775 = vmatpush1.msra.mxu0 %v4680
        %4776 = vmatprep.subr.mxu0 0.0
        %4777 = vmatpush1.msra.mxu0 0.0
        %4778 = vmatprep.subr.mxu0 0.0
        %4779 = vmatpush1.msra.mxu0 0.0
        %4780 = vmatprep.subr.mxu0 0.0
        %4781 = vmatpush1.msra.mxu0 0.0
        %4782 = vmatprep.subr.mxu0 0.0
        %4783 = vmatpush1.msra.mxu0 0.0
        %4784 = vmatprep.subr.mxu0 0.0
        %4785 = vmatpush1.msra.mxu0 0.0
        %4786 = vmatprep.subr.mxu0 0.0
        %4787 = vmatpush1.msra.mxu0 0.0
        %4788 = vmatprep.subr.mxu0 0.0
        %4789 = vmatpush1.msra.mxu0 0.0
        %4790 = vmatprep.subr.mxu0 0.0
        %4791 = vmatpush1.msra.mxu0 0.0
        %4792 = vmatprep.subr.mxu0 0.0
        %4793 = vmatpush1.msra.mxu0 0.0
        %4794 = vmatprep.subr.mxu0 0.0
        %4795 = vmatpush1.msra.mxu0 0.0
        %4796 = vmatprep.subr.mxu0 0.0
        %4797 = vmatpush1.msra.mxu0 0.0
        %4798 = vmatprep.subr.mxu0 0.0
        %4799 = vmatpush1.msra.mxu0 0.0
        %4800 = vmatprep.subr.mxu0 0.0
        %4801 = vmatpush1.msra.mxu0 0.0
        %4802 = vmatprep.subr.mxu0 0.0
        %4803 = vmatpush1.msra.mxu0 0.0
        %4804 = vmatprep.subr.mxu0 0.0
        %4805 = vmatpush1.msra.mxu0 0.0
        %4806 = vmatprep.subr.mxu0 0.0
        %4807 = vmatpush1.msra.mxu0 0.0
        %4808 = vmatprep.subr.mxu0 0.0
        %4809 = vmatpush1.msra.mxu0 0.0
        %4810 = vmatprep.subr.mxu0 0.0
        %4811 = vmatpush1.msra.mxu0 0.0
        %4812 = vmatprep.subr.mxu0 0.0
        %4813 = vmatpush1.msra.mxu0 0.0
        %4814 = vmatprep.subr.mxu0 0.0
        %4815 = vmatpush1.msra.mxu0 0.0
        %4816 = vmatprep.subr.mxu0 0.0
        %4817 = vmatpush1.msra.mxu0 0.0
        %4818 = vmatprep.subr.mxu0 0.0
        %4819 = vmatpush1.msra.mxu0 0.0
        %4820 = vmatprep.subr.mxu0 0.0
        %4821 = vmatpush1.msra.mxu0 0.0
        %4822 = vmatprep.subr.mxu0 0.0
        %4823 = vmatpush1.msra.mxu0 0.0
        %4824 = vmatprep.subr.mxu0 0.0
        %4825 = vmatpush1.msra.mxu0 0.0
        %4826 = vmatprep.subr.mxu0 0.0
        %4827 = vmatpush1.msra.mxu0 0.0
        %4828 = vmatprep.mubr.f32.mxu0 0.0
        %4829 = vmatmul.mubr.f32.gmra.mrb[0].mxu0 %v4692
        %v4830 = vpop.f32.mrb[0].mxu0
        %v4831 = vadd.f32 %v4689, %v4830
        %v4832 = vpop.f32.mrb[0].mxu0
        %4833 = vdwg.mxu0
        %4834 = vmatprep.subr.mxu0 0.0
        %4835 = vmatpush1.msra.mxu0 %v4681
        %4836 = vmatprep.subr.mxu0 0.0
        %4837 = vmatpush1.msra.mxu0 %v4682
        %4838 = vmatprep.subr.mxu0 0.0
        %4839 = vmatpush1.msra.mxu0 %v4683
        %4840 = vmatprep.subr.mxu0 0.0
        %4841 = vmatpush1.msra.mxu0 %v4684
        %4842 = vmatprep.subr.mxu0 0.0
        %4843 = vmatpush1.msra.mxu0 %v4685
        %4844 = vmatprep.subr.mxu0 0.0
        %4845 = vmatpush1.msra.mxu0 %v4686
        %4846 = vmatprep.subr.mxu0 0.0
        %4847 = vmatpush1.msra.mxu0 0.0
        %4848 = vmatprep.subr.mxu0 0.0
        %4849 = vmatpush1.msra.mxu0 0.0
        %4850 = vmatprep.subr.mxu0 0.0
        %4851 = vmatpush1.msra.mxu0 0.0
        %4852 = vmatprep.subr.mxu0 0.0
        %4853 = vmatpush1.msra.mxu0 0.0
        %4854 = vmatprep.subr.mxu0 0.0
        %4855 = vmatpush1.msra.mxu0 0.0
        %4856 = vmatprep.subr.mxu0 0.0
        %4857 = vmatpush1.msra.mxu0 0.0
        %4858 = vmatprep.subr.mxu0 0.0
        %4859 = vmatpush1.msra.mxu0 0.0
        %4860 = vmatprep.subr.mxu0 0.0
        %4861 = vmatpush1.msra.mxu0 0.0
        %4862 = vmatprep.subr.mxu0 0.0
        %4863 = vmatpush1.msra.mxu0 0.0
        %4864 = vmatprep.subr.mxu0 0.0
        %4865 = vmatpush1.msra.mxu0 0.0
        %4866 = vmatprep.subr.mxu0 0.0
        %4867 = vmatpush1.msra.mxu0 0.0
        %4868 = vmatprep.subr.mxu0 0.0
        %4869 = vmatpush1.msra.mxu0 0.0
        %4870 = vmatprep.subr.mxu0 0.0
        %4871 = vmatpush1.msra.mxu0 0.0
        %4872 = vmatprep.subr.mxu0 0.0
        %4873 = vmatpush1.msra.mxu0 0.0
        %4874 = vmatprep.subr.mxu0 0.0
        %4875 = vmatpush1.msra.mxu0 0.0
        %4876 = vmatprep.subr.mxu0 0.0
        %4877 = vmatpush1.msra.mxu0 0.0
        %4878 = vmatprep.subr.mxu0 0.0
        %4879 = vmatpush1.msra.mxu0 0.0
        %4880 = vmatprep.subr.mxu0 0.0
        %4881 = vmatpush1.msra.mxu0 0.0
        %4882 = vmatprep.subr.mxu0 0.0
        %4883 = vmatpush1.msra.mxu0 0.0
        %4884 = vmatprep.subr.mxu0 0.0
        %4885 = vmatpush1.msra.mxu0 0.0
        %4886 = vmatprep.subr.mxu0 0.0
        %4887 = vmatpush1.msra.mxu0 0.0
        %4888 = vmatprep.subr.mxu0 0.0
        %4889 = vmatpush1.msra.mxu0 0.0
        %4890 = vmatprep.subr.mxu0 0.0
        %4891 = vmatpush1.msra.mxu0 0.0
        %4892 = vmatprep.subr.mxu0 0.0
        %4893 = vmatpush1.msra.mxu0 0.0
        %4894 = vmatprep.subr.mxu0 0.0
        %4895 = vmatpush1.msra.mxu0 0.0
        %4896 = vmatprep.subr.mxu0 0.0
        %4897 = vmatpush1.msra.mxu0 0.0
        %4898 = vmatprep.mubr.f32.mxu0 0.0
        %4899 = vmatmul.mubr.f32.gmra.mrb[0].mxu0 %v4692
        %v4900 = vpop.f32.mrb[0].mxu0
        %v4901 = vadd.f32 %v4690, %v4900
        %v4902 = vpop.f32.mrb[0].mxu0
        %4903 = vdwg.mxu0
        %v4904 = vmul.f32 %v4761, 0.25
        %v4905 = vmul.f32 %v4831, 0.25
        %v4906 = vmul.f32 %v4901, 0.25
        %v4908 = vsel %vm1415, %v4904, 0
        %v4911 = vsel %vm1415, %v4274, 0
        %4913 = vmatprep.subr.mxu0 0.0
        %4914 = vmatpush1.xpose.msra.mxu0 %v4911
        %4915 = vmatprep.subr.mxu0 0.0
        %4916 = vmatpush1.xpose.msra.mxu0 0.0
        %4917 = vmatprep.subr.mxu0 0.0
        %4918 = vmatpush1.xpose.msra.mxu0 0.0
        %4919 = vmatprep.subr.mxu0 0.0
        %4920 = vmatpush1.xpose.msra.mxu0 0.0
        %4921 = vmatprep.subr.mxu0 0.0
        %4922 = vmatpush1.xpose.msra.mxu0 0.0
        %4923 = vmatprep.subr.mxu0 0.0
        %4924 = vmatpush1.xpose.msra.mxu0 0.0
        %4925 = vmatprep.subr.mxu0 0.0
        %4926 = vmatpush1.xpose.msra.mxu0 0.0
        %4927 = vmatprep.subr.mxu0 0.0
        %4928 = vmatpush1.xpose.msra.mxu0 0.0
        %4929 = vmatprep.subr.mxu0 0.0
        %4930 = vmatpush1.xpose.msra.mxu0 0.0
        %4931 = vmatprep.subr.mxu0 0.0
        %4932 = vmatpush1.xpose.msra.mxu0 0.0
        %4933 = vmatprep.subr.mxu0 0.0
        %4934 = vmatpush1.xpose.msra.mxu0 0.0
        %4935 = vmatprep.subr.mxu0 0.0
        %4936 = vmatpush1.xpose.msra.mxu0 0.0
        %4937 = vmatprep.subr.mxu0 0.0
        %4938 = vmatpush1.xpose.msra.mxu0 0.0
        %4939 = vmatprep.subr.mxu0 0.0
        %4940 = vmatpush1.xpose.msra.mxu0 0.0
        %4941 = vmatprep.subr.mxu0 0.0
        %4942 = vmatpush1.xpose.msra.mxu0 0.0
        %4943 = vmatprep.subr.mxu0 0.0
        %4944 = vmatpush1.xpose.msra.mxu0 0.0
        %4945 = vmatprep.subr.mxu0 0.0
        %4946 = vmatpush1.xpose.msra.mxu0 0.0
        %4947 = vmatprep.subr.mxu0 0.0
        %4948 = vmatpush1.xpose.msra.mxu0 0.0
        %4949 = vmatprep.subr.mxu0 0.0
        %4950 = vmatpush1.xpose.msra.mxu0 0.0
        %4951 = vmatprep.subr.mxu0 0.0
        %4952 = vmatpush1.xpose.msra.mxu0 0.0
        %4953 = vmatprep.subr.mxu0 0.0
        %4954 = vmatpush1.xpose.msra.mxu0 0.0
        %4955 = vmatprep.subr.mxu0 0.0
        %4956 = vmatpush1.xpose.msra.mxu0 0.0
        %4957 = vmatprep.subr.mxu0 0.0
        %4958 = vmatpush1.xpose.msra.mxu0 0.0
        %4959 = vmatprep.subr.mxu0 0.0
        %4960 = vmatpush1.xpose.msra.mxu0 0.0
        %4961 = vmatprep.subr.mxu0 0.0
        %4962 = vmatpush1.xpose.msra.mxu0 0.0
        %4963 = vmatprep.subr.mxu0 0.0
        %4964 = vmatpush1.xpose.msra.mxu0 0.0
        %4965 = vmatprep.subr.mxu0 0.0
        %4966 = vmatpush1.xpose.msra.mxu0 0.0
        %4967 = vmatprep.subr.mxu0 0.0
        %4968 = vmatpush1.xpose.msra.mxu0 0.0
        %4969 = vmatprep.subr.mxu0 0.0
        %4970 = vmatpush1.xpose.msra.mxu0 0.0
        %4971 = vmatprep.subr.mxu0 0.0
        %4972 = vmatpush1.xpose.msra.mxu0 0.0
        %4973 = vmatprep.subr.mxu0 0.0
        %4974 = vmatpush1.xpose.msra.mxu0 0.0
        %4975 = vmatprep.subr.mxu0 0.0
        %4976 = vmatpush1.xpose.msra.mxu0 0.0
        %4977 = vmatprep.mubr.f32.mxu0 0.0
        %4978 = vmatmul.mubr.f32.gmra.mrb[0].mxu0 %v4908
        %v4979 = vpop.f32.mrb[0].mxu0
        %v4980 = vadd.f32 0.0, %v4979
        %v4981 = vpop.f32.mrb[0].mxu0
        %4982 = vdwg.mxu0
        %v4984 = vsel %vm1415, %v4905, 0
        %v4987 = vsel %vm1415, %v4344, 0
        %4989 = vmatprep.subr.mxu0 0.0
        %4990 = vmatpush1.xpose.msra.mxu0 %v4987
        %4991 = vmatprep.subr.mxu0 0.0
        %4992 = vmatpush1.xpose.msra.mxu0 0.0
        %4993 = vmatprep.subr.mxu0 0.0
        %4994 = vmatpush1.xpose.msra.mxu0 0.0
        %4995 = vmatprep.subr.mxu0 0.0
        %4996 = vmatpush1.xpose.msra.mxu0 0.0
        %4997 = vmatprep.subr.mxu0 0.0
        %4998 = vmatpush1.xpose.msra.mxu0 0.0
        %4999 = vmatprep.subr.mxu0 0.0
        %5000 = vmatpush1.xpose.msra.mxu0 0.0
        %5001 = vmatprep.subr.mxu0 0.0
        %5002 = vmatpush1.xpose.msra.mxu0 0.0
        %5003 = vmatprep.subr.mxu0 0.0
        %5004 = vmatpush1.xpose.msra.mxu0 0.0
        %5005 = vmatprep.subr.mxu0 0.0
        %5006 = vmatpush1.xpose.msra.mxu0 0.0
        %5007 = vmatprep.subr.mxu0 0.0
        %5008 = vmatpush1.xpose.msra.mxu0 0.0
        %5009 = vmatprep.subr.mxu0 0.0
        %5010 = vmatpush1.xpose.msra.mxu0 0.0
        %5011 = vmatprep.subr.mxu0 0.0
        %5012 = vmatpush1.xpose.msra.mxu0 0.0
        %5013 = vmatprep.subr.mxu0 0.0
        %5014 = vmatpush1.xpose.msra.mxu0 0.0
        %5015 = vmatprep.subr.mxu0 0.0
        %5016 = vmatpush1.xpose.msra.mxu0 0.0
        %5017 = vmatprep.subr.mxu0 0.0
        %5018 = vmatpush1.xpose.msra.mxu0 0.0
        %5019 = vmatprep.subr.mxu0 0.0
        %5020 = vmatpush1.xpose.msra.mxu0 0.0
        %5021 = vmatprep.subr.mxu0 0.0
        %5022 = vmatpush1.xpose.msra.mxu0 0.0
        %5023 = vmatprep.subr.mxu0 0.0
        %5024 = vmatpush1.xpose.msra.mxu0 0.0
        %5025 = vmatprep.subr.mxu0 0.0
        %5026 = vmatpush1.xpose.msra.mxu0 0.0
        %5027 = vmatprep.subr.mxu0 0.0
        %5028 = vmatpush1.xpose.msra.mxu0 0.0
        %5029 = vmatprep.subr.mxu0 0.0
        %5030 = vmatpush1.xpose.msra.mxu0 0.0
        %5031 = vmatprep.subr.mxu0 0.0
        %5032 = vmatpush1.xpose.msra.mxu0 0.0
        %5033 = vmatprep.subr.mxu0 0.0
        %5034 = vmatpush1.xpose.msra.mxu0 0.0
        %5035 = vmatprep.subr.mxu0 0.0
        %5036 = vmatpush1.xpose.msra.mxu0 0.0
        %5037 = vmatprep.subr.mxu0 0.0
        %5038 = vmatpush1.xpose.msra.mxu0 0.0
        %5039 = vmatprep.subr.mxu0 0.0
        %5040 = vmatpush1.xpose.msra.mxu0 0.0
        %5041 = vmatprep.subr.mxu0 0.0
        %5042 = vmatpush1.xpose.msra.mxu0 0.0
        %5043 = vmatprep.subr.mxu0 0.0
        %5044 = vmatpush1.xpose.msra.mxu0 0.0
        %5045 = vmatprep.subr.mxu0 0.0
        %5046 = vmatpush1.xpose.msra.mxu0 0.0
        %5047 = vmatprep.subr.mxu0 0.0
        %5048 = vmatpush1.xpose.msra.mxu0 0.0
        %5049 = vmatprep.subr.mxu0 0.0
        %5050 = vmatpush1.xpose.msra.mxu0 0.0
        %5051 = vmatprep.subr.mxu0 0.0
        %5052 = vmatpush1.xpose.msra.mxu0 0.0
        %5053 = vmatprep.mubr.f32.mxu0 0.0
        %5054 = vmatmul.mubr.f32.gmra.mrb[0].mxu0 %v4984
        %v5055 = vpop.f32.mrb[0].mxu0
        %v5056 = vadd.f32 0.0, %v5055
        %v5057 = vpop.f32.mrb[0].mxu0
        %5058 = vdwg.mxu0
        %v5060 = vsel %vm1415, %v4906, 0
        %v5063 = vsel %vm1415, %v4414, 0
        %5065 = vmatprep.subr.mxu0 0.0
        %5066 = vmatpush1.xpose.msra.mxu0 %v5063
        %5067 = vmatprep.subr.mxu0 0.0
        %5068 = vmatpush1.xpose.msra.mxu0 0.0
        %5069 = vmatprep.subr.mxu0 0.0
        %5070 = vmatpush1.xpose.msra.mxu0 0.0
        %5071 = vmatprep.subr.mxu0 0.0
        %5072 = vmatpush1.xpose.msra.mxu0 0.0
        %5073 = vmatprep.subr.mxu0 0.0
        %5074 = vmatpush1.xpose.msra.mxu0 0.0
        %5075 = vmatprep.subr.mxu0 0.0
        %5076 = vmatpush1.xpose.msra.mxu0 0.0
        %5077 = vmatprep.subr.mxu0 0.0
        %5078 = vmatpush1.xpose.msra.mxu0 0.0
        %5079 = vmatprep.subr.mxu0 0.0
        %5080 = vmatpush1.xpose.msra.mxu0 0.0
        %5081 = vmatprep.subr.mxu0 0.0
        %5082 = vmatpush1.xpose.msra.mxu0 0.0
        %5083 = vmatprep.subr.mxu0 0.0
        %5084 = vmatpush1.xpose.msra.mxu0 0.0
        %5085 = vmatprep.subr.mxu0 0.0
        %5086 = vmatpush1.xpose.msra.mxu0 0.0
        %5087 = vmatprep.subr.mxu0 0.0
        %5088 = vmatpush1.xpose.msra.mxu0 0.0
        %5089 = vmatprep.subr.mxu0 0.0
        %5090 = vmatpush1.xpose.msra.mxu0 0.0
        %5091 = vmatprep.subr.mxu0 0.0
        %5092 = vmatpush1.xpose.msra.mxu0 0.0
        %5093 = vmatprep.subr.mxu0 0.0
        %5094 = vmatpush1.xpose.msra.mxu0 0.0
        %5095 = vmatprep.subr.mxu0 0.0
        %5096 = vmatpush1.xpose.msra.mxu0 0.0
        %5097 = vmatprep.subr.mxu0 0.0
        %5098 = vmatpush1.xpose.msra.mxu0 0.0
        %5099 = vmatprep.subr.mxu0 0.0
        %5100 = vmatpush1.xpose.msra.mxu0 0.0
        %5101 = vmatprep.subr.mxu0 0.0
        %5102 = vmatpush1.xpose.msra.mxu0 0.0
        %5103 = vmatprep.subr.mxu0 0.0
        %5104 = vmatpush1.xpose.msra.mxu0 0.0
        %5105 = vmatprep.subr.mxu0 0.0
        %5106 = vmatpush1.xpose.msra.mxu0 0.0
        %5107 = vmatprep.subr.mxu0 0.0
        %5108 = vmatpush1.xpose.msra.mxu0 0.0
        %5109 = vmatprep.subr.mxu0 0.0
        %5110 = vmatpush1.xpose.msra.mxu0 0.0
        %5111 = vmatprep.subr.mxu0 0.0
        %5112 = vmatpush1.xpose.msra.mxu0 0.0
        %5113 = vmatprep.subr.mxu0 0.0
        %5114 = vmatpush1.xpose.msra.mxu0 0.0
        %5115 = vmatprep.subr.mxu0 0.0
        %5116 = vmatpush1.xpose.msra.mxu0 0.0
        %5117 = vmatprep.subr.mxu0 0.0
        %5118 = vmatpush1.xpose.msra.mxu0 0.0
        %5119 = vmatprep.subr.mxu0 0.0
        %5120 = vmatpush1.xpose.msra.mxu0 0.0
        %5121 = vmatprep.subr.mxu0 0.0
        %5122 = vmatpush1.xpose.msra.mxu0 0.0
        %5123 = vmatprep.subr.mxu0 0.0
        %5124 = vmatpush1.xpose.msra.mxu0 0.0
        %5125 = vmatprep.subr.mxu0 0.0
        %5126 = vmatpush1.xpose.msra.mxu0 0.0
        %5127 = vmatprep.subr.mxu0 0.0
        %5128 = vmatpush1.xpose.msra.mxu0 0.0
        %5129 = vmatprep.mubr.f32.mxu0 0.0
        %5130 = vmatmul.mubr.f32.gmra.mrb[0].mxu0 %v5060
        %v5131 = vpop.f32.mrb[0].mxu0
        %v5132 = vadd.f32 0.0, %v5131
        %v5133 = vpop.f32.mrb[0].mxu0
        %5134 = vdwg.mxu0
        %vm5135 = vcmask 57344
        %v5136 = vsel %vm5135, %v4980, -inf
        %5137 = vmax.xlane.f32.xlu0 %v5136
        %v5138 = vpop.xlane.xlu0 %5137
        %v5139 = vsel %vm5135, %v5056, -inf
        %5140 = vmax.xlane.f32.xlu0 %v5139
        %v5141 = vpop.xlane.xlu0 %5140
        %v5142 = vsel %vm5135, %v5132, -inf
        %5143 = vmax.xlane.f32.xlu0 %v5142
        %v5144 = vpop.xlane.xlu0 %5143
        %v5145 = vsub.f32 %v4980, %v5138
        %v5146 = vsub.f32 %v5056, %v5141
        %v5147 = vsub.f32 %v5132, %v5144
        %v5148 = vmul.f32 %v5145, 1.442695
        %v5149 = vpow.pop %v5148
        %v5150 = vmul.f32 %v5146, 1.442695
        %v5151 = vpow.pop %v5150
        %v5152 = vmul.f32 %v5147, 1.442695
        %v5153 = vpow.pop %v5152
        %v5155 = vsel %vm1649, %v5149, 0
        %5157 = vmatprep.subr.mxu0 0.0
        %5158 = vmatpush1.msra.mxu0 %v4525
        %5159 = vmatprep.subr.mxu0 0.0
        %5160 = vmatpush1.msra.mxu0 0.0
        %5161 = vmatprep.subr.mxu0 0.0
        %5162 = vmatpush1.msra.mxu0 0.0
        %5163 = vmatprep.subr.mxu0 0.0
        %5164 = vmatpush1.msra.mxu0 0.0
        %5165 = vmatprep.subr.mxu0 0.0
        %5166 = vmatpush1.msra.mxu0 0.0
        %5167 = vmatprep.subr.mxu0 0.0
        %5168 = vmatpush1.msra.mxu0 0.0
        %5169 = vmatprep.subr.mxu0 0.0
        %5170 = vmatpush1.msra.mxu0 0.0
        %5171 = vmatprep.subr.mxu0 0.0
        %5172 = vmatpush1.msra.mxu0 0.0
        %5173 = vmatprep.subr.mxu0 0.0
        %5174 = vmatpush1.msra.mxu0 0.0
        %5175 = vmatprep.subr.mxu0 0.0
        %5176 = vmatpush1.msra.mxu0 0.0
        %5177 = vmatprep.subr.mxu0 0.0
        %5178 = vmatpush1.msra.mxu0 0.0
        %5179 = vmatprep.subr.mxu0 0.0
        %5180 = vmatpush1.msra.mxu0 0.0
        %5181 = vmatprep.subr.mxu0 0.0
        %5182 = vmatpush1.msra.mxu0 0.0
        %5183 = vmatprep.subr.mxu0 0.0
        %5184 = vmatpush1.msra.mxu0 0.0
        %5185 = vmatprep.subr.mxu0 0.0
        %5186 = vmatpush1.msra.mxu0 0.0
        %5187 = vmatprep.subr.mxu0 0.0
        %5188 = vmatpush1.msra.mxu0 0.0
        %5189 = vmatprep.subr.mxu0 0.0
        %5190 = vmatpush1.msra.mxu0 0.0
        %5191 = vmatprep.subr.mxu0 0.0
        %5192 = vmatpush1.msra.mxu0 0.0
        %5193 = vmatprep.subr.mxu0 0.0
        %5194 = vmatpush1.msra.mxu0 0.0
        %5195 = vmatprep.subr.mxu0 0.0
        %5196 = vmatpush1.msra.mxu0 0.0
        %5197 = vmatprep.subr.mxu0 0.0
        %5198 = vmatpush1.msra.mxu0 0.0
        %5199 = vmatprep.subr.mxu0 0.0
        %5200 = vmatpush1.msra.mxu0 0.0
        %5201 = vmatprep.subr.mxu0 0.0
        %5202 = vmatpush1.msra.mxu0 0.0
        %5203 = vmatprep.subr.mxu0 0.0
        %5204 = vmatpush1.msra.mxu0 0.0
        %5205 = vmatprep.subr.mxu0 0.0
        %5206 = vmatpush1.msra.mxu0 0.0
        %5207 = vmatprep.subr.mxu0 0.0
        %5208 = vmatpush1.msra.mxu0 0.0
        %5209 = vmatprep.subr.mxu0 0.0
        %5210 = vmatpush1.msra.mxu0 0.0
        %5211 = vmatprep.subr.mxu0 0.0
        %5212 = vmatpush1.msra.mxu0 0.0
        %5213 = vmatprep.subr.mxu0 0.0
        %5214 = vmatpush1.msra.mxu0 0.0
        %5215 = vmatprep.subr.mxu0 0.0
        %5216 = vmatpush1.msra.mxu0 0.0
        %5217 = vmatprep.subr.mxu0 0.0
        %5218 = vmatpush1.msra.mxu0 0.0
        %5219 = vmatprep.subr.mxu0 0.0
        %5220 = vmatpush1.msra.mxu0 0.0
        %5221 = vmatprep.mubr.f32.mxu0 0.0
        %5222 = vmatmul.mubr.f32.gmra.mrb[0].mxu0 %v5155
        %v5223 = vpop.f32.mrb[0].mxu0
        %v5224 = vadd.f32 0.0, %v5223
        %v5225 = vpop.f32.mrb[0].mxu0
        %5226 = vdwg.mxu0
        %v5228 = vsel %vm1649, %v5151, 0
        %5230 = vmatprep.subr.mxu0 0.0
        %5231 = vmatpush1.msra.mxu0 %v4595
        %5232 = vmatprep.subr.mxu0 0.0
        %5233 = vmatpush1.msra.mxu0 0.0
        %5234 = vmatprep.subr.mxu0 0.0
        %5235 = vmatpush1.msra.mxu0 0.0
        %5236 = vmatprep.subr.mxu0 0.0
        %5237 = vmatpush1.msra.mxu0 0.0
        %5238 = vmatprep.subr.mxu0 0.0
        %5239 = vmatpush1.msra.mxu0 0.0
        %5240 = vmatprep.subr.mxu0 0.0
        %5241 = vmatpush1.msra.mxu0 0.0
        %5242 = vmatprep.subr.mxu0 0.0
        %5243 = vmatpush1.msra.mxu0 0.0
        %5244 = vmatprep.subr.mxu0 0.0
        %5245 = vmatpush1.msra.mxu0 0.0
        %5246 = vmatprep.subr.mxu0 0.0
        %5247 = vmatpush1.msra.mxu0 0.0
        %5248 = vmatprep.subr.mxu0 0.0
        %5249 = vmatpush1.msra.mxu0 0.0
        %5250 = vmatprep.subr.mxu0 0.0
        %5251 = vmatpush1.msra.mxu0 0.0
        %5252 = vmatprep.subr.mxu0 0.0
        %5253 = vmatpush1.msra.mxu0 0.0
        %5254 = vmatprep.subr.mxu0 0.0
        %5255 = vmatpush1.msra.mxu0 0.0
        %5256 = vmatprep.subr.mxu0 0.0
        %5257 = vmatpush1.msra.mxu0 0.0
        %5258 = vmatprep.subr.mxu0 0.0
        %5259 = vmatpush1.msra.mxu0 0.0
        %5260 = vmatprep.subr.mxu0 0.0
        %5261 = vmatpush1.msra.mxu0 0.0
        %5262 = vmatprep.subr.mxu0 0.0
        %5263 = vmatpush1.msra.mxu0 0.0
        %5264 = vmatprep.subr.mxu0 0.0
        %5265 = vmatpush1.msra.mxu0 0.0
        %5266 = vmatprep.subr.mxu0 0.0
        %5267 = vmatpush1.msra.mxu0 0.0
        %5268 = vmatprep.subr.mxu0 0.0
        %5269 = vmatpush1.msra.mxu0 0.0
        %5270 = vmatprep.subr.mxu0 0.0
        %5271 = vmatpush1.msra.mxu0 0.0
        %5272 = vmatprep.subr.mxu0 0.0
        %5273 = vmatpush1.msra.mxu0 0.0
        %5274 = vmatprep.subr.mxu0 0.0
        %5275 = vmatpush1.msra.mxu0 0.0
        %5276 = vmatprep.subr.mxu0 0.0
        %5277 = vmatpush1.msra.mxu0 0.0
        %5278 = vmatprep.subr.mxu0 0.0
        %5279 = vmatpush1.msra.mxu0 0.0
        %5280 = vmatprep.subr.mxu0 0.0
        %5281 = vmatpush1.msra.mxu0 0.0
        %5282 = vmatprep.subr.mxu0 0.0
        %5283 = vmatpush1.msra.mxu0 0.0
        %5284 = vmatprep.subr.mxu0 0.0
        %5285 = vmatpush1.msra.mxu0 0.0
        %5286 = vmatprep.subr.mxu0 0.0
        %5287 = vmatpush1.msra.mxu0 0.0
        %5288 = vmatprep.subr.mxu0 0.0
        %5289 = vmatpush1.msra.mxu0 0.0
        %5290 = vmatprep.subr.mxu0 0.0
        %5291 = vmatpush1.msra.mxu0 0.0
        %5292 = vmatprep.subr.mxu0 0.0
        %5293 = vmatpush1.msra.mxu0 0.0
        %5294 = vmatprep.mubr.f32.mxu0 0.0
        %5295 = vmatmul.mubr.f32.gmra.mrb[0].mxu0 %v5228
        %v5296 = vpop.f32.mrb[0].mxu0
        %v5297 = vadd.f32 0.0, %v5296
        %v5298 = vpop.f32.mrb[0].mxu0
        %5299 = vdwg.mxu0
        %v5301 = vsel %vm1649, %v5153, 0
        %5303 = vmatprep.subr.mxu0 0.0
        %5304 = vmatpush1.msra.mxu0 %v4665
        %5305 = vmatprep.subr.mxu0 0.0
        %5306 = vmatpush1.msra.mxu0 0.0
        %5307 = vmatprep.subr.mxu0 0.0
        %5308 = vmatpush1.msra.mxu0 0.0
        %5309 = vmatprep.subr.mxu0 0.0
        %5310 = vmatpush1.msra.mxu0 0.0
        %5311 = vmatprep.subr.mxu0 0.0
        %5312 = vmatpush1.msra.mxu0 0.0
        %5313 = vmatprep.subr.mxu0 0.0
        %5314 = vmatpush1.msra.mxu0 0.0
        %5315 = vmatprep.subr.mxu0 0.0
        %5316 = vmatpush1.msra.mxu0 0.0
        %5317 = vmatprep.subr.mxu0 0.0
        %5318 = vmatpush1.msra.mxu0 0.0
        %5319 = vmatprep.subr.mxu0 0.0
        %5320 = vmatpush1.msra.mxu0 0.0
        %5321 = vmatprep.subr.mxu0 0.0
        %5322 = vmatpush1.msra.mxu0 0.0
        %5323 = vmatprep.subr.mxu0 0.0
        %5324 = vmatpush1.msra.mxu0 0.0
        %5325 = vmatprep.subr.mxu0 0.0
        %5326 = vmatpush1.msra.mxu0 0.0
        %5327 = vmatprep.subr.mxu0 0.0
        %5328 = vmatpush1.msra.mxu0 0.0
        %5329 = vmatprep.subr.mxu0 0.0
        %5330 = vmatpush1.msra.mxu0 0.0
        %5331 = vmatprep.subr.mxu0 0.0
        %5332 = vmatpush1.msra.mxu0 0.0
        %5333 = vmatprep.subr.mxu0 0.0
        %5334 = vmatpush1.msra.mxu0 0.0
        %5335 = vmatprep.subr.mxu0 0.0
        %5336 = vmatpush1.msra.mxu0 0.0
        %5337 = vmatprep.subr.mxu0 0.0
        %5338 = vmatpush1.msra.mxu0 0.0
        %5339 = vmatprep.subr.mxu0 0.0
        %5340 = vmatpush1.msra.mxu0 0.0
        %5341 = vmatprep.subr.mxu0 0.0
        %5342 = vmatpush1.msra.mxu0 0.0
        %5343 = vmatprep.subr.mxu0 0.0
        %5344 = vmatpush1.msra.mxu0 0.0
        %5345 = vmatprep.subr.mxu0 0.0
        %5346 = vmatpush1.msra.mxu0 0.0
        %5347 = vmatprep.subr.mxu0 0.0
        %5348 = vmatpush1.msra.mxu0 0.0
        %5349 = vmatprep.subr.mxu0 0.0
        %5350 = vmatpush1.msra.mxu0 0.0
        %5351 = vmatprep.subr.mxu0 0.0
        %5352 = vmatpush1.msra.mxu0 0.0
        %5353 = vmatprep.subr.mxu0 0.0
        %5354 = vmatpush1.msra.mxu0 0.0
        %5355 = vmatprep.subr.mxu0 0.0
        %5356 = vmatpush1.msra.mxu0 0.0
        %5357 = vmatprep.subr.mxu0 0.0
        %5358 = vmatpush1.msra.mxu0 0.0
        %5359 = vmatprep.subr.mxu0 0.0
        %5360 = vmatpush1.msra.mxu0 0.0
        %5361 = vmatprep.subr.mxu0 0.0
        %5362 = vmatpush1.msra.mxu0 0.0
        %5363 = vmatprep.subr.mxu0 0.0
        %5364 = vmatpush1.msra.mxu0 0.0
        %5365 = vmatprep.subr.mxu0 0.0
        %5366 = vmatpush1.msra.mxu0 0.0
        %5367 = vmatprep.mubr.f32.mxu0 0.0
        %5368 = vmatmul.mubr.f32.gmra.mrb[0].mxu0 %v5301
        %v5369 = vpop.f32.mrb[0].mxu0
        %v5370 = vadd.f32 0.0, %v5369
        %v5371 = vpop.f32.mrb[0].mxu0
        %5372 = vdwg.mxu0
        %v5373 = vsel %vm5135, %v5149, 0.0
        %5374 = vadd.xlane.f32.xlu0 %v5373
        %v5375 = vpop.xlane.xlu0 %5374
        %v5376 = vsel %vm5135, %v5151, 0.0
        %5377 = vadd.xlane.f32.xlu0 %v5376
        %v5378 = vpop.xlane.xlu0 %5377
        %v5379 = vsel %vm5135, %v5153, 0.0
        %5380 = vadd.xlane.f32.xlu0 %v5379
        %v5381 = vpop.xlane.xlu0 %5380
        %v5382 = vrcp.pop %v5375
        %v5383 = vrcp.pop %v5378
        %v5384 = vrcp.pop %v5381
        %v5385 = vmul.f32 %v5224, %v5382
        %v5386 = vmul.f32 %v5297, %v5383
        %v5387 = vmul.f32 %v5370, %v5384
        %s5388 = scalar_lea.vmem %s9, 96
        %v5389 = vld [vmem:[%s5388] sm:$0xff]
        %v5390 = vld [vmem:[%s5388 + $0x8] sm:$0xff]
        %v5391 = vld [vmem:[%s5388 + $0x10] sm:$0xff]
        %v5392 = vld [vmem:[%s5388 + $0x18] sm:$0xff]
        %v5393 = vld [vmem:[%s5388 + $0x20] sm:$0xff]
        %v5394 = vld [vmem:[%s5388 + $0x28] sm:$0xff]
        %v5396 = vsel %vm1415, %v5385, 0
        %5398 = vmatprep.subr.mxu0 0.0
        %5399 = vmatpush1.msra.mxu0 %v5389
        %5400 = vmatprep.subr.mxu0 0.0
        %5401 = vmatpush1.msra.mxu0 %v5390
        %5402 = vmatprep.subr.mxu0 0.0
        %5403 = vmatpush1.msra.mxu0 0.0
        %5404 = vmatprep.subr.mxu0 0.0
        %5405 = vmatpush1.msra.mxu0 0.0
        %5406 = vmatprep.subr.mxu0 0.0
        %5407 = vmatpush1.msra.mxu0 0.0
        %5408 = vmatprep.subr.mxu0 0.0
        %5409 = vmatpush1.msra.mxu0 0.0
        %5410 = vmatprep.subr.mxu0 0.0
        %5411 = vmatpush1.msra.mxu0 0.0
        %5412 = vmatprep.subr.mxu0 0.0
        %5413 = vmatpush1.msra.mxu0 0.0
        %5414 = vmatprep.subr.mxu0 0.0
        %5415 = vmatpush1.msra.mxu0 0.0
        %5416 = vmatprep.subr.mxu0 0.0
        %5417 = vmatpush1.msra.mxu0 0.0
        %5418 = vmatprep.subr.mxu0 0.0
        %5419 = vmatpush1.msra.mxu0 0.0
        %5420 = vmatprep.subr.mxu0 0.0
        %5421 = vmatpush1.msra.mxu0 0.0
        %5422 = vmatprep.subr.mxu0 0.0
        %5423 = vmatpush1.msra.mxu0 0.0
        %5424 = vmatprep.subr.mxu0 0.0
        %5425 = vmatpush1.msra.mxu0 0.0
        %5426 = vmatprep.subr.mxu0 0.0
        %5427 = vmatpush1.msra.mxu0 0.0
        %5428 = vmatprep.subr.mxu0 0.0
        %5429 = vmatpush1.msra.mxu0 0.0
        %5430 = vmatprep.subr.mxu0 0.0
        %5431 = vmatpush1.msra.mxu0 0.0
        %5432 = vmatprep.subr.mxu0 0.0
        %5433 = vmatpush1.msra.mxu0 0.0
        %5434 = vmatprep.subr.mxu0 0.0
        %5435 = vmatpush1.msra.mxu0 0.0
        %5436 = vmatprep.subr.mxu0 0.0
        %5437 = vmatpush1.msra.mxu0 0.0
        %5438 = vmatprep.subr.mxu0 0.0
        %5439 = vmatpush1.msra.mxu0 0.0
        %5440 = vmatprep.subr.mxu0 0.0
        %5441 = vmatpush1.msra.mxu0 0.0
        %5442 = vmatprep.subr.mxu0 0.0
        %5443 = vmatpush1.msra.mxu0 0.0
        %5444 = vmatprep.subr.mxu0 0.0
        %5445 = vmatpush1.msra.mxu0 0.0
        %5446 = vmatprep.subr.mxu0 0.0
        %5447 = vmatpush1.msra.mxu0 0.0
        %5448 = vmatprep.subr.mxu0 0.0
        %5449 = vmatpush1.msra.mxu0 0.0
        %5450 = vmatprep.subr.mxu0 0.0
        %5451 = vmatpush1.msra.mxu0 0.0
        %5452 = vmatprep.subr.mxu0 0.0
        %5453 = vmatpush1.msra.mxu0 0.0
        %5454 = vmatprep.subr.mxu0 0.0
        %5455 = vmatpush1.msra.mxu0 0.0
        %5456 = vmatprep.subr.mxu0 0.0
        %5457 = vmatpush1.msra.mxu0 0.0
        %5458 = vmatprep.subr.mxu0 0.0
        %5459 = vmatpush1.msra.mxu0 0.0
        %5460 = vmatprep.subr.mxu0 0.0
        %5461 = vmatpush1.msra.mxu0 0.0
        %5462 = vmatprep.mubr.f32.mxu0 0.0
        %5463 = vmatmul.mubr.f32.gmra.mrb[0].mxu0 %v5396
        %v5464 = vpop.f32.mrb[0].mxu0
        %v5465 = vadd.f32 0.0, %v5464
        %v5466 = vpop.f32.mrb[0].mxu0
        %5467 = vdwg.mxu0
        %v5469 = vsel %vm1415, %v5386, 0
        %5471 = vmatprep.subr.mxu0 0.0
        %5472 = vmatpush1.msra.mxu0 %v5391
        %5473 = vmatprep.subr.mxu0 0.0
        %5474 = vmatpush1.msra.mxu0 %v5392
        %5475 = vmatprep.subr.mxu0 0.0
        %5476 = vmatpush1.msra.mxu0 0.0
        %5477 = vmatprep.subr.mxu0 0.0
        %5478 = vmatpush1.msra.mxu0 0.0
        %5479 = vmatprep.subr.mxu0 0.0
        %5480 = vmatpush1.msra.mxu0 0.0
        %5481 = vmatprep.subr.mxu0 0.0
        %5482 = vmatpush1.msra.mxu0 0.0
        %5483 = vmatprep.subr.mxu0 0.0
        %5484 = vmatpush1.msra.mxu0 0.0
        %5485 = vmatprep.subr.mxu0 0.0
        %5486 = vmatpush1.msra.mxu0 0.0
        %5487 = vmatprep.subr.mxu0 0.0
        %5488 = vmatpush1.msra.mxu0 0.0
        %5489 = vmatprep.subr.mxu0 0.0
        %5490 = vmatpush1.msra.mxu0 0.0
        %5491 = vmatprep.subr.mxu0 0.0
        %5492 = vmatpush1.msra.mxu0 0.0
        %5493 = vmatprep.subr.mxu0 0.0
        %5494 = vmatpush1.msra.mxu0 0.0
        %5495 = vmatprep.subr.mxu0 0.0
        %5496 = vmatpush1.msra.mxu0 0.0
        %5497 = vmatprep.subr.mxu0 0.0
        %5498 = vmatpush1.msra.mxu0 0.0
        %5499 = vmatprep.subr.mxu0 0.0
        %5500 = vmatpush1.msra.mxu0 0.0
        %5501 = vmatprep.subr.mxu0 0.0
        %5502 = vmatpush1.msra.mxu0 0.0
        %5503 = vmatprep.subr.mxu0 0.0
        %5504 = vmatpush1.msra.mxu0 0.0
        %5505 = vmatprep.subr.mxu0 0.0
        %5506 = vmatpush1.msra.mxu0 0.0
        %5507 = vmatprep.subr.mxu0 0.0
        %5508 = vmatpush1.msra.mxu0 0.0
        %5509 = vmatprep.subr.mxu0 0.0
        %5510 = vmatpush1.msra.mxu0 0.0
        %5511 = vmatprep.subr.mxu0 0.0
        %5512 = vmatpush1.msra.mxu0 0.0
        %5513 = vmatprep.subr.mxu0 0.0
        %5514 = vmatpush1.msra.mxu0 0.0
        %5515 = vmatprep.subr.mxu0 0.0
        %5516 = vmatpush1.msra.mxu0 0.0
        %5517 = vmatprep.subr.mxu0 0.0
        %5518 = vmatpush1.msra.mxu0 0.0
        %5519 = vmatprep.subr.mxu0 0.0
        %5520 = vmatpush1.msra.mxu0 0.0
        %5521 = vmatprep.subr.mxu0 0.0
        %5522 = vmatpush1.msra.mxu0 0.0
        %5523 = vmatprep.subr.mxu0 0.0
        %5524 = vmatpush1.msra.mxu0 0.0
        %5525 = vmatprep.subr.mxu0 0.0
        %5526 = vmatpush1.msra.mxu0 0.0
        %5527 = vmatprep.subr.mxu0 0.0
        %5528 = vmatpush1.msra.mxu0 0.0
        %5529 = vmatprep.subr.mxu0 0.0
        %5530 = vmatpush1.msra.mxu0 0.0
        %5531 = vmatprep.subr.mxu0 0.0
        %5532 = vmatpush1.msra.mxu0 0.0
        %5533 = vmatprep.subr.mxu0 0.0
        %5534 = vmatpush1.msra.mxu0 0.0
        %5535 = vmatprep.mubr.f32.mxu0 0.0
        %5536 = vmatmul.mubr.f32.gmra.mrb[0].mxu0 %v5469
        %v5537 = vpop.f32.mrb[0].mxu0
        %v5538 = vadd.f32 0.0, %v5537
        %v5539 = vpop.f32.mrb[0].mxu0
        %5540 = vdwg.mxu0
        %v5542 = vsel %vm1415, %v5387, 0
        %5544 = vmatprep.subr.mxu0 0.0
        %5545 = vmatpush1.msra.mxu0 %v5393
        %5546 = vmatprep.subr.mxu0 0.0
        %5547 = vmatpush1.msra.mxu0 %v5394
        %5548 = vmatprep.subr.mxu0 0.0
        %5549 = vmatpush1.msra.mxu0 0.0
        %5550 = vmatprep.subr.mxu0 0.0
        %5551 = vmatpush1.msra.mxu0 0.0
        %5552 = vmatprep.subr.mxu0 0.0
        %5553 = vmatpush1.msra.mxu0 0.0
        %5554 = vmatprep.subr.mxu0 0.0
        %5555 = vmatpush1.msra.mxu0 0.0
        %5556 = vmatprep.subr.mxu0 0.0
        %5557 = vmatpush1.msra.mxu0 0.0
        %5558 = vmatprep.subr.mxu0 0.0
        %5559 = vmatpush1.msra.mxu0 0.0
        %5560 = vmatprep.subr.mxu0 0.0
        %5561 = vmatpush1.msra.mxu0 0.0
        %5562 = vmatprep.subr.mxu0 0.0
        %5563 = vmatpush1.msra.mxu0 0.0
        %5564 = vmatprep.subr.mxu0 0.0
        %5565 = vmatpush1.msra.mxu0 0.0
        %5566 = vmatprep.subr.mxu0 0.0
        %5567 = vmatpush1.msra.mxu0 0.0
        %5568 = vmatprep.subr.mxu0 0.0
        %5569 = vmatpush1.msra.mxu0 0.0
        %5570 = vmatprep.subr.mxu0 0.0
        %5571 = vmatpush1.msra.mxu0 0.0
        %5572 = vmatprep.subr.mxu0 0.0
        %5573 = vmatpush1.msra.mxu0 0.0
        %5574 = vmatprep.subr.mxu0 0.0
        %5575 = vmatpush1.msra.mxu0 0.0
        %5576 = vmatprep.subr.mxu0 0.0
        %5577 = vmatpush1.msra.mxu0 0.0
        %5578 = vmatprep.subr.mxu0 0.0
        %5579 = vmatpush1.msra.mxu0 0.0
        %5580 = vmatprep.subr.mxu0 0.0
        %5581 = vmatpush1.msra.mxu0 0.0
        %5582 = vmatprep.subr.mxu0 0.0
        %5583 = vmatpush1.msra.mxu0 0.0
        %5584 = vmatprep.subr.mxu0 0.0
        %5585 = vmatpush1.msra.mxu0 0.0
        %5586 = vmatprep.subr.mxu0 0.0
        %5587 = vmatpush1.msra.mxu0 0.0
        %5588 = vmatprep.subr.mxu0 0.0
        %5589 = vmatpush1.msra.mxu0 0.0
        %5590 = vmatprep.subr.mxu0 0.0
        %5591 = vmatpush1.msra.mxu0 0.0
        %5592 = vmatprep.subr.mxu0 0.0
        %5593 = vmatpush1.msra.mxu0 0.0
        %5594 = vmatprep.subr.mxu0 0.0
        %5595 = vmatpush1.msra.mxu0 0.0
        %5596 = vmatprep.subr.mxu0 0.0
        %5597 = vmatpush1.msra.mxu0 0.0
        %5598 = vmatprep.subr.mxu0 0.0
        %5599 = vmatpush1.msra.mxu0 0.0
        %5600 = vmatprep.subr.mxu0 0.0
        %5601 = vmatpush1.msra.mxu0 0.0
        %5602 = vmatprep.subr.mxu0 0.0
        %5603 = vmatpush1.msra.mxu0 0.0
        %5604 = vmatprep.subr.mxu0 0.0
        %5605 = vmatpush1.msra.mxu0 0.0
        %5606 = vmatprep.subr.mxu0 0.0
        %5607 = vmatpush1.msra.mxu0 0.0
        %5608 = vmatprep.mubr.f32.mxu0 0.0
        %5609 = vmatmul.mubr.f32.gmra.mrb[0].mxu0 %v5542
        %v5610 = vpop.f32.mrb[0].mxu0
        %v5611 = vadd.f32 0.0, %v5610
        %v5612 = vpop.f32.mrb[0].mxu0
        %5613 = vdwg.mxu0
        %vm5614 = vcmask 385024
        %v5615 = vsel %vm5614, %v5465, 0.0
        %v5616 = vsel %vm5614, %v5538, 0.0
        %v5617 = vadd.f32 %v5615, %v5616
        %v5618 = vsel %vm5614, %v5611, 0.0
        %v5619 = vadd.f32 %v5617, %v5618
        %s5620 = scalar_lea.vmem %s10, 2
        %v5621 = vld [vmem:[%s5620] sm:$0x1]
        %v5622 = vadd.f32 %v5619, %v5621
        %v5624 = vrot.slane %v5622, 1
        %v5626 = vadd.f32 %v4131, %v5624
        %s5627 = scalar_lea.vmem %s11, 2
        %v5628 = vld [vmem:[%s5627] sm:$0x1]
        %s5629 = scalar_lea.vmem %s12, 2
        %v5630 = vld [vmem:[%s5629] sm:$0x1]
        %vm5631 = vcmask 392199
        %v5632 = vsel %vm5631, %v5626, 0.0
        %5633 = vadd.xlane.f32.xlu0 %v5632
        %v5634 = vpop.xlane.xlu0 %5633
        %v5635 = vmul.f32 %v5634, %v637
        %v5636 = vsub.f32 %v5626, %v5635
        %v5637 = vmul.f32 %v5636, %v5636
        %v5638 = vsel %vm5631, %v5637, 0.0
        %5639 = vadd.xlane.f32.xlu0 %v5638
        %v5640 = vpop.xlane.xlu0 %5639
        %v5641 = vmul.f32 %v5640, %v637
        %v5642 = vadd.f32 %v5641, 1e-05
        %v5643 = vrsqrt.pop %v5642
        %v5644 = vmul.f32 %v5636, %v5643
        %v5646 = vlaneseq
        %v5647 = vshrl.u32 %v5646, 7
        %v5648 = vsub.s32 0, %v5647
        %v5649 = vrot.slane %v5628, %v5648
        %v5651 = vmul.f32 %v5644, %v5649
        %v5653 = vlaneseq
        %v5654 = vshrl.u32 %v5653, 7
        %v5655 = vsub.s32 0, %v5654
        %v5656 = vrot.slane %v5630, %v5655
        %v5658 = vadd.f32 %v5651, %v5656
        %s5659 = scalar_lea.vmem %s13, 192
        %v5660 = vld [vmem:[%s5659] sm:$0xff]
        %v5661 = vld [vmem:[%s5659 + $0x8] sm:$0xff]
        %v5662 = vld [vmem:[%s5659 + $0x10] sm:$0xff]
        %v5663 = vld [vmem:[%s5659 + $0x18] sm:$0xff]
        %v5664 = vld [vmem:[%s5659 + $0x20] sm:$0xff]
        %v5665 = vld [vmem:[%s5659 + $0x28] sm:$0xff]
        %v5666 = vld [vmem:[%s5659 + $0x30] sm:$0xff]
        %v5667 = vld [vmem:[%s5659 + $0x38] sm:$0xff]
        %v5668 = vld [vmem:[%s5659 + $0x40] sm:$0xff]
        %v5669 = vld [vmem:[%s5659 + $0x48] sm:$0xff]
        %v5670 = vld [vmem:[%s5659 + $0x50] sm:$0xff]
        %v5671 = vld [vmem:[%s5659 + $0x58] sm:$0xff]
        %s5672 = scalar_lea.vmem %s14, 4
        %v5673 = vld [vmem:[%s5672] sm:$0x3]
        %v5675 = vrot.slane %v5658, 7
        %v5677 = vlaneseq
        %v5678 = vshrl.u32 %v5677, 7
        %v5679 = vsub.s32 0, %v5678
        %v5680 = vrot.slane %v5673, %v5679
        %v5681 = vlaneseq
        %v5682 = vshrl.u32 %v5681, 7
        %v5683 = vsub.s32 1, %v5682
        %v5684 = vrot.slane %v5673, %v5683
        %v5687 = vsel %vm633, %v5675, 0
        %5689 = vmatprep.subr.mxu0 %v5661
        %5690 = vmatpush1.msra.mxu0 %v5660
        %5691 = vmatprep.subr.mxu0 %v5663
        %5692 = vmatpush1.msra.mxu0 %v5662
        %5693 = vmatprep.subr.mxu0 %v5665
        %5694 = vmatpush1.msra.mxu0 %v5664
        %5695 = vmatprep.subr.mxu0 %v5667
        %5696 = vmatpush1.msra.mxu0 %v5666
        %5697 = vmatprep.subr.mxu0 %v5669
        %5698 = vmatpush1.msra.mxu0 %v5668
        %5699 = vmatprep.subr.mxu0 %v5671
        %5700 = vmatpush1.msra.mxu0 %v5670
        %5701 = vmatprep.subr.mxu0 0.0
        %5702 = vmatpush1.msra.mxu0 0.0
        %5703 = vmatprep.subr.mxu0 0.0
        %5704 = vmatpush1.msra.mxu0 0.0
        %5705 = vmatprep.subr.mxu0 0.0
        %5706 = vmatpush1.msra.mxu0 0.0
        %5707 = vmatprep.subr.mxu0 0.0
        %5708 = vmatpush1.msra.mxu0 0.0
        %5709 = vmatprep.subr.mxu0 0.0
        %5710 = vmatpush1.msra.mxu0 0.0
        %5711 = vmatprep.subr.mxu0 0.0
        %5712 = vmatpush1.msra.mxu0 0.0
        %5713 = vmatprep.subr.mxu0 0.0
        %5714 = vmatpush1.msra.mxu0 0.0
        %5715 = vmatprep.subr.mxu0 0.0
        %5716 = vmatpush1.msra.mxu0 0.0
        %5717 = vmatprep.subr.mxu0 0.0
        %5718 = vmatpush1.msra.mxu0 0.0
        %5719 = vmatprep.subr.mxu0 0.0
        %5720 = vmatpush1.msra.mxu0 0.0
        %5721 = vmatprep.subr.mxu0 0.0
        %5722 = vmatpush1.msra.mxu0 0.0
        %5723 = vmatprep.subr.mxu0 0.0
        %5724 = vmatpush1.msra.mxu0 0.0
        %5725 = vmatprep.subr.mxu0 0.0
        %5726 = vmatpush1.msra.mxu0 0.0
        %5727 = vmatprep.subr.mxu0 0.0
        %5728 = vmatpush1.msra.mxu0 0.0
        %5729 = vmatprep.subr.mxu0 0.0
        %5730 = vmatpush1.msra.mxu0 0.0
        %5731 = vmatprep.subr.mxu0 0.0
        %5732 = vmatpush1.msra.mxu0 0.0
        %5733 = vmatprep.subr.mxu0 0.0
        %5734 = vmatpush1.msra.mxu0 0.0
        %5735 = vmatprep.subr.mxu0 0.0
        %5736 = vmatpush1.msra.mxu0 0.0
        %5737 = vmatprep.subr.mxu0 0.0
        %5738 = vmatpush1.msra.mxu0 0.0
        %5739 = vmatprep.subr.mxu0 0.0
        %5740 = vmatpush1.msra.mxu0 0.0
        %5741 = vmatprep.subr.mxu0 0.0
        %5742 = vmatpush1.msra.mxu0 0.0
        %5743 = vmatprep.subr.mxu0 0.0
        %5744 = vmatpush1.msra.mxu0 0.0
        %5745 = vmatprep.subr.mxu0 0.0
        %5746 = vmatpush1.msra.mxu0 0.0
        %5747 = vmatprep.subr.mxu0 0.0
        %5748 = vmatpush1.msra.mxu0 0.0
        %5749 = vmatprep.subr.mxu0 0.0
        %5750 = vmatpush1.msra.mxu0 0.0
        %5751 = vmatprep.subr.mxu0 0.0
        %5752 = vmatpush1.msra.mxu0 0.0
        %5753 = vmatprep.mubr.f32.mxu0 0.0
        %5754 = vmatmul.mubr.f32.gmra.mrb[0].mxu0 %v5687
        %v5755 = vpop.f32.mrb[0].mxu0
        %v5756 = vadd.f32 %v5680, %v5755
        %v5757 = vpop.f32.mrb[0].mxu0
        %v5758 = vadd.f32 %v5684, %v5757
        %5759 = vdwg.mxu0
        %v5760 = vtanh.pop %v5756
        %v5761 = vtanh.pop %v5758
        %s5762 = scalar_lea.vmem %s15, 384
        %v5763 = vld [vmem:[%s5762] sm:$0xff]
        %v5764 = vld [vmem:[%s5762 + $0x8] sm:$0xff]
        %v5765 = vld [vmem:[%s5762 + $0x10] sm:$0xff]
        %v5766 = vld [vmem:[%s5762 + $0x18] sm:$0xff]
        %v5767 = vld [vmem:[%s5762 + $0x20] sm:$0xff]
        %v5768 = vld [vmem:[%s5762 + $0x28] sm:$0xff]
        %v5769 = vld [vmem:[%s5762 + $0x30] sm:$0xff]
        %v5770 = vld [vmem:[%s5762 + $0x38] sm:$0xff]
        %v5771 = vld [vmem:[%s5762 + $0x40] sm:$0xff]
        %v5772 = vld [vmem:[%s5762 + $0x48] sm:$0xff]
        %v5773 = vld [vmem:[%s5762 + $0x50] sm:$0xff]
        %v5774 = vld [vmem:[%s5762 + $0x58] sm:$0xff]
        %v5775 = vld [vmem:[%s5762 + $0x60] sm:$0xff]
        %v5776 = vld [vmem:[%s5762 + $0x68] sm:$0xff]
        %v5777 = vld [vmem:[%s5762 + $0x70] sm:$0xff]
        %v5778 = vld [vmem:[%s5762 + $0x78] sm:$0xff]
        %v5779 = vld [vmem:[%s5762 + $0x80] sm:$0xff]
        %v5780 = vld [vmem:[%s5762 + $0x88] sm:$0xff]
        %v5781 = vld [vmem:[%s5762 + $0x90] sm:$0xff]
        %v5782 = vld [vmem:[%s5762 + $0x98] sm:$0xff]
        %v5783 = vld [vmem:[%s5762 + $0xa0] sm:$0xff]
        %v5784 = vld [vmem:[%s5762 + $0xa8] sm:$0xff]
        %v5785 = vld [vmem:[%s5762 + $0xb0] sm:$0xff]
        %v5786 = vld [vmem:[%s5762 + $0xb8] sm:$0xff]
        %v5788 = vsel %vm2294, %v5761, 0
        %5790 = vmatprep.subr.mxu0 0.0
        %5791 = vmatpush1.msra.mxu0 %v5763
        %5792 = vmatprep.subr.mxu0 0.0
        %5793 = vmatpush1.msra.mxu0 %v5764
        %5794 = vmatprep.subr.mxu0 0.0
        %5795 = vmatpush1.msra.mxu0 %v5765
        %5796 = vmatprep.subr.mxu0 0.0
        %5797 = vmatpush1.msra.mxu0 %v5766
        %5798 = vmatprep.subr.mxu0 0.0
        %5799 = vmatpush1.msra.mxu0 %v5767
        %5800 = vmatprep.subr.mxu0 0.0
        %5801 = vmatpush1.msra.mxu0 %v5768
        %5802 = vmatprep.subr.mxu0 0.0
        %5803 = vmatpush1.msra.mxu0 %v5769
        %5804 = vmatprep.subr.mxu0 0.0
        %5805 = vmatpush1.msra.mxu0 %v5770
        %5806 = vmatprep.subr.mxu0 0.0
        %5807 = vmatpush1.msra.mxu0 %v5771
        %5808 = vmatprep.subr.mxu0 0.0
        %5809 = vmatpush1.msra.mxu0 %v5772
        %5810 = vmatprep.subr.mxu0 0.0
        %5811 = vmatpush1.msra.mxu0 %v5773
        %5812 = vmatprep.subr.mxu0 0.0
        %5813 = vmatpush1.msra.mxu0 %v5774
        %5814 = vmatprep.subr.mxu0 0.0
        %5815 = vmatpush1.msra.mxu0 %v5775
        %5816 = vmatprep.subr.mxu0 0.0
        %5817 = vmatpush1.msra.mxu0 %v5776
        %5818 = vmatprep.subr.mxu0 0.0
        %5819 = vmatpush1.msra.mxu0 %v5777
        %5820 = vmatprep.subr.mxu0 0.0
        %5821 = vmatpush1.msra.mxu0 %v5778
        %5822 = vmatprep.subr.mxu0 0.0
        %5823 = vmatpush1.msra.mxu0 %v5779
        %5824 = vmatprep.subr.mxu0 0.0
        %5825 = vmatpush1.msra.mxu0 %v5780
        %5826 = vmatprep.subr.mxu0 0.0
        %5827 = vmatpush1.msra.mxu0 %v5781
        %5828 = vmatprep.subr.mxu0 0.0
        %5829 = vmatpush1.msra.mxu0 %v5782
        %5830 = vmatprep.subr.mxu0 0.0
        %5831 = vmatpush1.msra.mxu0 %v5783
        %5832 = vmatprep.subr.mxu0 0.0
        %5833 = vmatpush1.msra.mxu0 %v5784
        %5834 = vmatprep.subr.mxu0 0.0
        %5835 = vmatpush1.msra.mxu0 %v5785
        %5836 = vmatprep.subr.mxu0 0.0
        %5837 = vmatpush1.msra.mxu0 %v5786
        %5838 = vmatprep.subr.mxu0 0.0
        %5839 = vmatpush1.msra.mxu0 0.0
        %5840 = vmatprep.subr.mxu0 0.0
        %5841 = vmatpush1.msra.mxu0 0.0
        %5842 = vmatprep.subr.mxu0 0.0
        %5843 = vmatpush1.msra.mxu0 0.0
        %5844 = vmatprep.subr.mxu0 0.0
        %5845 = vmatpush1.msra.mxu0 0.0
        %5846 = vmatprep.subr.mxu0 0.0
        %5847 = vmatpush1.msra.mxu0 0.0
        %5848 = vmatprep.subr.mxu0 0.0
        %5849 = vmatpush1.msra.mxu0 0.0
        %5850 = vmatprep.subr.mxu0 0.0
        %5851 = vmatpush1.msra.mxu0 0.0
        %5852 = vmatprep.subr.mxu0 0.0
        %5853 = vmatpush1.msra.mxu0 0.0
        %5854 = vmatprep.mubr.f32.mxu0 %v5788
        %5855 = vmatmul.mubr.f32.gmra.mrb[0].mxu0 %v5760
        %v5856 = vpop.f32.mrb[0].mxu0
        %v5857 = vadd.f32 0.0, %v5856
        %v5858 = vpop.f32.mrb[0].mxu0
        %5859 = vdwg.mxu0
        %v5861 = vrot.slane %v5857, 1
        %v5863 = vadd.f32 %v5626, %v5861
        %s5864 = scalar_lea.vmem %s16, 2
        %v5865 = vld [vmem:[%s5864] sm:$0x1]
        %v5867 = vlaneseq
        %v5868 = vshrl.u32 %v5867, 7
        %v5869 = vsub.s32 0, %v5868
        %v5870 = vrot.slane %v5865, %v5869
        %v5872 = vadd.f32 %v5863, %v5870
        %v5873 = vld [vmem:[%s17] sm:$0x1]
        %v5874 = vld [vmem:[%s18] sm:$0x1]
        %v5875 = vsel %vm5631, %v5872, 0.0
        %5876 = vadd.xlane.f32.xlu0 %v5875
        %v5877 = vpop.xlane.xlu0 %5876
        %v5878 = vmul.f32 %v5877, %v637
        %v5879 = vsub.f32 %v5872, %v5878
        %v5880 = vmul.f32 %v5879, %v5879
        %v5881 = vsel %vm5631, %v5880, 0.0
        %5882 = vadd.xlane.f32.xlu0 %v5881
        %v5883 = vpop.xlane.xlu0 %5882
        %v5884 = vmul.f32 %v5883, %v637
        %v5885 = vadd.f32 %v5884, 1e-05
        %v5886 = vrsqrt.pop %v5885
        %v5887 = vmul.f32 %v5879, %v5886
        %v5889 = vlaneseq
        %v5890 = vshrl.u32 %v5889, 7
        %v5891 = vsub.s32 0, %v5890
        %v5892 = vrot.slane %v5873, %v5891
        %v5894 = vmul.f32 %v5887, %v5892
        %v5896 = vlaneseq
        %v5897 = vshrl.u32 %v5896, 7
        %v5898 = vsub.s32 0, %v5897
        %v5899 = vrot.slane %v5874, %v5898
        %v5901 = vadd.f32 %v5894, %v5899
        %v5902 = vld [vmem:[%s19] sm:$0xff]
        %v5903 = vld [vmem:[%s19 + $0x8] sm:$0xff]
        %v5904 = vld [vmem:[%s19 + $0x10] sm:$0xff]
        %v5905 = vld [vmem:[%s19 + $0x18] sm:$0xff]
        %v5906 = vld [vmem:[%s19 + $0x20] sm:$0xff]
        %v5907 = vld [vmem:[%s19 + $0x28] sm:$0xff]
        %v5908 = vld [vmem:[%s19 + $0x30] sm:$0xff]
        %v5909 = vld [vmem:[%s19 + $0x38] sm:$0xff]
        %v5910 = vld [vmem:[%s19 + $0x40] sm:$0xff]
        %v5911 = vld [vmem:[%s19 + $0x48] sm:$0xff]
        %v5912 = vld [vmem:[%s19 + $0x50] sm:$0xff]
        %v5913 = vld [vmem:[%s19 + $0x58] sm:$0xff]
        %v5914 = vld [vmem:[%s19 + $0x60] sm:$0xff]
        %v5915 = vld [vmem:[%s19 + $0x68] sm:$0xff]
        %v5916 = vld [vmem:[%s19 + $0x70] sm:$0xff]
        %v5917 = vld [vmem:[%s19 + $0x78] sm:$0xff]
        %v5918 = vld [vmem:[%s19 + $0x80] sm:$0xff]
        %v5919 = vld [vmem:[%s19 + $0x88] sm:$0xff]
        %v5920 = vld [vmem:[%s19 + $0x90] sm:$0xff]
        %v5921 = vld [vmem:[%s19 + $0x98] sm:$0xff]
        %v5922 = vld [vmem:[%s19 + $0xa0] sm:$0xff]
        %v5923 = vld [vmem:[%s19 + $0xa8] sm:$0xff]
        %v5924 = vld [vmem:[%s19 + $0xb0] sm:$0xff]
        %v5925 = vld [vmem:[%s19 + $0xb8] sm:$0xff]
        %v5926 = vld [vmem:[%s19 + $0xc0] sm:$0xff]
        %v5927 = vld [vmem:[%s19 + $0xc8] sm:$0xff]
        %v5928 = vld [vmem:[%s19 + $0xd0] sm:$0xff]
        %v5929 = vld [vmem:[%s19 + $0xd8] sm:$0xff]
        %v5930 = vld [vmem:[%s19 + $0xe0] sm:$0xff]
        %v5931 = vld [vmem:[%s19 + $0xe8] sm:$0xff]
        %v5932 = vld [vmem:[%s19 + $0xf0] sm:$0xff]
        %v5933 = vld [vmem:[%s19 + $0xf8] sm:$0xff]
        %v5934 = vld [vmem:[%s19 + $0x100] sm:$0xff]
        %v5935 = vld [vmem:[%s19 + $0x108] sm:$0xff]
        %v5936 = vld [vmem:[%s19 + $0x110] sm:$0xff]
        %v5937 = vld [vmem:[%s19 + $0x118] sm:$0xff]
        %v5938 = vld [vmem:[%s19 + $0x120] sm:$0xff]
        %v5939 = vld [vmem:[%s19 + $0x128] sm:$0xff]
        %v5940 = vld [vmem:[%s19 + $0x130] sm:$0xff]
        %v5941 = vld [vmem:[%s19 + $0x138] sm:$0xff]
        %v5942 = vld [vmem:[%s19 + $0x140] sm:$0xff]
        %v5943 = vld [vmem:[%s19 + $0x148] sm:$0xff]
        %v5944 = vld [vmem:[%s19 + $0x150] sm:$0xff]
        %v5945 = vld [vmem:[%s19 + $0x158] sm:$0xff]
        %v5946 = vld [vmem:[%s19 + $0x160] sm:$0xff]
        %v5947 = vld [vmem:[%s19 + $0x168] sm:$0xff]
        %v5948 = vld [vmem:[%s19 + $0x170] sm:$0xff]
        %v5949 = vld [vmem:[%s19 + $0x178] sm:$0xff]
        %v5951 = vrot.slane %v5901, 7
        %v5952 = vsel %vm633, %v5951, 0
        %5954 = vmatprep.subr.mxu0 %v5903
        %5955 = vmatpush1.msra.mxu0 %v5902
        %5956 = vmatprep.subr.mxu0 %v5911
        %5957 = vmatpush1.msra.mxu0 %v5910
        %5958 = vmatprep.subr.mxu0 %v5919
        %5959 = vmatpush1.msra.mxu0 %v5918
        %5960 = vmatprep.subr.mxu0 %v5927
        %5961 = vmatpush1.msra.mxu0 %v5926
        %5962 = vmatprep.subr.mxu0 %v5935
        %5963 = vmatpush1.msra.mxu0 %v5934
        %5964 = vmatprep.subr.mxu0 %v5943
        %5965 = vmatpush1.msra.mxu0 %v5942
        %5966 = vmatprep.subr.mxu0 0.0
        %5967 = vmatpush1.msra.mxu0 0.0
        %5968 = vmatprep.subr.mxu0 0.0
        %5969 = vmatpush1.msra.mxu0 0.0
        %5970 = vmatprep.subr.mxu0 0.0
        %5971 = vmatpush1.msra.mxu0 0.0
        %5972 = vmatprep.subr.mxu0 0.0
        %5973 = vmatpush1.msra.mxu0 0.0
        %5974 = vmatprep.subr.mxu0 0.0
        %5975 = vmatpush1.msra.mxu0 0.0
        %5976 = vmatprep.subr.mxu0 0.0
        %5977 = vmatpush1.msra.mxu0 0.0
        %5978 = vmatprep.subr.mxu0 0.0
        %5979 = vmatpush1.msra.mxu0 0.0
        %5980 = vmatprep.subr.mxu0 0.0
        %5981 = vmatpush1.msra.mxu0 0.0
        %5982 = vmatprep.subr.mxu0 0.0
        %5983 = vmatpush1.msra.mxu0 0.0
        %5984 = vmatprep.subr.mxu0 0.0
        %5985 = vmatpush1.msra.mxu0 0.0
        %5986 = vmatprep.subr.mxu0 0.0
        %5987 = vmatpush1.msra.mxu0 0.0
        %5988 = vmatprep.subr.mxu0 0.0
        %5989 = vmatpush1.msra.mxu0 0.0
        %5990 = vmatprep.subr.mxu0 0.0
        %5991 = vmatpush1.msra.mxu0 0.0
        %5992 = vmatprep.subr.mxu0 0.0
        %5993 = vmatpush1.msra.mxu0 0.0
        %5994 = vmatprep.subr.mxu0 0.0
        %5995 = vmatpush1.msra.mxu0 0.0
        %5996 = vmatprep.subr.mxu0 0.0
        %5997 = vmatpush1.msra.mxu0 0.0
        %5998 = vmatprep.subr.mxu0 0.0
        %5999 = vmatpush1.msra.mxu0 0.0
        %6000 = vmatprep.subr.mxu0 0.0
        %6001 = vmatpush1.msra.mxu0 0.0
        %6002 = vmatprep.subr.mxu0 0.0
        %6003 = vmatpush1.msra.mxu0 0.0
        %6004 = vmatprep.subr.mxu0 0.0
        %6005 = vmatpush1.msra.mxu0 0.0
        %6006 = vmatprep.subr.mxu0 0.0
        %6007 = vmatpush1.msra.mxu0 0.0
        %6008 = vmatprep.subr.mxu0 0.0
        %6009 = vmatpush1.msra.mxu0 0.0
        %6010 = vmatprep.subr.mxu0 0.0
        %6011 = vmatpush1.msra.mxu0 0.0
        %6012 = vmatprep.subr.mxu0 0.0
        %6013 = vmatpush1.msra.mxu0 0.0
        %6014 = vmatprep.subr.mxu0 0.0
        %6015 = vmatpush1.msra.mxu0 0.0
        %6016 = vmatprep.subr.mxu0 0.0
        %6017 = vmatpush1.msra.mxu0 0.0
        %6018 = vmatprep.mubr.f32.mxu0 0.0
        %6019 = vmatmul.mubr.f32.gmra.mrb[0].mxu0 %v5952
        %v6020 = vpop.f32.mrb[0].mxu0
        %v6021 = vadd.f32 0.0, %v6020
        %v6022 = vpop.f32.mrb[0].mxu0
        %v6023 = vadd.f32 0.0, %v6022
        %6024 = vdwg.mxu0
        %6025 = vmatprep.subr.mxu0 %v5905
        %6026 = vmatpush1.msra.mxu0 %v5904
        %6027 = vmatprep.subr.mxu0 %v5913
        %6028 = vmatpush1.msra.mxu0 %v5912
        %6029 = vmatprep.subr.mxu0 %v5921
        %6030 = vmatpush1.msra.mxu0 %v5920
        %6031 = vmatprep.subr.mxu0 %v5929
        %6032 = vmatpush1.msra.mxu0 %v5928
        %6033 = vmatprep.subr.mxu0 %v5937
        %6034 = vmatpush1.msra.mxu0 %v5936
        %6035 = vmatprep.subr.mxu0 %v5945
        %6036 = vmatpush1.msra.mxu0 %v5944
        %6037 = vmatprep.subr.mxu0 0.0
        %6038 = vmatpush1.msra.mxu0 0.0
        %6039 = vmatprep.subr.mxu0 0.0
        %6040 = vmatpush1.msra.mxu0 0.0
        %6041 = vmatprep.subr.mxu0 0.0
        %6042 = vmatpush1.msra.mxu0 0.0
        %6043 = vmatprep.subr.mxu0 0.0
        %6044 = vmatpush1.msra.mxu0 0.0
        %6045 = vmatprep.subr.mxu0 0.0
        %6046 = vmatpush1.msra.mxu0 0.0
        %6047 = vmatprep.subr.mxu0 0.0
        %6048 = vmatpush1.msra.mxu0 0.0
        %6049 = vmatprep.subr.mxu0 0.0
        %6050 = vmatpush1.msra.mxu0 0.0
        %6051 = vmatprep.subr.mxu0 0.0
        %6052 = vmatpush1.msra.mxu0 0.0
        %6053 = vmatprep.subr.mxu0 0.0
        %6054 = vmatpush1.msra.mxu0 0.0
        %6055 = vmatprep.subr.mxu0 0.0
        %6056 = vmatpush1.msra.mxu0 0.0
        %6057 = vmatprep.subr.mxu0 0.0
        %6058 = vmatpush1.msra.mxu0 0.0
        %6059 = vmatprep.subr.mxu0 0.0
        %6060 = vmatpush1.msra.mxu0 0.0
        %6061 = vmatprep.subr.mxu0 0.0
        %6062 = vmatpush1.msra.mxu0 0.0
        %6063 = vmatprep.subr.mxu0 0.0
        %6064 = vmatpush1.msra.mxu0 0.0
        %6065 = vmatprep.subr.mxu0 0.0
        %6066 = vmatpush1.msra.mxu0 0.0
        %6067 = vmatprep.subr.mxu0 0.0
        %6068 = vmatpush1.msra.mxu0 0.0
        %6069 = vmatprep.subr.mxu0 0.0
        %6070 = vmatpush1.msra.mxu0 0.0
        %6071 = vmatprep.subr.mxu0 0.0
        %6072 = vmatpush1.msra.mxu0 0.0
        %6073 = vmatprep.subr.mxu0 0.0
        %6074 = vmatpush1.msra.mxu0 0.0
        %6075 = vmatprep.subr.mxu0 0.0
        %6076 = vmatpush1.msra.mxu0 0.0
        %6077 = vmatprep.subr.mxu0 0.0
        %6078 = vmatpush1.msra.mxu0 0.0
        %6079 = vmatprep.subr.mxu0 0.0
        %6080 = vmatpush1.msra.mxu0 0.0
        %6081 = vmatprep.subr.mxu0 0.0
        %6082 = vmatpush1.msra.mxu0 0.0
        %6083 = vmatprep.subr.mxu0 0.0
        %6084 = vmatpush1.msra.mxu0 0.0
        %6085 = vmatprep.subr.mxu0 0.0
        %6086 = vmatpush1.msra.mxu0 0.0
        %6087 = vmatprep.subr.mxu0 0.0
        %6088 = vmatpush1.msra.mxu0 0.0
        %6089 = vmatprep.mubr.f32.mxu0 0.0
        %6090 = vmatmul.mubr.f32.gmra.mrb[0].mxu0 %v5952
        %v6091 = vpop.f32.mrb[0].mxu0
        %v6092 = vadd.f32 0.0, %v6091
        %v6093 = vpop.f32.mrb[0].mxu0
        %v6094 = vadd.f32 0.0, %v6093
        %6095 = vdwg.mxu0
        %6096 = vmatprep.subr.mxu0 %v5907
        %6097 = vmatpush1.msra.mxu0 %v5906
        %6098 = vmatprep.subr.mxu0 %v5915
        %6099 = vmatpush1.msra.mxu0 %v5914
        %6100 = vmatprep.subr.mxu0 %v5923
        %6101 = vmatpush1.msra.mxu0 %v5922
        %6102 = vmatprep.subr.mxu0 %v5931
        %6103 = vmatpush1.msra.mxu0 %v5930
        %6104 = vmatprep.subr.mxu0 %v5939
        %6105 = vmatpush1.msra.mxu0 %v5938
        %6106 = vmatprep.subr.mxu0 %v5947
        %6107 = vmatpush1.msra.mxu0 %v5946
        %6108 = vmatprep.subr.mxu0 0.0
        %6109 = vmatpush1.msra.mxu0 0.0
        %6110 = vmatprep.subr.mxu0 0.0
        %6111 = vmatpush1.msra.mxu0 0.0
        %6112 = vmatprep.subr.mxu0 0.0
        %6113 = vmatpush1.msra.mxu0 0.0
        %6114 = vmatprep.subr.mxu0 0.0
        %6115 = vmatpush1.msra.mxu0 0.0
        %6116 = vmatprep.subr.mxu0 0.0
        %6117 = vmatpush1.msra.mxu0 0.0
        %6118 = vmatprep.subr.mxu0 0.0
        %6119 = vmatpush1.msra.mxu0 0.0
        %6120 = vmatprep.subr.mxu0 0.0
        %6121 = vmatpush1.msra.mxu0 0.0
        %6122 = vmatprep.subr.mxu0 0.0
        %6123 = vmatpush1.msra.mxu0 0.0
        %6124 = vmatprep.subr.mxu0 0.0
        %6125 = vmatpush1.msra.mxu0 0.0
        %6126 = vmatprep.subr.mxu0 0.0
        %6127 = vmatpush1.msra.mxu0 0.0
        %6128 = vmatprep.subr.mxu0 0.0
        %6129 = vmatpush1.msra.mxu0 0.0
        %6130 = vmatprep.subr.mxu0 0.0
        %6131 = vmatpush1.msra.mxu0 0.0
        %6132 = vmatprep.subr.mxu0 0.0
        %6133 = vmatpush1.msra.mxu0 0.0
        %6134 = vmatprep.subr.mxu0 0.0
        %6135 = vmatpush1.msra.mxu0 0.0
        %6136 = vmatprep.subr.mxu0 0.0
        %6137 = vmatpush1.msra.mxu0 0.0
        %6138 = vmatprep.subr.mxu0 0.0
        %6139 = vmatpush1.msra.mxu0 0.0
        %6140 = vmatprep.subr.mxu0 0.0
        %6141 = vmatpush1.msra.mxu0 0.0
        %6142 = vmatprep.subr.mxu0 0.0
        %6143 = vmatpush1.msra.mxu0 0.0
        %6144 = vmatprep.subr.mxu0 0.0
        %6145 = vmatpush1.msra.mxu0 0.0
        %6146 = vmatprep.subr.mxu0 0.0
        %6147 = vmatpush1.msra.mxu0 0.0
        %6148 = vmatprep.subr.mxu0 0.0
        %6149 = vmatpush1.msra.mxu0 0.0
        %6150 = vmatprep.subr.mxu0 0.0
        %6151 = vmatpush1.msra.mxu0 0.0
        %6152 = vmatprep.subr.mxu0 0.0
        %6153 = vmatpush1.msra.mxu0 0.0
        %6154 = vmatprep.subr.mxu0 0.0
        %6155 = vmatpush1.msra.mxu0 0.0
        %6156 = vmatprep.subr.mxu0 0.0
        %6157 = vmatpush1.msra.mxu0 0.0
        %6158 = vmatprep.subr.mxu0 0.0
        %6159 = vmatpush1.msra.mxu0 0.0
        %6160 = vmatprep.mubr.f32.mxu0 0.0
        %6161 = vmatmul.mubr.f32.gmra.mrb[0].mxu0 %v5952
        %v6162 = vpop.f32.mrb[0].mxu0
        %v6163 = vadd.f32 0.0, %v6162
        %v6164 = vpop.f32.mrb[0].mxu0
        %v6165 = vadd.f32 0.0, %v6164
        %6166 = vdwg.mxu0
        %6167 = vmatprep.subr.mxu0 %v5909
        %6168 = vmatpush1.msra.mxu0 %v5908
        %6169 = vmatprep.subr.mxu0 %v5917
        %6170 = vmatpush1.msra.mxu0 %v5916
        %6171 = vmatprep.subr.mxu0 %v5925
        %6172 = vmatpush1.msra.mxu0 %v5924
        %6173 = vmatprep.subr.mxu0 %v5933
        %6174 = vmatpush1.msra.mxu0 %v5932
        %6175 = vmatprep.subr.mxu0 %v5941
        %6176 = vmatpush1.msra.mxu0 %v5940
        %6177 = vmatprep.subr.mxu0 %v5949
        %6178 = vmatpush1.msra.mxu0 %v5948
        %6179 = vmatprep.subr.mxu0 0.0
        %6180 = vmatpush1.msra.mxu0 0.0
        %6181 = vmatprep.subr.mxu0 0.0
        %6182 = vmatpush1.msra.mxu0 0.0
        %6183 = vmatprep.subr.mxu0 0.0
        %6184 = vmatpush1.msra.mxu0 0.0
        %6185 = vmatprep.subr.mxu0 0.0
        %6186 = vmatpush1.msra.mxu0 0.0
        %6187 = vmatprep.subr.mxu0 0.0
        %6188 = vmatpush1.msra.mxu0 0.0
        %6189 = vmatprep.subr.mxu0 0.0
        %6190 = vmatpush1.msra.mxu0 0.0
        %6191 = vmatprep.subr.mxu0 0.0
        %6192 = vmatpush1.msra.mxu0 0.0
        %6193 = vmatprep.subr.mxu0 0.0
        %6194 = vmatpush1.msra.mxu0 0.0
        %6195 = vmatprep.subr.mxu0 0.0
        %6196 = vmatpush1.msra.mxu0 0.0
        %6197 = vmatprep.subr.mxu0 0.0
        %6198 = vmatpush1.msra.mxu0 0.0
        %6199 = vmatprep.subr.mxu0 0.0
        %6200 = vmatpush1.msra.mxu0 0.0
        %6201 = vmatprep.subr.mxu0 0.0
        %6202 = vmatpush1.msra.mxu0 0.0
        %6203 = vmatprep.subr.mxu0 0.0
        %6204 = vmatpush1.msra.mxu0 0.0
        %6205 = vmatprep.subr.mxu0 0.0
        %6206 = vmatpush1.msra.mxu0 0.0
        %6207 = vmatprep.subr.mxu0 0.0
        %6208 = vmatpush1.msra.mxu0 0.0
        %6209 = vmatprep.subr.mxu0 0.0
        %6210 = vmatpush1.msra.mxu0 0.0
        %6211 = vmatprep.subr.mxu0 0.0
        %6212 = vmatpush1.msra.mxu0 0.0
        %6213 = vmatprep.subr.mxu0 0.0
        %6214 = vmatpush1.msra.mxu0 0.0
        %6215 = vmatprep.subr.mxu0 0.0
        %6216 = vmatpush1.msra.mxu0 0.0
        %6217 = vmatprep.subr.mxu0 0.0
        %6218 = vmatpush1.msra.mxu0 0.0
        %6219 = vmatprep.subr.mxu0 0.0
        %6220 = vmatpush1.msra.mxu0 0.0
        %6221 = vmatprep.subr.mxu0 0.0
        %6222 = vmatpush1.msra.mxu0 0.0
        %6223 = vmatprep.subr.mxu0 0.0
        %6224 = vmatpush1.msra.mxu0 0.0
        %6225 = vmatprep.subr.mxu0 0.0
        %6226 = vmatpush1.msra.mxu0 0.0
        %6227 = vmatprep.subr.mxu0 0.0
        %6228 = vmatpush1.msra.mxu0 0.0
        %6229 = vmatprep.subr.mxu0 0.0
        %6230 = vmatpush1.msra.mxu0 0.0
        %6231 = vmatprep.mubr.f32.mxu0 0.0
        %6232 = vmatmul.mubr.f32.gmra.mrb[0].mxu0 %v5952
        %v6233 = vpop.f32.mrb[0].mxu0
        %v6234 = vadd.f32 0.0, %v6233
        %v6235 = vpop.f32.mrb[0].mxu0
        %v6236 = vadd.f32 0.0, %v6235
        %6237 = vdwg.mxu0
        %v6246 = vcombine.low %v6021, %v6023
        %v6247 = vcombine.low %v6092, %v6094
        %v6248 = vcombine.low %v6163, %v6165
        %v6249 = vcombine.low %v6234, %v6236
        %v6251 = vunpack.c.l.s4 1966171168
        %v6252 = vunpack.c.0.s8 %v6251
        %v6253 = vlaneseq
        %v6254 = vshrl.u32 %v6253, 7
        %v6255 = vsub.s32 %v6252, %v6254
        %v6256 = vrot.slane %v6246, %v6255
        %v6258 = vunpack.c.l.s4 1966171168
        %v6259 = vunpack.c.0.s8 %v6258
        %v6260 = vlaneseq
        %v6261 = vshrl.u32 %v6260, 7
        %v6262 = vsub.s32 %v6259, %v6261
        %v6263 = vrot.slane %v6247, %v6262
        %v6265 = vunpack.c.l.s4 1966171168
        %v6266 = vunpack.c.0.s8 %v6265
        %v6267 = vlaneseq
        %v6268 = vshrl.u32 %v6267, 7
        %v6269 = vsub.s32 %v6266, %v6268
        %v6270 = vrot.slane %v6248, %v6269
        %v6272 = vunpack.c.l.s4 1966171168
        %v6273 = vunpack.c.0.s8 %v6272
        %v6274 = vlaneseq
        %v6275 = vshrl.u32 %v6274, 7
        %v6276 = vsub.s32 %v6273, %v6275
        %v6277 = vrot.slane %v6249, %v6276
        %v6278 = vcombine.low %v6256, %v6263
        %v6279 = vcombine.low %v6270, %v6277
        %v6281 = vunpack.c.l.s4 1966171168
        %v6282 = vunpack.c.0.s8 %v6281
        %v6283 = vlaneseq
        %v6284 = vshrl.u32 %v6283, 7
        %v6285 = vsub.s32 %v6282, %v6284
        %v6286 = vrot.slane %v6278, %v6285
        %v6288 = vunpack.c.l.s4 1966171168
        %v6289 = vunpack.c.0.s8 %v6288
        %v6290 = vlaneseq
        %v6291 = vshrl.u32 %v6290, 7
        %v6292 = vsub.s32 %v6289, %v6291
        %v6293 = vrot.slane %v6279, %v6292
        %v6294 = vcombine.low %v6286, %v6293
        %6296 = vst [vmem:[%s620] sm:$0xff] %v6294
        %s6297 = sand.u32 %s467, 1
        %s6298 = scalar_lea.sflag [#allocation3], %s6297
        %s6299 = sand.u32 %s467, 1
        %s6300 = smul.addr %s6299, 8
        %s6301 = scalar_lea.vmem [#allocation2], %s6300
        // Predicated region
        $region101: #{gpt_forward.1} parent=99 // pred_check
          %p6302 = pneg %p477
        $region102: #{gpt_forward.1} parent=99 // pred_check_branch
          %6304 = sbr.rel (%p6302) target = $region104
        $region103: #{gpt_forward.1} parent=99 // pred_region
          %s6306 = ssub.s32 128, 128
          %6307 = vsyncadd %s6298, %s6306
          %s6308 = smul.addr %s34, 8
          %s6309 = smul.addr %s6308, 16
          %s6310 = scalar_lea.hbm %s20, %s6309
          %s6312 = sshll.u32 %s6301, 4
          %s6313 = int_to_ptr.vmem [resolvable:$true] %s6312
          %6315 = dma.vmem_to_hbm [thread:$0]  %s6313, 128, %s6310, %s6298
        $region104: #{gpt_forward.1} parent=99 // pred_fallthru
          _
      $region100: #{gpt_forward.1} parent=5 // pred_fallthru
        _
      %p6316 = scmp.le.s32.totalorder 2, %s29
      // Predicated region
      $region105: #{gpt_forward.1} parent=5 // pred_check
        %p6317 = pneg %p6316
      $region106: #{gpt_forward.1} parent=5 // pred_check_branch
        %6319 = sbr.rel (%p6317) target = $region108
      $region107: #{gpt_forward.1} parent=5 // pred_region
        %s6320 = ssub.s32 %s29, 2
        // Predicated region
        $region109: #{gpt_forward.1} parent=107 // pred_check
          %p6321 = pneg %p483
        $region110: #{gpt_forward.1} parent=107 // pred_check_branch
          %6323 = sbr.rel (%p6321) target = $region112
        $region111: #{gpt_forward.1} parent=107 // pred_region
          %s6324 = sand.u32 %s468, 1
          %s6325 = scalar_lea.sflag [#allocation3], %s6324
          %s6326 = sand.u32 %s468, 1
          %s6327 = smul.addr %s6326, 8
          %s6328 = scalar_lea.vmem [#allocation2], %s6327
          %6329 = dma.done %s6325, 128
        $region112: #{gpt_forward.1} parent=107 // pred_fallthru
          _
      $region108: #{gpt_forward.1} parent=5 // pred_fallthru
        _
    $region6: #{gpt_forward.1} parent=1 // loop_footer
      %s33 = sadd.s32 1, %s29
    $region7: #{gpt_forward.1} parent=1 // loop_footer_branch
      %28 = sbr.rel target = $region3
    $region8: #{gpt_forward.1} parent=1 // loop_exit
      _
    %6330 = vsyncpa [#allocation3], 1
    %s6331 = scalar_lea.sflag [#allocation3], 1
    %6332 = vsyncpa %s6331, 1

</llo_original>
